<compile_context>
chip_gen: v7x
topology: tpu7x:2x2x1
jax: 0.10.0
libtpu: 0.0.40
codegen_flags: <defaults>
</compile_context>

<pallas_src>
import functools

import jax
import jax.numpy as jnp
import numpy as np
from jax import lax
from jax.experimental import pallas as pl
from jax.experimental.pallas import tpu as pltpu


# ----------------------------------------------------------------------------- kernels
def conv_pool_kernel(z_ref, w_ref, b_ref, o_ref, zext_ref, *, wh, cout):
    """Fused 3x3 'same' conv + bias + ReLU + 2x2 max-pool on a space-to-depth tile.

    z_ref:    (M, 4*Cin)         space-to-depth activations, M = BT * Hh * Wh rows
    w_ref:    (4, 4*Cin, 4*Cout) one matrix per row shift s in {0, 1, Wh, Wh+1}
    b_ref:    (1, Cout)          f32 bias
    o_ref:    (M, Cout)          pooled output; rows with u==Hh-1 or v==Wh-1 are junk
    zext_ref: (M + pad, 4*Cin)   VMEM scratch: z followed by `pad` zero rows
    """
    m = z_ref.shape[0]
    pad = zext_ref.shape[0] - m
    zext_ref[0:m, :] = z_ref[...]
    zext_ref[m:m + pad, :] = jnp.zeros((pad, z_ref.shape[1]), zext_ref.dtype)

    acc = None
    for s, off in enumerate((0, 1, wh, wh + 1)):          # shifts (sy, sx) in {0,1}^2
        part = jnp.dot(zext_ref[off:off + m, :], w_ref[s],
                       preferred_element_type=jnp.float32)
        acc = part if acc is None else acc + part

    # acc: (M, 4*Cout); the 4 lane groups are the 4 positions of each 2x2 pool window.
    pooled = jnp.maximum(jnp.maximum(acc[:, 0:cout], acc[:, cout:2 * cout]),
                         jnp.maximum(acc[:, 2 * cout:3 * cout], acc[:, 3 * cout:4 * cout]))
    pooled = jnp.maximum(pooled + b_ref[...], 0.0)        # bias + ReLU (commute with max)
    o_ref[...] = pooled.astype(o_ref.dtype)


def fc_kernel(x_ref, w_ref, b_ref, o_ref):
    """(tile, 2048) @ (2048, 10) + bias, f32 accumulation."""
    y = jnp.dot(x_ref[...], w_ref[...], preferred_element_type=jnp.float32) + b_ref[...]
    o_ref[...] = y.astype(o_ref.dtype)


# ----------------------------------------------------------------------------- pallas_call wrappers
def conv_pool(z, w_shift, bias, *, bt, rows, wh, cout):
    m_tot, kdim = z.shape
    m = bt * rows
    grid = (m_tot // m,)
    pad = ((wh + 1 + 7) // 8) * 8                          # room for the largest row shift
    kernel = functools.partial(conv_pool_kernel, wh=wh, cout=cout)
    return pl.pallas_call(
        kernel,
        out_shape=jax.ShapeDtypeStruct((m_tot, cout), z.dtype),
        grid_spec=pltpu.PrefetchScalarGridSpec(
            num_scalar_prefetch=0,
            grid=grid,
            in_specs=[
                pl.BlockSpec((m, kdim), lambda i: (i, 0)),
                pl.BlockSpec(w_shift.shape, lambda i: (0, 0, 0)),
                pl.BlockSpec(bias.shape, lambda i: (0, 0)),
            ],
            out_specs=pl.BlockSpec((m, cout), lambda i: (i, 0)),
            scratch_shapes=[pltpu.VMEM((m + pad, kdim), z.dtype)],
        ),
        compiler_params=pltpu.CompilerParams(dimension_semantics=("parallel",)),
    )(z, w_shift, bias)


def fc(x, w, bias, *, tile=8):
    bp, d = x.shape
    n = w.shape[1]
    return pl.pallas_call(
        fc_kernel,
        out_shape=jax.ShapeDtypeStruct((bp, n), jnp.float32),
        grid_spec=pltpu.PrefetchScalarGridSpec(
            num_scalar_prefetch=0,
            grid=(bp // tile,),
            in_specs=[
                pl.BlockSpec((tile, d), lambda i: (i, 0)),
                pl.BlockSpec((d, n), lambda i: (0, 0)),
                pl.BlockSpec((1, n), lambda i: (0, 0)),
            ],
            out_specs=pl.BlockSpec((tile, n), lambda i: (i, 0)),
        ),
        compiler_params=pltpu.CompilerParams(dimension_semantics=("parallel",)),
    )(x, w, bias)


# ----------------------------------------------------------------------------- glue (plain JAX)
def space_to_depth_rows(x_nhwc):
    """(B, H, W, C) with H, W even -> (B*(H//2)*(W//2), 4*C); lane index = (py*2+px)*C + c."""
    b, h, w, c = x_nhwc.shape
    t = x_nhwc.reshape(b, h // 2, 2, w // 2, 2, c)
    t = jnp.transpose(t, (0, 1, 3, 2, 4, 5))
    return t.reshape(b * (h // 2) * (w // 2), 4 * c)


def build_shift_weights(w_oihw):
    """PyTorch (Cout, Cin, 3, 3) conv weight -> (4, 4*Cin, 4*Cout).

    For row shift s=(sy,sx), the matrix maps space-to-depth lanes (input phase p=(py,px), ci)
    to (pool phase q=(qy,qx), co) using kernel tap (dy, dx) = (2*sy+py-qy, 2*sx+px-qx); taps
    outside [0,3) get a zero block."""
    cout, cin = w_oihw.shape[0], w_oihw.shape[1]
    wk = jnp.transpose(w_oihw, (2, 3, 1, 0))               # (dy, dx, ci, co)
    zeros = jnp.zeros((cin, cout), w_oihw.dtype)
    mats = []
    for sy in range(2):
        for sx in range(2):
            rows = []
            for py in range(2):
                for px in range(2):
                    cols = []
                    for qy in range(2):
                        for qx in range(2):
                            dy = 2 * sy + py - qy
                            dx = 2 * sx + px - qx
                            cols.append(wk[dy, dx] if (0 <= dy <= 2 and 0 <= dx <= 2)
                                        else zeros)
                    rows.append(jnp.concatenate(cols, axis=1))   # (Cin, 4*Cout)
            mats.append(jnp.concatenate(rows, axis=0))           # (4*Cin, 4*Cout)
    return jnp.stack(mats, axis=0)                               # (4, 4*Cin, 4*Cout)


def build_fc_weight(wfc):
    """PyTorch (10, 32*7*7) Linear weight (CHW flatten) -> (2048, 10) acting directly on the
    conv2 kernel's raw per-sample (8*8, 32) output (HWC order; junk rows u==7 / v==7 -> 0)."""
    w = wfc.T.reshape(32, 7, 7, 10)                        # (c, m, n, o)
    w = jnp.transpose(w, (1, 2, 0, 3))                     # (m, n, c, o)
    w = jnp.pad(w, ((0, 1), (0, 1), (0, 0), (0, 0)))       # (8, 8, 32, 10)
    return w.reshape(8 * 8 * 32, 10)


@functools.partial(jax.jit, static_argnames=("bt", "compute_dtype"))
def cnn2_forward(x_nchw, w1, b1, w2, b2, wfc, bfc, *, bt=4, compute_dtype=jnp.bfloat16):
    """Pallas forward of CNN2.  Params in PyTorch layouts: w1 (16,1,3,3), b1 (16,),
    w2 (32,16,3,3), b2 (32,), wfc (10,1568), bfc (10,)."""
    b = x_nchw.shape[0]
    mult = int(np.lcm(8, bt))                              # conv tile bt, FC tile 8
    bp = ((b + mult - 1) // mult) * mult
    x = x_nchw.reshape(b, 28, 28)
    if bp != b:
        x = jnp.pad(x, ((0, bp - b), (0, 0), (0, 0)))

    # ---- conv1 + ReLU + pool1: 28x28x1 -> (16x16 grid, valid 14x14) x 16
    xp = jnp.pad(x, ((0, 0), (1, 3), (1, 3)))[..., None]           # (Bp, 32, 32, 1)
    z1 = space_to_depth_rows(xp).astype(compute_dtype)             # (Bp*256, 4)
    w1s = build_shift_weights(w1).astype(compute_dtype)            # (4, 4, 64)
    p1 = conv_pool(z1, w1s, b1.reshape(1, 16).astype(jnp.float32),
                   bt=bt, rows=256, wh=16, cout=16)                # (Bp*256, 16)

    # ---- conv2 + ReLU + pool2: 14x14x16 -> (8x8 grid, valid 7x7) x 32
    h1 = p1.reshape(bp, 16, 16, 16)[:, :14, :14, :]                # drop junk rows/cols
    h1p = jnp.pad(h1, ((0, 0), (1, 1), (1, 1), (0, 0)))            # (Bp, 16, 16, 16)
    z2 = space_to_depth_rows(h1p).astype(compute_dtype)            # (Bp*64, 64)
    w2s = build_shift_weights(w2).astype(compute_dtype)            # (4, 64, 128)
    p2 = conv_pool(z2, w2s, b2.reshape(1, 32).astype(jnp.float32),
                   bt=bt, rows=64, wh=8, cout=32)                  # (Bp*64, 32)

    # ---- FC: conv2 output is consumed via a free HBM reshape; junk rows hit zero weights
    feats = p2.reshape(bp, 64 * 32)                                # (Bp, 2048)
    wfc_big = build_fc_weight(wfc).astype(compute_dtype)           # (2048, 10)
    out = fc(feats, wfc_big, bfc.reshape(1, 10).astype(jnp.float32))
    return out[:b]


# ----------------------------------------------------------------------------- pure-JAX reference
def ref_forward(x, w1, b1, w2, b2, wfc, bfc):
    dn = ("NCHW", "OIHW", "NCHW")
    y = lax.conv_general_dilated(x, w1, (1, 1), "SAME", dimension_numbers=dn,
                                 precision=lax.Precision.HIGHEST)
    y = jnp.maximum(y + b1[None, :, None, None], 0.0)
    y = lax.reduce_window(y, -jnp.inf, lax.max, (1, 1, 2, 2), (1, 1, 2, 2), "VALID")
    y = lax.conv_general_dilated(y, w2, (1, 1), "SAME", dimension_numbers=dn,
                                 precision=lax.Precision.HIGHEST)
    y = jnp.maximum(y + b2[None, :, None, None], 0.0)
    y = lax.reduce_window(y, -jnp.inf, lax.max, (1, 1, 2, 2), (1, 1, 2, 2), "VALID")
    y = y.reshape(x.shape[0], -1)                          # PyTorch x.view(B, -1): CHW flatten
    return y @ wfc.T + bfc[None, :]


# ----------------------------------------------------------------------------- main
if __name__ == "__main__":
    key = jax.random.PRNGKey(0)
    ks = jax.random.split(key, 7)
    B = 8  # small, but enough to exercise the batch-tiled grid (2 parallel steps at bt=4)
    x = jax.random.normal(ks[0], (B, 1, 28, 28), dtype=jnp.float32)
    w1 = 0.2 * jax.random.normal(ks[1], (16, 1, 3, 3), dtype=jnp.float32)
    b1 = 0.1 * jax.random.normal(ks[2], (16,), dtype=jnp.float32)
    w2 = 0.1 * jax.random.normal(ks[3], (32, 16, 3, 3), dtype=jnp.float32)
    b2 = 0.1 * jax.random.normal(ks[4], (32,), dtype=jnp.float32)
    wfc = 0.05 * jax.random.normal(ks[5], (10, 32 * 7 * 7), dtype=jnp.float32)
    bfc = 0.1 * jax.random.normal(ks[6], (10,), dtype=jnp.float32)

    ref = np.asarray(ref_forward(x, w1, b1, w2, b2, wfc, bfc))

    # f32 operand path: tight check of the kernel algebra (same tolerance as the original).
    out_f32 = jax.block_until_ready(
        cnn2_forward(x, w1, b1, w2, b2, wfc, bfc, compute_dtype=jnp.float32))
    assert out_f32.shape == (B, 10) and out_f32.dtype == jnp.float32
    if not np.allclose(np.asarray(out_f32), ref, atol=1e-2, rtol=1e-2):
        raise AssertionError(
            "f32 path mismatch vs reference: max abs diff "
            f"{np.max(np.abs(np.asarray(out_f32) - ref))}")

    # bf16 operand path (default / performance config): bf16 rounding across three layers
    # gives ~0.5% of the output scale (outputs are O(1.5)), hence the wider tolerance.
    out_bf16 = jax.block_until_ready(cnn2_forward(x, w1, b1, w2, b2, wfc, bfc))
    assert out_bf16.shape == (B, 10) and out_bf16.dtype == jnp.float32
    if not np.allclose(np.asarray(out_bf16), ref, atol=5e-2, rtol=2e-2):
        raise AssertionError(
            "bf16 path mismatch vs reference: max abs diff "
            f"{np.max(np.abs(np.asarray(out_bf16) - ref))}")

    print("KERNEL_OK")
</pallas_src>

<mosaic_0001>
module attributes {stable_mosaic.version = 11 : i64} {
  func.func @conv_pool_kernel(%arg0: i32, %arg1: memref<1024x4xf32, #tpu.memory_space<vmem>>, %arg2: memref<4x4x64xf32, #tpu.memory_space<vmem>>, %arg3: memref<1x16xf32, #tpu.memory_space<vmem>>, %arg4: memref<1024x16xf32, #tpu.memory_space<vmem>>, %arg5: memref<1048x4xf32, #tpu.memory_space<vmem>>) attributes {dimension_semantics = [#tpu.dimension_semantics<parallel>], iteration_bounds = array<i64: 2>, scalar_prefetch = 0 : i64, scratch_operands = 1 : i64, tpu.core_type = #tpu.core_type<tc>, window_params = [{transform_indices = @transform_0, window_bounds = array<i64: 1024, 4>}, {pipeline_mode = #tpu.pipeline_mode<synchronous>, transform_indices = @transform_1, window_bounds = array<i64: 4, 4, 64>}, {pipeline_mode = #tpu.pipeline_mode<synchronous>, transform_indices = @transform_2, window_bounds = array<i64: 1, 16>}, {transform_indices = @transform_3, window_bounds = array<i64: 1024, 16>}]} {
    %c0 = arith.constant 0 : index
    %c0_0 = arith.constant 0 : index
    %0 = vector.load %arg1[%c0, %c0_0] : memref<1024x4xf32, #tpu.memory_space<vmem>>, vector<1024x4xf32>
    %c0_1 = arith.constant 0 : index
    %c0_2 = arith.constant 0 : index
    %1 = vector.load %arg5[%c0_1, %c0_2] : memref<1048x4xf32, #tpu.memory_space<vmem>>, vector<1024x4xf32>
    tpu.vector_store %arg5[%c0_1, %c0_2], %0 {strides = array<i32>} : memref<1048x4xf32, #tpu.memory_space<vmem>>, vector<1024x4xf32>,
    %cst = arith.constant 0.000000e+00 : f32
    %2 = vector.broadcast %cst : f32 to vector<24x4xf32>
    %c1024 = arith.constant 1024 : index
    %c0_3 = arith.constant 0 : index
    %3 = vector.load %arg5[%c1024, %c0_3] : memref<1048x4xf32, #tpu.memory_space<vmem>>, vector<24x4xf32>
    tpu.vector_store %arg5[%c1024, %c0_3], %2 {strides = array<i32>} : memref<1048x4xf32, #tpu.memory_space<vmem>>, vector<24x4xf32>,
    %c0_4 = arith.constant 0 : index
    %c0_5 = arith.constant 0 : index
    %4 = vector.load %arg5[%c0_4, %c0_5] : memref<1048x4xf32, #tpu.memory_space<vmem>>, vector<1024x4xf32>
    %c0_6 = arith.constant 0 : index
    %c0_7 = arith.constant 0 : index
    %c0_8 = arith.constant 0 : index
    %5 = vector.load %arg2[%c0_6, %c0_7, %c0_8] : memref<4x4x64xf32, #tpu.memory_space<vmem>>, vector<1x4x64xf32>
    %6 = vector.shape_cast %5 : vector<1x4x64xf32> to vector<4x64xf32>
    %cst_9 = arith.constant dense<0.000000e+00> : vector<1024x64xf32>
    %7 = tpu.matmul %4, %6, %cst_9 {dimension_numbers = #tpu.dot_dimension_numbers<[1], [0], [0], [1], [0, 0, 1, 1], [], []>} : vector<1024x4xf32>, vector<4x64xf32>, vector<1024x64xf32> -> vector<1024x64xf32>
    %c1 = arith.constant 1 : index
    %c0_10 = arith.constant 0 : index
    %8 = vector.load %arg5[%c1, %c0_10] : memref<1048x4xf32, #tpu.memory_space<vmem>>, vector<1024x4xf32>
    %c1_11 = arith.constant 1 : index
    %c0_12 = arith.constant 0 : index
    %c0_13 = arith.constant 0 : index
    %9 = vector.load %arg2[%c1_11, %c0_12, %c0_13] : memref<4x4x64xf32, #tpu.memory_space<vmem>>, vector<1x4x64xf32>
    %10 = vector.shape_cast %9 : vector<1x4x64xf32> to vector<4x64xf32>
    %cst_14 = arith.constant dense<0.000000e+00> : vector<1024x64xf32>
    %11 = tpu.matmul %8, %10, %cst_14 {dimension_numbers = #tpu.dot_dimension_numbers<[1], [0], [0], [1], [0, 0, 1, 1], [], []>} : vector<1024x4xf32>, vector<4x64xf32>, vector<1024x64xf32> -> vector<1024x64xf32>
    %12 = arith.addf %7, %11 : vector<1024x64xf32>
    %c16 = arith.constant 16 : index
    %c0_15 = arith.constant 0 : index
    %13 = vector.load %arg5[%c16, %c0_15] : memref<1048x4xf32, #tpu.memory_space<vmem>>, vector<1024x4xf32>
    %c2 = arith.constant 2 : index
    %c0_16 = arith.constant 0 : index
    %c0_17 = arith.constant 0 : index
    %14 = vector.load %arg2[%c2, %c0_16, %c0_17] : memref<4x4x64xf32, #tpu.memory_space<vmem>>, vector<1x4x64xf32>
    %15 = vector.shape_cast %14 : vector<1x4x64xf32> to vector<4x64xf32>
    %cst_18 = arith.constant dense<0.000000e+00> : vector<1024x64xf32>
    %16 = tpu.matmul %13, %15, %cst_18 {dimension_numbers = #tpu.dot_dimension_numbers<[1], [0], [0], [1], [0, 0, 1, 1], [], []>} : vector<1024x4xf32>, vector<4x64xf32>, vector<1024x64xf32> -> vector<1024x64xf32>
    %17 = arith.addf %12, %16 : vector<1024x64xf32>
    %c17 = arith.constant 17 : index
    %c0_19 = arith.constant 0 : index
    %18 = vector.load %arg5[%c17, %c0_19] : memref<1048x4xf32, #tpu.memory_space<vmem>>, vector<1024x4xf32>
    %c3 = arith.constant 3 : index
    %c0_20 = arith.constant 0 : index
    %c0_21 = arith.constant 0 : index
    %19 = vector.load %arg2[%c3, %c0_20, %c0_21] : memref<4x4x64xf32, #tpu.memory_space<vmem>>, vector<1x4x64xf32>
    %20 = vector.shape_cast %19 : vector<1x4x64xf32> to vector<4x64xf32>
    %cst_22 = arith.constant dense<0.000000e+00> : vector<1024x64xf32>
    %21 = tpu.matmul %18, %20, %cst_22 {dimension_numbers = #tpu.dot_dimension_numbers<[1], [0], [0], [1], [0, 0, 1, 1], [], []>} : vector<1024x4xf32>, vector<4x64xf32>, vector<1024x64xf32> -> vector<1024x64xf32>
    %22 = arith.addf %17, %21 : vector<1024x64xf32>
    %23 = vector.extract_strided_slice %22 {offsets = [0, 0], sizes = [1024, 16], strides = [1, 1]} : vector<1024x64xf32> to vector<1024x16xf32>
    %24 = vector.extract_strided_slice %22 {offsets = [0, 16], sizes = [1024, 16], strides = [1, 1]} : vector<1024x64xf32> to vector<1024x16xf32>
    %25 = arith.maximumf %23, %24 : vector<1024x16xf32>
    %26 = vector.extract_strided_slice %22 {offsets = [0, 32], sizes = [1024, 16], strides = [1, 1]} : vector<1024x64xf32> to vector<1024x16xf32>
    %27 = vector.extract_strided_slice %22 {offsets = [0, 48], sizes = [1024, 16], strides = [1, 1]} : vector<1024x64xf32> to vector<1024x16xf32>
    %28 = arith.maximumf %26, %27 : vector<1024x16xf32>
    %29 = arith.maximumf %25, %28 : vector<1024x16xf32>
    %c0_23 = arith.constant 0 : index
    %c0_24 = arith.constant 0 : index
    %30 = vector.load %arg3[%c0_23, %c0_24] : memref<1x16xf32, #tpu.memory_space<vmem>>, vector<1x16xf32>
    %31 = vector.broadcast %30 : vector<1x16xf32> to vector<1024x16xf32>
    %32 = arith.addf %29, %31 : vector<1024x16xf32>
    %cst_25 = arith.constant 0.000000e+00 : f32
    %33 = vector.broadcast %cst_25 : f32 to vector<1024x16xf32>
    %34 = arith.maximumf %32, %33 : vector<1024x16xf32>
    %c0_26 = arith.constant 0 : index
    %c0_27 = arith.constant 0 : index
    %35 = vector.load %arg4[%c0_26, %c0_27] : memref<1024x16xf32, #tpu.memory_space<vmem>>, vector<1024x16xf32>
    tpu.vector_store %arg4[%c0_26, %c0_27], %34 {strides = array<i32>} : memref<1024x16xf32, #tpu.memory_space<vmem>>, vector<1024x16xf32>,
    return
  }
  func.func @transform_0(%arg0: i32) -> (i32, i32) {
    %c0_i32 = arith.constant 0 : i32
    %c0_i32_0 = arith.constant 0 : i32
    return %arg0, %c0_i32 : i32, i32
  }
  func.func @transform_1(%arg0: i32) -> (i32, i32, i32) {
    %c0_i32 = arith.constant 0 : i32
    %c0_i32_0 = arith.constant 0 : i32
    %c0_i32_1 = arith.constant 0 : i32
    %c0_i32_2 = arith.constant 0 : i32
    return %c0_i32, %c0_i32_0, %c0_i32_1 : i32, i32, i32
  }
  func.func @transform_2(%arg0: i32) -> (i32, i32) {
    %c0_i32 = arith.constant 0 : i32
    %c0_i32_0 = arith.constant 0 : i32
    %c0_i32_1 = arith.constant 0 : i32
    return %c0_i32, %c0_i32_0 : i32, i32
  }
  func.func @transform_3(%arg0: i32) -> (i32, i32) {
    %c0_i32 = arith.constant 0 : i32
    %c0_i32_0 = arith.constant 0 : i32
    return %arg0, %c0_i32 : i32, i32
  }
}

module attributes {stable_mosaic.version = 11 : i64} {
  func.func @conv_pool_kernel(%arg0: i32, %arg1: memref<256x64xf32, #tpu.memory_space<vmem>>, %arg2: memref<4x64x128xf32, #tpu.memory_space<vmem>>, %arg3: memref<1x32xf32, #tpu.memory_space<vmem>>, %arg4: memref<256x32xf32, #tpu.memory_space<vmem>>, %arg5: memref<272x64xf32, #tpu.memory_space<vmem>>) attributes {dimension_semantics = [#tpu.dimension_semantics<parallel>], iteration_bounds = array<i64: 2>, scalar_prefetch = 0 : i64, scratch_operands = 1 : i64, tpu.core_type = #tpu.core_type<tc>, window_params = [{transform_indices = @transform_0, window_bounds = array<i64: 256, 64>}, {pipeline_mode = #tpu.pipeline_mode<synchronous>, transform_indices = @transform_1, window_bounds = array<i64: 4, 64, 128>}, {pipeline_mode = #tpu.pipeline_mode<synchronous>, transform_indices = @transform_2, window_bounds = array<i64: 1, 32>}, {transform_indices = @transform_3, window_bounds = array<i64: 256, 32>}]} {
    %c0 = arith.constant 0 : index
    %c0_0 = arith.constant 0 : index
    %0 = vector.load %arg1[%c0, %c0_0] : memref<256x64xf32, #tpu.memory_space<vmem>>, vector<256x64xf32>
    %c0_1 = arith.constant 0 : index
    %c0_2 = arith.constant 0 : index
    %1 = vector.load %arg5[%c0_1, %c0_2] : memref<272x64xf32, #tpu.memory_space<vmem>>, vector<256x64xf32>
    tpu.vector_store %arg5[%c0_1, %c0_2], %0 {strides = array<i32>} : memref<272x64xf32, #tpu.memory_space<vmem>>, vector<256x64xf32>,
    %cst = arith.constant 0.000000e+00 : f32
    %2 = vector.broadcast %cst : f32 to vector<16x64xf32>
    %c256 = arith.constant 256 : index
    %c0_3 = arith.constant 0 : index
    %3 = vector.load %arg5[%c256, %c0_3] : memref<272x64xf32, #tpu.memory_space<vmem>>, vector<16x64xf32>
    tpu.vector_store %arg5[%c256, %c0_3], %2 {strides = array<i32>} : memref<272x64xf32, #tpu.memory_space<vmem>>, vector<16x64xf32>,
    %c0_4 = arith.constant 0 : index
    %c0_5 = arith.constant 0 : index
    %4 = vector.load %arg5[%c0_4, %c0_5] : memref<272x64xf32, #tpu.memory_space<vmem>>, vector<256x64xf32>
    %c0_6 = arith.constant 0 : index
    %c0_7 = arith.constant 0 : index
    %c0_8 = arith.constant 0 : index
    %5 = vector.load %arg2[%c0_6, %c0_7, %c0_8] : memref<4x64x128xf32, #tpu.memory_space<vmem>>, vector<1x64x128xf32>
    %6 = vector.shape_cast %5 : vector<1x64x128xf32> to vector<64x128xf32>
    %cst_9 = arith.constant dense<0.000000e+00> : vector<256x128xf32>
    %7 = tpu.matmul %4, %6, %cst_9 {dimension_numbers = #tpu.dot_dimension_numbers<[1], [0], [0], [1], [0, 0, 1, 1], [], []>} : vector<256x64xf32>, vector<64x128xf32>, vector<256x128xf32> -> vector<256x128xf32>
    %c1 = arith.constant 1 : index
    %c0_10 = arith.constant 0 : index
    %8 = vector.load %arg5[%c1, %c0_10] : memref<272x64xf32, #tpu.memory_space<vmem>>, vector<256x64xf32>
    %c1_11 = arith.constant 1 : index
    %c0_12 = arith.constant 0 : index
    %c0_13 = arith.constant 0 : index
    %9 = vector.load %arg2[%c1_11, %c0_12, %c0_13] : memref<4x64x128xf32, #tpu.memory_space<vmem>>, vector<1x64x128xf32>
    %10 = vector.shape_cast %9 : vector<1x64x128xf32> to vector<64x128xf32>
    %cst_14 = arith.constant dense<0.000000e+00> : vector<256x128xf32>
    %11 = tpu.matmul %8, %10, %cst_14 {dimension_numbers = #tpu.dot_dimension_numbers<[1], [0], [0], [1], [0, 0, 1, 1], [], []>} : vector<256x64xf32>, vector<64x128xf32>, vector<256x128xf32> -> vector<256x128xf32>
    %12 = arith.addf %7, %11 : vector<256x128xf32>
    %c8 = arith.constant 8 : index
    %c0_15 = arith.constant 0 : index
    %13 = vector.load %arg5[%c8, %c0_15] : memref<272x64xf32, #tpu.memory_space<vmem>>, vector<256x64xf32>
    %c2 = arith.constant 2 : index
    %c0_16 = arith.constant 0 : index
    %c0_17 = arith.constant 0 : index
    %14 = vector.load %arg2[%c2, %c0_16, %c0_17] : memref<4x64x128xf32, #tpu.memory_space<vmem>>, vector<1x64x128xf32>
    %15 = vector.shape_cast %14 : vector<1x64x128xf32> to vector<64x128xf32>
    %cst_18 = arith.constant dense<0.000000e+00> : vector<256x128xf32>
    %16 = tpu.matmul %13, %15, %cst_18 {dimension_numbers = #tpu.dot_dimension_numbers<[1], [0], [0], [1], [0, 0, 1, 1], [], []>} : vector<256x64xf32>, vector<64x128xf32>, vector<256x128xf32> -> vector<256x128xf32>
    %17 = arith.addf %12, %16 : vector<256x128xf32>
    %c9 = arith.constant 9 : index
    %c0_19 = arith.constant 0 : index
    %18 = vector.load %arg5[%c9, %c0_19] : memref<272x64xf32, #tpu.memory_space<vmem>>, vector<256x64xf32>
    %c3 = arith.constant 3 : index
    %c0_20 = arith.constant 0 : index
    %c0_21 = arith.constant 0 : index
    %19 = vector.load %arg2[%c3, %c0_20, %c0_21] : memref<4x64x128xf32, #tpu.memory_space<vmem>>, vector<1x64x128xf32>
    %20 = vector.shape_cast %19 : vector<1x64x128xf32> to vector<64x128xf32>
    %cst_22 = arith.constant dense<0.000000e+00> : vector<256x128xf32>
    %21 = tpu.matmul %18, %20, %cst_22 {dimension_numbers = #tpu.dot_dimension_numbers<[1], [0], [0], [1], [0, 0, 1, 1], [], []>} : vector<256x64xf32>, vector<64x128xf32>, vector<256x128xf32> -> vector<256x128xf32>
    %22 = arith.addf %17, %21 : vector<256x128xf32>
    %23 = vector.extract_strided_slice %22 {offsets = [0, 0], sizes = [256, 32], strides = [1, 1]} : vector<256x128xf32> to vector<256x32xf32>
    %24 = vector.extract_strided_slice %22 {offsets = [0, 32], sizes = [256, 32], strides = [1, 1]} : vector<256x128xf32> to vector<256x32xf32>
    %25 = arith.maximumf %23, %24 : vector<256x32xf32>
    %26 = vector.extract_strided_slice %22 {offsets = [0, 64], sizes = [256, 32], strides = [1, 1]} : vector<256x128xf32> to vector<256x32xf32>
    %27 = vector.extract_strided_slice %22 {offsets = [0, 96], sizes = [256, 32], strides = [1, 1]} : vector<256x128xf32> to vector<256x32xf32>
    %28 = arith.maximumf %26, %27 : vector<256x32xf32>
    %29 = arith.maximumf %25, %28 : vector<256x32xf32>
    %c0_23 = arith.constant 0 : index
    %c0_24 = arith.constant 0 : index
    %30 = vector.load %arg3[%c0_23, %c0_24] : memref<1x32xf32, #tpu.memory_space<vmem>>, vector<1x32xf32>
    %31 = vector.broadcast %30 : vector<1x32xf32> to vector<256x32xf32>
    %32 = arith.addf %29, %31 : vector<256x32xf32>
    %cst_25 = arith.constant 0.000000e+00 : f32
    %33 = vector.broadcast %cst_25 : f32 to vector<256x32xf32>
    %34 = arith.maximumf %32, %33 : vector<256x32xf32>
    %c0_26 = arith.constant 0 : index
    %c0_27 = arith.constant 0 : index
    %35 = vector.load %arg4[%c0_26, %c0_27] : memref<256x32xf32, #tpu.memory_space<vmem>>, vector<256x32xf32>
    tpu.vector_store %arg4[%c0_26, %c0_27], %34 {strides = array<i32>} : memref<256x32xf32, #tpu.memory_space<vmem>>, vector<256x32xf32>,
    return
  }
  func.func @transform_0(%arg0: i32) -> (i32, i32) {
    %c0_i32 = arith.constant 0 : i32
    %c0_i32_0 = arith.constant 0 : i32
    return %arg0, %c0_i32 : i32, i32
  }
  func.func @transform_1(%arg0: i32) -> (i32, i32, i32) {
    %c0_i32 = arith.constant 0 : i32
    %c0_i32_0 = arith.constant 0 : i32
    %c0_i32_1 = arith.constant 0 : i32
    %c0_i32_2 = arith.constant 0 : i32
    return %c0_i32, %c0_i32_0, %c0_i32_1 : i32, i32, i32
  }
  func.func @transform_2(%arg0: i32) -> (i32, i32) {
    %c0_i32 = arith.constant 0 : i32
    %c0_i32_0 = arith.constant 0 : i32
    %c0_i32_1 = arith.constant 0 : i32
    return %c0_i32, %c0_i32_0 : i32, i32
  }
  func.func @transform_3(%arg0: i32) -> (i32, i32) {
    %c0_i32 = arith.constant 0 : i32
    %c0_i32_0 = arith.constant 0 : i32
    return %arg0, %c0_i32 : i32, i32
  }
}

module attributes {stable_mosaic.version = 11 : i64} {
  func.func @fc_kernel(%arg0: i32, %arg1: memref<8x2048xf32, #tpu.memory_space<vmem>>, %arg2: memref<2048x10xf32, #tpu.memory_space<vmem>>, %arg3: memref<1x10xf32, #tpu.memory_space<vmem>>, %arg4: memref<8x10xf32, #tpu.memory_space<vmem>>) attributes {dimension_semantics = [#tpu.dimension_semantics<parallel>], iteration_bounds = array<i64: 1>, scalar_prefetch = 0 : i64, scratch_operands = 0 : i64, tpu.core_type = #tpu.core_type<tc>, window_params = [{transform_indices = @transform_0, window_bounds = array<i64: 8, 2048>}, {pipeline_mode = #tpu.pipeline_mode<synchronous>, transform_indices = @transform_1, window_bounds = array<i64: 2048, 10>}, {pipeline_mode = #tpu.pipeline_mode<synchronous>, transform_indices = @transform_2, window_bounds = array<i64: 1, 10>}, {transform_indices = @transform_3, window_bounds = array<i64: 8, 10>}]} {
    %c0 = arith.constant 0 : index
    %c0_0 = arith.constant 0 : index
    %0 = vector.load %arg1[%c0, %c0_0] : memref<8x2048xf32, #tpu.memory_space<vmem>>, vector<8x2048xf32>
    %c0_1 = arith.constant 0 : index
    %c0_2 = arith.constant 0 : index
    %1 = vector.load %arg2[%c0_1, %c0_2] : memref<2048x10xf32, #tpu.memory_space<vmem>>, vector<2048x10xf32>
    %cst = arith.constant dense<0.000000e+00> : vector<8x10xf32>
    %2 = tpu.matmul %0, %1, %cst {dimension_numbers = #tpu.dot_dimension_numbers<[1], [0], [0], [1], [0, 0, 1, 1], [], []>} : vector<8x2048xf32>, vector<2048x10xf32>, vector<8x10xf32> -> vector<8x10xf32>
    %c0_3 = arith.constant 0 : index
    %c0_4 = arith.constant 0 : index
    %3 = vector.load %arg3[%c0_3, %c0_4] : memref<1x10xf32, #tpu.memory_space<vmem>>, vector<1x10xf32>
    %4 = vector.broadcast %3 : vector<1x10xf32> to vector<8x10xf32>
    %5 = arith.addf %2, %4 : vector<8x10xf32>
    %c0_5 = arith.constant 0 : index
    %c0_6 = arith.constant 0 : index
    %6 = vector.load %arg4[%c0_5, %c0_6] : memref<8x10xf32, #tpu.memory_space<vmem>>, vector<8x10xf32>
    tpu.vector_store %arg4[%c0_5, %c0_6], %5 {strides = array<i32>} : memref<8x10xf32, #tpu.memory_space<vmem>>, vector<8x10xf32>,
    return
  }
  func.func @transform_0(%arg0: i32) -> (i32, i32) {
    %c0_i32 = arith.constant 0 : i32
    %c0_i32_0 = arith.constant 0 : i32
    return %arg0, %c0_i32 : i32, i32
  }
  func.func @transform_1(%arg0: i32) -> (i32, i32) {
    %c0_i32 = arith.constant 0 : i32
    %c0_i32_0 = arith.constant 0 : i32
    %c0_i32_1 = arith.constant 0 : i32
    return %c0_i32, %c0_i32_0 : i32, i32
  }
  func.func @transform_2(%arg0: i32) -> (i32, i32) {
    %c0_i32 = arith.constant 0 : i32
    %c0_i32_0 = arith.constant 0 : i32
    %c0_i32_1 = arith.constant 0 : i32
    return %c0_i32, %c0_i32_0 : i32, i32
  }
  func.func @transform_3(%arg0: i32) -> (i32, i32) {
    %c0_i32 = arith.constant 0 : i32
    %c0_i32_0 = arith.constant 0 : i32
    return %arg0, %c0_i32 : i32, i32
  }
}

</mosaic_0001>

<llo_original>
// kernel: cnn2_forward.3
$region0: #{cnn2_forward.3}
  #allocation0 [shape = 'u32[]', space=smem, size = 0x4, offset = 0x4, fixed_abs, tag = 'smem constant byte address 0x4 - core index']
  #allocation1 [shape = 'u32[144,128]{1,0:T(1,128)}', space=vmem, size = 0x12000, scoped, tag = 'internal scratch']
  #allocation2 [shape = 'f32[1048,4]{1,0:T(8,128)}', space=vmem, size = 0x83000, scoped, tag = 'scratch operand']
  %s0 = inlined_call_operand.vmem [shape: f32[2048,4], index: 0, kind: input, shape index: {}]
  %s1 = inlined_call_operand.vmem [shape: f32[4,4,64], index: 1, kind: input, shape index: {}]
  %s2 = inlined_call_operand.vmem [shape: f32[1,16], index: 2, kind: input, shape index: {}]
  %s3 = inlined_call_operand.vmem [shape: f32[2048,16], index: 3, kind: output, shape index: {}]
  %s4 = sld [smem:[#allocation0]]
  $region45: #{cnn2_forward.3} parent=0
    _
  %s6 = ssub.s32 1, %s4
  %s7 = scalar_select 0, %s6, %s4
  loop: start=0, step=1, limit=4
  $region2: #{cnn2_forward.3} parent=0 // loop_pre_header
    _
  $region3: #{cnn2_forward.3} parent=0 // loop_header
    %s9 = sphi 0, %s13
    %p10 = scmp.ge.s32.totalorder %s9, 4
    %s19 = sphi 0, %s21
    %s22 = sphi 0, %s19
    %s23 = sphi 0, %s22
    %s39 = sphi 0, %s23
    %s43 = sphi 0, %s43
    %s45 = sphi 0, %s43
    %s46 = sphi 0, %s45
    %s60 = sphi 0, %s46
    %s64 = sphi 0, %s64
    %s66 = sphi 0, %s64
    %s67 = sphi 0, %s66
    %s81 = sphi 0, %s67
    %s87 = sphi 0, %s89
    %s90 = sphi 0, %s87
    %s91 = sphi 0, %s90
    %s107 = sphi 0, %s91
  $region4: #{cnn2_forward.3} parent=0 // loop_header_branch
    %12 = sbr.rel (%p10) target = $region8
  $region5: #{cnn2_forward.3} parent=0 // loop_body
    %s14 = ssub.s32 %s9, 1
    %s15 = ssub.s32 %s9, 2
    %s16 = sadd.s32 %s9, 1
    %s17 = ssub.s32 %s9, %s16
    %p18 = scmp.eq.s32.totalorder %s17, 0
    %s20 = sadd.s32 %s19, 1
    %s21 = scalar_select %p18, %s19, %s20
    %p24 = pneg %p18
    %p25 = scmp.eq.s32.totalorder %s9, 1
    %p26 = por %p24, %p25
    %p27 = scmp.ne.s32.totalorder %s19, %s22
    %p28 = scmp.eq.s32.totalorder %s9, 0
    %p29 = por %p27, %p28
    %p30 = scmp.ne.s32.totalorder %s19, %s22
    %p31 = scmp.eq.s32.totalorder %s14, 1
    %p32 = por %p30, %p31
    %p33 = scmp.ne.s32.totalorder %s22, %s23
    %p34 = scmp.eq.s32.totalorder %s14, 0
    %p35 = por %p33, %p34
    %p36 = scmp.ne.s32.totalorder %s22, %s23
    %p37 = scmp.eq.s32.totalorder %s15, 1
    %p38 = por %p36, %p37
    %p40 = scmp.ne.s32.totalorder %s23, %s39
    %p41 = scmp.eq.s32.totalorder %s15, 0
    %p42 = por %p40, %p41
    %s44 = sadd.s32 %s43, 1
    %p47 = scmp.eq.s32.totalorder %s9, 1
    %p48 = scmp.ne.s32.totalorder %s43, %s45
    %p49 = scmp.eq.s32.totalorder %s9, 0
    %p50 = por %p48, %p49
    %p51 = scmp.ne.s32.totalorder %s43, %s45
    %p52 = scmp.eq.s32.totalorder %s14, 1
    %p53 = por %p51, %p52
    %p54 = scmp.ne.s32.totalorder %s45, %s46
    %p55 = scmp.eq.s32.totalorder %s14, 0
    %p56 = por %p54, %p55
    %p57 = scmp.ne.s32.totalorder %s45, %s46
    %p58 = scmp.eq.s32.totalorder %s15, 1
    %p59 = por %p57, %p58
    %p61 = scmp.ne.s32.totalorder %s46, %s60
    %p62 = scmp.eq.s32.totalorder %s15, 0
    %p63 = por %p61, %p62
    %s65 = sadd.s32 %s64, 1
    %p68 = scmp.eq.s32.totalorder %s9, 1
    %p69 = scmp.ne.s32.totalorder %s64, %s66
    %p70 = scmp.eq.s32.totalorder %s9, 0
    %p71 = por %p69, %p70
    %p72 = scmp.ne.s32.totalorder %s64, %s66
    %p73 = scmp.eq.s32.totalorder %s14, 1
    %p74 = por %p72, %p73
    %p75 = scmp.ne.s32.totalorder %s66, %s67
    %p76 = scmp.eq.s32.totalorder %s14, 0
    %p77 = por %p75, %p76
    %p78 = scmp.ne.s32.totalorder %s66, %s67
    %p79 = scmp.eq.s32.totalorder %s15, 1
    %p80 = por %p78, %p79
    %p82 = scmp.ne.s32.totalorder %s67, %s81
    %p83 = scmp.eq.s32.totalorder %s15, 0
    %p84 = por %p82, %p83
    %s85 = ssub.s32 %s9, %s16
    %p86 = scmp.eq.s32.totalorder %s85, 0
    %s88 = sadd.s32 %s87, 1
    %s89 = scalar_select %p86, %s87, %s88
    %p92 = pneg %p86
    %p93 = scmp.eq.s32.totalorder %s9, 1
    %p94 = por %p92, %p93
    %p95 = scmp.ne.s32.totalorder %s87, %s90
    %p96 = scmp.eq.s32.totalorder %s9, 0
    %p97 = por %p95, %p96
    %p98 = scmp.ne.s32.totalorder %s87, %s90
    %p99 = scmp.eq.s32.totalorder %s14, 1
    %p100 = por %p98, %p99
    %p101 = scmp.ne.s32.totalorder %s90, %s91
    %p102 = scmp.eq.s32.totalorder %s14, 0
    %p103 = por %p101, %p102
    %p104 = scmp.ne.s32.totalorder %s90, %s91
    %p105 = scmp.eq.s32.totalorder %s15, 1
    %p106 = por %p104, %p105
    %p108 = scmp.ne.s32.totalorder %s91, %s107
    %p109 = scmp.eq.s32.totalorder %s15, 0
    %p110 = por %p108, %p109
    %p111 = scmp.le.s32.totalorder 1, %s9
    %p112 = scmp.lt.s32.totalorder %s9, 3
    %p113 = pnand %p111, %p112
    %p114 = pneg %p113
    // Predicated region
    $region9: #{cnn2_forward.3} parent=5 // pred_check
      _
    $region10: #{cnn2_forward.3} parent=5 // pred_check_branch
      %116 = sbr.rel (%p113) target = $region12
    $region11: #{cnn2_forward.3} parent=5 // pred_region
      %s117 = ssub.s32 %s9, 1
      // Predicated region
      $region13: #{cnn2_forward.3} parent=11 // pred_check
        %p118 = pneg %p56
      $region14: #{cnn2_forward.3} parent=11 // pred_check_branch
        %120 = sbr.rel (%p118) target = $region16
      $region15: #{cnn2_forward.3} parent=11 // pred_region
        _
      $region16: #{cnn2_forward.3} parent=11 // pred_fallthru
        _
      // Predicated region
      $region17: #{cnn2_forward.3} parent=11 // pred_check
        %p121 = pneg %p77
      $region18: #{cnn2_forward.3} parent=11 // pred_check_branch
        %123 = sbr.rel (%p121) target = $region20
      $region19: #{cnn2_forward.3} parent=11 // pred_region
        _
      $region20: #{cnn2_forward.3} parent=11 // pred_fallthru
        _
    $region12: #{cnn2_forward.3} parent=5 // pred_fallthru
      _
    %p124 = scmp.lt.s32.totalorder %s9, 2
    // Predicated region
    $region21: #{cnn2_forward.3} parent=5 // pred_check
      %p125 = pneg %p124
    $region22: #{cnn2_forward.3} parent=5 // pred_check_branch
      %127 = sbr.rel (%p125) target = $region24
    $region23: #{cnn2_forward.3} parent=5 // pred_region
      // Predicated region
      $region25: #{cnn2_forward.3} parent=23 // pred_check
        %p128 = pneg %p29
      $region26: #{cnn2_forward.3} parent=23 // pred_check_branch
        %130 = sbr.rel (%p128) target = $region28
      $region27: #{cnn2_forward.3} parent=23 // pred_region
        %s131 = smul.u32 128, %s9
        %p132 = scmp.lt.s32.totalorder %s131, 255
        %s133 = scalar_select %p132, %s131, 255
        %s134 = smul.addr %s133, 8
        %s135 = scalar_lea.vmem %s0, %s134
        %s136 = smul.u32 128, %s9
      $region28: #{cnn2_forward.3} parent=23 // pred_fallthru
        _
    $region24: #{cnn2_forward.3} parent=5 // pred_fallthru
      _
    %p137 = scmp.le.s32.totalorder 1, %s9
    %p138 = scmp.lt.s32.totalorder %s9, 3
    %p139 = pnand %p137, %p138
    %p140 = pneg %p139
    // Predicated region
    $region29: #{cnn2_forward.3} parent=5 // pred_check
      _
    $region30: #{cnn2_forward.3} parent=5 // pred_check_branch
      %142 = sbr.rel (%p139) target = $region32
    $region31: #{cnn2_forward.3} parent=5 // pred_region
      %s143 = ssub.s32 %s9, 1
      %s144 = smul.u32 128, %s14
      %p145 = scmp.lt.s32.totalorder %s144, 255
      %s146 = scalar_select %p145, %s144, 255
      %s147 = smul.addr %s146, 8
      %s148 = scalar_lea.vmem %s0, %s147
      %p149 = pneg %p35
      %p150 = pneg %p32
      %p151 = pneg %p56
      %p152 = pneg %p53
      %p153 = pneg %p77
      %p154 = pneg %p74
      %p155 = pneg %p103
      %p156 = pneg %p100
      %s157 = smul.u32 128, %s14
      %p158 = scmp.lt.s32.totalorder %s157, 255
      %s159 = scalar_select %p158, %s157, 255
      %s160 = smul.addr %s159, 8
      %s161 = scalar_lea.vmem %s3, %s160
      %s162 = smul.u32 128, %s14
      %p163 = scmp.lt.s32.totalorder %s162, 255
      %s164 = scalar_select %p163, %s162, 255
      %s165 = smul.addr %s164, 8
      %s166 = scalar_lea.vmem %s0, %s165
      %s167 = smul.u32 128, %s14
      %s168 = smul.u32 128, %s14
      %p169 = scmp.lt.s32.totalorder %s168, 255
      %s170 = scalar_select %p169, %s168, 255
      %s171 = smul.addr %s170, 8
      %s172 = scalar_lea.vmem %s3, %s171
      %s173 = smul.u32 128, %s14
      %v174 = vld [vmem:[%s166] sm:$0xff]
      %v175 = vld [vmem:[%s166 + $0x8] sm:$0xff]
      %v176 = vld [vmem:[%s166 + $0x10] sm:$0xff]
      %v177 = vld [vmem:[%s166 + $0x18] sm:$0xff]
      %v178 = vld [vmem:[%s166 + $0x20] sm:$0xff]
      %v179 = vld [vmem:[%s166 + $0x28] sm:$0xff]
      %v180 = vld [vmem:[%s166 + $0x30] sm:$0xff]
      %v181 = vld [vmem:[%s166 + $0x38] sm:$0xff]
      %v182 = vld [vmem:[%s166 + $0x40] sm:$0xff]
      %v183 = vld [vmem:[%s166 + $0x48] sm:$0xff]
      %v184 = vld [vmem:[%s166 + $0x50] sm:$0xff]
      %v185 = vld [vmem:[%s166 + $0x58] sm:$0xff]
      %v186 = vld [vmem:[%s166 + $0x60] sm:$0xff]
      %v187 = vld [vmem:[%s166 + $0x68] sm:$0xff]
      %v188 = vld [vmem:[%s166 + $0x70] sm:$0xff]
      %v189 = vld [vmem:[%s166 + $0x78] sm:$0xff]
      %v190 = vld [vmem:[%s166 + $0x80] sm:$0xff]
      %v191 = vld [vmem:[%s166 + $0x88] sm:$0xff]
      %v192 = vld [vmem:[%s166 + $0x90] sm:$0xff]
      %v193 = vld [vmem:[%s166 + $0x98] sm:$0xff]
      %v194 = vld [vmem:[%s166 + $0xa0] sm:$0xff]
      %v195 = vld [vmem:[%s166 + $0xa8] sm:$0xff]
      %v196 = vld [vmem:[%s166 + $0xb0] sm:$0xff]
      %v197 = vld [vmem:[%s166 + $0xb8] sm:$0xff]
      %v198 = vld [vmem:[%s166 + $0xc0] sm:$0xff]
      %v199 = vld [vmem:[%s166 + $0xc8] sm:$0xff]
      %v200 = vld [vmem:[%s166 + $0xd0] sm:$0xff]
      %v201 = vld [vmem:[%s166 + $0xd8] sm:$0xff]
      %v202 = vld [vmem:[%s166 + $0xe0] sm:$0xff]
      %v203 = vld [vmem:[%s166 + $0xe8] sm:$0xff]
      %v204 = vld [vmem:[%s166 + $0xf0] sm:$0xff]
      %v205 = vld [vmem:[%s166 + $0xf8] sm:$0xff]
      %v206 = vld [vmem:[%s166 + $0x100] sm:$0xff]
      %v207 = vld [vmem:[%s166 + $0x108] sm:$0xff]
      %v208 = vld [vmem:[%s166 + $0x110] sm:$0xff]
      %v209 = vld [vmem:[%s166 + $0x118] sm:$0xff]
      %v210 = vld [vmem:[%s166 + $0x120] sm:$0xff]
      %v211 = vld [vmem:[%s166 + $0x128] sm:$0xff]
      %v212 = vld [vmem:[%s166 + $0x130] sm:$0xff]
      %v213 = vld [vmem:[%s166 + $0x138] sm:$0xff]
      %v214 = vld [vmem:[%s166 + $0x140] sm:$0xff]
      %v215 = vld [vmem:[%s166 + $0x148] sm:$0xff]
      %v216 = vld [vmem:[%s166 + $0x150] sm:$0xff]
      %v217 = vld [vmem:[%s166 + $0x158] sm:$0xff]
      %v218 = vld [vmem:[%s166 + $0x160] sm:$0xff]
      %v219 = vld [vmem:[%s166 + $0x168] sm:$0xff]
      %v220 = vld [vmem:[%s166 + $0x170] sm:$0xff]
      %v221 = vld [vmem:[%s166 + $0x178] sm:$0xff]
      %v222 = vld [vmem:[%s166 + $0x180] sm:$0xff]
      %v223 = vld [vmem:[%s166 + $0x188] sm:$0xff]
      %v224 = vld [vmem:[%s166 + $0x190] sm:$0xff]
      %v225 = vld [vmem:[%s166 + $0x198] sm:$0xff]
      %v226 = vld [vmem:[%s166 + $0x1a0] sm:$0xff]
      %v227 = vld [vmem:[%s166 + $0x1a8] sm:$0xff]
      %v228 = vld [vmem:[%s166 + $0x1b0] sm:$0xff]
      %v229 = vld [vmem:[%s166 + $0x1b8] sm:$0xff]
      %v230 = vld [vmem:[%s166 + $0x1c0] sm:$0xff]
      %v231 = vld [vmem:[%s166 + $0x1c8] sm:$0xff]
      %v232 = vld [vmem:[%s166 + $0x1d0] sm:$0xff]
      %v233 = vld [vmem:[%s166 + $0x1d8] sm:$0xff]
      %v234 = vld [vmem:[%s166 + $0x1e0] sm:$0xff]
      %v235 = vld [vmem:[%s166 + $0x1e8] sm:$0xff]
      %v236 = vld [vmem:[%s166 + $0x1f0] sm:$0xff]
      %v237 = vld [vmem:[%s166 + $0x1f8] sm:$0xff]
      %v238 = vld [vmem:[%s166 + $0x200] sm:$0xff]
      %v239 = vld [vmem:[%s166 + $0x208] sm:$0xff]
      %v240 = vld [vmem:[%s166 + $0x210] sm:$0xff]
      %v241 = vld [vmem:[%s166 + $0x218] sm:$0xff]
      %v242 = vld [vmem:[%s166 + $0x220] sm:$0xff]
      %v243 = vld [vmem:[%s166 + $0x228] sm:$0xff]
      %v244 = vld [vmem:[%s166 + $0x230] sm:$0xff]
      %v245 = vld [vmem:[%s166 + $0x238] sm:$0xff]
      %v246 = vld [vmem:[%s166 + $0x240] sm:$0xff]
      %v247 = vld [vmem:[%s166 + $0x248] sm:$0xff]
      %v248 = vld [vmem:[%s166 + $0x250] sm:$0xff]
      %v249 = vld [vmem:[%s166 + $0x258] sm:$0xff]
      %v250 = vld [vmem:[%s166 + $0x260] sm:$0xff]
      %v251 = vld [vmem:[%s166 + $0x268] sm:$0xff]
      %v252 = vld [vmem:[%s166 + $0x270] sm:$0xff]
      %v253 = vld [vmem:[%s166 + $0x278] sm:$0xff]
      %v254 = vld [vmem:[%s166 + $0x280] sm:$0xff]
      %v255 = vld [vmem:[%s166 + $0x288] sm:$0xff]
      %v256 = vld [vmem:[%s166 + $0x290] sm:$0xff]
      %v257 = vld [vmem:[%s166 + $0x298] sm:$0xff]
      %v258 = vld [vmem:[%s166 + $0x2a0] sm:$0xff]
      %v259 = vld [vmem:[%s166 + $0x2a8] sm:$0xff]
      %v260 = vld [vmem:[%s166 + $0x2b0] sm:$0xff]
      %v261 = vld [vmem:[%s166 + $0x2b8] sm:$0xff]
      %v262 = vld [vmem:[%s166 + $0x2c0] sm:$0xff]
      %v263 = vld [vmem:[%s166 + $0x2c8] sm:$0xff]
      %v264 = vld [vmem:[%s166 + $0x2d0] sm:$0xff]
      %v265 = vld [vmem:[%s166 + $0x2d8] sm:$0xff]
      %v266 = vld [vmem:[%s166 + $0x2e0] sm:$0xff]
      %v267 = vld [vmem:[%s166 + $0x2e8] sm:$0xff]
      %v268 = vld [vmem:[%s166 + $0x2f0] sm:$0xff]
      %v269 = vld [vmem:[%s166 + $0x2f8] sm:$0xff]
      %v270 = vld [vmem:[%s166 + $0x300] sm:$0xff]
      %v271 = vld [vmem:[%s166 + $0x308] sm:$0xff]
      %v272 = vld [vmem:[%s166 + $0x310] sm:$0xff]
      %v273 = vld [vmem:[%s166 + $0x318] sm:$0xff]
      %v274 = vld [vmem:[%s166 + $0x320] sm:$0xff]
      %v275 = vld [vmem:[%s166 + $0x328] sm:$0xff]
      %v276 = vld [vmem:[%s166 + $0x330] sm:$0xff]
      %v277 = vld [vmem:[%s166 + $0x338] sm:$0xff]
      %v278 = vld [vmem:[%s166 + $0x340] sm:$0xff]
      %v279 = vld [vmem:[%s166 + $0x348] sm:$0xff]
      %v280 = vld [vmem:[%s166 + $0x350] sm:$0xff]
      %v281 = vld [vmem:[%s166 + $0x358] sm:$0xff]
      %v282 = vld [vmem:[%s166 + $0x360] sm:$0xff]
      %v283 = vld [vmem:[%s166 + $0x368] sm:$0xff]
      %v284 = vld [vmem:[%s166 + $0x370] sm:$0xff]
      %v285 = vld [vmem:[%s166 + $0x378] sm:$0xff]
      %v286 = vld [vmem:[%s166 + $0x380] sm:$0xff]
      %v287 = vld [vmem:[%s166 + $0x388] sm:$0xff]
      %v288 = vld [vmem:[%s166 + $0x390] sm:$0xff]
      %v289 = vld [vmem:[%s166 + $0x398] sm:$0xff]
      %v290 = vld [vmem:[%s166 + $0x3a0] sm:$0xff]
      %v291 = vld [vmem:[%s166 + $0x3a8] sm:$0xff]
      %v292 = vld [vmem:[%s166 + $0x3b0] sm:$0xff]
      %v293 = vld [vmem:[%s166 + $0x3b8] sm:$0xff]
      %v294 = vld [vmem:[%s166 + $0x3c0] sm:$0xff]
      %v295 = vld [vmem:[%s166 + $0x3c8] sm:$0xff]
      %v296 = vld [vmem:[%s166 + $0x3d0] sm:$0xff]
      %v297 = vld [vmem:[%s166 + $0x3d8] sm:$0xff]
      %v298 = vld [vmem:[%s166 + $0x3e0] sm:$0xff]
      %v299 = vld [vmem:[%s166 + $0x3e8] sm:$0xff]
      %v300 = vld [vmem:[%s166 + $0x3f0] sm:$0xff]
      %v301 = vld [vmem:[%s166 + $0x3f8] sm:$0xff]
      %vm302 = vcmask 31744
      %303 = vst.msk [vmem:[#allocation2] sm:$0xff] %vm302, %v174
      %304 = vst.msk [vmem:[#allocation2 + $0x8] sm:$0xff] %vm302, %v175
      %305 = vst.msk [vmem:[#allocation2 + $0x10] sm:$0xff] %vm302, %v176
      %306 = vst.msk [vmem:[#allocation2 + $0x18] sm:$0xff] %vm302, %v177
      %307 = vst.msk [vmem:[#allocation2 + $0x20] sm:$0xff] %vm302, %v178
      %308 = vst.msk [vmem:[#allocation2 + $0x28] sm:$0xff] %vm302, %v179
      %309 = vst.msk [vmem:[#allocation2 + $0x30] sm:$0xff] %vm302, %v180
      %310 = vst.msk [vmem:[#allocation2 + $0x38] sm:$0xff] %vm302, %v181
      %311 = vst.msk [vmem:[#allocation2 + $0x40] sm:$0xff] %vm302, %v182
      %312 = vst.msk [vmem:[#allocation2 + $0x48] sm:$0xff] %vm302, %v183
      %313 = vst.msk [vmem:[#allocation2 + $0x50] sm:$0xff] %vm302, %v184
      %314 = vst.msk [vmem:[#allocation2 + $0x58] sm:$0xff] %vm302, %v185
      %315 = vst.msk [vmem:[#allocation2 + $0x60] sm:$0xff] %vm302, %v186
      %316 = vst.msk [vmem:[#allocation2 + $0x68] sm:$0xff] %vm302, %v187
      %317 = vst.msk [vmem:[#allocation2 + $0x70] sm:$0xff] %vm302, %v188
      %318 = vst.msk [vmem:[#allocation2 + $0x78] sm:$0xff] %vm302, %v189
      %319 = vst.msk [vmem:[#allocation2 + $0x80] sm:$0xff] %vm302, %v190
      %320 = vst.msk [vmem:[#allocation2 + $0x88] sm:$0xff] %vm302, %v191
      %321 = vst.msk [vmem:[#allocation2 + $0x90] sm:$0xff] %vm302, %v192
      %322 = vst.msk [vmem:[#allocation2 + $0x98] sm:$0xff] %vm302, %v193
      %323 = vst.msk [vmem:[#allocation2 + $0xa0] sm:$0xff] %vm302, %v194
      %324 = vst.msk [vmem:[#allocation2 + $0xa8] sm:$0xff] %vm302, %v195
      %325 = vst.msk [vmem:[#allocation2 + $0xb0] sm:$0xff] %vm302, %v196
      %326 = vst.msk [vmem:[#allocation2 + $0xb8] sm:$0xff] %vm302, %v197
      %327 = vst.msk [vmem:[#allocation2 + $0xc0] sm:$0xff] %vm302, %v198
      %328 = vst.msk [vmem:[#allocation2 + $0xc8] sm:$0xff] %vm302, %v199
      %329 = vst.msk [vmem:[#allocation2 + $0xd0] sm:$0xff] %vm302, %v200
      %330 = vst.msk [vmem:[#allocation2 + $0xd8] sm:$0xff] %vm302, %v201
      %331 = vst.msk [vmem:[#allocation2 + $0xe0] sm:$0xff] %vm302, %v202
      %332 = vst.msk [vmem:[#allocation2 + $0xe8] sm:$0xff] %vm302, %v203
      %333 = vst.msk [vmem:[#allocation2 + $0xf0] sm:$0xff] %vm302, %v204
      %334 = vst.msk [vmem:[#allocation2 + $0xf8] sm:$0xff] %vm302, %v205
      %335 = vst.msk [vmem:[#allocation2 + $0x100] sm:$0xff] %vm302, %v206
      %336 = vst.msk [vmem:[#allocation2 + $0x108] sm:$0xff] %vm302, %v207
      %337 = vst.msk [vmem:[#allocation2 + $0x110] sm:$0xff] %vm302, %v208
      %338 = vst.msk [vmem:[#allocation2 + $0x118] sm:$0xff] %vm302, %v209
      %339 = vst.msk [vmem:[#allocation2 + $0x120] sm:$0xff] %vm302, %v210
      %340 = vst.msk [vmem:[#allocation2 + $0x128] sm:$0xff] %vm302, %v211
      %341 = vst.msk [vmem:[#allocation2 + $0x130] sm:$0xff] %vm302, %v212
      %342 = vst.msk [vmem:[#allocation2 + $0x138] sm:$0xff] %vm302, %v213
      %343 = vst.msk [vmem:[#allocation2 + $0x140] sm:$0xff] %vm302, %v214
      %344 = vst.msk [vmem:[#allocation2 + $0x148] sm:$0xff] %vm302, %v215
      %345 = vst.msk [vmem:[#allocation2 + $0x150] sm:$0xff] %vm302, %v216
      %346 = vst.msk [vmem:[#allocation2 + $0x158] sm:$0xff] %vm302, %v217
      %347 = vst.msk [vmem:[#allocation2 + $0x160] sm:$0xff] %vm302, %v218
      %348 = vst.msk [vmem:[#allocation2 + $0x168] sm:$0xff] %vm302, %v219
      %349 = vst.msk [vmem:[#allocation2 + $0x170] sm:$0xff] %vm302, %v220
      %350 = vst.msk [vmem:[#allocation2 + $0x178] sm:$0xff] %vm302, %v221
      %351 = vst.msk [vmem:[#allocation2 + $0x180] sm:$0xff] %vm302, %v222
      %352 = vst.msk [vmem:[#allocation2 + $0x188] sm:$0xff] %vm302, %v223
      %353 = vst.msk [vmem:[#allocation2 + $0x190] sm:$0xff] %vm302, %v224
      %354 = vst.msk [vmem:[#allocation2 + $0x198] sm:$0xff] %vm302, %v225
      %355 = vst.msk [vmem:[#allocation2 + $0x1a0] sm:$0xff] %vm302, %v226
      %356 = vst.msk [vmem:[#allocation2 + $0x1a8] sm:$0xff] %vm302, %v227
      %357 = vst.msk [vmem:[#allocation2 + $0x1b0] sm:$0xff] %vm302, %v228
      %358 = vst.msk [vmem:[#allocation2 + $0x1b8] sm:$0xff] %vm302, %v229
      %359 = vst.msk [vmem:[#allocation2 + $0x1c0] sm:$0xff] %vm302, %v230
      %360 = vst.msk [vmem:[#allocation2 + $0x1c8] sm:$0xff] %vm302, %v231
      %361 = vst.msk [vmem:[#allocation2 + $0x1d0] sm:$0xff] %vm302, %v232
      %362 = vst.msk [vmem:[#allocation2 + $0x1d8] sm:$0xff] %vm302, %v233
      %363 = vst.msk [vmem:[#allocation2 + $0x1e0] sm:$0xff] %vm302, %v234
      %364 = vst.msk [vmem:[#allocation2 + $0x1e8] sm:$0xff] %vm302, %v235
      %365 = vst.msk [vmem:[#allocation2 + $0x1f0] sm:$0xff] %vm302, %v236
      %366 = vst.msk [vmem:[#allocation2 + $0x1f8] sm:$0xff] %vm302, %v237
      %367 = vst.msk [vmem:[#allocation2 + $0x200] sm:$0xff] %vm302, %v238
      %368 = vst.msk [vmem:[#allocation2 + $0x208] sm:$0xff] %vm302, %v239
      %369 = vst.msk [vmem:[#allocation2 + $0x210] sm:$0xff] %vm302, %v240
      %370 = vst.msk [vmem:[#allocation2 + $0x218] sm:$0xff] %vm302, %v241
      %371 = vst.msk [vmem:[#allocation2 + $0x220] sm:$0xff] %vm302, %v242
      %372 = vst.msk [vmem:[#allocation2 + $0x228] sm:$0xff] %vm302, %v243
      %373 = vst.msk [vmem:[#allocation2 + $0x230] sm:$0xff] %vm302, %v244
      %374 = vst.msk [vmem:[#allocation2 + $0x238] sm:$0xff] %vm302, %v245
      %375 = vst.msk [vmem:[#allocation2 + $0x240] sm:$0xff] %vm302, %v246
      %376 = vst.msk [vmem:[#allocation2 + $0x248] sm:$0xff] %vm302, %v247
      %377 = vst.msk [vmem:[#allocation2 + $0x250] sm:$0xff] %vm302, %v248
      %378 = vst.msk [vmem:[#allocation2 + $0x258] sm:$0xff] %vm302, %v249
      %379 = vst.msk [vmem:[#allocation2 + $0x260] sm:$0xff] %vm302, %v250
      %380 = vst.msk [vmem:[#allocation2 + $0x268] sm:$0xff] %vm302, %v251
      %381 = vst.msk [vmem:[#allocation2 + $0x270] sm:$0xff] %vm302, %v252
      %382 = vst.msk [vmem:[#allocation2 + $0x278] sm:$0xff] %vm302, %v253
      %383 = vst.msk [vmem:[#allocation2 + $0x280] sm:$0xff] %vm302, %v254
      %384 = vst.msk [vmem:[#allocation2 + $0x288] sm:$0xff] %vm302, %v255
      %385 = vst.msk [vmem:[#allocation2 + $0x290] sm:$0xff] %vm302, %v256
      %386 = vst.msk [vmem:[#allocation2 + $0x298] sm:$0xff] %vm302, %v257
      %387 = vst.msk [vmem:[#allocation2 + $0x2a0] sm:$0xff] %vm302, %v258
      %388 = vst.msk [vmem:[#allocation2 + $0x2a8] sm:$0xff] %vm302, %v259
      %389 = vst.msk [vmem:[#allocation2 + $0x2b0] sm:$0xff] %vm302, %v260
      %390 = vst.msk [vmem:[#allocation2 + $0x2b8] sm:$0xff] %vm302, %v261
      %391 = vst.msk [vmem:[#allocation2 + $0x2c0] sm:$0xff] %vm302, %v262
      %392 = vst.msk [vmem:[#allocation2 + $0x2c8] sm:$0xff] %vm302, %v263
      %393 = vst.msk [vmem:[#allocation2 + $0x2d0] sm:$0xff] %vm302, %v264
      %394 = vst.msk [vmem:[#allocation2 + $0x2d8] sm:$0xff] %vm302, %v265
      %395 = vst.msk [vmem:[#allocation2 + $0x2e0] sm:$0xff] %vm302, %v266
      %396 = vst.msk [vmem:[#allocation2 + $0x2e8] sm:$0xff] %vm302, %v267
      %397 = vst.msk [vmem:[#allocation2 + $0x2f0] sm:$0xff] %vm302, %v268
      %398 = vst.msk [vmem:[#allocation2 + $0x2f8] sm:$0xff] %vm302, %v269
      %399 = vst.msk [vmem:[#allocation2 + $0x300] sm:$0xff] %vm302, %v270
      %400 = vst.msk [vmem:[#allocation2 + $0x308] sm:$0xff] %vm302, %v271
      %401 = vst.msk [vmem:[#allocation2 + $0x310] sm:$0xff] %vm302, %v272
      %402 = vst.msk [vmem:[#allocation2 + $0x318] sm:$0xff] %vm302, %v273
      %403 = vst.msk [vmem:[#allocation2 + $0x320] sm:$0xff] %vm302, %v274
      %404 = vst.msk [vmem:[#allocation2 + $0x328] sm:$0xff] %vm302, %v275
      %405 = vst.msk [vmem:[#allocation2 + $0x330] sm:$0xff] %vm302, %v276
      %406 = vst.msk [vmem:[#allocation2 + $0x338] sm:$0xff] %vm302, %v277
      %407 = vst.msk [vmem:[#allocation2 + $0x340] sm:$0xff] %vm302, %v278
      %408 = vst.msk [vmem:[#allocation2 + $0x348] sm:$0xff] %vm302, %v279
      %409 = vst.msk [vmem:[#allocation2 + $0x350] sm:$0xff] %vm302, %v280
      %410 = vst.msk [vmem:[#allocation2 + $0x358] sm:$0xff] %vm302, %v281
      %411 = vst.msk [vmem:[#allocation2 + $0x360] sm:$0xff] %vm302, %v282
      %412 = vst.msk [vmem:[#allocation2 + $0x368] sm:$0xff] %vm302, %v283
      %413 = vst.msk [vmem:[#allocation2 + $0x370] sm:$0xff] %vm302, %v284
      %414 = vst.msk [vmem:[#allocation2 + $0x378] sm:$0xff] %vm302, %v285
      %415 = vst.msk [vmem:[#allocation2 + $0x380] sm:$0xff] %vm302, %v286
      %416 = vst.msk [vmem:[#allocation2 + $0x388] sm:$0xff] %vm302, %v287
      %417 = vst.msk [vmem:[#allocation2 + $0x390] sm:$0xff] %vm302, %v288
      %418 = vst.msk [vmem:[#allocation2 + $0x398] sm:$0xff] %vm302, %v289
      %419 = vst.msk [vmem:[#allocation2 + $0x3a0] sm:$0xff] %vm302, %v290
      %420 = vst.msk [vmem:[#allocation2 + $0x3a8] sm:$0xff] %vm302, %v291
      %421 = vst.msk [vmem:[#allocation2 + $0x3b0] sm:$0xff] %vm302, %v292
      %422 = vst.msk [vmem:[#allocation2 + $0x3b8] sm:$0xff] %vm302, %v293
      %423 = vst.msk [vmem:[#allocation2 + $0x3c0] sm:$0xff] %vm302, %v294
      %424 = vst.msk [vmem:[#allocation2 + $0x3c8] sm:$0xff] %vm302, %v295
      %425 = vst.msk [vmem:[#allocation2 + $0x3d0] sm:$0xff] %vm302, %v296
      %426 = vst.msk [vmem:[#allocation2 + $0x3d8] sm:$0xff] %vm302, %v297
      %427 = vst.msk [vmem:[#allocation2 + $0x3e0] sm:$0xff] %vm302, %v298
      %428 = vst.msk [vmem:[#allocation2 + $0x3e8] sm:$0xff] %vm302, %v299
      %429 = vst.msk [vmem:[#allocation2 + $0x3f0] sm:$0xff] %vm302, %v300
      %430 = vst.msk [vmem:[#allocation2 + $0x3f8] sm:$0xff] %vm302, %v301
      %431 = vst.msk [vmem:[#allocation2 + $0x400] sm:$0xff] %vm302, 0.0
      %432 = vst.msk [vmem:[#allocation2 + $0x408] sm:$0xff] %vm302, 0.0
      %433 = vst.msk [vmem:[#allocation2 + $0x410] sm:$0xff] %vm302, 0.0
      %v434 = vld [vmem:[#allocation2] sm:$0xff]
      %v435 = vld [vmem:[#allocation2 + $0x8] sm:$0xff]
      %v436 = vld [vmem:[#allocation2 + $0x10] sm:$0xff]
      %v437 = vld [vmem:[#allocation2 + $0x18] sm:$0xff]
      %v438 = vld [vmem:[#allocation2 + $0x20] sm:$0xff]
      %v439 = vld [vmem:[#allocation2 + $0x28] sm:$0xff]
      %v440 = vld [vmem:[#allocation2 + $0x30] sm:$0xff]
      %v441 = vld [vmem:[#allocation2 + $0x38] sm:$0xff]
      %v442 = vld [vmem:[#allocation2 + $0x40] sm:$0xff]
      %v443 = vld [vmem:[#allocation2 + $0x48] sm:$0xff]
      %v444 = vld [vmem:[#allocation2 + $0x50] sm:$0xff]
      %v445 = vld [vmem:[#allocation2 + $0x58] sm:$0xff]
      %v446 = vld [vmem:[#allocation2 + $0x60] sm:$0xff]
      %v447 = vld [vmem:[#allocation2 + $0x68] sm:$0xff]
      %v448 = vld [vmem:[#allocation2 + $0x70] sm:$0xff]
      %v449 = vld [vmem:[#allocation2 + $0x78] sm:$0xff]
      %v450 = vld [vmem:[#allocation2 + $0x80] sm:$0xff]
      %v451 = vld [vmem:[#allocation2 + $0x88] sm:$0xff]
      %v452 = vld [vmem:[#allocation2 + $0x90] sm:$0xff]
      %v453 = vld [vmem:[#allocation2 + $0x98] sm:$0xff]
      %v454 = vld [vmem:[#allocation2 + $0xa0] sm:$0xff]
      %v455 = vld [vmem:[#allocation2 + $0xa8] sm:$0xff]
      %v456 = vld [vmem:[#allocation2 + $0xb0] sm:$0xff]
      %v457 = vld [vmem:[#allocation2 + $0xb8] sm:$0xff]
      %v458 = vld [vmem:[#allocation2 + $0xc0] sm:$0xff]
      %v459 = vld [vmem:[#allocation2 + $0xc8] sm:$0xff]
      %v460 = vld [vmem:[#allocation2 + $0xd0] sm:$0xff]
      %v461 = vld [vmem:[#allocation2 + $0xd8] sm:$0xff]
      %v462 = vld [vmem:[#allocation2 + $0xe0] sm:$0xff]
      %v463 = vld [vmem:[#allocation2 + $0xe8] sm:$0xff]
      %v464 = vld [vmem:[#allocation2 + $0xf0] sm:$0xff]
      %v465 = vld [vmem:[#allocation2 + $0xf8] sm:$0xff]
      %v466 = vld [vmem:[#allocation2 + $0x100] sm:$0xff]
      %v467 = vld [vmem:[#allocation2 + $0x108] sm:$0xff]
      %v468 = vld [vmem:[#allocation2 + $0x110] sm:$0xff]
      %v469 = vld [vmem:[#allocation2 + $0x118] sm:$0xff]
      %v470 = vld [vmem:[#allocation2 + $0x120] sm:$0xff]
      %v471 = vld [vmem:[#allocation2 + $0x128] sm:$0xff]
      %v472 = vld [vmem:[#allocation2 + $0x130] sm:$0xff]
      %v473 = vld [vmem:[#allocation2 + $0x138] sm:$0xff]
      %v474 = vld [vmem:[#allocation2 + $0x140] sm:$0xff]
      %v475 = vld [vmem:[#allocation2 + $0x148] sm:$0xff]
      %v476 = vld [vmem:[#allocation2 + $0x150] sm:$0xff]
      %v477 = vld [vmem:[#allocation2 + $0x158] sm:$0xff]
      %v478 = vld [vmem:[#allocation2 + $0x160] sm:$0xff]
      %v479 = vld [vmem:[#allocation2 + $0x168] sm:$0xff]
      %v480 = vld [vmem:[#allocation2 + $0x170] sm:$0xff]
      %v481 = vld [vmem:[#allocation2 + $0x178] sm:$0xff]
      %v482 = vld [vmem:[#allocation2 + $0x180] sm:$0xff]
      %v483 = vld [vmem:[#allocation2 + $0x188] sm:$0xff]
      %v484 = vld [vmem:[#allocation2 + $0x190] sm:$0xff]
      %v485 = vld [vmem:[#allocation2 + $0x198] sm:$0xff]
      %v486 = vld [vmem:[#allocation2 + $0x1a0] sm:$0xff]
      %v487 = vld [vmem:[#allocation2 + $0x1a8] sm:$0xff]
      %v488 = vld [vmem:[#allocation2 + $0x1b0] sm:$0xff]
      %v489 = vld [vmem:[#allocation2 + $0x1b8] sm:$0xff]
      %v490 = vld [vmem:[#allocation2 + $0x1c0] sm:$0xff]
      %v491 = vld [vmem:[#allocation2 + $0x1c8] sm:$0xff]
      %v492 = vld [vmem:[#allocation2 + $0x1d0] sm:$0xff]
      %v493 = vld [vmem:[#allocation2 + $0x1d8] sm:$0xff]
      %v494 = vld [vmem:[#allocation2 + $0x1e0] sm:$0xff]
      %v495 = vld [vmem:[#allocation2 + $0x1e8] sm:$0xff]
      %v496 = vld [vmem:[#allocation2 + $0x1f0] sm:$0xff]
      %v497 = vld [vmem:[#allocation2 + $0x1f8] sm:$0xff]
      %v498 = vld [vmem:[#allocation2 + $0x200] sm:$0xff]
      %v499 = vld [vmem:[#allocation2 + $0x208] sm:$0xff]
      %v500 = vld [vmem:[#allocation2 + $0x210] sm:$0xff]
      %v501 = vld [vmem:[#allocation2 + $0x218] sm:$0xff]
      %v502 = vld [vmem:[#allocation2 + $0x220] sm:$0xff]
      %v503 = vld [vmem:[#allocation2 + $0x228] sm:$0xff]
      %v504 = vld [vmem:[#allocation2 + $0x230] sm:$0xff]
      %v505 = vld [vmem:[#allocation2 + $0x238] sm:$0xff]
      %v506 = vld [vmem:[#allocation2 + $0x240] sm:$0xff]
      %v507 = vld [vmem:[#allocation2 + $0x248] sm:$0xff]
      %v508 = vld [vmem:[#allocation2 + $0x250] sm:$0xff]
      %v509 = vld [vmem:[#allocation2 + $0x258] sm:$0xff]
      %v510 = vld [vmem:[#allocation2 + $0x260] sm:$0xff]
      %v511 = vld [vmem:[#allocation2 + $0x268] sm:$0xff]
      %v512 = vld [vmem:[#allocation2 + $0x270] sm:$0xff]
      %v513 = vld [vmem:[#allocation2 + $0x278] sm:$0xff]
      %v514 = vld [vmem:[#allocation2 + $0x280] sm:$0xff]
      %v515 = vld [vmem:[#allocation2 + $0x288] sm:$0xff]
      %v516 = vld [vmem:[#allocation2 + $0x290] sm:$0xff]
      %v517 = vld [vmem:[#allocation2 + $0x298] sm:$0xff]
      %v518 = vld [vmem:[#allocation2 + $0x2a0] sm:$0xff]
      %v519 = vld [vmem:[#allocation2 + $0x2a8] sm:$0xff]
      %v520 = vld [vmem:[#allocation2 + $0x2b0] sm:$0xff]
      %v521 = vld [vmem:[#allocation2 + $0x2b8] sm:$0xff]
      %v522 = vld [vmem:[#allocation2 + $0x2c0] sm:$0xff]
      %v523 = vld [vmem:[#allocation2 + $0x2c8] sm:$0xff]
      %v524 = vld [vmem:[#allocation2 + $0x2d0] sm:$0xff]
      %v525 = vld [vmem:[#allocation2 + $0x2d8] sm:$0xff]
      %v526 = vld [vmem:[#allocation2 + $0x2e0] sm:$0xff]
      %v527 = vld [vmem:[#allocation2 + $0x2e8] sm:$0xff]
      %v528 = vld [vmem:[#allocation2 + $0x2f0] sm:$0xff]
      %v529 = vld [vmem:[#allocation2 + $0x2f8] sm:$0xff]
      %v530 = vld [vmem:[#allocation2 + $0x300] sm:$0xff]
      %v531 = vld [vmem:[#allocation2 + $0x308] sm:$0xff]
      %v532 = vld [vmem:[#allocation2 + $0x310] sm:$0xff]
      %v533 = vld [vmem:[#allocation2 + $0x318] sm:$0xff]
      %v534 = vld [vmem:[#allocation2 + $0x320] sm:$0xff]
      %v535 = vld [vmem:[#allocation2 + $0x328] sm:$0xff]
      %v536 = vld [vmem:[#allocation2 + $0x330] sm:$0xff]
      %v537 = vld [vmem:[#allocation2 + $0x338] sm:$0xff]
      %v538 = vld [vmem:[#allocation2 + $0x340] sm:$0xff]
      %v539 = vld [vmem:[#allocation2 + $0x348] sm:$0xff]
      %v540 = vld [vmem:[#allocation2 + $0x350] sm:$0xff]
      %v541 = vld [vmem:[#allocation2 + $0x358] sm:$0xff]
      %v542 = vld [vmem:[#allocation2 + $0x360] sm:$0xff]
      %v543 = vld [vmem:[#allocation2 + $0x368] sm:$0xff]
      %v544 = vld [vmem:[#allocation2 + $0x370] sm:$0xff]
      %v545 = vld [vmem:[#allocation2 + $0x378] sm:$0xff]
      %v546 = vld [vmem:[#allocation2 + $0x380] sm:$0xff]
      %v547 = vld [vmem:[#allocation2 + $0x388] sm:$0xff]
      %v548 = vld [vmem:[#allocation2 + $0x390] sm:$0xff]
      %v549 = vld [vmem:[#allocation2 + $0x398] sm:$0xff]
      %v550 = vld [vmem:[#allocation2 + $0x3a0] sm:$0xff]
      %v551 = vld [vmem:[#allocation2 + $0x3a8] sm:$0xff]
      %v552 = vld [vmem:[#allocation2 + $0x3b0] sm:$0xff]
      %v553 = vld [vmem:[#allocation2 + $0x3b8] sm:$0xff]
      %v554 = vld [vmem:[#allocation2 + $0x3c0] sm:$0xff]
      %v555 = vld [vmem:[#allocation2 + $0x3c8] sm:$0xff]
      %v556 = vld [vmem:[#allocation2 + $0x3d0] sm:$0xff]
      %v557 = vld [vmem:[#allocation2 + $0x3d8] sm:$0xff]
      %v558 = vld [vmem:[#allocation2 + $0x3e0] sm:$0xff]
      %v559 = vld [vmem:[#allocation2 + $0x3e8] sm:$0xff]
      %v560 = vld [vmem:[#allocation2 + $0x3f0] sm:$0xff]
      %v561 = vld [vmem:[#allocation2 + $0x3f8] sm:$0xff]
      %v562 = vld [vmem:[%s1] sm:$0xf]
      %v563 = vld [vmem:[#allocation2 + $0x1] sm:$0xff]
      %v564 = vld [vmem:[#allocation2 + $0x9] sm:$0xff]
      %v565 = vld [vmem:[#allocation2 + $0x11] sm:$0xff]
      %v566 = vld [vmem:[#allocation2 + $0x19] sm:$0xff]
      %v567 = vld [vmem:[#allocation2 + $0x21] sm:$0xff]
      %v568 = vld [vmem:[#allocation2 + $0x29] sm:$0xff]
      %v569 = vld [vmem:[#allocation2 + $0x31] sm:$0xff]
      %v570 = vld [vmem:[#allocation2 + $0x39] sm:$0xff]
      %v571 = vld [vmem:[#allocation2 + $0x41] sm:$0xff]
      %v572 = vld [vmem:[#allocation2 + $0x49] sm:$0xff]
      %v573 = vld [vmem:[#allocation2 + $0x51] sm:$0xff]
      %v574 = vld [vmem:[#allocation2 + $0x59] sm:$0xff]
      %v575 = vld [vmem:[#allocation2 + $0x61] sm:$0xff]
      %v576 = vld [vmem:[#allocation2 + $0x69] sm:$0xff]
      %v577 = vld [vmem:[#allocation2 + $0x71] sm:$0xff]
      %v578 = vld [vmem:[#allocation2 + $0x79] sm:$0xff]
      %v579 = vld [vmem:[#allocation2 + $0x81] sm:$0xff]
      %v580 = vld [vmem:[#allocation2 + $0x89] sm:$0xff]
      %v581 = vld [vmem:[#allocation2 + $0x91] sm:$0xff]
      %v582 = vld [vmem:[#allocation2 + $0x99] sm:$0xff]
      %v583 = vld [vmem:[#allocation2 + $0xa1] sm:$0xff]
      %v584 = vld [vmem:[#allocation2 + $0xa9] sm:$0xff]
      %v585 = vld [vmem:[#allocation2 + $0xb1] sm:$0xff]
      %v586 = vld [vmem:[#allocation2 + $0xb9] sm:$0xff]
      %v587 = vld [vmem:[#allocation2 + $0xc1] sm:$0xff]
      %v588 = vld [vmem:[#allocation2 + $0xc9] sm:$0xff]
      %v589 = vld [vmem:[#allocation2 + $0xd1] sm:$0xff]
      %v590 = vld [vmem:[#allocation2 + $0xd9] sm:$0xff]
      %v591 = vld [vmem:[#allocation2 + $0xe1] sm:$0xff]
      %v592 = vld [vmem:[#allocation2 + $0xe9] sm:$0xff]
      %v593 = vld [vmem:[#allocation2 + $0xf1] sm:$0xff]
      %v594 = vld [vmem:[#allocation2 + $0xf9] sm:$0xff]
      %v595 = vld [vmem:[#allocation2 + $0x101] sm:$0xff]
      %v596 = vld [vmem:[#allocation2 + $0x109] sm:$0xff]
      %v597 = vld [vmem:[#allocation2 + $0x111] sm:$0xff]
      %v598 = vld [vmem:[#allocation2 + $0x119] sm:$0xff]
      %v599 = vld [vmem:[#allocation2 + $0x121] sm:$0xff]
      %v600 = vld [vmem:[#allocation2 + $0x129] sm:$0xff]
      %v601 = vld [vmem:[#allocation2 + $0x131] sm:$0xff]
      %v602 = vld [vmem:[#allocation2 + $0x139] sm:$0xff]
      %v603 = vld [vmem:[#allocation2 + $0x141] sm:$0xff]
      %v604 = vld [vmem:[#allocation2 + $0x149] sm:$0xff]
      %v605 = vld [vmem:[#allocation2 + $0x151] sm:$0xff]
      %v606 = vld [vmem:[#allocation2 + $0x159] sm:$0xff]
      %v607 = vld [vmem:[#allocation2 + $0x161] sm:$0xff]
      %v608 = vld [vmem:[#allocation2 + $0x169] sm:$0xff]
      %v609 = vld [vmem:[#allocation2 + $0x171] sm:$0xff]
      %v610 = vld [vmem:[#allocation2 + $0x179] sm:$0xff]
      %v611 = vld [vmem:[#allocation2 + $0x181] sm:$0xff]
      %v612 = vld [vmem:[#allocation2 + $0x189] sm:$0xff]
      %v613 = vld [vmem:[#allocation2 + $0x191] sm:$0xff]
      %v614 = vld [vmem:[#allocation2 + $0x199] sm:$0xff]
      %v615 = vld [vmem:[#allocation2 + $0x1a1] sm:$0xff]
      %v616 = vld [vmem:[#allocation2 + $0x1a9] sm:$0xff]
      %v617 = vld [vmem:[#allocation2 + $0x1b1] sm:$0xff]
      %v618 = vld [vmem:[#allocation2 + $0x1b9] sm:$0xff]
      %v619 = vld [vmem:[#allocation2 + $0x1c1] sm:$0xff]
      %v620 = vld [vmem:[#allocation2 + $0x1c9] sm:$0xff]
      %v621 = vld [vmem:[#allocation2 + $0x1d1] sm:$0xff]
      %v622 = vld [vmem:[#allocation2 + $0x1d9] sm:$0xff]
      %v623 = vld [vmem:[#allocation2 + $0x1e1] sm:$0xff]
      %v624 = vld [vmem:[#allocation2 + $0x1e9] sm:$0xff]
      %v625 = vld [vmem:[#allocation2 + $0x1f1] sm:$0xff]
      %v626 = vld [vmem:[#allocation2 + $0x1f9] sm:$0xff]
      %v627 = vld [vmem:[#allocation2 + $0x201] sm:$0xff]
      %v628 = vld [vmem:[#allocation2 + $0x209] sm:$0xff]
      %v629 = vld [vmem:[#allocation2 + $0x211] sm:$0xff]
      %v630 = vld [vmem:[#allocation2 + $0x219] sm:$0xff]
      %v631 = vld [vmem:[#allocation2 + $0x221] sm:$0xff]
      %v632 = vld [vmem:[#allocation2 + $0x229] sm:$0xff]
      %v633 = vld [vmem:[#allocation2 + $0x231] sm:$0xff]
      %v634 = vld [vmem:[#allocation2 + $0x239] sm:$0xff]
      %v635 = vld [vmem:[#allocation2 + $0x241] sm:$0xff]
      %v636 = vld [vmem:[#allocation2 + $0x249] sm:$0xff]
      %v637 = vld [vmem:[#allocation2 + $0x251] sm:$0xff]
      %v638 = vld [vmem:[#allocation2 + $0x259] sm:$0xff]
      %v639 = vld [vmem:[#allocation2 + $0x261] sm:$0xff]
      %v640 = vld [vmem:[#allocation2 + $0x269] sm:$0xff]
      %v641 = vld [vmem:[#allocation2 + $0x271] sm:$0xff]
      %v642 = vld [vmem:[#allocation2 + $0x279] sm:$0xff]
      %v643 = vld [vmem:[#allocation2 + $0x281] sm:$0xff]
      %v644 = vld [vmem:[#allocation2 + $0x289] sm:$0xff]
      %v645 = vld [vmem:[#allocation2 + $0x291] sm:$0xff]
      %v646 = vld [vmem:[#allocation2 + $0x299] sm:$0xff]
      %v647 = vld [vmem:[#allocation2 + $0x2a1] sm:$0xff]
      %v648 = vld [vmem:[#allocation2 + $0x2a9] sm:$0xff]
      %v649 = vld [vmem:[#allocation2 + $0x2b1] sm:$0xff]
      %v650 = vld [vmem:[#allocation2 + $0x2b9] sm:$0xff]
      %v651 = vld [vmem:[#allocation2 + $0x2c1] sm:$0xff]
      %v652 = vld [vmem:[#allocation2 + $0x2c9] sm:$0xff]
      %v653 = vld [vmem:[#allocation2 + $0x2d1] sm:$0xff]
      %v654 = vld [vmem:[#allocation2 + $0x2d9] sm:$0xff]
      %v655 = vld [vmem:[#allocation2 + $0x2e1] sm:$0xff]
      %v656 = vld [vmem:[#allocation2 + $0x2e9] sm:$0xff]
      %v657 = vld [vmem:[#allocation2 + $0x2f1] sm:$0xff]
      %v658 = vld [vmem:[#allocation2 + $0x2f9] sm:$0xff]
      %v659 = vld [vmem:[#allocation2 + $0x301] sm:$0xff]
      %v660 = vld [vmem:[#allocation2 + $0x309] sm:$0xff]
      %v661 = vld [vmem:[#allocation2 + $0x311] sm:$0xff]
      %v662 = vld [vmem:[#allocation2 + $0x319] sm:$0xff]
      %v663 = vld [vmem:[#allocation2 + $0x321] sm:$0xff]
      %v664 = vld [vmem:[#allocation2 + $0x329] sm:$0xff]
      %v665 = vld [vmem:[#allocation2 + $0x331] sm:$0xff]
      %v666 = vld [vmem:[#allocation2 + $0x339] sm:$0xff]
      %v667 = vld [vmem:[#allocation2 + $0x341] sm:$0xff]
      %v668 = vld [vmem:[#allocation2 + $0x349] sm:$0xff]
      %v669 = vld [vmem:[#allocation2 + $0x351] sm:$0xff]
      %v670 = vld [vmem:[#allocation2 + $0x359] sm:$0xff]
      %v671 = vld [vmem:[#allocation2 + $0x361] sm:$0xff]
      %v672 = vld [vmem:[#allocation2 + $0x369] sm:$0xff]
      %v673 = vld [vmem:[#allocation2 + $0x371] sm:$0xff]
      %v674 = vld [vmem:[#allocation2 + $0x379] sm:$0xff]
      %v675 = vld [vmem:[#allocation2 + $0x381] sm:$0xff]
      %v676 = vld [vmem:[#allocation2 + $0x389] sm:$0xff]
      %v677 = vld [vmem:[#allocation2 + $0x391] sm:$0xff]
      %v678 = vld [vmem:[#allocation2 + $0x399] sm:$0xff]
      %v679 = vld [vmem:[#allocation2 + $0x3a1] sm:$0xff]
      %v680 = vld [vmem:[#allocation2 + $0x3a9] sm:$0xff]
      %v681 = vld [vmem:[#allocation2 + $0x3b1] sm:$0xff]
      %v682 = vld [vmem:[#allocation2 + $0x3b9] sm:$0xff]
      %v683 = vld [vmem:[#allocation2 + $0x3c1] sm:$0xff]
      %v684 = vld [vmem:[#allocation2 + $0x3c9] sm:$0xff]
      %v685 = vld [vmem:[#allocation2 + $0x3d1] sm:$0xff]
      %v686 = vld [vmem:[#allocation2 + $0x3d9] sm:$0xff]
      %v687 = vld [vmem:[#allocation2 + $0x3e1] sm:$0xff]
      %v688 = vld [vmem:[#allocation2 + $0x3e9] sm:$0xff]
      %v689 = vld [vmem:[#allocation2 + $0x3f1] sm:$0xff]
      %v690 = vld [vmem:[#allocation2 + $0x3f9] sm:$0xff]
      %s691 = scalar_lea.vmem %s1, 4
      %v692 = vld [vmem:[%s691] sm:$0xf]
      %v694 = vsel %vm302, %v563, 0
      %v697 = vsel %vm302, %v564, 0
      %v700 = vsel %vm302, %v565, 0
      %v703 = vsel %vm302, %v566, 0
      %v706 = vsel %vm302, %v567, 0
      %v709 = vsel %vm302, %v568, 0
      %v712 = vsel %vm302, %v569, 0
      %v715 = vsel %vm302, %v570, 0
      %v718 = vsel %vm302, %v571, 0
      %v721 = vsel %vm302, %v572, 0
      %v724 = vsel %vm302, %v573, 0
      %v727 = vsel %vm302, %v574, 0
      %v730 = vsel %vm302, %v575, 0
      %v733 = vsel %vm302, %v576, 0
      %v736 = vsel %vm302, %v577, 0
      %v739 = vsel %vm302, %v578, 0
      %v742 = vsel %vm302, %v579, 0
      %v745 = vsel %vm302, %v580, 0
      %v748 = vsel %vm302, %v581, 0
      %v751 = vsel %vm302, %v582, 0
      %v754 = vsel %vm302, %v583, 0
      %v757 = vsel %vm302, %v584, 0
      %v760 = vsel %vm302, %v585, 0
      %v763 = vsel %vm302, %v586, 0
      %v766 = vsel %vm302, %v587, 0
      %v769 = vsel %vm302, %v588, 0
      %v772 = vsel %vm302, %v589, 0
      %v775 = vsel %vm302, %v590, 0
      %v778 = vsel %vm302, %v591, 0
      %v781 = vsel %vm302, %v592, 0
      %v784 = vsel %vm302, %v593, 0
      %v787 = vsel %vm302, %v594, 0
      %v790 = vsel %vm302, %v595, 0
      %v793 = vsel %vm302, %v596, 0
      %v796 = vsel %vm302, %v597, 0
      %v799 = vsel %vm302, %v598, 0
      %v802 = vsel %vm302, %v599, 0
      %v805 = vsel %vm302, %v600, 0
      %v808 = vsel %vm302, %v601, 0
      %v811 = vsel %vm302, %v602, 0
      %v814 = vsel %vm302, %v603, 0
      %v817 = vsel %vm302, %v604, 0
      %v820 = vsel %vm302, %v605, 0
      %v823 = vsel %vm302, %v606, 0
      %v826 = vsel %vm302, %v607, 0
      %v829 = vsel %vm302, %v608, 0
      %v832 = vsel %vm302, %v609, 0
      %v835 = vsel %vm302, %v610, 0
      %v838 = vsel %vm302, %v611, 0
      %v841 = vsel %vm302, %v612, 0
      %v844 = vsel %vm302, %v613, 0
      %v847 = vsel %vm302, %v614, 0
      %v850 = vsel %vm302, %v615, 0
      %v853 = vsel %vm302, %v616, 0
      %v856 = vsel %vm302, %v617, 0
      %v859 = vsel %vm302, %v618, 0
      %v862 = vsel %vm302, %v619, 0
      %v865 = vsel %vm302, %v620, 0
      %v868 = vsel %vm302, %v621, 0
      %v871 = vsel %vm302, %v622, 0
      %v874 = vsel %vm302, %v623, 0
      %v877 = vsel %vm302, %v624, 0
      %v880 = vsel %vm302, %v625, 0
      %v883 = vsel %vm302, %v626, 0
      %v886 = vsel %vm302, %v627, 0
      %v889 = vsel %vm302, %v628, 0
      %v892 = vsel %vm302, %v629, 0
      %v895 = vsel %vm302, %v630, 0
      %v898 = vsel %vm302, %v631, 0
      %v901 = vsel %vm302, %v632, 0
      %v904 = vsel %vm302, %v633, 0
      %v907 = vsel %vm302, %v634, 0
      %v910 = vsel %vm302, %v635, 0
      %v913 = vsel %vm302, %v636, 0
      %v916 = vsel %vm302, %v637, 0
      %v919 = vsel %vm302, %v638, 0
      %v922 = vsel %vm302, %v639, 0
      %v925 = vsel %vm302, %v640, 0
      %v928 = vsel %vm302, %v641, 0
      %v931 = vsel %vm302, %v642, 0
      %v934 = vsel %vm302, %v643, 0
      %v937 = vsel %vm302, %v644, 0
      %v940 = vsel %vm302, %v645, 0
      %v943 = vsel %vm302, %v646, 0
      %v946 = vsel %vm302, %v647, 0
      %v949 = vsel %vm302, %v648, 0
      %v952 = vsel %vm302, %v649, 0
      %v955 = vsel %vm302, %v650, 0
      %v958 = vsel %vm302, %v651, 0
      %v961 = vsel %vm302, %v652, 0
      %v964 = vsel %vm302, %v653, 0
      %v967 = vsel %vm302, %v654, 0
      %v970 = vsel %vm302, %v655, 0
      %v973 = vsel %vm302, %v656, 0
      %v976 = vsel %vm302, %v657, 0
      %v979 = vsel %vm302, %v658, 0
      %v982 = vsel %vm302, %v659, 0
      %v985 = vsel %vm302, %v660, 0
      %v988 = vsel %vm302, %v661, 0
      %v991 = vsel %vm302, %v662, 0
      %v994 = vsel %vm302, %v663, 0
      %v997 = vsel %vm302, %v664, 0
      %v1000 = vsel %vm302, %v665, 0
      %v1003 = vsel %vm302, %v666, 0
      %v1006 = vsel %vm302, %v667, 0
      %v1009 = vsel %vm302, %v668, 0
      %v1012 = vsel %vm302, %v669, 0
      %v1015 = vsel %vm302, %v670, 0
      %v1018 = vsel %vm302, %v671, 0
      %v1021 = vsel %vm302, %v672, 0
      %v1024 = vsel %vm302, %v673, 0
      %v1027 = vsel %vm302, %v674, 0
      %v1030 = vsel %vm302, %v675, 0
      %v1033 = vsel %vm302, %v676, 0
      %v1036 = vsel %vm302, %v677, 0
      %v1039 = vsel %vm302, %v678, 0
      %v1042 = vsel %vm302, %v679, 0
      %v1045 = vsel %vm302, %v680, 0
      %v1048 = vsel %vm302, %v681, 0
      %v1051 = vsel %vm302, %v682, 0
      %v1054 = vsel %vm302, %v683, 0
      %v1057 = vsel %vm302, %v684, 0
      %v1060 = vsel %vm302, %v685, 0
      %v1063 = vsel %vm302, %v686, 0
      %v1066 = vsel %vm302, %v687, 0
      %v1069 = vsel %vm302, %v688, 0
      %v1072 = vsel %vm302, %v689, 0
      %v1075 = vsel %vm302, %v690, 0
      %vm1077 = vcmask 1043456
      %v1079 = vsel %vm1077, %v692, 0
      %1081 = vmatprep.subr.mxu0 0.0
      %1082 = vmatpush1.msra.mxu0 %v1079
      %1083 = vmatprep.subr.mxu0 0.0
      %1084 = vmatpush1.msra.mxu0 0.0
      %1085 = vmatprep.subr.mxu0 0.0
      %1086 = vmatpush1.msra.mxu0 0.0
      %1087 = vmatprep.subr.mxu0 0.0
      %1088 = vmatpush1.msra.mxu0 0.0
      %1089 = vmatprep.subr.mxu0 0.0
      %1090 = vmatpush1.msra.mxu0 0.0
      %1091 = vmatprep.subr.mxu0 0.0
      %1092 = vmatpush1.msra.mxu0 0.0
      %1093 = vmatprep.subr.mxu0 0.0
      %1094 = vmatpush1.msra.mxu0 0.0
      %1095 = vmatprep.subr.mxu0 0.0
      %1096 = vmatpush1.msra.mxu0 0.0
      %1097 = vmatprep.subr.mxu0 0.0
      %1098 = vmatpush1.msra.mxu0 0.0
      %1099 = vmatprep.subr.mxu0 0.0
      %1100 = vmatpush1.msra.mxu0 0.0
      %1101 = vmatprep.subr.mxu0 0.0
      %1102 = vmatpush1.msra.mxu0 0.0
      %1103 = vmatprep.subr.mxu0 0.0
      %1104 = vmatpush1.msra.mxu0 0.0
      %1105 = vmatprep.subr.mxu0 0.0
      %1106 = vmatpush1.msra.mxu0 0.0
      %1107 = vmatprep.subr.mxu0 0.0
      %1108 = vmatpush1.msra.mxu0 0.0
      %1109 = vmatprep.subr.mxu0 0.0
      %1110 = vmatpush1.msra.mxu0 0.0
      %1111 = vmatprep.subr.mxu0 0.0
      %1112 = vmatpush1.msra.mxu0 0.0
      %1113 = vmatprep.subr.mxu0 0.0
      %1114 = vmatpush1.msra.mxu0 0.0
      %1115 = vmatprep.subr.mxu0 0.0
      %1116 = vmatpush1.msra.mxu0 0.0
      %1117 = vmatprep.subr.mxu0 0.0
      %1118 = vmatpush1.msra.mxu0 0.0
      %1119 = vmatprep.subr.mxu0 0.0
      %1120 = vmatpush1.msra.mxu0 0.0
      %1121 = vmatprep.subr.mxu0 0.0
      %1122 = vmatpush1.msra.mxu0 0.0
      %1123 = vmatprep.subr.mxu0 0.0
      %1124 = vmatpush1.msra.mxu0 0.0
      %1125 = vmatprep.subr.mxu0 0.0
      %1126 = vmatpush1.msra.mxu0 0.0
      %1127 = vmatprep.subr.mxu0 0.0
      %1128 = vmatpush1.msra.mxu0 0.0
      %1129 = vmatprep.subr.mxu0 0.0
      %1130 = vmatpush1.msra.mxu0 0.0
      %1131 = vmatprep.subr.mxu0 0.0
      %1132 = vmatpush1.msra.mxu0 0.0
      %1133 = vmatprep.subr.mxu0 0.0
      %1134 = vmatpush1.msra.mxu0 0.0
      %1135 = vmatprep.subr.mxu0 0.0
      %1136 = vmatpush1.msra.mxu0 0.0
      %1137 = vmatprep.subr.mxu0 0.0
      %1138 = vmatpush1.msra.mxu0 0.0
      %1139 = vmatprep.subr.mxu0 0.0
      %1140 = vmatpush1.msra.mxu0 0.0
      %1141 = vmatprep.subr.mxu0 0.0
      %1142 = vmatpush1.msra.mxu0 0.0
      %1143 = vmatprep.subr.mxu0 0.0
      %1144 = vmatpush1.msra.mxu0 0.0
      %1145 = vmatprep.mubr.f32.mxu0 0.0
      %1146 = vmatmul.mubr.f32.gmra.mrb[0].mxu0 %v694
      %v1147 = vpop.f32.mrb[0].mxu0
      %v1148 = vadd.f32 0.0, %v1147
      %v1149 = vpop.f32.mrb[0].mxu0
      %1150 = vmatprep.mubr.f32.mxu0 0.0
      %1151 = vmatmul.mubr.f32.gmra.mrb[0].mxu0 %v697
      %v1152 = vpop.f32.mrb[0].mxu0
      %v1153 = vadd.f32 0.0, %v1152
      %v1154 = vpop.f32.mrb[0].mxu0
      %1155 = vmatprep.mubr.f32.mxu0 0.0
      %1156 = vmatmul.mubr.f32.gmra.mrb[0].mxu0 %v700
      %v1157 = vpop.f32.mrb[0].mxu0
      %v1158 = vadd.f32 0.0, %v1157
      %v1159 = vpop.f32.mrb[0].mxu0
      %1160 = vmatprep.mubr.f32.mxu0 0.0
      %1161 = vmatmul.mubr.f32.gmra.mrb[0].mxu0 %v703
      %v1162 = vpop.f32.mrb[0].mxu0
      %v1163 = vadd.f32 0.0, %v1162
      %v1164 = vpop.f32.mrb[0].mxu0
      %1165 = vmatprep.mubr.f32.mxu0 0.0
      %1166 = vmatmul.mubr.f32.gmra.mrb[0].mxu0 %v706
      %v1167 = vpop.f32.mrb[0].mxu0
      %v1168 = vadd.f32 0.0, %v1167
      %v1169 = vpop.f32.mrb[0].mxu0
      %1170 = vmatprep.mubr.f32.mxu0 0.0
      %1171 = vmatmul.mubr.f32.gmra.mrb[0].mxu0 %v709
      %v1172 = vpop.f32.mrb[0].mxu0
      %v1173 = vadd.f32 0.0, %v1172
      %v1174 = vpop.f32.mrb[0].mxu0
      %1175 = vmatprep.mubr.f32.mxu0 0.0
      %1176 = vmatmul.mubr.f32.gmra.mrb[0].mxu0 %v712
      %v1177 = vpop.f32.mrb[0].mxu0
      %v1178 = vadd.f32 0.0, %v1177
      %v1179 = vpop.f32.mrb[0].mxu0
      %1180 = vmatprep.mubr.f32.mxu0 0.0
      %1181 = vmatmul.mubr.f32.gmra.mrb[0].mxu0 %v715
      %v1182 = vpop.f32.mrb[0].mxu0
      %v1183 = vadd.f32 0.0, %v1182
      %v1184 = vpop.f32.mrb[0].mxu0
      %1185 = vmatprep.mubr.f32.mxu0 0.0
      %1186 = vmatmul.mubr.f32.gmra.mrb[0].mxu0 %v718
      %v1187 = vpop.f32.mrb[0].mxu0
      %v1188 = vadd.f32 0.0, %v1187
      %v1189 = vpop.f32.mrb[0].mxu0
      %1190 = vmatprep.mubr.f32.mxu0 0.0
      %1191 = vmatmul.mubr.f32.gmra.mrb[0].mxu0 %v721
      %v1192 = vpop.f32.mrb[0].mxu0
      %v1193 = vadd.f32 0.0, %v1192
      %v1194 = vpop.f32.mrb[0].mxu0
      %1195 = vmatprep.mubr.f32.mxu0 0.0
      %1196 = vmatmul.mubr.f32.gmra.mrb[0].mxu0 %v724
      %v1197 = vpop.f32.mrb[0].mxu0
      %v1198 = vadd.f32 0.0, %v1197
      %v1199 = vpop.f32.mrb[0].mxu0
      %1200 = vmatprep.mubr.f32.mxu0 0.0
      %1201 = vmatmul.mubr.f32.gmra.mrb[0].mxu0 %v727
      %v1202 = vpop.f32.mrb[0].mxu0
      %v1203 = vadd.f32 0.0, %v1202
      %v1204 = vpop.f32.mrb[0].mxu0
      %1205 = vmatprep.mubr.f32.mxu0 0.0
      %1206 = vmatmul.mubr.f32.gmra.mrb[0].mxu0 %v730
      %v1207 = vpop.f32.mrb[0].mxu0
      %v1208 = vadd.f32 0.0, %v1207
      %v1209 = vpop.f32.mrb[0].mxu0
      %1210 = vmatprep.mubr.f32.mxu0 0.0
      %1211 = vmatmul.mubr.f32.gmra.mrb[0].mxu0 %v733
      %v1212 = vpop.f32.mrb[0].mxu0
      %v1213 = vadd.f32 0.0, %v1212
      %v1214 = vpop.f32.mrb[0].mxu0
      %1215 = vmatprep.mubr.f32.mxu0 0.0
      %1216 = vmatmul.mubr.f32.gmra.mrb[0].mxu0 %v736
      %v1217 = vpop.f32.mrb[0].mxu0
      %v1218 = vadd.f32 0.0, %v1217
      %v1219 = vpop.f32.mrb[0].mxu0
      %1220 = vmatprep.mubr.f32.mxu0 0.0
      %1221 = vmatmul.mubr.f32.gmra.mrb[0].mxu0 %v739
      %v1222 = vpop.f32.mrb[0].mxu0
      %v1223 = vadd.f32 0.0, %v1222
      %v1224 = vpop.f32.mrb[0].mxu0
      %1225 = vmatprep.mubr.f32.mxu0 0.0
      %1226 = vmatmul.mubr.f32.gmra.mrb[0].mxu0 %v742
      %v1227 = vpop.f32.mrb[0].mxu0
      %v1228 = vadd.f32 0.0, %v1227
      %v1229 = vpop.f32.mrb[0].mxu0
      %1230 = vmatprep.mubr.f32.mxu0 0.0
      %1231 = vmatmul.mubr.f32.gmra.mrb[0].mxu0 %v745
      %v1232 = vpop.f32.mrb[0].mxu0
      %v1233 = vadd.f32 0.0, %v1232
      %v1234 = vpop.f32.mrb[0].mxu0
      %1235 = vmatprep.mubr.f32.mxu0 0.0
      %1236 = vmatmul.mubr.f32.gmra.mrb[0].mxu0 %v748
      %v1237 = vpop.f32.mrb[0].mxu0
      %v1238 = vadd.f32 0.0, %v1237
      %v1239 = vpop.f32.mrb[0].mxu0
      %1240 = vmatprep.mubr.f32.mxu0 0.0
      %1241 = vmatmul.mubr.f32.gmra.mrb[0].mxu0 %v751
      %v1242 = vpop.f32.mrb[0].mxu0
      %v1243 = vadd.f32 0.0, %v1242
      %v1244 = vpop.f32.mrb[0].mxu0
      %1245 = vmatprep.mubr.f32.mxu0 0.0
      %1246 = vmatmul.mubr.f32.gmra.mrb[0].mxu0 %v754
      %v1247 = vpop.f32.mrb[0].mxu0
      %v1248 = vadd.f32 0.0, %v1247
      %v1249 = vpop.f32.mrb[0].mxu0
      %1250 = vmatprep.mubr.f32.mxu0 0.0
      %1251 = vmatmul.mubr.f32.gmra.mrb[0].mxu0 %v757
      %v1252 = vpop.f32.mrb[0].mxu0
      %v1253 = vadd.f32 0.0, %v1252
      %v1254 = vpop.f32.mrb[0].mxu0
      %1255 = vmatprep.mubr.f32.mxu0 0.0
      %1256 = vmatmul.mubr.f32.gmra.mrb[0].mxu0 %v760
      %v1257 = vpop.f32.mrb[0].mxu0
      %v1258 = vadd.f32 0.0, %v1257
      %v1259 = vpop.f32.mrb[0].mxu0
      %1260 = vmatprep.mubr.f32.mxu0 0.0
      %1261 = vmatmul.mubr.f32.gmra.mrb[0].mxu0 %v763
      %v1262 = vpop.f32.mrb[0].mxu0
      %v1263 = vadd.f32 0.0, %v1262
      %v1264 = vpop.f32.mrb[0].mxu0
      %1265 = vmatprep.mubr.f32.mxu0 0.0
      %1266 = vmatmul.mubr.f32.gmra.mrb[0].mxu0 %v766
      %v1267 = vpop.f32.mrb[0].mxu0
      %v1268 = vadd.f32 0.0, %v1267
      %v1269 = vpop.f32.mrb[0].mxu0
      %1270 = vmatprep.mubr.f32.mxu0 0.0
      %1271 = vmatmul.mubr.f32.gmra.mrb[0].mxu0 %v769
      %v1272 = vpop.f32.mrb[0].mxu0
      %v1273 = vadd.f32 0.0, %v1272
      %v1274 = vpop.f32.mrb[0].mxu0
      %1275 = vmatprep.mubr.f32.mxu0 0.0
      %1276 = vmatmul.mubr.f32.gmra.mrb[0].mxu0 %v772
      %v1277 = vpop.f32.mrb[0].mxu0
      %v1278 = vadd.f32 0.0, %v1277
      %v1279 = vpop.f32.mrb[0].mxu0
      %1280 = vmatprep.mubr.f32.mxu0 0.0
      %1281 = vmatmul.mubr.f32.gmra.mrb[0].mxu0 %v775
      %v1282 = vpop.f32.mrb[0].mxu0
      %v1283 = vadd.f32 0.0, %v1282
      %v1284 = vpop.f32.mrb[0].mxu0
      %1285 = vmatprep.mubr.f32.mxu0 0.0
      %1286 = vmatmul.mubr.f32.gmra.mrb[0].mxu0 %v778
      %v1287 = vpop.f32.mrb[0].mxu0
      %v1288 = vadd.f32 0.0, %v1287
      %v1289 = vpop.f32.mrb[0].mxu0
      %1290 = vmatprep.mubr.f32.mxu0 0.0
      %1291 = vmatmul.mubr.f32.gmra.mrb[0].mxu0 %v781
      %v1292 = vpop.f32.mrb[0].mxu0
      %v1293 = vadd.f32 0.0, %v1292
      %v1294 = vpop.f32.mrb[0].mxu0
      %1295 = vmatprep.mubr.f32.mxu0 0.0
      %1296 = vmatmul.mubr.f32.gmra.mrb[0].mxu0 %v784
      %v1297 = vpop.f32.mrb[0].mxu0
      %v1298 = vadd.f32 0.0, %v1297
      %v1299 = vpop.f32.mrb[0].mxu0
      %1300 = vmatprep.mubr.f32.mxu0 0.0
      %1301 = vmatmul.mubr.f32.gmra.mrb[0].mxu0 %v787
      %v1302 = vpop.f32.mrb[0].mxu0
      %v1303 = vadd.f32 0.0, %v1302
      %v1304 = vpop.f32.mrb[0].mxu0
      %1305 = vmatprep.mubr.f32.mxu0 0.0
      %1306 = vmatmul.mubr.f32.gmra.mrb[0].mxu0 %v790
      %v1307 = vpop.f32.mrb[0].mxu0
      %v1308 = vadd.f32 0.0, %v1307
      %v1309 = vpop.f32.mrb[0].mxu0
      %1310 = vmatprep.mubr.f32.mxu0 0.0
      %1311 = vmatmul.mubr.f32.gmra.mrb[0].mxu0 %v793
      %v1312 = vpop.f32.mrb[0].mxu0
      %v1313 = vadd.f32 0.0, %v1312
      %v1314 = vpop.f32.mrb[0].mxu0
      %1315 = vmatprep.mubr.f32.mxu0 0.0
      %1316 = vmatmul.mubr.f32.gmra.mrb[0].mxu0 %v796
      %v1317 = vpop.f32.mrb[0].mxu0
      %v1318 = vadd.f32 0.0, %v1317
      %v1319 = vpop.f32.mrb[0].mxu0
      %1320 = vmatprep.mubr.f32.mxu0 0.0
      %1321 = vmatmul.mubr.f32.gmra.mrb[0].mxu0 %v799
      %v1322 = vpop.f32.mrb[0].mxu0
      %v1323 = vadd.f32 0.0, %v1322
      %v1324 = vpop.f32.mrb[0].mxu0
      %1325 = vmatprep.mubr.f32.mxu0 0.0
      %1326 = vmatmul.mubr.f32.gmra.mrb[0].mxu0 %v802
      %v1327 = vpop.f32.mrb[0].mxu0
      %v1328 = vadd.f32 0.0, %v1327
      %v1329 = vpop.f32.mrb[0].mxu0
      %1330 = vmatprep.mubr.f32.mxu0 0.0
      %1331 = vmatmul.mubr.f32.gmra.mrb[0].mxu0 %v805
      %v1332 = vpop.f32.mrb[0].mxu0
      %v1333 = vadd.f32 0.0, %v1332
      %v1334 = vpop.f32.mrb[0].mxu0
      %1335 = vmatprep.mubr.f32.mxu0 0.0
      %1336 = vmatmul.mubr.f32.gmra.mrb[0].mxu0 %v808
      %v1337 = vpop.f32.mrb[0].mxu0
      %v1338 = vadd.f32 0.0, %v1337
      %v1339 = vpop.f32.mrb[0].mxu0
      %1340 = vmatprep.mubr.f32.mxu0 0.0
      %1341 = vmatmul.mubr.f32.gmra.mrb[0].mxu0 %v811
      %v1342 = vpop.f32.mrb[0].mxu0
      %v1343 = vadd.f32 0.0, %v1342
      %v1344 = vpop.f32.mrb[0].mxu0
      %1345 = vmatprep.mubr.f32.mxu0 0.0
      %1346 = vmatmul.mubr.f32.gmra.mrb[0].mxu0 %v814
      %v1347 = vpop.f32.mrb[0].mxu0
      %v1348 = vadd.f32 0.0, %v1347
      %v1349 = vpop.f32.mrb[0].mxu0
      %1350 = vmatprep.mubr.f32.mxu0 0.0
      %1351 = vmatmul.mubr.f32.gmra.mrb[0].mxu0 %v817
      %v1352 = vpop.f32.mrb[0].mxu0
      %v1353 = vadd.f32 0.0, %v1352
      %v1354 = vpop.f32.mrb[0].mxu0
      %1355 = vmatprep.mubr.f32.mxu0 0.0
      %1356 = vmatmul.mubr.f32.gmra.mrb[0].mxu0 %v820
      %v1357 = vpop.f32.mrb[0].mxu0
      %v1358 = vadd.f32 0.0, %v1357
      %v1359 = vpop.f32.mrb[0].mxu0
      %1360 = vmatprep.mubr.f32.mxu0 0.0
      %1361 = vmatmul.mubr.f32.gmra.mrb[0].mxu0 %v823
      %v1362 = vpop.f32.mrb[0].mxu0
      %v1363 = vadd.f32 0.0, %v1362
      %v1364 = vpop.f32.mrb[0].mxu0
      %1365 = vmatprep.mubr.f32.mxu0 0.0
      %1366 = vmatmul.mubr.f32.gmra.mrb[0].mxu0 %v826
      %v1367 = vpop.f32.mrb[0].mxu0
      %v1368 = vadd.f32 0.0, %v1367
      %v1369 = vpop.f32.mrb[0].mxu0
      %1370 = vmatprep.mubr.f32.mxu0 0.0
      %1371 = vmatmul.mubr.f32.gmra.mrb[0].mxu0 %v829
      %v1372 = vpop.f32.mrb[0].mxu0
      %v1373 = vadd.f32 0.0, %v1372
      %v1374 = vpop.f32.mrb[0].mxu0
      %1375 = vmatprep.mubr.f32.mxu0 0.0
      %1376 = vmatmul.mubr.f32.gmra.mrb[0].mxu0 %v832
      %v1377 = vpop.f32.mrb[0].mxu0
      %v1378 = vadd.f32 0.0, %v1377
      %v1379 = vpop.f32.mrb[0].mxu0
      %1380 = vmatprep.mubr.f32.mxu0 0.0
      %1381 = vmatmul.mubr.f32.gmra.mrb[0].mxu0 %v835
      %v1382 = vpop.f32.mrb[0].mxu0
      %v1383 = vadd.f32 0.0, %v1382
      %v1384 = vpop.f32.mrb[0].mxu0
      %1385 = vmatprep.mubr.f32.mxu0 0.0
      %1386 = vmatmul.mubr.f32.gmra.mrb[0].mxu0 %v838
      %v1387 = vpop.f32.mrb[0].mxu0
      %v1388 = vadd.f32 0.0, %v1387
      %v1389 = vpop.f32.mrb[0].mxu0
      %1390 = vmatprep.mubr.f32.mxu0 0.0
      %1391 = vmatmul.mubr.f32.gmra.mrb[0].mxu0 %v841
      %v1392 = vpop.f32.mrb[0].mxu0
      %v1393 = vadd.f32 0.0, %v1392
      %v1394 = vpop.f32.mrb[0].mxu0
      %1395 = vmatprep.mubr.f32.mxu0 0.0
      %1396 = vmatmul.mubr.f32.gmra.mrb[0].mxu0 %v844
      %v1397 = vpop.f32.mrb[0].mxu0
      %v1398 = vadd.f32 0.0, %v1397
      %v1399 = vpop.f32.mrb[0].mxu0
      %1400 = vmatprep.mubr.f32.mxu0 0.0
      %1401 = vmatmul.mubr.f32.gmra.mrb[0].mxu0 %v847
      %v1402 = vpop.f32.mrb[0].mxu0
      %v1403 = vadd.f32 0.0, %v1402
      %v1404 = vpop.f32.mrb[0].mxu0
      %1405 = vmatprep.mubr.f32.mxu0 0.0
      %1406 = vmatmul.mubr.f32.gmra.mrb[0].mxu0 %v850
      %v1407 = vpop.f32.mrb[0].mxu0
      %v1408 = vadd.f32 0.0, %v1407
      %v1409 = vpop.f32.mrb[0].mxu0
      %1410 = vmatprep.mubr.f32.mxu0 0.0
      %1411 = vmatmul.mubr.f32.gmra.mrb[0].mxu0 %v853
      %v1412 = vpop.f32.mrb[0].mxu0
      %v1413 = vadd.f32 0.0, %v1412
      %v1414 = vpop.f32.mrb[0].mxu0
      %1415 = vmatprep.mubr.f32.mxu0 0.0
      %1416 = vmatmul.mubr.f32.gmra.mrb[0].mxu0 %v856
      %v1417 = vpop.f32.mrb[0].mxu0
      %v1418 = vadd.f32 0.0, %v1417
      %v1419 = vpop.f32.mrb[0].mxu0
      %1420 = vmatprep.mubr.f32.mxu0 0.0
      %1421 = vmatmul.mubr.f32.gmra.mrb[0].mxu0 %v859
      %v1422 = vpop.f32.mrb[0].mxu0
      %v1423 = vadd.f32 0.0, %v1422
      %v1424 = vpop.f32.mrb[0].mxu0
      %1425 = vmatprep.mubr.f32.mxu0 0.0
      %1426 = vmatmul.mubr.f32.gmra.mrb[0].mxu0 %v862
      %v1427 = vpop.f32.mrb[0].mxu0
      %v1428 = vadd.f32 0.0, %v1427
      %v1429 = vpop.f32.mrb[0].mxu0
      %1430 = vmatprep.mubr.f32.mxu0 0.0
      %1431 = vmatmul.mubr.f32.gmra.mrb[0].mxu0 %v865
      %v1432 = vpop.f32.mrb[0].mxu0
      %v1433 = vadd.f32 0.0, %v1432
      %v1434 = vpop.f32.mrb[0].mxu0
      %1435 = vmatprep.mubr.f32.mxu0 0.0
      %1436 = vmatmul.mubr.f32.gmra.mrb[0].mxu0 %v868
      %v1437 = vpop.f32.mrb[0].mxu0
      %v1438 = vadd.f32 0.0, %v1437
      %v1439 = vpop.f32.mrb[0].mxu0
      %1440 = vmatprep.mubr.f32.mxu0 0.0
      %1441 = vmatmul.mubr.f32.gmra.mrb[0].mxu0 %v871
      %v1442 = vpop.f32.mrb[0].mxu0
      %v1443 = vadd.f32 0.0, %v1442
      %v1444 = vpop.f32.mrb[0].mxu0
      %1445 = vmatprep.mubr.f32.mxu0 0.0
      %1446 = vmatmul.mubr.f32.gmra.mrb[0].mxu0 %v874
      %v1447 = vpop.f32.mrb[0].mxu0
      %v1448 = vadd.f32 0.0, %v1447
      %v1449 = vpop.f32.mrb[0].mxu0
      %1450 = vmatprep.mubr.f32.mxu0 0.0
      %1451 = vmatmul.mubr.f32.gmra.mrb[0].mxu0 %v877
      %v1452 = vpop.f32.mrb[0].mxu0
      %v1453 = vadd.f32 0.0, %v1452
      %v1454 = vpop.f32.mrb[0].mxu0
      %1455 = vmatprep.mubr.f32.mxu0 0.0
      %1456 = vmatmul.mubr.f32.gmra.mrb[0].mxu0 %v880
      %v1457 = vpop.f32.mrb[0].mxu0
      %v1458 = vadd.f32 0.0, %v1457
      %v1459 = vpop.f32.mrb[0].mxu0
      %1460 = vmatprep.mubr.f32.mxu0 0.0
      %1461 = vmatmul.mubr.f32.gmra.mrb[0].mxu0 %v883
      %v1462 = vpop.f32.mrb[0].mxu0
      %v1463 = vadd.f32 0.0, %v1462
      %v1464 = vpop.f32.mrb[0].mxu0
      %1465 = vmatprep.mubr.f32.mxu0 0.0
      %1466 = vmatmul.mubr.f32.gmra.mrb[0].mxu0 %v886
      %v1467 = vpop.f32.mrb[0].mxu0
      %v1468 = vadd.f32 0.0, %v1467
      %v1469 = vpop.f32.mrb[0].mxu0
      %1470 = vmatprep.mubr.f32.mxu0 0.0
      %1471 = vmatmul.mubr.f32.gmra.mrb[0].mxu0 %v889
      %v1472 = vpop.f32.mrb[0].mxu0
      %v1473 = vadd.f32 0.0, %v1472
      %v1474 = vpop.f32.mrb[0].mxu0
      %1475 = vmatprep.mubr.f32.mxu0 0.0
      %1476 = vmatmul.mubr.f32.gmra.mrb[0].mxu0 %v892
      %v1477 = vpop.f32.mrb[0].mxu0
      %v1478 = vadd.f32 0.0, %v1477
      %v1479 = vpop.f32.mrb[0].mxu0
      %1480 = vmatprep.mubr.f32.mxu0 0.0
      %1481 = vmatmul.mubr.f32.gmra.mrb[0].mxu0 %v895
      %v1482 = vpop.f32.mrb[0].mxu0
      %v1483 = vadd.f32 0.0, %v1482
      %v1484 = vpop.f32.mrb[0].mxu0
      %1485 = vmatprep.mubr.f32.mxu0 0.0
      %1486 = vmatmul.mubr.f32.gmra.mrb[0].mxu0 %v898
      %v1487 = vpop.f32.mrb[0].mxu0
      %v1488 = vadd.f32 0.0, %v1487
      %v1489 = vpop.f32.mrb[0].mxu0
      %1490 = vmatprep.mubr.f32.mxu0 0.0
      %1491 = vmatmul.mubr.f32.gmra.mrb[0].mxu0 %v901
      %v1492 = vpop.f32.mrb[0].mxu0
      %v1493 = vadd.f32 0.0, %v1492
      %v1494 = vpop.f32.mrb[0].mxu0
      %1495 = vmatprep.mubr.f32.mxu0 0.0
      %1496 = vmatmul.mubr.f32.gmra.mrb[0].mxu0 %v904
      %v1497 = vpop.f32.mrb[0].mxu0
      %v1498 = vadd.f32 0.0, %v1497
      %v1499 = vpop.f32.mrb[0].mxu0
      %1500 = vmatprep.mubr.f32.mxu0 0.0
      %1501 = vmatmul.mubr.f32.gmra.mrb[0].mxu0 %v907
      %v1502 = vpop.f32.mrb[0].mxu0
      %v1503 = vadd.f32 0.0, %v1502
      %v1504 = vpop.f32.mrb[0].mxu0
      %1505 = vmatprep.mubr.f32.mxu0 0.0
      %1506 = vmatmul.mubr.f32.gmra.mrb[0].mxu0 %v910
      %v1507 = vpop.f32.mrb[0].mxu0
      %v1508 = vadd.f32 0.0, %v1507
      %v1509 = vpop.f32.mrb[0].mxu0
      %1510 = vmatprep.mubr.f32.mxu0 0.0
      %1511 = vmatmul.mubr.f32.gmra.mrb[0].mxu0 %v913
      %v1512 = vpop.f32.mrb[0].mxu0
      %v1513 = vadd.f32 0.0, %v1512
      %v1514 = vpop.f32.mrb[0].mxu0
      %1515 = vmatprep.mubr.f32.mxu0 0.0
      %1516 = vmatmul.mubr.f32.gmra.mrb[0].mxu0 %v916
      %v1517 = vpop.f32.mrb[0].mxu0
      %v1518 = vadd.f32 0.0, %v1517
      %v1519 = vpop.f32.mrb[0].mxu0
      %1520 = vmatprep.mubr.f32.mxu0 0.0
      %1521 = vmatmul.mubr.f32.gmra.mrb[0].mxu0 %v919
      %v1522 = vpop.f32.mrb[0].mxu0
      %v1523 = vadd.f32 0.0, %v1522
      %v1524 = vpop.f32.mrb[0].mxu0
      %1525 = vmatprep.mubr.f32.mxu0 0.0
      %1526 = vmatmul.mubr.f32.gmra.mrb[0].mxu0 %v922
      %v1527 = vpop.f32.mrb[0].mxu0
      %v1528 = vadd.f32 0.0, %v1527
      %v1529 = vpop.f32.mrb[0].mxu0
      %1530 = vmatprep.mubr.f32.mxu0 0.0
      %1531 = vmatmul.mubr.f32.gmra.mrb[0].mxu0 %v925
      %v1532 = vpop.f32.mrb[0].mxu0
      %v1533 = vadd.f32 0.0, %v1532
      %v1534 = vpop.f32.mrb[0].mxu0
      %1535 = vmatprep.mubr.f32.mxu0 0.0
      %1536 = vmatmul.mubr.f32.gmra.mrb[0].mxu0 %v928
      %v1537 = vpop.f32.mrb[0].mxu0
      %v1538 = vadd.f32 0.0, %v1537
      %v1539 = vpop.f32.mrb[0].mxu0
      %1540 = vmatprep.mubr.f32.mxu0 0.0
      %1541 = vmatmul.mubr.f32.gmra.mrb[0].mxu0 %v931
      %v1542 = vpop.f32.mrb[0].mxu0
      %v1543 = vadd.f32 0.0, %v1542
      %v1544 = vpop.f32.mrb[0].mxu0
      %1545 = vmatprep.mubr.f32.mxu0 0.0
      %1546 = vmatmul.mubr.f32.gmra.mrb[0].mxu0 %v934
      %v1547 = vpop.f32.mrb[0].mxu0
      %v1548 = vadd.f32 0.0, %v1547
      %v1549 = vpop.f32.mrb[0].mxu0
      %1550 = vmatprep.mubr.f32.mxu0 0.0
      %1551 = vmatmul.mubr.f32.gmra.mrb[0].mxu0 %v937
      %v1552 = vpop.f32.mrb[0].mxu0
      %v1553 = vadd.f32 0.0, %v1552
      %v1554 = vpop.f32.mrb[0].mxu0
      %1555 = vmatprep.mubr.f32.mxu0 0.0
      %1556 = vmatmul.mubr.f32.gmra.mrb[0].mxu0 %v940
      %v1557 = vpop.f32.mrb[0].mxu0
      %v1558 = vadd.f32 0.0, %v1557
      %v1559 = vpop.f32.mrb[0].mxu0
      %1560 = vmatprep.mubr.f32.mxu0 0.0
      %1561 = vmatmul.mubr.f32.gmra.mrb[0].mxu0 %v943
      %v1562 = vpop.f32.mrb[0].mxu0
      %v1563 = vadd.f32 0.0, %v1562
      %v1564 = vpop.f32.mrb[0].mxu0
      %1565 = vmatprep.mubr.f32.mxu0 0.0
      %1566 = vmatmul.mubr.f32.gmra.mrb[0].mxu0 %v946
      %v1567 = vpop.f32.mrb[0].mxu0
      %v1568 = vadd.f32 0.0, %v1567
      %v1569 = vpop.f32.mrb[0].mxu0
      %1570 = vmatprep.mubr.f32.mxu0 0.0
      %1571 = vmatmul.mubr.f32.gmra.mrb[0].mxu0 %v949
      %v1572 = vpop.f32.mrb[0].mxu0
      %v1573 = vadd.f32 0.0, %v1572
      %v1574 = vpop.f32.mrb[0].mxu0
      %1575 = vmatprep.mubr.f32.mxu0 0.0
      %1576 = vmatmul.mubr.f32.gmra.mrb[0].mxu0 %v952
      %v1577 = vpop.f32.mrb[0].mxu0
      %v1578 = vadd.f32 0.0, %v1577
      %v1579 = vpop.f32.mrb[0].mxu0
      %1580 = vmatprep.mubr.f32.mxu0 0.0
      %1581 = vmatmul.mubr.f32.gmra.mrb[0].mxu0 %v955
      %v1582 = vpop.f32.mrb[0].mxu0
      %v1583 = vadd.f32 0.0, %v1582
      %v1584 = vpop.f32.mrb[0].mxu0
      %1585 = vmatprep.mubr.f32.mxu0 0.0
      %1586 = vmatmul.mubr.f32.gmra.mrb[0].mxu0 %v958
      %v1587 = vpop.f32.mrb[0].mxu0
      %v1588 = vadd.f32 0.0, %v1587
      %v1589 = vpop.f32.mrb[0].mxu0
      %1590 = vmatprep.mubr.f32.mxu0 0.0
      %1591 = vmatmul.mubr.f32.gmra.mrb[0].mxu0 %v961
      %v1592 = vpop.f32.mrb[0].mxu0
      %v1593 = vadd.f32 0.0, %v1592
      %v1594 = vpop.f32.mrb[0].mxu0
      %1595 = vmatprep.mubr.f32.mxu0 0.0
      %1596 = vmatmul.mubr.f32.gmra.mrb[0].mxu0 %v964
      %v1597 = vpop.f32.mrb[0].mxu0
      %v1598 = vadd.f32 0.0, %v1597
      %v1599 = vpop.f32.mrb[0].mxu0
      %1600 = vmatprep.mubr.f32.mxu0 0.0
      %1601 = vmatmul.mubr.f32.gmra.mrb[0].mxu0 %v967
      %v1602 = vpop.f32.mrb[0].mxu0
      %v1603 = vadd.f32 0.0, %v1602
      %v1604 = vpop.f32.mrb[0].mxu0
      %1605 = vmatprep.mubr.f32.mxu0 0.0
      %1606 = vmatmul.mubr.f32.gmra.mrb[0].mxu0 %v970
      %v1607 = vpop.f32.mrb[0].mxu0
      %v1608 = vadd.f32 0.0, %v1607
      %v1609 = vpop.f32.mrb[0].mxu0
      %1610 = vmatprep.mubr.f32.mxu0 0.0
      %1611 = vmatmul.mubr.f32.gmra.mrb[0].mxu0 %v973
      %v1612 = vpop.f32.mrb[0].mxu0
      %v1613 = vadd.f32 0.0, %v1612
      %v1614 = vpop.f32.mrb[0].mxu0
      %1615 = vmatprep.mubr.f32.mxu0 0.0
      %1616 = vmatmul.mubr.f32.gmra.mrb[0].mxu0 %v976
      %v1617 = vpop.f32.mrb[0].mxu0
      %v1618 = vadd.f32 0.0, %v1617
      %v1619 = vpop.f32.mrb[0].mxu0
      %1620 = vmatprep.mubr.f32.mxu0 0.0
      %1621 = vmatmul.mubr.f32.gmra.mrb[0].mxu0 %v979
      %v1622 = vpop.f32.mrb[0].mxu0
      %v1623 = vadd.f32 0.0, %v1622
      %v1624 = vpop.f32.mrb[0].mxu0
      %1625 = vmatprep.mubr.f32.mxu0 0.0
      %1626 = vmatmul.mubr.f32.gmra.mrb[0].mxu0 %v982
      %v1627 = vpop.f32.mrb[0].mxu0
      %v1628 = vadd.f32 0.0, %v1627
      %v1629 = vpop.f32.mrb[0].mxu0
      %1630 = vmatprep.mubr.f32.mxu0 0.0
      %1631 = vmatmul.mubr.f32.gmra.mrb[0].mxu0 %v985
      %v1632 = vpop.f32.mrb[0].mxu0
      %v1633 = vadd.f32 0.0, %v1632
      %v1634 = vpop.f32.mrb[0].mxu0
      %1635 = vmatprep.mubr.f32.mxu0 0.0
      %1636 = vmatmul.mubr.f32.gmra.mrb[0].mxu0 %v988
      %v1637 = vpop.f32.mrb[0].mxu0
      %v1638 = vadd.f32 0.0, %v1637
      %v1639 = vpop.f32.mrb[0].mxu0
      %1640 = vmatprep.mubr.f32.mxu0 0.0
      %1641 = vmatmul.mubr.f32.gmra.mrb[0].mxu0 %v991
      %v1642 = vpop.f32.mrb[0].mxu0
      %v1643 = vadd.f32 0.0, %v1642
      %v1644 = vpop.f32.mrb[0].mxu0
      %1645 = vmatprep.mubr.f32.mxu0 0.0
      %1646 = vmatmul.mubr.f32.gmra.mrb[0].mxu0 %v994
      %v1647 = vpop.f32.mrb[0].mxu0
      %v1648 = vadd.f32 0.0, %v1647
      %v1649 = vpop.f32.mrb[0].mxu0
      %1650 = vmatprep.mubr.f32.mxu0 0.0
      %1651 = vmatmul.mubr.f32.gmra.mrb[0].mxu0 %v997
      %v1652 = vpop.f32.mrb[0].mxu0
      %v1653 = vadd.f32 0.0, %v1652
      %v1654 = vpop.f32.mrb[0].mxu0
      %1655 = vmatprep.mubr.f32.mxu0 0.0
      %1656 = vmatmul.mubr.f32.gmra.mrb[0].mxu0 %v1000
      %v1657 = vpop.f32.mrb[0].mxu0
      %v1658 = vadd.f32 0.0, %v1657
      %v1659 = vpop.f32.mrb[0].mxu0
      %1660 = vmatprep.mubr.f32.mxu0 0.0
      %1661 = vmatmul.mubr.f32.gmra.mrb[0].mxu0 %v1003
      %v1662 = vpop.f32.mrb[0].mxu0
      %v1663 = vadd.f32 0.0, %v1662
      %v1664 = vpop.f32.mrb[0].mxu0
      %1665 = vmatprep.mubr.f32.mxu0 0.0
      %1666 = vmatmul.mubr.f32.gmra.mrb[0].mxu0 %v1006
      %v1667 = vpop.f32.mrb[0].mxu0
      %v1668 = vadd.f32 0.0, %v1667
      %v1669 = vpop.f32.mrb[0].mxu0
      %1670 = vmatprep.mubr.f32.mxu0 0.0
      %1671 = vmatmul.mubr.f32.gmra.mrb[0].mxu0 %v1009
      %v1672 = vpop.f32.mrb[0].mxu0
      %v1673 = vadd.f32 0.0, %v1672
      %v1674 = vpop.f32.mrb[0].mxu0
      %1675 = vmatprep.mubr.f32.mxu0 0.0
      %1676 = vmatmul.mubr.f32.gmra.mrb[0].mxu0 %v1012
      %v1677 = vpop.f32.mrb[0].mxu0
      %v1678 = vadd.f32 0.0, %v1677
      %v1679 = vpop.f32.mrb[0].mxu0
      %1680 = vmatprep.mubr.f32.mxu0 0.0
      %1681 = vmatmul.mubr.f32.gmra.mrb[0].mxu0 %v1015
      %v1682 = vpop.f32.mrb[0].mxu0
      %v1683 = vadd.f32 0.0, %v1682
      %v1684 = vpop.f32.mrb[0].mxu0
      %1685 = vmatprep.mubr.f32.mxu0 0.0
      %1686 = vmatmul.mubr.f32.gmra.mrb[0].mxu0 %v1018
      %v1687 = vpop.f32.mrb[0].mxu0
      %v1688 = vadd.f32 0.0, %v1687
      %v1689 = vpop.f32.mrb[0].mxu0
      %1690 = vmatprep.mubr.f32.mxu0 0.0
      %1691 = vmatmul.mubr.f32.gmra.mrb[0].mxu0 %v1021
      %v1692 = vpop.f32.mrb[0].mxu0
      %v1693 = vadd.f32 0.0, %v1692
      %v1694 = vpop.f32.mrb[0].mxu0
      %1695 = vmatprep.mubr.f32.mxu0 0.0
      %1696 = vmatmul.mubr.f32.gmra.mrb[0].mxu0 %v1024
      %v1697 = vpop.f32.mrb[0].mxu0
      %v1698 = vadd.f32 0.0, %v1697
      %v1699 = vpop.f32.mrb[0].mxu0
      %1700 = vmatprep.mubr.f32.mxu0 0.0
      %1701 = vmatmul.mubr.f32.gmra.mrb[0].mxu0 %v1027
      %v1702 = vpop.f32.mrb[0].mxu0
      %v1703 = vadd.f32 0.0, %v1702
      %v1704 = vpop.f32.mrb[0].mxu0
      %1705 = vmatprep.mubr.f32.mxu0 0.0
      %1706 = vmatmul.mubr.f32.gmra.mrb[0].mxu0 %v1030
      %v1707 = vpop.f32.mrb[0].mxu0
      %v1708 = vadd.f32 0.0, %v1707
      %v1709 = vpop.f32.mrb[0].mxu0
      %1710 = vmatprep.mubr.f32.mxu0 0.0
      %1711 = vmatmul.mubr.f32.gmra.mrb[0].mxu0 %v1033
      %v1712 = vpop.f32.mrb[0].mxu0
      %v1713 = vadd.f32 0.0, %v1712
      %v1714 = vpop.f32.mrb[0].mxu0
      %1715 = vmatprep.mubr.f32.mxu0 0.0
      %1716 = vmatmul.mubr.f32.gmra.mrb[0].mxu0 %v1036
      %v1717 = vpop.f32.mrb[0].mxu0
      %v1718 = vadd.f32 0.0, %v1717
      %v1719 = vpop.f32.mrb[0].mxu0
      %1720 = vmatprep.mubr.f32.mxu0 0.0
      %1721 = vmatmul.mubr.f32.gmra.mrb[0].mxu0 %v1039
      %v1722 = vpop.f32.mrb[0].mxu0
      %v1723 = vadd.f32 0.0, %v1722
      %v1724 = vpop.f32.mrb[0].mxu0
      %1725 = vmatprep.mubr.f32.mxu0 0.0
      %1726 = vmatmul.mubr.f32.gmra.mrb[0].mxu0 %v1042
      %v1727 = vpop.f32.mrb[0].mxu0
      %v1728 = vadd.f32 0.0, %v1727
      %v1729 = vpop.f32.mrb[0].mxu0
      %1730 = vmatprep.mubr.f32.mxu0 0.0
      %1731 = vmatmul.mubr.f32.gmra.mrb[0].mxu0 %v1045
      %v1732 = vpop.f32.mrb[0].mxu0
      %v1733 = vadd.f32 0.0, %v1732
      %v1734 = vpop.f32.mrb[0].mxu0
      %1735 = vmatprep.mubr.f32.mxu0 0.0
      %1736 = vmatmul.mubr.f32.gmra.mrb[0].mxu0 %v1048
      %v1737 = vpop.f32.mrb[0].mxu0
      %v1738 = vadd.f32 0.0, %v1737
      %v1739 = vpop.f32.mrb[0].mxu0
      %1740 = vmatprep.mubr.f32.mxu0 0.0
      %1741 = vmatmul.mubr.f32.gmra.mrb[0].mxu0 %v1051
      %v1742 = vpop.f32.mrb[0].mxu0
      %v1743 = vadd.f32 0.0, %v1742
      %v1744 = vpop.f32.mrb[0].mxu0
      %1745 = vmatprep.mubr.f32.mxu0 0.0
      %1746 = vmatmul.mubr.f32.gmra.mrb[0].mxu0 %v1054
      %v1747 = vpop.f32.mrb[0].mxu0
      %v1748 = vadd.f32 0.0, %v1747
      %v1749 = vpop.f32.mrb[0].mxu0
      %1750 = vmatprep.mubr.f32.mxu0 0.0
      %1751 = vmatmul.mubr.f32.gmra.mrb[0].mxu0 %v1057
      %v1752 = vpop.f32.mrb[0].mxu0
      %v1753 = vadd.f32 0.0, %v1752
      %v1754 = vpop.f32.mrb[0].mxu0
      %1755 = vmatprep.mubr.f32.mxu0 0.0
      %1756 = vmatmul.mubr.f32.gmra.mrb[0].mxu0 %v1060
      %v1757 = vpop.f32.mrb[0].mxu0
      %v1758 = vadd.f32 0.0, %v1757
      %v1759 = vpop.f32.mrb[0].mxu0
      %1760 = vmatprep.mubr.f32.mxu0 0.0
      %1761 = vmatmul.mubr.f32.gmra.mrb[0].mxu0 %v1063
      %v1762 = vpop.f32.mrb[0].mxu0
      %v1763 = vadd.f32 0.0, %v1762
      %v1764 = vpop.f32.mrb[0].mxu0
      %1765 = vmatprep.mubr.f32.mxu0 0.0
      %1766 = vmatmul.mubr.f32.gmra.mrb[0].mxu0 %v1066
      %v1767 = vpop.f32.mrb[0].mxu0
      %v1768 = vadd.f32 0.0, %v1767
      %v1769 = vpop.f32.mrb[0].mxu0
      %1770 = vmatprep.mubr.f32.mxu0 0.0
      %1771 = vmatmul.mubr.f32.gmra.mrb[0].mxu0 %v1069
      %v1772 = vpop.f32.mrb[0].mxu0
      %v1773 = vadd.f32 0.0, %v1772
      %v1774 = vpop.f32.mrb[0].mxu0
      %1775 = vmatprep.mubr.f32.mxu0 0.0
      %1776 = vmatmul.mubr.f32.gmra.mrb[0].mxu0 %v1072
      %v1777 = vpop.f32.mrb[0].mxu0
      %v1778 = vadd.f32 0.0, %v1777
      %v1779 = vpop.f32.mrb[0].mxu0
      %1780 = vmatprep.mubr.f32.mxu0 0.0
      %1781 = vmatmul.mubr.f32.gmra.mrb[0].mxu0 %v1075
      %v1782 = vpop.f32.mrb[0].mxu0
      %v1783 = vadd.f32 0.0, %v1782
      %v1784 = vpop.f32.mrb[0].mxu0
      %1785 = vdwg.mxu0
      %v1787 = vsel %vm302, %v434, 0
      %v1790 = vsel %vm302, %v435, 0
      %v1793 = vsel %vm302, %v436, 0
      %v1796 = vsel %vm302, %v437, 0
      %v1799 = vsel %vm302, %v438, 0
      %v1802 = vsel %vm302, %v439, 0
      %v1805 = vsel %vm302, %v440, 0
      %v1808 = vsel %vm302, %v441, 0
      %v1811 = vsel %vm302, %v442, 0
      %v1814 = vsel %vm302, %v443, 0
      %v1817 = vsel %vm302, %v444, 0
      %v1820 = vsel %vm302, %v445, 0
      %v1823 = vsel %vm302, %v446, 0
      %v1826 = vsel %vm302, %v447, 0
      %v1829 = vsel %vm302, %v448, 0
      %v1832 = vsel %vm302, %v449, 0
      %v1835 = vsel %vm302, %v450, 0
      %v1838 = vsel %vm302, %v451, 0
      %v1841 = vsel %vm302, %v452, 0
      %v1844 = vsel %vm302, %v453, 0
      %v1847 = vsel %vm302, %v454, 0
      %v1850 = vsel %vm302, %v455, 0
      %v1853 = vsel %vm302, %v456, 0
      %v1856 = vsel %vm302, %v457, 0
      %v1859 = vsel %vm302, %v458, 0
      %v1862 = vsel %vm302, %v459, 0
      %v1865 = vsel %vm302, %v460, 0
      %v1868 = vsel %vm302, %v461, 0
      %v1871 = vsel %vm302, %v462, 0
      %v1874 = vsel %vm302, %v463, 0
      %v1877 = vsel %vm302, %v464, 0
      %v1880 = vsel %vm302, %v465, 0
      %v1883 = vsel %vm302, %v466, 0
      %v1886 = vsel %vm302, %v467, 0
      %v1889 = vsel %vm302, %v468, 0
      %v1892 = vsel %vm302, %v469, 0
      %v1895 = vsel %vm302, %v470, 0
      %v1898 = vsel %vm302, %v471, 0
      %v1901 = vsel %vm302, %v472, 0
      %v1904 = vsel %vm302, %v473, 0
      %v1907 = vsel %vm302, %v474, 0
      %v1910 = vsel %vm302, %v475, 0
      %v1913 = vsel %vm302, %v476, 0
      %v1916 = vsel %vm302, %v477, 0
      %v1919 = vsel %vm302, %v478, 0
      %v1922 = vsel %vm302, %v479, 0
      %v1925 = vsel %vm302, %v480, 0
      %v1928 = vsel %vm302, %v481, 0
      %v1931 = vsel %vm302, %v482, 0
      %v1934 = vsel %vm302, %v483, 0
      %v1937 = vsel %vm302, %v484, 0
      %v1940 = vsel %vm302, %v485, 0
      %v1943 = vsel %vm302, %v486, 0
      %v1946 = vsel %vm302, %v487, 0
      %v1949 = vsel %vm302, %v488, 0
      %v1952 = vsel %vm302, %v489, 0
      %v1955 = vsel %vm302, %v490, 0
      %v1958 = vsel %vm302, %v491, 0
      %v1961 = vsel %vm302, %v492, 0
      %v1964 = vsel %vm302, %v493, 0
      %v1967 = vsel %vm302, %v494, 0
      %v1970 = vsel %vm302, %v495, 0
      %v1973 = vsel %vm302, %v496, 0
      %v1976 = vsel %vm302, %v497, 0
      %v1979 = vsel %vm302, %v498, 0
      %v1982 = vsel %vm302, %v499, 0
      %v1985 = vsel %vm302, %v500, 0
      %v1988 = vsel %vm302, %v501, 0
      %v1991 = vsel %vm302, %v502, 0
      %v1994 = vsel %vm302, %v503, 0
      %v1997 = vsel %vm302, %v504, 0
      %v2000 = vsel %vm302, %v505, 0
      %v2003 = vsel %vm302, %v506, 0
      %v2006 = vsel %vm302, %v507, 0
      %v2009 = vsel %vm302, %v508, 0
      %v2012 = vsel %vm302, %v509, 0
      %v2015 = vsel %vm302, %v510, 0
      %v2018 = vsel %vm302, %v511, 0
      %v2021 = vsel %vm302, %v512, 0
      %v2024 = vsel %vm302, %v513, 0
      %v2027 = vsel %vm302, %v514, 0
      %v2030 = vsel %vm302, %v515, 0
      %v2033 = vsel %vm302, %v516, 0
      %v2036 = vsel %vm302, %v517, 0
      %v2039 = vsel %vm302, %v518, 0
      %v2042 = vsel %vm302, %v519, 0
      %v2045 = vsel %vm302, %v520, 0
      %v2048 = vsel %vm302, %v521, 0
      %v2051 = vsel %vm302, %v522, 0
      %v2054 = vsel %vm302, %v523, 0
      %v2057 = vsel %vm302, %v524, 0
      %v2060 = vsel %vm302, %v525, 0
      %v2063 = vsel %vm302, %v526, 0
      %v2066 = vsel %vm302, %v527, 0
      %v2069 = vsel %vm302, %v528, 0
      %v2072 = vsel %vm302, %v529, 0
      %v2075 = vsel %vm302, %v530, 0
      %v2078 = vsel %vm302, %v531, 0
      %v2081 = vsel %vm302, %v532, 0
      %v2084 = vsel %vm302, %v533, 0
      %v2087 = vsel %vm302, %v534, 0
      %v2090 = vsel %vm302, %v535, 0
      %v2093 = vsel %vm302, %v536, 0
      %v2096 = vsel %vm302, %v537, 0
      %v2099 = vsel %vm302, %v538, 0
      %v2102 = vsel %vm302, %v539, 0
      %v2105 = vsel %vm302, %v540, 0
      %v2108 = vsel %vm302, %v541, 0
      %v2111 = vsel %vm302, %v542, 0
      %v2114 = vsel %vm302, %v543, 0
      %v2117 = vsel %vm302, %v544, 0
      %v2120 = vsel %vm302, %v545, 0
      %v2123 = vsel %vm302, %v546, 0
      %v2126 = vsel %vm302, %v547, 0
      %v2129 = vsel %vm302, %v548, 0
      %v2132 = vsel %vm302, %v549, 0
      %v2135 = vsel %vm302, %v550, 0
      %v2138 = vsel %vm302, %v551, 0
      %v2141 = vsel %vm302, %v552, 0
      %v2144 = vsel %vm302, %v553, 0
      %v2147 = vsel %vm302, %v554, 0
      %v2150 = vsel %vm302, %v555, 0
      %v2153 = vsel %vm302, %v556, 0
      %v2156 = vsel %vm302, %v557, 0
      %v2159 = vsel %vm302, %v558, 0
      %v2162 = vsel %vm302, %v559, 0
      %v2165 = vsel %vm302, %v560, 0
      %v2168 = vsel %vm302, %v561, 0
      %v2171 = vsel %vm1077, %v562, 0
      %2173 = vmatprep.subr.mxu0 0.0
      %2174 = vmatpush1.msra.mxu0 %v2171
      %2175 = vmatprep.subr.mxu0 0.0
      %2176 = vmatpush1.msra.mxu0 0.0
      %2177 = vmatprep.subr.mxu0 0.0
      %2178 = vmatpush1.msra.mxu0 0.0
      %2179 = vmatprep.subr.mxu0 0.0
      %2180 = vmatpush1.msra.mxu0 0.0
      %2181 = vmatprep.subr.mxu0 0.0
      %2182 = vmatpush1.msra.mxu0 0.0
      %2183 = vmatprep.subr.mxu0 0.0
      %2184 = vmatpush1.msra.mxu0 0.0
      %2185 = vmatprep.subr.mxu0 0.0
      %2186 = vmatpush1.msra.mxu0 0.0
      %2187 = vmatprep.subr.mxu0 0.0
      %2188 = vmatpush1.msra.mxu0 0.0
      %2189 = vmatprep.subr.mxu0 0.0
      %2190 = vmatpush1.msra.mxu0 0.0
      %2191 = vmatprep.subr.mxu0 0.0
      %2192 = vmatpush1.msra.mxu0 0.0
      %2193 = vmatprep.subr.mxu0 0.0
      %2194 = vmatpush1.msra.mxu0 0.0
      %2195 = vmatprep.subr.mxu0 0.0
      %2196 = vmatpush1.msra.mxu0 0.0
      %2197 = vmatprep.subr.mxu0 0.0
      %2198 = vmatpush1.msra.mxu0 0.0
      %2199 = vmatprep.subr.mxu0 0.0
      %2200 = vmatpush1.msra.mxu0 0.0
      %2201 = vmatprep.subr.mxu0 0.0
      %2202 = vmatpush1.msra.mxu0 0.0
      %2203 = vmatprep.subr.mxu0 0.0
      %2204 = vmatpush1.msra.mxu0 0.0
      %2205 = vmatprep.subr.mxu0 0.0
      %2206 = vmatpush1.msra.mxu0 0.0
      %2207 = vmatprep.subr.mxu0 0.0
      %2208 = vmatpush1.msra.mxu0 0.0
      %2209 = vmatprep.subr.mxu0 0.0
      %2210 = vmatpush1.msra.mxu0 0.0
      %2211 = vmatprep.subr.mxu0 0.0
      %2212 = vmatpush1.msra.mxu0 0.0
      %2213 = vmatprep.subr.mxu0 0.0
      %2214 = vmatpush1.msra.mxu0 0.0
      %2215 = vmatprep.subr.mxu0 0.0
      %2216 = vmatpush1.msra.mxu0 0.0
      %2217 = vmatprep.subr.mxu0 0.0
      %2218 = vmatpush1.msra.mxu0 0.0
      %2219 = vmatprep.subr.mxu0 0.0
      %2220 = vmatpush1.msra.mxu0 0.0
      %2221 = vmatprep.subr.mxu0 0.0
      %2222 = vmatpush1.msra.mxu0 0.0
      %2223 = vmatprep.subr.mxu0 0.0
      %2224 = vmatpush1.msra.mxu0 0.0
      %2225 = vmatprep.subr.mxu0 0.0
      %2226 = vmatpush1.msra.mxu0 0.0
      %2227 = vmatprep.subr.mxu0 0.0
      %2228 = vmatpush1.msra.mxu0 0.0
      %2229 = vmatprep.subr.mxu0 0.0
      %2230 = vmatpush1.msra.mxu0 0.0
      %2231 = vmatprep.subr.mxu0 0.0
      %2232 = vmatpush1.msra.mxu0 0.0
      %2233 = vmatprep.subr.mxu0 0.0
      %2234 = vmatpush1.msra.mxu0 0.0
      %2235 = vmatprep.subr.mxu0 0.0
      %2236 = vmatpush1.msra.mxu0 0.0
      %2237 = vmatprep.mubr.f32.mxu0 0.0
      %2238 = vmatmul.mubr.f32.gmra.mrb[0].mxu0 %v1787
      %v2239 = vpop.f32.mrb[0].mxu0
      %v2240 = vadd.f32 %v1148, %v2239
      %v2241 = vpop.f32.mrb[0].mxu0
      %2242 = vmatprep.mubr.f32.mxu0 0.0
      %2243 = vmatmul.mubr.f32.gmra.mrb[0].mxu0 %v1790
      %v2244 = vpop.f32.mrb[0].mxu0
      %v2245 = vadd.f32 %v1153, %v2244
      %v2246 = vpop.f32.mrb[0].mxu0
      %2247 = vmatprep.mubr.f32.mxu0 0.0
      %2248 = vmatmul.mubr.f32.gmra.mrb[0].mxu0 %v1793
      %v2249 = vpop.f32.mrb[0].mxu0
      %v2250 = vadd.f32 %v1158, %v2249
      %v2251 = vpop.f32.mrb[0].mxu0
      %2252 = vmatprep.mubr.f32.mxu0 0.0
      %2253 = vmatmul.mubr.f32.gmra.mrb[0].mxu0 %v1796
      %v2254 = vpop.f32.mrb[0].mxu0
      %v2255 = vadd.f32 %v1163, %v2254
      %v2256 = vpop.f32.mrb[0].mxu0
      %2257 = vmatprep.mubr.f32.mxu0 0.0
      %2258 = vmatmul.mubr.f32.gmra.mrb[0].mxu0 %v1799
      %v2259 = vpop.f32.mrb[0].mxu0
      %v2260 = vadd.f32 %v1168, %v2259
      %v2261 = vpop.f32.mrb[0].mxu0
      %2262 = vmatprep.mubr.f32.mxu0 0.0
      %2263 = vmatmul.mubr.f32.gmra.mrb[0].mxu0 %v1802
      %v2264 = vpop.f32.mrb[0].mxu0
      %v2265 = vadd.f32 %v1173, %v2264
      %v2266 = vpop.f32.mrb[0].mxu0
      %2267 = vmatprep.mubr.f32.mxu0 0.0
      %2268 = vmatmul.mubr.f32.gmra.mrb[0].mxu0 %v1805
      %v2269 = vpop.f32.mrb[0].mxu0
      %v2270 = vadd.f32 %v1178, %v2269
      %v2271 = vpop.f32.mrb[0].mxu0
      %2272 = vmatprep.mubr.f32.mxu0 0.0
      %2273 = vmatmul.mubr.f32.gmra.mrb[0].mxu0 %v1808
      %v2274 = vpop.f32.mrb[0].mxu0
      %v2275 = vadd.f32 %v1183, %v2274
      %v2276 = vpop.f32.mrb[0].mxu0
      %2277 = vmatprep.mubr.f32.mxu0 0.0
      %2278 = vmatmul.mubr.f32.gmra.mrb[0].mxu0 %v1811
      %v2279 = vpop.f32.mrb[0].mxu0
      %v2280 = vadd.f32 %v1188, %v2279
      %v2281 = vpop.f32.mrb[0].mxu0
      %2282 = vmatprep.mubr.f32.mxu0 0.0
      %2283 = vmatmul.mubr.f32.gmra.mrb[0].mxu0 %v1814
      %v2284 = vpop.f32.mrb[0].mxu0
      %v2285 = vadd.f32 %v1193, %v2284
      %v2286 = vpop.f32.mrb[0].mxu0
      %2287 = vmatprep.mubr.f32.mxu0 0.0
      %2288 = vmatmul.mubr.f32.gmra.mrb[0].mxu0 %v1817
      %v2289 = vpop.f32.mrb[0].mxu0
      %v2290 = vadd.f32 %v1198, %v2289
      %v2291 = vpop.f32.mrb[0].mxu0
      %2292 = vmatprep.mubr.f32.mxu0 0.0
      %2293 = vmatmul.mubr.f32.gmra.mrb[0].mxu0 %v1820
      %v2294 = vpop.f32.mrb[0].mxu0
      %v2295 = vadd.f32 %v1203, %v2294
      %v2296 = vpop.f32.mrb[0].mxu0
      %2297 = vmatprep.mubr.f32.mxu0 0.0
      %2298 = vmatmul.mubr.f32.gmra.mrb[0].mxu0 %v1823
      %v2299 = vpop.f32.mrb[0].mxu0
      %v2300 = vadd.f32 %v1208, %v2299
      %v2301 = vpop.f32.mrb[0].mxu0
      %2302 = vmatprep.mubr.f32.mxu0 0.0
      %2303 = vmatmul.mubr.f32.gmra.mrb[0].mxu0 %v1826
      %v2304 = vpop.f32.mrb[0].mxu0
      %v2305 = vadd.f32 %v1213, %v2304
      %v2306 = vpop.f32.mrb[0].mxu0
      %2307 = vmatprep.mubr.f32.mxu0 0.0
      %2308 = vmatmul.mubr.f32.gmra.mrb[0].mxu0 %v1829
      %v2309 = vpop.f32.mrb[0].mxu0
      %v2310 = vadd.f32 %v1218, %v2309
      %v2311 = vpop.f32.mrb[0].mxu0
      %2312 = vmatprep.mubr.f32.mxu0 0.0
      %2313 = vmatmul.mubr.f32.gmra.mrb[0].mxu0 %v1832
      %v2314 = vpop.f32.mrb[0].mxu0
      %v2315 = vadd.f32 %v1223, %v2314
      %v2316 = vpop.f32.mrb[0].mxu0
      %2317 = vmatprep.mubr.f32.mxu0 0.0
      %2318 = vmatmul.mubr.f32.gmra.mrb[0].mxu0 %v1835
      %v2319 = vpop.f32.mrb[0].mxu0
      %v2320 = vadd.f32 %v1228, %v2319
      %v2321 = vpop.f32.mrb[0].mxu0
      %2322 = vmatprep.mubr.f32.mxu0 0.0
      %2323 = vmatmul.mubr.f32.gmra.mrb[0].mxu0 %v1838
      %v2324 = vpop.f32.mrb[0].mxu0
      %v2325 = vadd.f32 %v1233, %v2324
      %v2326 = vpop.f32.mrb[0].mxu0
      %2327 = vmatprep.mubr.f32.mxu0 0.0
      %2328 = vmatmul.mubr.f32.gmra.mrb[0].mxu0 %v1841
      %v2329 = vpop.f32.mrb[0].mxu0
      %v2330 = vadd.f32 %v1238, %v2329
      %v2331 = vpop.f32.mrb[0].mxu0
      %2332 = vmatprep.mubr.f32.mxu0 0.0
      %2333 = vmatmul.mubr.f32.gmra.mrb[0].mxu0 %v1844
      %v2334 = vpop.f32.mrb[0].mxu0
      %v2335 = vadd.f32 %v1243, %v2334
      %v2336 = vpop.f32.mrb[0].mxu0
      %2337 = vmatprep.mubr.f32.mxu0 0.0
      %2338 = vmatmul.mubr.f32.gmra.mrb[0].mxu0 %v1847
      %v2339 = vpop.f32.mrb[0].mxu0
      %v2340 = vadd.f32 %v1248, %v2339
      %v2341 = vpop.f32.mrb[0].mxu0
      %2342 = vmatprep.mubr.f32.mxu0 0.0
      %2343 = vmatmul.mubr.f32.gmra.mrb[0].mxu0 %v1850
      %v2344 = vpop.f32.mrb[0].mxu0
      %v2345 = vadd.f32 %v1253, %v2344
      %v2346 = vpop.f32.mrb[0].mxu0
      %2347 = vmatprep.mubr.f32.mxu0 0.0
      %2348 = vmatmul.mubr.f32.gmra.mrb[0].mxu0 %v1853
      %v2349 = vpop.f32.mrb[0].mxu0
      %v2350 = vadd.f32 %v1258, %v2349
      %v2351 = vpop.f32.mrb[0].mxu0
      %2352 = vmatprep.mubr.f32.mxu0 0.0
      %2353 = vmatmul.mubr.f32.gmra.mrb[0].mxu0 %v1856
      %v2354 = vpop.f32.mrb[0].mxu0
      %v2355 = vadd.f32 %v1263, %v2354
      %v2356 = vpop.f32.mrb[0].mxu0
      %2357 = vmatprep.mubr.f32.mxu0 0.0
      %2358 = vmatmul.mubr.f32.gmra.mrb[0].mxu0 %v1859
      %v2359 = vpop.f32.mrb[0].mxu0
      %v2360 = vadd.f32 %v1268, %v2359
      %v2361 = vpop.f32.mrb[0].mxu0
      %2362 = vmatprep.mubr.f32.mxu0 0.0
      %2363 = vmatmul.mubr.f32.gmra.mrb[0].mxu0 %v1862
      %v2364 = vpop.f32.mrb[0].mxu0
      %v2365 = vadd.f32 %v1273, %v2364
      %v2366 = vpop.f32.mrb[0].mxu0
      %2367 = vmatprep.mubr.f32.mxu0 0.0
      %2368 = vmatmul.mubr.f32.gmra.mrb[0].mxu0 %v1865
      %v2369 = vpop.f32.mrb[0].mxu0
      %v2370 = vadd.f32 %v1278, %v2369
      %v2371 = vpop.f32.mrb[0].mxu0
      %2372 = vmatprep.mubr.f32.mxu0 0.0
      %2373 = vmatmul.mubr.f32.gmra.mrb[0].mxu0 %v1868
      %v2374 = vpop.f32.mrb[0].mxu0
      %v2375 = vadd.f32 %v1283, %v2374
      %v2376 = vpop.f32.mrb[0].mxu0
      %2377 = vmatprep.mubr.f32.mxu0 0.0
      %2378 = vmatmul.mubr.f32.gmra.mrb[0].mxu0 %v1871
      %v2379 = vpop.f32.mrb[0].mxu0
      %v2380 = vadd.f32 %v1288, %v2379
      %v2381 = vpop.f32.mrb[0].mxu0
      %2382 = vmatprep.mubr.f32.mxu0 0.0
      %2383 = vmatmul.mubr.f32.gmra.mrb[0].mxu0 %v1874
      %v2384 = vpop.f32.mrb[0].mxu0
      %v2385 = vadd.f32 %v1293, %v2384
      %v2386 = vpop.f32.mrb[0].mxu0
      %2387 = vmatprep.mubr.f32.mxu0 0.0
      %2388 = vmatmul.mubr.f32.gmra.mrb[0].mxu0 %v1877
      %v2389 = vpop.f32.mrb[0].mxu0
      %v2390 = vadd.f32 %v1298, %v2389
      %v2391 = vpop.f32.mrb[0].mxu0
      %2392 = vmatprep.mubr.f32.mxu0 0.0
      %2393 = vmatmul.mubr.f32.gmra.mrb[0].mxu0 %v1880
      %v2394 = vpop.f32.mrb[0].mxu0
      %v2395 = vadd.f32 %v1303, %v2394
      %v2396 = vpop.f32.mrb[0].mxu0
      %2397 = vmatprep.mubr.f32.mxu0 0.0
      %2398 = vmatmul.mubr.f32.gmra.mrb[0].mxu0 %v1883
      %v2399 = vpop.f32.mrb[0].mxu0
      %v2400 = vadd.f32 %v1308, %v2399
      %v2401 = vpop.f32.mrb[0].mxu0
      %2402 = vmatprep.mubr.f32.mxu0 0.0
      %2403 = vmatmul.mubr.f32.gmra.mrb[0].mxu0 %v1886
      %v2404 = vpop.f32.mrb[0].mxu0
      %v2405 = vadd.f32 %v1313, %v2404
      %v2406 = vpop.f32.mrb[0].mxu0
      %2407 = vmatprep.mubr.f32.mxu0 0.0
      %2408 = vmatmul.mubr.f32.gmra.mrb[0].mxu0 %v1889
      %v2409 = vpop.f32.mrb[0].mxu0
      %v2410 = vadd.f32 %v1318, %v2409
      %v2411 = vpop.f32.mrb[0].mxu0
      %2412 = vmatprep.mubr.f32.mxu0 0.0
      %2413 = vmatmul.mubr.f32.gmra.mrb[0].mxu0 %v1892
      %v2414 = vpop.f32.mrb[0].mxu0
      %v2415 = vadd.f32 %v1323, %v2414
      %v2416 = vpop.f32.mrb[0].mxu0
      %2417 = vmatprep.mubr.f32.mxu0 0.0
      %2418 = vmatmul.mubr.f32.gmra.mrb[0].mxu0 %v1895
      %v2419 = vpop.f32.mrb[0].mxu0
      %v2420 = vadd.f32 %v1328, %v2419
      %v2421 = vpop.f32.mrb[0].mxu0
      %2422 = vmatprep.mubr.f32.mxu0 0.0
      %2423 = vmatmul.mubr.f32.gmra.mrb[0].mxu0 %v1898
      %v2424 = vpop.f32.mrb[0].mxu0
      %v2425 = vadd.f32 %v1333, %v2424
      %v2426 = vpop.f32.mrb[0].mxu0
      %2427 = vmatprep.mubr.f32.mxu0 0.0
      %2428 = vmatmul.mubr.f32.gmra.mrb[0].mxu0 %v1901
      %v2429 = vpop.f32.mrb[0].mxu0
      %v2430 = vadd.f32 %v1338, %v2429
      %v2431 = vpop.f32.mrb[0].mxu0
      %2432 = vmatprep.mubr.f32.mxu0 0.0
      %2433 = vmatmul.mubr.f32.gmra.mrb[0].mxu0 %v1904
      %v2434 = vpop.f32.mrb[0].mxu0
      %v2435 = vadd.f32 %v1343, %v2434
      %v2436 = vpop.f32.mrb[0].mxu0
      %2437 = vmatprep.mubr.f32.mxu0 0.0
      %2438 = vmatmul.mubr.f32.gmra.mrb[0].mxu0 %v1907
      %v2439 = vpop.f32.mrb[0].mxu0
      %v2440 = vadd.f32 %v1348, %v2439
      %v2441 = vpop.f32.mrb[0].mxu0
      %2442 = vmatprep.mubr.f32.mxu0 0.0
      %2443 = vmatmul.mubr.f32.gmra.mrb[0].mxu0 %v1910
      %v2444 = vpop.f32.mrb[0].mxu0
      %v2445 = vadd.f32 %v1353, %v2444
      %v2446 = vpop.f32.mrb[0].mxu0
      %2447 = vmatprep.mubr.f32.mxu0 0.0
      %2448 = vmatmul.mubr.f32.gmra.mrb[0].mxu0 %v1913
      %v2449 = vpop.f32.mrb[0].mxu0
      %v2450 = vadd.f32 %v1358, %v2449
      %v2451 = vpop.f32.mrb[0].mxu0
      %2452 = vmatprep.mubr.f32.mxu0 0.0
      %2453 = vmatmul.mubr.f32.gmra.mrb[0].mxu0 %v1916
      %v2454 = vpop.f32.mrb[0].mxu0
      %v2455 = vadd.f32 %v1363, %v2454
      %v2456 = vpop.f32.mrb[0].mxu0
      %2457 = vmatprep.mubr.f32.mxu0 0.0
      %2458 = vmatmul.mubr.f32.gmra.mrb[0].mxu0 %v1919
      %v2459 = vpop.f32.mrb[0].mxu0
      %v2460 = vadd.f32 %v1368, %v2459
      %v2461 = vpop.f32.mrb[0].mxu0
      %2462 = vmatprep.mubr.f32.mxu0 0.0
      %2463 = vmatmul.mubr.f32.gmra.mrb[0].mxu0 %v1922
      %v2464 = vpop.f32.mrb[0].mxu0
      %v2465 = vadd.f32 %v1373, %v2464
      %v2466 = vpop.f32.mrb[0].mxu0
      %2467 = vmatprep.mubr.f32.mxu0 0.0
      %2468 = vmatmul.mubr.f32.gmra.mrb[0].mxu0 %v1925
      %v2469 = vpop.f32.mrb[0].mxu0
      %v2470 = vadd.f32 %v1378, %v2469
      %v2471 = vpop.f32.mrb[0].mxu0
      %2472 = vmatprep.mubr.f32.mxu0 0.0
      %2473 = vmatmul.mubr.f32.gmra.mrb[0].mxu0 %v1928
      %v2474 = vpop.f32.mrb[0].mxu0
      %v2475 = vadd.f32 %v1383, %v2474
      %v2476 = vpop.f32.mrb[0].mxu0
      %2477 = vmatprep.mubr.f32.mxu0 0.0
      %2478 = vmatmul.mubr.f32.gmra.mrb[0].mxu0 %v1931
      %v2479 = vpop.f32.mrb[0].mxu0
      %v2480 = vadd.f32 %v1388, %v2479
      %v2481 = vpop.f32.mrb[0].mxu0
      %2482 = vmatprep.mubr.f32.mxu0 0.0
      %2483 = vmatmul.mubr.f32.gmra.mrb[0].mxu0 %v1934
      %v2484 = vpop.f32.mrb[0].mxu0
      %v2485 = vadd.f32 %v1393, %v2484
      %v2486 = vpop.f32.mrb[0].mxu0
      %2487 = vmatprep.mubr.f32.mxu0 0.0
      %2488 = vmatmul.mubr.f32.gmra.mrb[0].mxu0 %v1937
      %v2489 = vpop.f32.mrb[0].mxu0
      %v2490 = vadd.f32 %v1398, %v2489
      %v2491 = vpop.f32.mrb[0].mxu0
      %2492 = vmatprep.mubr.f32.mxu0 0.0
      %2493 = vmatmul.mubr.f32.gmra.mrb[0].mxu0 %v1940
      %v2494 = vpop.f32.mrb[0].mxu0
      %v2495 = vadd.f32 %v1403, %v2494
      %v2496 = vpop.f32.mrb[0].mxu0
      %2497 = vmatprep.mubr.f32.mxu0 0.0
      %2498 = vmatmul.mubr.f32.gmra.mrb[0].mxu0 %v1943
      %v2499 = vpop.f32.mrb[0].mxu0
      %v2500 = vadd.f32 %v1408, %v2499
      %v2501 = vpop.f32.mrb[0].mxu0
      %2502 = vmatprep.mubr.f32.mxu0 0.0
      %2503 = vmatmul.mubr.f32.gmra.mrb[0].mxu0 %v1946
      %v2504 = vpop.f32.mrb[0].mxu0
      %v2505 = vadd.f32 %v1413, %v2504
      %v2506 = vpop.f32.mrb[0].mxu0
      %2507 = vmatprep.mubr.f32.mxu0 0.0
      %2508 = vmatmul.mubr.f32.gmra.mrb[0].mxu0 %v1949
      %v2509 = vpop.f32.mrb[0].mxu0
      %v2510 = vadd.f32 %v1418, %v2509
      %v2511 = vpop.f32.mrb[0].mxu0
      %2512 = vmatprep.mubr.f32.mxu0 0.0
      %2513 = vmatmul.mubr.f32.gmra.mrb[0].mxu0 %v1952
      %v2514 = vpop.f32.mrb[0].mxu0
      %v2515 = vadd.f32 %v1423, %v2514
      %v2516 = vpop.f32.mrb[0].mxu0
      %2517 = vmatprep.mubr.f32.mxu0 0.0
      %2518 = vmatmul.mubr.f32.gmra.mrb[0].mxu0 %v1955
      %v2519 = vpop.f32.mrb[0].mxu0
      %v2520 = vadd.f32 %v1428, %v2519
      %v2521 = vpop.f32.mrb[0].mxu0
      %2522 = vmatprep.mubr.f32.mxu0 0.0
      %2523 = vmatmul.mubr.f32.gmra.mrb[0].mxu0 %v1958
      %v2524 = vpop.f32.mrb[0].mxu0
      %v2525 = vadd.f32 %v1433, %v2524
      %v2526 = vpop.f32.mrb[0].mxu0
      %2527 = vmatprep.mubr.f32.mxu0 0.0
      %2528 = vmatmul.mubr.f32.gmra.mrb[0].mxu0 %v1961
      %v2529 = vpop.f32.mrb[0].mxu0
      %v2530 = vadd.f32 %v1438, %v2529
      %v2531 = vpop.f32.mrb[0].mxu0
      %2532 = vmatprep.mubr.f32.mxu0 0.0
      %2533 = vmatmul.mubr.f32.gmra.mrb[0].mxu0 %v1964
      %v2534 = vpop.f32.mrb[0].mxu0
      %v2535 = vadd.f32 %v1443, %v2534
      %v2536 = vpop.f32.mrb[0].mxu0
      %2537 = vmatprep.mubr.f32.mxu0 0.0
      %2538 = vmatmul.mubr.f32.gmra.mrb[0].mxu0 %v1967
      %v2539 = vpop.f32.mrb[0].mxu0
      %v2540 = vadd.f32 %v1448, %v2539
      %v2541 = vpop.f32.mrb[0].mxu0
      %2542 = vmatprep.mubr.f32.mxu0 0.0
      %2543 = vmatmul.mubr.f32.gmra.mrb[0].mxu0 %v1970
      %v2544 = vpop.f32.mrb[0].mxu0
      %v2545 = vadd.f32 %v1453, %v2544
      %v2546 = vpop.f32.mrb[0].mxu0
      %2547 = vmatprep.mubr.f32.mxu0 0.0
      %2548 = vmatmul.mubr.f32.gmra.mrb[0].mxu0 %v1973
      %v2549 = vpop.f32.mrb[0].mxu0
      %v2550 = vadd.f32 %v1458, %v2549
      %v2551 = vpop.f32.mrb[0].mxu0
      %2552 = vmatprep.mubr.f32.mxu0 0.0
      %2553 = vmatmul.mubr.f32.gmra.mrb[0].mxu0 %v1976
      %v2554 = vpop.f32.mrb[0].mxu0
      %v2555 = vadd.f32 %v1463, %v2554
      %v2556 = vpop.f32.mrb[0].mxu0
      %2557 = vmatprep.mubr.f32.mxu0 0.0
      %2558 = vmatmul.mubr.f32.gmra.mrb[0].mxu0 %v1979
      %v2559 = vpop.f32.mrb[0].mxu0
      %v2560 = vadd.f32 %v1468, %v2559
      %v2561 = vpop.f32.mrb[0].mxu0
      %2562 = vmatprep.mubr.f32.mxu0 0.0
      %2563 = vmatmul.mubr.f32.gmra.mrb[0].mxu0 %v1982
      %v2564 = vpop.f32.mrb[0].mxu0
      %v2565 = vadd.f32 %v1473, %v2564
      %v2566 = vpop.f32.mrb[0].mxu0
      %2567 = vmatprep.mubr.f32.mxu0 0.0
      %2568 = vmatmul.mubr.f32.gmra.mrb[0].mxu0 %v1985
      %v2569 = vpop.f32.mrb[0].mxu0
      %v2570 = vadd.f32 %v1478, %v2569
      %v2571 = vpop.f32.mrb[0].mxu0
      %2572 = vmatprep.mubr.f32.mxu0 0.0
      %2573 = vmatmul.mubr.f32.gmra.mrb[0].mxu0 %v1988
      %v2574 = vpop.f32.mrb[0].mxu0
      %v2575 = vadd.f32 %v1483, %v2574
      %v2576 = vpop.f32.mrb[0].mxu0
      %2577 = vmatprep.mubr.f32.mxu0 0.0
      %2578 = vmatmul.mubr.f32.gmra.mrb[0].mxu0 %v1991
      %v2579 = vpop.f32.mrb[0].mxu0
      %v2580 = vadd.f32 %v1488, %v2579
      %v2581 = vpop.f32.mrb[0].mxu0
      %2582 = vmatprep.mubr.f32.mxu0 0.0
      %2583 = vmatmul.mubr.f32.gmra.mrb[0].mxu0 %v1994
      %v2584 = vpop.f32.mrb[0].mxu0
      %v2585 = vadd.f32 %v1493, %v2584
      %v2586 = vpop.f32.mrb[0].mxu0
      %2587 = vmatprep.mubr.f32.mxu0 0.0
      %2588 = vmatmul.mubr.f32.gmra.mrb[0].mxu0 %v1997
      %v2589 = vpop.f32.mrb[0].mxu0
      %v2590 = vadd.f32 %v1498, %v2589
      %v2591 = vpop.f32.mrb[0].mxu0
      %2592 = vmatprep.mubr.f32.mxu0 0.0
      %2593 = vmatmul.mubr.f32.gmra.mrb[0].mxu0 %v2000
      %v2594 = vpop.f32.mrb[0].mxu0
      %v2595 = vadd.f32 %v1503, %v2594
      %v2596 = vpop.f32.mrb[0].mxu0
      %2597 = vmatprep.mubr.f32.mxu0 0.0
      %2598 = vmatmul.mubr.f32.gmra.mrb[0].mxu0 %v2003
      %v2599 = vpop.f32.mrb[0].mxu0
      %v2600 = vadd.f32 %v1508, %v2599
      %v2601 = vpop.f32.mrb[0].mxu0
      %2602 = vmatprep.mubr.f32.mxu0 0.0
      %2603 = vmatmul.mubr.f32.gmra.mrb[0].mxu0 %v2006
      %v2604 = vpop.f32.mrb[0].mxu0
      %v2605 = vadd.f32 %v1513, %v2604
      %v2606 = vpop.f32.mrb[0].mxu0
      %2607 = vmatprep.mubr.f32.mxu0 0.0
      %2608 = vmatmul.mubr.f32.gmra.mrb[0].mxu0 %v2009
      %v2609 = vpop.f32.mrb[0].mxu0
      %v2610 = vadd.f32 %v1518, %v2609
      %v2611 = vpop.f32.mrb[0].mxu0
      %2612 = vmatprep.mubr.f32.mxu0 0.0
      %2613 = vmatmul.mubr.f32.gmra.mrb[0].mxu0 %v2012
      %v2614 = vpop.f32.mrb[0].mxu0
      %v2615 = vadd.f32 %v1523, %v2614
      %v2616 = vpop.f32.mrb[0].mxu0
      %2617 = vmatprep.mubr.f32.mxu0 0.0
      %2618 = vmatmul.mubr.f32.gmra.mrb[0].mxu0 %v2015
      %v2619 = vpop.f32.mrb[0].mxu0
      %v2620 = vadd.f32 %v1528, %v2619
      %v2621 = vpop.f32.mrb[0].mxu0
      %2622 = vmatprep.mubr.f32.mxu0 0.0
      %2623 = vmatmul.mubr.f32.gmra.mrb[0].mxu0 %v2018
      %v2624 = vpop.f32.mrb[0].mxu0
      %v2625 = vadd.f32 %v1533, %v2624
      %v2626 = vpop.f32.mrb[0].mxu0
      %2627 = vmatprep.mubr.f32.mxu0 0.0
      %2628 = vmatmul.mubr.f32.gmra.mrb[0].mxu0 %v2021
      %v2629 = vpop.f32.mrb[0].mxu0
      %v2630 = vadd.f32 %v1538, %v2629
      %v2631 = vpop.f32.mrb[0].mxu0
      %2632 = vmatprep.mubr.f32.mxu0 0.0
      %2633 = vmatmul.mubr.f32.gmra.mrb[0].mxu0 %v2024
      %v2634 = vpop.f32.mrb[0].mxu0
      %v2635 = vadd.f32 %v1543, %v2634
      %v2636 = vpop.f32.mrb[0].mxu0
      %2637 = vmatprep.mubr.f32.mxu0 0.0
      %2638 = vmatmul.mubr.f32.gmra.mrb[0].mxu0 %v2027
      %v2639 = vpop.f32.mrb[0].mxu0
      %v2640 = vadd.f32 %v1548, %v2639
      %v2641 = vpop.f32.mrb[0].mxu0
      %2642 = vmatprep.mubr.f32.mxu0 0.0
      %2643 = vmatmul.mubr.f32.gmra.mrb[0].mxu0 %v2030
      %v2644 = vpop.f32.mrb[0].mxu0
      %v2645 = vadd.f32 %v1553, %v2644
      %v2646 = vpop.f32.mrb[0].mxu0
      %2647 = vmatprep.mubr.f32.mxu0 0.0
      %2648 = vmatmul.mubr.f32.gmra.mrb[0].mxu0 %v2033
      %v2649 = vpop.f32.mrb[0].mxu0
      %v2650 = vadd.f32 %v1558, %v2649
      %v2651 = vpop.f32.mrb[0].mxu0
      %2652 = vmatprep.mubr.f32.mxu0 0.0
      %2653 = vmatmul.mubr.f32.gmra.mrb[0].mxu0 %v2036
      %v2654 = vpop.f32.mrb[0].mxu0
      %v2655 = vadd.f32 %v1563, %v2654
      %v2656 = vpop.f32.mrb[0].mxu0
      %2657 = vmatprep.mubr.f32.mxu0 0.0
      %2658 = vmatmul.mubr.f32.gmra.mrb[0].mxu0 %v2039
      %v2659 = vpop.f32.mrb[0].mxu0
      %v2660 = vadd.f32 %v1568, %v2659
      %v2661 = vpop.f32.mrb[0].mxu0
      %2662 = vmatprep.mubr.f32.mxu0 0.0
      %2663 = vmatmul.mubr.f32.gmra.mrb[0].mxu0 %v2042
      %v2664 = vpop.f32.mrb[0].mxu0
      %v2665 = vadd.f32 %v1573, %v2664
      %v2666 = vpop.f32.mrb[0].mxu0
      %2667 = vmatprep.mubr.f32.mxu0 0.0
      %2668 = vmatmul.mubr.f32.gmra.mrb[0].mxu0 %v2045
      %v2669 = vpop.f32.mrb[0].mxu0
      %v2670 = vadd.f32 %v1578, %v2669
      %v2671 = vpop.f32.mrb[0].mxu0
      %2672 = vmatprep.mubr.f32.mxu0 0.0
      %2673 = vmatmul.mubr.f32.gmra.mrb[0].mxu0 %v2048
      %v2674 = vpop.f32.mrb[0].mxu0
      %v2675 = vadd.f32 %v1583, %v2674
      %v2676 = vpop.f32.mrb[0].mxu0
      %2677 = vmatprep.mubr.f32.mxu0 0.0
      %2678 = vmatmul.mubr.f32.gmra.mrb[0].mxu0 %v2051
      %v2679 = vpop.f32.mrb[0].mxu0
      %v2680 = vadd.f32 %v1588, %v2679
      %v2681 = vpop.f32.mrb[0].mxu0
      %2682 = vmatprep.mubr.f32.mxu0 0.0
      %2683 = vmatmul.mubr.f32.gmra.mrb[0].mxu0 %v2054
      %v2684 = vpop.f32.mrb[0].mxu0
      %v2685 = vadd.f32 %v1593, %v2684
      %v2686 = vpop.f32.mrb[0].mxu0
      %2687 = vmatprep.mubr.f32.mxu0 0.0
      %2688 = vmatmul.mubr.f32.gmra.mrb[0].mxu0 %v2057
      %v2689 = vpop.f32.mrb[0].mxu0
      %v2690 = vadd.f32 %v1598, %v2689
      %v2691 = vpop.f32.mrb[0].mxu0
      %2692 = vmatprep.mubr.f32.mxu0 0.0
      %2693 = vmatmul.mubr.f32.gmra.mrb[0].mxu0 %v2060
      %v2694 = vpop.f32.mrb[0].mxu0
      %v2695 = vadd.f32 %v1603, %v2694
      %v2696 = vpop.f32.mrb[0].mxu0
      %2697 = vmatprep.mubr.f32.mxu0 0.0
      %2698 = vmatmul.mubr.f32.gmra.mrb[0].mxu0 %v2063
      %v2699 = vpop.f32.mrb[0].mxu0
      %v2700 = vadd.f32 %v1608, %v2699
      %v2701 = vpop.f32.mrb[0].mxu0
      %2702 = vmatprep.mubr.f32.mxu0 0.0
      %2703 = vmatmul.mubr.f32.gmra.mrb[0].mxu0 %v2066
      %v2704 = vpop.f32.mrb[0].mxu0
      %v2705 = vadd.f32 %v1613, %v2704
      %v2706 = vpop.f32.mrb[0].mxu0
      %2707 = vmatprep.mubr.f32.mxu0 0.0
      %2708 = vmatmul.mubr.f32.gmra.mrb[0].mxu0 %v2069
      %v2709 = vpop.f32.mrb[0].mxu0
      %v2710 = vadd.f32 %v1618, %v2709
      %v2711 = vpop.f32.mrb[0].mxu0
      %2712 = vmatprep.mubr.f32.mxu0 0.0
      %2713 = vmatmul.mubr.f32.gmra.mrb[0].mxu0 %v2072
      %v2714 = vpop.f32.mrb[0].mxu0
      %v2715 = vadd.f32 %v1623, %v2714
      %v2716 = vpop.f32.mrb[0].mxu0
      %2717 = vmatprep.mubr.f32.mxu0 0.0
      %2718 = vmatmul.mubr.f32.gmra.mrb[0].mxu0 %v2075
      %v2719 = vpop.f32.mrb[0].mxu0
      %v2720 = vadd.f32 %v1628, %v2719
      %v2721 = vpop.f32.mrb[0].mxu0
      %2722 = vmatprep.mubr.f32.mxu0 0.0
      %2723 = vmatmul.mubr.f32.gmra.mrb[0].mxu0 %v2078
      %v2724 = vpop.f32.mrb[0].mxu0
      %v2725 = vadd.f32 %v1633, %v2724
      %v2726 = vpop.f32.mrb[0].mxu0
      %2727 = vmatprep.mubr.f32.mxu0 0.0
      %2728 = vmatmul.mubr.f32.gmra.mrb[0].mxu0 %v2081
      %v2729 = vpop.f32.mrb[0].mxu0
      %v2730 = vadd.f32 %v1638, %v2729
      %v2731 = vpop.f32.mrb[0].mxu0
      %2732 = vmatprep.mubr.f32.mxu0 0.0
      %2733 = vmatmul.mubr.f32.gmra.mrb[0].mxu0 %v2084
      %v2734 = vpop.f32.mrb[0].mxu0
      %v2735 = vadd.f32 %v1643, %v2734
      %v2736 = vpop.f32.mrb[0].mxu0
      %2737 = vmatprep.mubr.f32.mxu0 0.0
      %2738 = vmatmul.mubr.f32.gmra.mrb[0].mxu0 %v2087
      %v2739 = vpop.f32.mrb[0].mxu0
      %v2740 = vadd.f32 %v1648, %v2739
      %v2741 = vpop.f32.mrb[0].mxu0
      %2742 = vmatprep.mubr.f32.mxu0 0.0
      %2743 = vmatmul.mubr.f32.gmra.mrb[0].mxu0 %v2090
      %v2744 = vpop.f32.mrb[0].mxu0
      %v2745 = vadd.f32 %v1653, %v2744
      %v2746 = vpop.f32.mrb[0].mxu0
      %2747 = vmatprep.mubr.f32.mxu0 0.0
      %2748 = vmatmul.mubr.f32.gmra.mrb[0].mxu0 %v2093
      %v2749 = vpop.f32.mrb[0].mxu0
      %v2750 = vadd.f32 %v1658, %v2749
      %v2751 = vpop.f32.mrb[0].mxu0
      %2752 = vmatprep.mubr.f32.mxu0 0.0
      %2753 = vmatmul.mubr.f32.gmra.mrb[0].mxu0 %v2096
      %v2754 = vpop.f32.mrb[0].mxu0
      %v2755 = vadd.f32 %v1663, %v2754
      %v2756 = vpop.f32.mrb[0].mxu0
      %2757 = vmatprep.mubr.f32.mxu0 0.0
      %2758 = vmatmul.mubr.f32.gmra.mrb[0].mxu0 %v2099
      %v2759 = vpop.f32.mrb[0].mxu0
      %v2760 = vadd.f32 %v1668, %v2759
      %v2761 = vpop.f32.mrb[0].mxu0
      %2762 = vmatprep.mubr.f32.mxu0 0.0
      %2763 = vmatmul.mubr.f32.gmra.mrb[0].mxu0 %v2102
      %v2764 = vpop.f32.mrb[0].mxu0
      %v2765 = vadd.f32 %v1673, %v2764
      %v2766 = vpop.f32.mrb[0].mxu0
      %2767 = vmatprep.mubr.f32.mxu0 0.0
      %2768 = vmatmul.mubr.f32.gmra.mrb[0].mxu0 %v2105
      %v2769 = vpop.f32.mrb[0].mxu0
      %v2770 = vadd.f32 %v1678, %v2769
      %v2771 = vpop.f32.mrb[0].mxu0
      %2772 = vmatprep.mubr.f32.mxu0 0.0
      %2773 = vmatmul.mubr.f32.gmra.mrb[0].mxu0 %v2108
      %v2774 = vpop.f32.mrb[0].mxu0
      %v2775 = vadd.f32 %v1683, %v2774
      %v2776 = vpop.f32.mrb[0].mxu0
      %2777 = vmatprep.mubr.f32.mxu0 0.0
      %2778 = vmatmul.mubr.f32.gmra.mrb[0].mxu0 %v2111
      %v2779 = vpop.f32.mrb[0].mxu0
      %v2780 = vadd.f32 %v1688, %v2779
      %v2781 = vpop.f32.mrb[0].mxu0
      %2782 = vmatprep.mubr.f32.mxu0 0.0
      %2783 = vmatmul.mubr.f32.gmra.mrb[0].mxu0 %v2114
      %v2784 = vpop.f32.mrb[0].mxu0
      %v2785 = vadd.f32 %v1693, %v2784
      %v2786 = vpop.f32.mrb[0].mxu0
      %2787 = vmatprep.mubr.f32.mxu0 0.0
      %2788 = vmatmul.mubr.f32.gmra.mrb[0].mxu0 %v2117
      %v2789 = vpop.f32.mrb[0].mxu0
      %v2790 = vadd.f32 %v1698, %v2789
      %v2791 = vpop.f32.mrb[0].mxu0
      %2792 = vmatprep.mubr.f32.mxu0 0.0
      %2793 = vmatmul.mubr.f32.gmra.mrb[0].mxu0 %v2120
      %v2794 = vpop.f32.mrb[0].mxu0
      %v2795 = vadd.f32 %v1703, %v2794
      %v2796 = vpop.f32.mrb[0].mxu0
      %2797 = vmatprep.mubr.f32.mxu0 0.0
      %2798 = vmatmul.mubr.f32.gmra.mrb[0].mxu0 %v2123
      %v2799 = vpop.f32.mrb[0].mxu0
      %v2800 = vadd.f32 %v1708, %v2799
      %v2801 = vpop.f32.mrb[0].mxu0
      %2802 = vmatprep.mubr.f32.mxu0 0.0
      %2803 = vmatmul.mubr.f32.gmra.mrb[0].mxu0 %v2126
      %v2804 = vpop.f32.mrb[0].mxu0
      %v2805 = vadd.f32 %v1713, %v2804
      %v2806 = vpop.f32.mrb[0].mxu0
      %2807 = vmatprep.mubr.f32.mxu0 0.0
      %2808 = vmatmul.mubr.f32.gmra.mrb[0].mxu0 %v2129
      %v2809 = vpop.f32.mrb[0].mxu0
      %v2810 = vadd.f32 %v1718, %v2809
      %v2811 = vpop.f32.mrb[0].mxu0
      %2812 = vmatprep.mubr.f32.mxu0 0.0
      %2813 = vmatmul.mubr.f32.gmra.mrb[0].mxu0 %v2132
      %v2814 = vpop.f32.mrb[0].mxu0
      %v2815 = vadd.f32 %v1723, %v2814
      %v2816 = vpop.f32.mrb[0].mxu0
      %2817 = vmatprep.mubr.f32.mxu0 0.0
      %2818 = vmatmul.mubr.f32.gmra.mrb[0].mxu0 %v2135
      %v2819 = vpop.f32.mrb[0].mxu0
      %v2820 = vadd.f32 %v1728, %v2819
      %v2821 = vpop.f32.mrb[0].mxu0
      %2822 = vmatprep.mubr.f32.mxu0 0.0
      %2823 = vmatmul.mubr.f32.gmra.mrb[0].mxu0 %v2138
      %v2824 = vpop.f32.mrb[0].mxu0
      %v2825 = vadd.f32 %v1733, %v2824
      %v2826 = vpop.f32.mrb[0].mxu0
      %2827 = vmatprep.mubr.f32.mxu0 0.0
      %2828 = vmatmul.mubr.f32.gmra.mrb[0].mxu0 %v2141
      %v2829 = vpop.f32.mrb[0].mxu0
      %v2830 = vadd.f32 %v1738, %v2829
      %v2831 = vpop.f32.mrb[0].mxu0
      %2832 = vmatprep.mubr.f32.mxu0 0.0
      %2833 = vmatmul.mubr.f32.gmra.mrb[0].mxu0 %v2144
      %v2834 = vpop.f32.mrb[0].mxu0
      %v2835 = vadd.f32 %v1743, %v2834
      %v2836 = vpop.f32.mrb[0].mxu0
      %2837 = vmatprep.mubr.f32.mxu0 0.0
      %2838 = vmatmul.mubr.f32.gmra.mrb[0].mxu0 %v2147
      %v2839 = vpop.f32.mrb[0].mxu0
      %v2840 = vadd.f32 %v1748, %v2839
      %v2841 = vpop.f32.mrb[0].mxu0
      %2842 = vmatprep.mubr.f32.mxu0 0.0
      %2843 = vmatmul.mubr.f32.gmra.mrb[0].mxu0 %v2150
      %v2844 = vpop.f32.mrb[0].mxu0
      %v2845 = vadd.f32 %v1753, %v2844
      %v2846 = vpop.f32.mrb[0].mxu0
      %2847 = vmatprep.mubr.f32.mxu0 0.0
      %2848 = vmatmul.mubr.f32.gmra.mrb[0].mxu0 %v2153
      %v2849 = vpop.f32.mrb[0].mxu0
      %v2850 = vadd.f32 %v1758, %v2849
      %v2851 = vpop.f32.mrb[0].mxu0
      %2852 = vmatprep.mubr.f32.mxu0 0.0
      %2853 = vmatmul.mubr.f32.gmra.mrb[0].mxu0 %v2156
      %v2854 = vpop.f32.mrb[0].mxu0
      %v2855 = vadd.f32 %v1763, %v2854
      %v2856 = vpop.f32.mrb[0].mxu0
      %2857 = vmatprep.mubr.f32.mxu0 0.0
      %2858 = vmatmul.mubr.f32.gmra.mrb[0].mxu0 %v2159
      %v2859 = vpop.f32.mrb[0].mxu0
      %v2860 = vadd.f32 %v1768, %v2859
      %v2861 = vpop.f32.mrb[0].mxu0
      %2862 = vmatprep.mubr.f32.mxu0 0.0
      %2863 = vmatmul.mubr.f32.gmra.mrb[0].mxu0 %v2162
      %v2864 = vpop.f32.mrb[0].mxu0
      %v2865 = vadd.f32 %v1773, %v2864
      %v2866 = vpop.f32.mrb[0].mxu0
      %2867 = vmatprep.mubr.f32.mxu0 0.0
      %2868 = vmatmul.mubr.f32.gmra.mrb[0].mxu0 %v2165
      %v2869 = vpop.f32.mrb[0].mxu0
      %v2870 = vadd.f32 %v1778, %v2869
      %v2871 = vpop.f32.mrb[0].mxu0
      %2872 = vmatprep.mubr.f32.mxu0 0.0
      %2873 = vmatmul.mubr.f32.gmra.mrb[0].mxu0 %v2168
      %v2874 = vpop.f32.mrb[0].mxu0
      %v2875 = vadd.f32 %v1783, %v2874
      %v2876 = vpop.f32.mrb[0].mxu0
      %2877 = vdwg.mxu0
      %v2878 = vld [vmem:[#allocation2 + $0x10] sm:$0xff]
      %v2879 = vld [vmem:[#allocation2 + $0x18] sm:$0xff]
      %v2880 = vld [vmem:[#allocation2 + $0x20] sm:$0xff]
      %v2881 = vld [vmem:[#allocation2 + $0x28] sm:$0xff]
      %v2882 = vld [vmem:[#allocation2 + $0x30] sm:$0xff]
      %v2883 = vld [vmem:[#allocation2 + $0x38] sm:$0xff]
      %v2884 = vld [vmem:[#allocation2 + $0x40] sm:$0xff]
      %v2885 = vld [vmem:[#allocation2 + $0x48] sm:$0xff]
      %v2886 = vld [vmem:[#allocation2 + $0x50] sm:$0xff]
      %v2887 = vld [vmem:[#allocation2 + $0x58] sm:$0xff]
      %v2888 = vld [vmem:[#allocation2 + $0x60] sm:$0xff]
      %v2889 = vld [vmem:[#allocation2 + $0x68] sm:$0xff]
      %v2890 = vld [vmem:[#allocation2 + $0x70] sm:$0xff]
      %v2891 = vld [vmem:[#allocation2 + $0x78] sm:$0xff]
      %v2892 = vld [vmem:[#allocation2 + $0x80] sm:$0xff]
      %v2893 = vld [vmem:[#allocation2 + $0x88] sm:$0xff]
      %v2894 = vld [vmem:[#allocation2 + $0x90] sm:$0xff]
      %v2895 = vld [vmem:[#allocation2 + $0x98] sm:$0xff]
      %v2896 = vld [vmem:[#allocation2 + $0xa0] sm:$0xff]
      %v2897 = vld [vmem:[#allocation2 + $0xa8] sm:$0xff]
      %v2898 = vld [vmem:[#allocation2 + $0xb0] sm:$0xff]
      %v2899 = vld [vmem:[#allocation2 + $0xb8] sm:$0xff]
      %v2900 = vld [vmem:[#allocation2 + $0xc0] sm:$0xff]
      %v2901 = vld [vmem:[#allocation2 + $0xc8] sm:$0xff]
      %v2902 = vld [vmem:[#allocation2 + $0xd0] sm:$0xff]
      %v2903 = vld [vmem:[#allocation2 + $0xd8] sm:$0xff]
      %v2904 = vld [vmem:[#allocation2 + $0xe0] sm:$0xff]
      %v2905 = vld [vmem:[#allocation2 + $0xe8] sm:$0xff]
      %v2906 = vld [vmem:[#allocation2 + $0xf0] sm:$0xff]
      %v2907 = vld [vmem:[#allocation2 + $0xf8] sm:$0xff]
      %v2908 = vld [vmem:[#allocation2 + $0x100] sm:$0xff]
      %v2909 = vld [vmem:[#allocation2 + $0x108] sm:$0xff]
      %v2910 = vld [vmem:[#allocation2 + $0x110] sm:$0xff]
      %v2911 = vld [vmem:[#allocation2 + $0x118] sm:$0xff]
      %v2912 = vld [vmem:[#allocation2 + $0x120] sm:$0xff]
      %v2913 = vld [vmem:[#allocation2 + $0x128] sm:$0xff]
      %v2914 = vld [vmem:[#allocation2 + $0x130] sm:$0xff]
      %v2915 = vld [vmem:[#allocation2 + $0x138] sm:$0xff]
      %v2916 = vld [vmem:[#allocation2 + $0x140] sm:$0xff]
      %v2917 = vld [vmem:[#allocation2 + $0x148] sm:$0xff]
      %v2918 = vld [vmem:[#allocation2 + $0x150] sm:$0xff]
      %v2919 = vld [vmem:[#allocation2 + $0x158] sm:$0xff]
      %v2920 = vld [vmem:[#allocation2 + $0x160] sm:$0xff]
      %v2921 = vld [vmem:[#allocation2 + $0x168] sm:$0xff]
      %v2922 = vld [vmem:[#allocation2 + $0x170] sm:$0xff]
      %v2923 = vld [vmem:[#allocation2 + $0x178] sm:$0xff]
      %v2924 = vld [vmem:[#allocation2 + $0x180] sm:$0xff]
      %v2925 = vld [vmem:[#allocation2 + $0x188] sm:$0xff]
      %v2926 = vld [vmem:[#allocation2 + $0x190] sm:$0xff]
      %v2927 = vld [vmem:[#allocation2 + $0x198] sm:$0xff]
      %v2928 = vld [vmem:[#allocation2 + $0x1a0] sm:$0xff]
      %v2929 = vld [vmem:[#allocation2 + $0x1a8] sm:$0xff]
      %v2930 = vld [vmem:[#allocation2 + $0x1b0] sm:$0xff]
      %v2931 = vld [vmem:[#allocation2 + $0x1b8] sm:$0xff]
      %v2932 = vld [vmem:[#allocation2 + $0x1c0] sm:$0xff]
      %v2933 = vld [vmem:[#allocation2 + $0x1c8] sm:$0xff]
      %v2934 = vld [vmem:[#allocation2 + $0x1d0] sm:$0xff]
      %v2935 = vld [vmem:[#allocation2 + $0x1d8] sm:$0xff]
      %v2936 = vld [vmem:[#allocation2 + $0x1e0] sm:$0xff]
      %v2937 = vld [vmem:[#allocation2 + $0x1e8] sm:$0xff]
      %v2938 = vld [vmem:[#allocation2 + $0x1f0] sm:$0xff]
      %v2939 = vld [vmem:[#allocation2 + $0x1f8] sm:$0xff]
      %v2940 = vld [vmem:[#allocation2 + $0x200] sm:$0xff]
      %v2941 = vld [vmem:[#allocation2 + $0x208] sm:$0xff]
      %v2942 = vld [vmem:[#allocation2 + $0x210] sm:$0xff]
      %v2943 = vld [vmem:[#allocation2 + $0x218] sm:$0xff]
      %v2944 = vld [vmem:[#allocation2 + $0x220] sm:$0xff]
      %v2945 = vld [vmem:[#allocation2 + $0x228] sm:$0xff]
      %v2946 = vld [vmem:[#allocation2 + $0x230] sm:$0xff]
      %v2947 = vld [vmem:[#allocation2 + $0x238] sm:$0xff]
      %v2948 = vld [vmem:[#allocation2 + $0x240] sm:$0xff]
      %v2949 = vld [vmem:[#allocation2 + $0x248] sm:$0xff]
      %v2950 = vld [vmem:[#allocation2 + $0x250] sm:$0xff]
      %v2951 = vld [vmem:[#allocation2 + $0x258] sm:$0xff]
      %v2952 = vld [vmem:[#allocation2 + $0x260] sm:$0xff]
      %v2953 = vld [vmem:[#allocation2 + $0x268] sm:$0xff]
      %v2954 = vld [vmem:[#allocation2 + $0x270] sm:$0xff]
      %v2955 = vld [vmem:[#allocation2 + $0x278] sm:$0xff]
      %v2956 = vld [vmem:[#allocation2 + $0x280] sm:$0xff]
      %v2957 = vld [vmem:[#allocation2 + $0x288] sm:$0xff]
      %v2958 = vld [vmem:[#allocation2 + $0x290] sm:$0xff]
      %v2959 = vld [vmem:[#allocation2 + $0x298] sm:$0xff]
      %v2960 = vld [vmem:[#allocation2 + $0x2a0] sm:$0xff]
      %v2961 = vld [vmem:[#allocation2 + $0x2a8] sm:$0xff]
      %v2962 = vld [vmem:[#allocation2 + $0x2b0] sm:$0xff]
      %v2963 = vld [vmem:[#allocation2 + $0x2b8] sm:$0xff]
      %v2964 = vld [vmem:[#allocation2 + $0x2c0] sm:$0xff]
      %v2965 = vld [vmem:[#allocation2 + $0x2c8] sm:$0xff]
      %v2966 = vld [vmem:[#allocation2 + $0x2d0] sm:$0xff]
      %v2967 = vld [vmem:[#allocation2 + $0x2d8] sm:$0xff]
      %v2968 = vld [vmem:[#allocation2 + $0x2e0] sm:$0xff]
      %v2969 = vld [vmem:[#allocation2 + $0x2e8] sm:$0xff]
      %v2970 = vld [vmem:[#allocation2 + $0x2f0] sm:$0xff]
      %v2971 = vld [vmem:[#allocation2 + $0x2f8] sm:$0xff]
      %v2972 = vld [vmem:[#allocation2 + $0x300] sm:$0xff]
      %v2973 = vld [vmem:[#allocation2 + $0x308] sm:$0xff]
      %v2974 = vld [vmem:[#allocation2 + $0x310] sm:$0xff]
      %v2975 = vld [vmem:[#allocation2 + $0x318] sm:$0xff]
      %v2976 = vld [vmem:[#allocation2 + $0x320] sm:$0xff]
      %v2977 = vld [vmem:[#allocation2 + $0x328] sm:$0xff]
      %v2978 = vld [vmem:[#allocation2 + $0x330] sm:$0xff]
      %v2979 = vld [vmem:[#allocation2 + $0x338] sm:$0xff]
      %v2980 = vld [vmem:[#allocation2 + $0x340] sm:$0xff]
      %v2981 = vld [vmem:[#allocation2 + $0x348] sm:$0xff]
      %v2982 = vld [vmem:[#allocation2 + $0x350] sm:$0xff]
      %v2983 = vld [vmem:[#allocation2 + $0x358] sm:$0xff]
      %v2984 = vld [vmem:[#allocation2 + $0x360] sm:$0xff]
      %v2985 = vld [vmem:[#allocation2 + $0x368] sm:$0xff]
      %v2986 = vld [vmem:[#allocation2 + $0x370] sm:$0xff]
      %v2987 = vld [vmem:[#allocation2 + $0x378] sm:$0xff]
      %v2988 = vld [vmem:[#allocation2 + $0x380] sm:$0xff]
      %v2989 = vld [vmem:[#allocation2 + $0x388] sm:$0xff]
      %v2990 = vld [vmem:[#allocation2 + $0x390] sm:$0xff]
      %v2991 = vld [vmem:[#allocation2 + $0x398] sm:$0xff]
      %v2992 = vld [vmem:[#allocation2 + $0x3a0] sm:$0xff]
      %v2993 = vld [vmem:[#allocation2 + $0x3a8] sm:$0xff]
      %v2994 = vld [vmem:[#allocation2 + $0x3b0] sm:$0xff]
      %v2995 = vld [vmem:[#allocation2 + $0x3b8] sm:$0xff]
      %v2996 = vld [vmem:[#allocation2 + $0x3c0] sm:$0xff]
      %v2997 = vld [vmem:[#allocation2 + $0x3c8] sm:$0xff]
      %v2998 = vld [vmem:[#allocation2 + $0x3d0] sm:$0xff]
      %v2999 = vld [vmem:[#allocation2 + $0x3d8] sm:$0xff]
      %v3000 = vld [vmem:[#allocation2 + $0x3e0] sm:$0xff]
      %v3001 = vld [vmem:[#allocation2 + $0x3e8] sm:$0xff]
      %v3002 = vld [vmem:[#allocation2 + $0x3f0] sm:$0xff]
      %v3003 = vld [vmem:[#allocation2 + $0x3f8] sm:$0xff]
      %v3004 = vld [vmem:[#allocation2 + $0x400] sm:$0xff]
      %v3005 = vld [vmem:[#allocation2 + $0x408] sm:$0xff]
      %s3006 = scalar_lea.vmem %s1, 8
      %v3007 = vld [vmem:[%s3006] sm:$0xf]
      %v3009 = vsel %vm302, %v2878, 0
      %v3012 = vsel %vm302, %v2879, 0
      %v3015 = vsel %vm302, %v2880, 0
      %v3018 = vsel %vm302, %v2881, 0
      %v3021 = vsel %vm302, %v2882, 0
      %v3024 = vsel %vm302, %v2883, 0
      %v3027 = vsel %vm302, %v2884, 0
      %v3030 = vsel %vm302, %v2885, 0
      %v3033 = vsel %vm302, %v2886, 0
      %v3036 = vsel %vm302, %v2887, 0
      %v3039 = vsel %vm302, %v2888, 0
      %v3042 = vsel %vm302, %v2889, 0
      %v3045 = vsel %vm302, %v2890, 0
      %v3048 = vsel %vm302, %v2891, 0
      %v3051 = vsel %vm302, %v2892, 0
      %v3054 = vsel %vm302, %v2893, 0
      %v3057 = vsel %vm302, %v2894, 0
      %v3060 = vsel %vm302, %v2895, 0
      %v3063 = vsel %vm302, %v2896, 0
      %v3066 = vsel %vm302, %v2897, 0
      %v3069 = vsel %vm302, %v2898, 0
      %v3072 = vsel %vm302, %v2899, 0
      %v3075 = vsel %vm302, %v2900, 0
      %v3078 = vsel %vm302, %v2901, 0
      %v3081 = vsel %vm302, %v2902, 0
      %v3084 = vsel %vm302, %v2903, 0
      %v3087 = vsel %vm302, %v2904, 0
      %v3090 = vsel %vm302, %v2905, 0
      %v3093 = vsel %vm302, %v2906, 0
      %v3096 = vsel %vm302, %v2907, 0
      %v3099 = vsel %vm302, %v2908, 0
      %v3102 = vsel %vm302, %v2909, 0
      %v3105 = vsel %vm302, %v2910, 0
      %v3108 = vsel %vm302, %v2911, 0
      %v3111 = vsel %vm302, %v2912, 0
      %v3114 = vsel %vm302, %v2913, 0
      %v3117 = vsel %vm302, %v2914, 0
      %v3120 = vsel %vm302, %v2915, 0
      %v3123 = vsel %vm302, %v2916, 0
      %v3126 = vsel %vm302, %v2917, 0
      %v3129 = vsel %vm302, %v2918, 0
      %v3132 = vsel %vm302, %v2919, 0
      %v3135 = vsel %vm302, %v2920, 0
      %v3138 = vsel %vm302, %v2921, 0
      %v3141 = vsel %vm302, %v2922, 0
      %v3144 = vsel %vm302, %v2923, 0
      %v3147 = vsel %vm302, %v2924, 0
      %v3150 = vsel %vm302, %v2925, 0
      %v3153 = vsel %vm302, %v2926, 0
      %v3156 = vsel %vm302, %v2927, 0
      %v3159 = vsel %vm302, %v2928, 0
      %v3162 = vsel %vm302, %v2929, 0
      %v3165 = vsel %vm302, %v2930, 0
      %v3168 = vsel %vm302, %v2931, 0
      %v3171 = vsel %vm302, %v2932, 0
      %v3174 = vsel %vm302, %v2933, 0
      %v3177 = vsel %vm302, %v2934, 0
      %v3180 = vsel %vm302, %v2935, 0
      %v3183 = vsel %vm302, %v2936, 0
      %v3186 = vsel %vm302, %v2937, 0
      %v3189 = vsel %vm302, %v2938, 0
      %v3192 = vsel %vm302, %v2939, 0
      %v3195 = vsel %vm302, %v2940, 0
      %v3198 = vsel %vm302, %v2941, 0
      %v3201 = vsel %vm302, %v2942, 0
      %v3204 = vsel %vm302, %v2943, 0
      %v3207 = vsel %vm302, %v2944, 0
      %v3210 = vsel %vm302, %v2945, 0
      %v3213 = vsel %vm302, %v2946, 0
      %v3216 = vsel %vm302, %v2947, 0
      %v3219 = vsel %vm302, %v2948, 0
      %v3222 = vsel %vm302, %v2949, 0
      %v3225 = vsel %vm302, %v2950, 0
      %v3228 = vsel %vm302, %v2951, 0
      %v3231 = vsel %vm302, %v2952, 0
      %v3234 = vsel %vm302, %v2953, 0
      %v3237 = vsel %vm302, %v2954, 0
      %v3240 = vsel %vm302, %v2955, 0
      %v3243 = vsel %vm302, %v2956, 0
      %v3246 = vsel %vm302, %v2957, 0
      %v3249 = vsel %vm302, %v2958, 0
      %v3252 = vsel %vm302, %v2959, 0
      %v3255 = vsel %vm302, %v2960, 0
      %v3258 = vsel %vm302, %v2961, 0
      %v3261 = vsel %vm302, %v2962, 0
      %v3264 = vsel %vm302, %v2963, 0
      %v3267 = vsel %vm302, %v2964, 0
      %v3270 = vsel %vm302, %v2965, 0
      %v3273 = vsel %vm302, %v2966, 0
      %v3276 = vsel %vm302, %v2967, 0
      %v3279 = vsel %vm302, %v2968, 0
      %v3282 = vsel %vm302, %v2969, 0
      %v3285 = vsel %vm302, %v2970, 0
      %v3288 = vsel %vm302, %v2971, 0
      %v3291 = vsel %vm302, %v2972, 0
      %v3294 = vsel %vm302, %v2973, 0
      %v3297 = vsel %vm302, %v2974, 0
      %v3300 = vsel %vm302, %v2975, 0
      %v3303 = vsel %vm302, %v2976, 0
      %v3306 = vsel %vm302, %v2977, 0
      %v3309 = vsel %vm302, %v2978, 0
      %v3312 = vsel %vm302, %v2979, 0
      %v3315 = vsel %vm302, %v2980, 0
      %v3318 = vsel %vm302, %v2981, 0
      %v3321 = vsel %vm302, %v2982, 0
      %v3324 = vsel %vm302, %v2983, 0
      %v3327 = vsel %vm302, %v2984, 0
      %v3330 = vsel %vm302, %v2985, 0
      %v3333 = vsel %vm302, %v2986, 0
      %v3336 = vsel %vm302, %v2987, 0
      %v3339 = vsel %vm302, %v2988, 0
      %v3342 = vsel %vm302, %v2989, 0
      %v3345 = vsel %vm302, %v2990, 0
      %v3348 = vsel %vm302, %v2991, 0
      %v3351 = vsel %vm302, %v2992, 0
      %v3354 = vsel %vm302, %v2993, 0
      %v3357 = vsel %vm302, %v2994, 0
      %v3360 = vsel %vm302, %v2995, 0
      %v3363 = vsel %vm302, %v2996, 0
      %v3366 = vsel %vm302, %v2997, 0
      %v3369 = vsel %vm302, %v2998, 0
      %v3372 = vsel %vm302, %v2999, 0
      %v3375 = vsel %vm302, %v3000, 0
      %v3378 = vsel %vm302, %v3001, 0
      %v3381 = vsel %vm302, %v3002, 0
      %v3384 = vsel %vm302, %v3003, 0
      %v3387 = vsel %vm302, %v3004, 0
      %v3390 = vsel %vm302, %v3005, 0
      %v3393 = vsel %vm1077, %v3007, 0
      %3395 = vmatprep.subr.mxu0 0.0
      %3396 = vmatpush1.msra.mxu0 %v3393
      %3397 = vmatprep.subr.mxu0 0.0
      %3398 = vmatpush1.msra.mxu0 0.0
      %3399 = vmatprep.subr.mxu0 0.0
      %3400 = vmatpush1.msra.mxu0 0.0
      %3401 = vmatprep.subr.mxu0 0.0
      %3402 = vmatpush1.msra.mxu0 0.0
      %3403 = vmatprep.subr.mxu0 0.0
      %3404 = vmatpush1.msra.mxu0 0.0
      %3405 = vmatprep.subr.mxu0 0.0
      %3406 = vmatpush1.msra.mxu0 0.0
      %3407 = vmatprep.subr.mxu0 0.0
      %3408 = vmatpush1.msra.mxu0 0.0
      %3409 = vmatprep.subr.mxu0 0.0
      %3410 = vmatpush1.msra.mxu0 0.0
      %3411 = vmatprep.subr.mxu0 0.0
      %3412 = vmatpush1.msra.mxu0 0.0
      %3413 = vmatprep.subr.mxu0 0.0
      %3414 = vmatpush1.msra.mxu0 0.0
      %3415 = vmatprep.subr.mxu0 0.0
      %3416 = vmatpush1.msra.mxu0 0.0
      %3417 = vmatprep.subr.mxu0 0.0
      %3418 = vmatpush1.msra.mxu0 0.0
      %3419 = vmatprep.subr.mxu0 0.0
      %3420 = vmatpush1.msra.mxu0 0.0
      %3421 = vmatprep.subr.mxu0 0.0
      %3422 = vmatpush1.msra.mxu0 0.0
      %3423 = vmatprep.subr.mxu0 0.0
      %3424 = vmatpush1.msra.mxu0 0.0
      %3425 = vmatprep.subr.mxu0 0.0
      %3426 = vmatpush1.msra.mxu0 0.0
      %3427 = vmatprep.subr.mxu0 0.0
      %3428 = vmatpush1.msra.mxu0 0.0
      %3429 = vmatprep.subr.mxu0 0.0
      %3430 = vmatpush1.msra.mxu0 0.0
      %3431 = vmatprep.subr.mxu0 0.0
      %3432 = vmatpush1.msra.mxu0 0.0
      %3433 = vmatprep.subr.mxu0 0.0
      %3434 = vmatpush1.msra.mxu0 0.0
      %3435 = vmatprep.subr.mxu0 0.0
      %3436 = vmatpush1.msra.mxu0 0.0
      %3437 = vmatprep.subr.mxu0 0.0
      %3438 = vmatpush1.msra.mxu0 0.0
      %3439 = vmatprep.subr.mxu0 0.0
      %3440 = vmatpush1.msra.mxu0 0.0
      %3441 = vmatprep.subr.mxu0 0.0
      %3442 = vmatpush1.msra.mxu0 0.0
      %3443 = vmatprep.subr.mxu0 0.0
      %3444 = vmatpush1.msra.mxu0 0.0
      %3445 = vmatprep.subr.mxu0 0.0
      %3446 = vmatpush1.msra.mxu0 0.0
      %3447 = vmatprep.subr.mxu0 0.0
      %3448 = vmatpush1.msra.mxu0 0.0
      %3449 = vmatprep.subr.mxu0 0.0
      %3450 = vmatpush1.msra.mxu0 0.0
      %3451 = vmatprep.subr.mxu0 0.0
      %3452 = vmatpush1.msra.mxu0 0.0
      %3453 = vmatprep.subr.mxu0 0.0
      %3454 = vmatpush1.msra.mxu0 0.0
      %3455 = vmatprep.subr.mxu0 0.0
      %3456 = vmatpush1.msra.mxu0 0.0
      %3457 = vmatprep.subr.mxu0 0.0
      %3458 = vmatpush1.msra.mxu0 0.0
      %3459 = vmatprep.mubr.f32.mxu0 0.0
      %3460 = vmatmul.mubr.f32.gmra.mrb[0].mxu0 %v3009
      %v3461 = vpop.f32.mrb[0].mxu0
      %v3462 = vadd.f32 0.0, %v3461
      %v3463 = vpop.f32.mrb[0].mxu0
      %3464 = vmatprep.mubr.f32.mxu0 0.0
      %3465 = vmatmul.mubr.f32.gmra.mrb[0].mxu0 %v3012
      %v3466 = vpop.f32.mrb[0].mxu0
      %v3467 = vadd.f32 0.0, %v3466
      %v3468 = vpop.f32.mrb[0].mxu0
      %3469 = vmatprep.mubr.f32.mxu0 0.0
      %3470 = vmatmul.mubr.f32.gmra.mrb[0].mxu0 %v3015
      %v3471 = vpop.f32.mrb[0].mxu0
      %v3472 = vadd.f32 0.0, %v3471
      %v3473 = vpop.f32.mrb[0].mxu0
      %3474 = vmatprep.mubr.f32.mxu0 0.0
      %3475 = vmatmul.mubr.f32.gmra.mrb[0].mxu0 %v3018
      %v3476 = vpop.f32.mrb[0].mxu0
      %v3477 = vadd.f32 0.0, %v3476
      %v3478 = vpop.f32.mrb[0].mxu0
      %3479 = vmatprep.mubr.f32.mxu0 0.0
      %3480 = vmatmul.mubr.f32.gmra.mrb[0].mxu0 %v3021
      %v3481 = vpop.f32.mrb[0].mxu0
      %v3482 = vadd.f32 0.0, %v3481
      %v3483 = vpop.f32.mrb[0].mxu0
      %3484 = vmatprep.mubr.f32.mxu0 0.0
      %3485 = vmatmul.mubr.f32.gmra.mrb[0].mxu0 %v3024
      %v3486 = vpop.f32.mrb[0].mxu0
      %v3487 = vadd.f32 0.0, %v3486
      %v3488 = vpop.f32.mrb[0].mxu0
      %3489 = vmatprep.mubr.f32.mxu0 0.0
      %3490 = vmatmul.mubr.f32.gmra.mrb[0].mxu0 %v3027
      %v3491 = vpop.f32.mrb[0].mxu0
      %v3492 = vadd.f32 0.0, %v3491
      %v3493 = vpop.f32.mrb[0].mxu0
      %3494 = vmatprep.mubr.f32.mxu0 0.0
      %3495 = vmatmul.mubr.f32.gmra.mrb[0].mxu0 %v3030
      %v3496 = vpop.f32.mrb[0].mxu0
      %v3497 = vadd.f32 0.0, %v3496
      %v3498 = vpop.f32.mrb[0].mxu0
      %3499 = vmatprep.mubr.f32.mxu0 0.0
      %3500 = vmatmul.mubr.f32.gmra.mrb[0].mxu0 %v3033
      %v3501 = vpop.f32.mrb[0].mxu0
      %v3502 = vadd.f32 0.0, %v3501
      %v3503 = vpop.f32.mrb[0].mxu0
      %3504 = vmatprep.mubr.f32.mxu0 0.0
      %3505 = vmatmul.mubr.f32.gmra.mrb[0].mxu0 %v3036
      %v3506 = vpop.f32.mrb[0].mxu0
      %v3507 = vadd.f32 0.0, %v3506
      %v3508 = vpop.f32.mrb[0].mxu0
      %3509 = vmatprep.mubr.f32.mxu0 0.0
      %3510 = vmatmul.mubr.f32.gmra.mrb[0].mxu0 %v3039
      %v3511 = vpop.f32.mrb[0].mxu0
      %v3512 = vadd.f32 0.0, %v3511
      %v3513 = vpop.f32.mrb[0].mxu0
      %3514 = vmatprep.mubr.f32.mxu0 0.0
      %3515 = vmatmul.mubr.f32.gmra.mrb[0].mxu0 %v3042
      %v3516 = vpop.f32.mrb[0].mxu0
      %v3517 = vadd.f32 0.0, %v3516
      %v3518 = vpop.f32.mrb[0].mxu0
      %3519 = vmatprep.mubr.f32.mxu0 0.0
      %3520 = vmatmul.mubr.f32.gmra.mrb[0].mxu0 %v3045
      %v3521 = vpop.f32.mrb[0].mxu0
      %v3522 = vadd.f32 0.0, %v3521
      %v3523 = vpop.f32.mrb[0].mxu0
      %3524 = vmatprep.mubr.f32.mxu0 0.0
      %3525 = vmatmul.mubr.f32.gmra.mrb[0].mxu0 %v3048
      %v3526 = vpop.f32.mrb[0].mxu0
      %v3527 = vadd.f32 0.0, %v3526
      %v3528 = vpop.f32.mrb[0].mxu0
      %3529 = vmatprep.mubr.f32.mxu0 0.0
      %3530 = vmatmul.mubr.f32.gmra.mrb[0].mxu0 %v3051
      %v3531 = vpop.f32.mrb[0].mxu0
      %v3532 = vadd.f32 0.0, %v3531
      %v3533 = vpop.f32.mrb[0].mxu0
      %3534 = vmatprep.mubr.f32.mxu0 0.0
      %3535 = vmatmul.mubr.f32.gmra.mrb[0].mxu0 %v3054
      %v3536 = vpop.f32.mrb[0].mxu0
      %v3537 = vadd.f32 0.0, %v3536
      %v3538 = vpop.f32.mrb[0].mxu0
      %3539 = vmatprep.mubr.f32.mxu0 0.0
      %3540 = vmatmul.mubr.f32.gmra.mrb[0].mxu0 %v3057
      %v3541 = vpop.f32.mrb[0].mxu0
      %v3542 = vadd.f32 0.0, %v3541
      %v3543 = vpop.f32.mrb[0].mxu0
      %3544 = vmatprep.mubr.f32.mxu0 0.0
      %3545 = vmatmul.mubr.f32.gmra.mrb[0].mxu0 %v3060
      %v3546 = vpop.f32.mrb[0].mxu0
      %v3547 = vadd.f32 0.0, %v3546
      %v3548 = vpop.f32.mrb[0].mxu0
      %3549 = vmatprep.mubr.f32.mxu0 0.0
      %3550 = vmatmul.mubr.f32.gmra.mrb[0].mxu0 %v3063
      %v3551 = vpop.f32.mrb[0].mxu0
      %v3552 = vadd.f32 0.0, %v3551
      %v3553 = vpop.f32.mrb[0].mxu0
      %3554 = vmatprep.mubr.f32.mxu0 0.0
      %3555 = vmatmul.mubr.f32.gmra.mrb[0].mxu0 %v3066
      %v3556 = vpop.f32.mrb[0].mxu0
      %v3557 = vadd.f32 0.0, %v3556
      %v3558 = vpop.f32.mrb[0].mxu0
      %3559 = vmatprep.mubr.f32.mxu0 0.0
      %3560 = vmatmul.mubr.f32.gmra.mrb[0].mxu0 %v3069
      %v3561 = vpop.f32.mrb[0].mxu0
      %v3562 = vadd.f32 0.0, %v3561
      %v3563 = vpop.f32.mrb[0].mxu0
      %3564 = vmatprep.mubr.f32.mxu0 0.0
      %3565 = vmatmul.mubr.f32.gmra.mrb[0].mxu0 %v3072
      %v3566 = vpop.f32.mrb[0].mxu0
      %v3567 = vadd.f32 0.0, %v3566
      %v3568 = vpop.f32.mrb[0].mxu0
      %3569 = vmatprep.mubr.f32.mxu0 0.0
      %3570 = vmatmul.mubr.f32.gmra.mrb[0].mxu0 %v3075
      %v3571 = vpop.f32.mrb[0].mxu0
      %v3572 = vadd.f32 0.0, %v3571
      %v3573 = vpop.f32.mrb[0].mxu0
      %3574 = vmatprep.mubr.f32.mxu0 0.0
      %3575 = vmatmul.mubr.f32.gmra.mrb[0].mxu0 %v3078
      %v3576 = vpop.f32.mrb[0].mxu0
      %v3577 = vadd.f32 0.0, %v3576
      %v3578 = vpop.f32.mrb[0].mxu0
      %3579 = vmatprep.mubr.f32.mxu0 0.0
      %3580 = vmatmul.mubr.f32.gmra.mrb[0].mxu0 %v3081
      %v3581 = vpop.f32.mrb[0].mxu0
      %v3582 = vadd.f32 0.0, %v3581
      %v3583 = vpop.f32.mrb[0].mxu0
      %3584 = vmatprep.mubr.f32.mxu0 0.0
      %3585 = vmatmul.mubr.f32.gmra.mrb[0].mxu0 %v3084
      %v3586 = vpop.f32.mrb[0].mxu0
      %v3587 = vadd.f32 0.0, %v3586
      %v3588 = vpop.f32.mrb[0].mxu0
      %3589 = vmatprep.mubr.f32.mxu0 0.0
      %3590 = vmatmul.mubr.f32.gmra.mrb[0].mxu0 %v3087
      %v3591 = vpop.f32.mrb[0].mxu0
      %v3592 = vadd.f32 0.0, %v3591
      %v3593 = vpop.f32.mrb[0].mxu0
      %3594 = vmatprep.mubr.f32.mxu0 0.0
      %3595 = vmatmul.mubr.f32.gmra.mrb[0].mxu0 %v3090
      %v3596 = vpop.f32.mrb[0].mxu0
      %v3597 = vadd.f32 0.0, %v3596
      %v3598 = vpop.f32.mrb[0].mxu0
      %3599 = vmatprep.mubr.f32.mxu0 0.0
      %3600 = vmatmul.mubr.f32.gmra.mrb[0].mxu0 %v3093
      %v3601 = vpop.f32.mrb[0].mxu0
      %v3602 = vadd.f32 0.0, %v3601
      %v3603 = vpop.f32.mrb[0].mxu0
      %3604 = vmatprep.mubr.f32.mxu0 0.0
      %3605 = vmatmul.mubr.f32.gmra.mrb[0].mxu0 %v3096
      %v3606 = vpop.f32.mrb[0].mxu0
      %v3607 = vadd.f32 0.0, %v3606
      %v3608 = vpop.f32.mrb[0].mxu0
      %3609 = vmatprep.mubr.f32.mxu0 0.0
      %3610 = vmatmul.mubr.f32.gmra.mrb[0].mxu0 %v3099
      %v3611 = vpop.f32.mrb[0].mxu0
      %v3612 = vadd.f32 0.0, %v3611
      %v3613 = vpop.f32.mrb[0].mxu0
      %3614 = vmatprep.mubr.f32.mxu0 0.0
      %3615 = vmatmul.mubr.f32.gmra.mrb[0].mxu0 %v3102
      %v3616 = vpop.f32.mrb[0].mxu0
      %v3617 = vadd.f32 0.0, %v3616
      %v3618 = vpop.f32.mrb[0].mxu0
      %3619 = vmatprep.mubr.f32.mxu0 0.0
      %3620 = vmatmul.mubr.f32.gmra.mrb[0].mxu0 %v3105
      %v3621 = vpop.f32.mrb[0].mxu0
      %v3622 = vadd.f32 0.0, %v3621
      %v3623 = vpop.f32.mrb[0].mxu0
      %3624 = vmatprep.mubr.f32.mxu0 0.0
      %3625 = vmatmul.mubr.f32.gmra.mrb[0].mxu0 %v3108
      %v3626 = vpop.f32.mrb[0].mxu0
      %v3627 = vadd.f32 0.0, %v3626
      %v3628 = vpop.f32.mrb[0].mxu0
      %3629 = vmatprep.mubr.f32.mxu0 0.0
      %3630 = vmatmul.mubr.f32.gmra.mrb[0].mxu0 %v3111
      %v3631 = vpop.f32.mrb[0].mxu0
      %v3632 = vadd.f32 0.0, %v3631
      %v3633 = vpop.f32.mrb[0].mxu0
      %3634 = vmatprep.mubr.f32.mxu0 0.0
      %3635 = vmatmul.mubr.f32.gmra.mrb[0].mxu0 %v3114
      %v3636 = vpop.f32.mrb[0].mxu0
      %v3637 = vadd.f32 0.0, %v3636
      %v3638 = vpop.f32.mrb[0].mxu0
      %3639 = vmatprep.mubr.f32.mxu0 0.0
      %3640 = vmatmul.mubr.f32.gmra.mrb[0].mxu0 %v3117
      %v3641 = vpop.f32.mrb[0].mxu0
      %v3642 = vadd.f32 0.0, %v3641
      %v3643 = vpop.f32.mrb[0].mxu0
      %3644 = vmatprep.mubr.f32.mxu0 0.0
      %3645 = vmatmul.mubr.f32.gmra.mrb[0].mxu0 %v3120
      %v3646 = vpop.f32.mrb[0].mxu0
      %v3647 = vadd.f32 0.0, %v3646
      %v3648 = vpop.f32.mrb[0].mxu0
      %3649 = vmatprep.mubr.f32.mxu0 0.0
      %3650 = vmatmul.mubr.f32.gmra.mrb[0].mxu0 %v3123
      %v3651 = vpop.f32.mrb[0].mxu0
      %v3652 = vadd.f32 0.0, %v3651
      %v3653 = vpop.f32.mrb[0].mxu0
      %3654 = vmatprep.mubr.f32.mxu0 0.0
      %3655 = vmatmul.mubr.f32.gmra.mrb[0].mxu0 %v3126
      %v3656 = vpop.f32.mrb[0].mxu0
      %v3657 = vadd.f32 0.0, %v3656
      %v3658 = vpop.f32.mrb[0].mxu0
      %3659 = vmatprep.mubr.f32.mxu0 0.0
      %3660 = vmatmul.mubr.f32.gmra.mrb[0].mxu0 %v3129
      %v3661 = vpop.f32.mrb[0].mxu0
      %v3662 = vadd.f32 0.0, %v3661
      %v3663 = vpop.f32.mrb[0].mxu0
      %3664 = vmatprep.mubr.f32.mxu0 0.0
      %3665 = vmatmul.mubr.f32.gmra.mrb[0].mxu0 %v3132
      %v3666 = vpop.f32.mrb[0].mxu0
      %v3667 = vadd.f32 0.0, %v3666
      %v3668 = vpop.f32.mrb[0].mxu0
      %3669 = vmatprep.mubr.f32.mxu0 0.0
      %3670 = vmatmul.mubr.f32.gmra.mrb[0].mxu0 %v3135
      %v3671 = vpop.f32.mrb[0].mxu0
      %v3672 = vadd.f32 0.0, %v3671
      %v3673 = vpop.f32.mrb[0].mxu0
      %3674 = vmatprep.mubr.f32.mxu0 0.0
      %3675 = vmatmul.mubr.f32.gmra.mrb[0].mxu0 %v3138
      %v3676 = vpop.f32.mrb[0].mxu0
      %v3677 = vadd.f32 0.0, %v3676
      %v3678 = vpop.f32.mrb[0].mxu0
      %3679 = vmatprep.mubr.f32.mxu0 0.0
      %3680 = vmatmul.mubr.f32.gmra.mrb[0].mxu0 %v3141
      %v3681 = vpop.f32.mrb[0].mxu0
      %v3682 = vadd.f32 0.0, %v3681
      %v3683 = vpop.f32.mrb[0].mxu0
      %3684 = vmatprep.mubr.f32.mxu0 0.0
      %3685 = vmatmul.mubr.f32.gmra.mrb[0].mxu0 %v3144
      %v3686 = vpop.f32.mrb[0].mxu0
      %v3687 = vadd.f32 0.0, %v3686
      %v3688 = vpop.f32.mrb[0].mxu0
      %3689 = vmatprep.mubr.f32.mxu0 0.0
      %3690 = vmatmul.mubr.f32.gmra.mrb[0].mxu0 %v3147
      %v3691 = vpop.f32.mrb[0].mxu0
      %v3692 = vadd.f32 0.0, %v3691
      %v3693 = vpop.f32.mrb[0].mxu0
      %3694 = vmatprep.mubr.f32.mxu0 0.0
      %3695 = vmatmul.mubr.f32.gmra.mrb[0].mxu0 %v3150
      %v3696 = vpop.f32.mrb[0].mxu0
      %v3697 = vadd.f32 0.0, %v3696
      %v3698 = vpop.f32.mrb[0].mxu0
      %3699 = vmatprep.mubr.f32.mxu0 0.0
      %3700 = vmatmul.mubr.f32.gmra.mrb[0].mxu0 %v3153
      %v3701 = vpop.f32.mrb[0].mxu0
      %v3702 = vadd.f32 0.0, %v3701
      %v3703 = vpop.f32.mrb[0].mxu0
      %3704 = vmatprep.mubr.f32.mxu0 0.0
      %3705 = vmatmul.mubr.f32.gmra.mrb[0].mxu0 %v3156
      %v3706 = vpop.f32.mrb[0].mxu0
      %v3707 = vadd.f32 0.0, %v3706
      %v3708 = vpop.f32.mrb[0].mxu0
      %3709 = vmatprep.mubr.f32.mxu0 0.0
      %3710 = vmatmul.mubr.f32.gmra.mrb[0].mxu0 %v3159
      %v3711 = vpop.f32.mrb[0].mxu0
      %v3712 = vadd.f32 0.0, %v3711
      %v3713 = vpop.f32.mrb[0].mxu0
      %3714 = vmatprep.mubr.f32.mxu0 0.0
      %3715 = vmatmul.mubr.f32.gmra.mrb[0].mxu0 %v3162
      %v3716 = vpop.f32.mrb[0].mxu0
      %v3717 = vadd.f32 0.0, %v3716
      %v3718 = vpop.f32.mrb[0].mxu0
      %3719 = vmatprep.mubr.f32.mxu0 0.0
      %3720 = vmatmul.mubr.f32.gmra.mrb[0].mxu0 %v3165
      %v3721 = vpop.f32.mrb[0].mxu0
      %v3722 = vadd.f32 0.0, %v3721
      %v3723 = vpop.f32.mrb[0].mxu0
      %3724 = vmatprep.mubr.f32.mxu0 0.0
      %3725 = vmatmul.mubr.f32.gmra.mrb[0].mxu0 %v3168
      %v3726 = vpop.f32.mrb[0].mxu0
      %v3727 = vadd.f32 0.0, %v3726
      %v3728 = vpop.f32.mrb[0].mxu0
      %3729 = vmatprep.mubr.f32.mxu0 0.0
      %3730 = vmatmul.mubr.f32.gmra.mrb[0].mxu0 %v3171
      %v3731 = vpop.f32.mrb[0].mxu0
      %v3732 = vadd.f32 0.0, %v3731
      %v3733 = vpop.f32.mrb[0].mxu0
      %3734 = vmatprep.mubr.f32.mxu0 0.0
      %3735 = vmatmul.mubr.f32.gmra.mrb[0].mxu0 %v3174
      %v3736 = vpop.f32.mrb[0].mxu0
      %v3737 = vadd.f32 0.0, %v3736
      %v3738 = vpop.f32.mrb[0].mxu0
      %3739 = vmatprep.mubr.f32.mxu0 0.0
      %3740 = vmatmul.mubr.f32.gmra.mrb[0].mxu0 %v3177
      %v3741 = vpop.f32.mrb[0].mxu0
      %v3742 = vadd.f32 0.0, %v3741
      %v3743 = vpop.f32.mrb[0].mxu0
      %3744 = vmatprep.mubr.f32.mxu0 0.0
      %3745 = vmatmul.mubr.f32.gmra.mrb[0].mxu0 %v3180
      %v3746 = vpop.f32.mrb[0].mxu0
      %v3747 = vadd.f32 0.0, %v3746
      %v3748 = vpop.f32.mrb[0].mxu0
      %3749 = vmatprep.mubr.f32.mxu0 0.0
      %3750 = vmatmul.mubr.f32.gmra.mrb[0].mxu0 %v3183
      %v3751 = vpop.f32.mrb[0].mxu0
      %v3752 = vadd.f32 0.0, %v3751
      %v3753 = vpop.f32.mrb[0].mxu0
      %3754 = vmatprep.mubr.f32.mxu0 0.0
      %3755 = vmatmul.mubr.f32.gmra.mrb[0].mxu0 %v3186
      %v3756 = vpop.f32.mrb[0].mxu0
      %v3757 = vadd.f32 0.0, %v3756
      %v3758 = vpop.f32.mrb[0].mxu0
      %3759 = vmatprep.mubr.f32.mxu0 0.0
      %3760 = vmatmul.mubr.f32.gmra.mrb[0].mxu0 %v3189
      %v3761 = vpop.f32.mrb[0].mxu0
      %v3762 = vadd.f32 0.0, %v3761
      %v3763 = vpop.f32.mrb[0].mxu0
      %3764 = vmatprep.mubr.f32.mxu0 0.0
      %3765 = vmatmul.mubr.f32.gmra.mrb[0].mxu0 %v3192
      %v3766 = vpop.f32.mrb[0].mxu0
      %v3767 = vadd.f32 0.0, %v3766
      %v3768 = vpop.f32.mrb[0].mxu0
      %3769 = vmatprep.mubr.f32.mxu0 0.0
      %3770 = vmatmul.mubr.f32.gmra.mrb[0].mxu0 %v3195
      %v3771 = vpop.f32.mrb[0].mxu0
      %v3772 = vadd.f32 0.0, %v3771
      %v3773 = vpop.f32.mrb[0].mxu0
      %3774 = vmatprep.mubr.f32.mxu0 0.0
      %3775 = vmatmul.mubr.f32.gmra.mrb[0].mxu0 %v3198
      %v3776 = vpop.f32.mrb[0].mxu0
      %v3777 = vadd.f32 0.0, %v3776
      %v3778 = vpop.f32.mrb[0].mxu0
      %3779 = vmatprep.mubr.f32.mxu0 0.0
      %3780 = vmatmul.mubr.f32.gmra.mrb[0].mxu0 %v3201
      %v3781 = vpop.f32.mrb[0].mxu0
      %v3782 = vadd.f32 0.0, %v3781
      %v3783 = vpop.f32.mrb[0].mxu0
      %3784 = vmatprep.mubr.f32.mxu0 0.0
      %3785 = vmatmul.mubr.f32.gmra.mrb[0].mxu0 %v3204
      %v3786 = vpop.f32.mrb[0].mxu0
      %v3787 = vadd.f32 0.0, %v3786
      %v3788 = vpop.f32.mrb[0].mxu0
      %3789 = vmatprep.mubr.f32.mxu0 0.0
      %3790 = vmatmul.mubr.f32.gmra.mrb[0].mxu0 %v3207
      %v3791 = vpop.f32.mrb[0].mxu0
      %v3792 = vadd.f32 0.0, %v3791
      %v3793 = vpop.f32.mrb[0].mxu0
      %3794 = vmatprep.mubr.f32.mxu0 0.0
      %3795 = vmatmul.mubr.f32.gmra.mrb[0].mxu0 %v3210
      %v3796 = vpop.f32.mrb[0].mxu0
      %v3797 = vadd.f32 0.0, %v3796
      %v3798 = vpop.f32.mrb[0].mxu0
      %3799 = vmatprep.mubr.f32.mxu0 0.0
      %3800 = vmatmul.mubr.f32.gmra.mrb[0].mxu0 %v3213
      %v3801 = vpop.f32.mrb[0].mxu0
      %v3802 = vadd.f32 0.0, %v3801
      %v3803 = vpop.f32.mrb[0].mxu0
      %3804 = vmatprep.mubr.f32.mxu0 0.0
      %3805 = vmatmul.mubr.f32.gmra.mrb[0].mxu0 %v3216
      %v3806 = vpop.f32.mrb[0].mxu0
      %v3807 = vadd.f32 0.0, %v3806
      %v3808 = vpop.f32.mrb[0].mxu0
      %3809 = vmatprep.mubr.f32.mxu0 0.0
      %3810 = vmatmul.mubr.f32.gmra.mrb[0].mxu0 %v3219
      %v3811 = vpop.f32.mrb[0].mxu0
      %v3812 = vadd.f32 0.0, %v3811
      %v3813 = vpop.f32.mrb[0].mxu0
      %3814 = vmatprep.mubr.f32.mxu0 0.0
      %3815 = vmatmul.mubr.f32.gmra.mrb[0].mxu0 %v3222
      %v3816 = vpop.f32.mrb[0].mxu0
      %v3817 = vadd.f32 0.0, %v3816
      %v3818 = vpop.f32.mrb[0].mxu0
      %3819 = vmatprep.mubr.f32.mxu0 0.0
      %3820 = vmatmul.mubr.f32.gmra.mrb[0].mxu0 %v3225
      %v3821 = vpop.f32.mrb[0].mxu0
      %v3822 = vadd.f32 0.0, %v3821
      %v3823 = vpop.f32.mrb[0].mxu0
      %3824 = vmatprep.mubr.f32.mxu0 0.0
      %3825 = vmatmul.mubr.f32.gmra.mrb[0].mxu0 %v3228
      %v3826 = vpop.f32.mrb[0].mxu0
      %v3827 = vadd.f32 0.0, %v3826
      %v3828 = vpop.f32.mrb[0].mxu0
      %3829 = vmatprep.mubr.f32.mxu0 0.0
      %3830 = vmatmul.mubr.f32.gmra.mrb[0].mxu0 %v3231
      %v3831 = vpop.f32.mrb[0].mxu0
      %v3832 = vadd.f32 0.0, %v3831
      %v3833 = vpop.f32.mrb[0].mxu0
      %3834 = vmatprep.mubr.f32.mxu0 0.0
      %3835 = vmatmul.mubr.f32.gmra.mrb[0].mxu0 %v3234
      %v3836 = vpop.f32.mrb[0].mxu0
      %v3837 = vadd.f32 0.0, %v3836
      %v3838 = vpop.f32.mrb[0].mxu0
      %3839 = vmatprep.mubr.f32.mxu0 0.0
      %3840 = vmatmul.mubr.f32.gmra.mrb[0].mxu0 %v3237
      %v3841 = vpop.f32.mrb[0].mxu0
      %v3842 = vadd.f32 0.0, %v3841
      %v3843 = vpop.f32.mrb[0].mxu0
      %3844 = vmatprep.mubr.f32.mxu0 0.0
      %3845 = vmatmul.mubr.f32.gmra.mrb[0].mxu0 %v3240
      %v3846 = vpop.f32.mrb[0].mxu0
      %v3847 = vadd.f32 0.0, %v3846
      %v3848 = vpop.f32.mrb[0].mxu0
      %3849 = vmatprep.mubr.f32.mxu0 0.0
      %3850 = vmatmul.mubr.f32.gmra.mrb[0].mxu0 %v3243
      %v3851 = vpop.f32.mrb[0].mxu0
      %v3852 = vadd.f32 0.0, %v3851
      %v3853 = vpop.f32.mrb[0].mxu0
      %3854 = vmatprep.mubr.f32.mxu0 0.0
      %3855 = vmatmul.mubr.f32.gmra.mrb[0].mxu0 %v3246
      %v3856 = vpop.f32.mrb[0].mxu0
      %v3857 = vadd.f32 0.0, %v3856
      %v3858 = vpop.f32.mrb[0].mxu0
      %3859 = vmatprep.mubr.f32.mxu0 0.0
      %3860 = vmatmul.mubr.f32.gmra.mrb[0].mxu0 %v3249
      %v3861 = vpop.f32.mrb[0].mxu0
      %v3862 = vadd.f32 0.0, %v3861
      %v3863 = vpop.f32.mrb[0].mxu0
      %3864 = vmatprep.mubr.f32.mxu0 0.0
      %3865 = vmatmul.mubr.f32.gmra.mrb[0].mxu0 %v3252
      %v3866 = vpop.f32.mrb[0].mxu0
      %v3867 = vadd.f32 0.0, %v3866
      %v3868 = vpop.f32.mrb[0].mxu0
      %3869 = vmatprep.mubr.f32.mxu0 0.0
      %3870 = vmatmul.mubr.f32.gmra.mrb[0].mxu0 %v3255
      %v3871 = vpop.f32.mrb[0].mxu0
      %v3872 = vadd.f32 0.0, %v3871
      %v3873 = vpop.f32.mrb[0].mxu0
      %3874 = vmatprep.mubr.f32.mxu0 0.0
      %3875 = vmatmul.mubr.f32.gmra.mrb[0].mxu0 %v3258
      %v3876 = vpop.f32.mrb[0].mxu0
      %v3877 = vadd.f32 0.0, %v3876
      %v3878 = vpop.f32.mrb[0].mxu0
      %3879 = vmatprep.mubr.f32.mxu0 0.0
      %3880 = vmatmul.mubr.f32.gmra.mrb[0].mxu0 %v3261
      %v3881 = vpop.f32.mrb[0].mxu0
      %v3882 = vadd.f32 0.0, %v3881
      %v3883 = vpop.f32.mrb[0].mxu0
      %3884 = vmatprep.mubr.f32.mxu0 0.0
      %3885 = vmatmul.mubr.f32.gmra.mrb[0].mxu0 %v3264
      %v3886 = vpop.f32.mrb[0].mxu0
      %v3887 = vadd.f32 0.0, %v3886
      %v3888 = vpop.f32.mrb[0].mxu0
      %3889 = vmatprep.mubr.f32.mxu0 0.0
      %3890 = vmatmul.mubr.f32.gmra.mrb[0].mxu0 %v3267
      %v3891 = vpop.f32.mrb[0].mxu0
      %v3892 = vadd.f32 0.0, %v3891
      %v3893 = vpop.f32.mrb[0].mxu0
      %3894 = vmatprep.mubr.f32.mxu0 0.0
      %3895 = vmatmul.mubr.f32.gmra.mrb[0].mxu0 %v3270
      %v3896 = vpop.f32.mrb[0].mxu0
      %v3897 = vadd.f32 0.0, %v3896
      %v3898 = vpop.f32.mrb[0].mxu0
      %3899 = vmatprep.mubr.f32.mxu0 0.0
      %3900 = vmatmul.mubr.f32.gmra.mrb[0].mxu0 %v3273
      %v3901 = vpop.f32.mrb[0].mxu0
      %v3902 = vadd.f32 0.0, %v3901
      %v3903 = vpop.f32.mrb[0].mxu0
      %3904 = vmatprep.mubr.f32.mxu0 0.0
      %3905 = vmatmul.mubr.f32.gmra.mrb[0].mxu0 %v3276
      %v3906 = vpop.f32.mrb[0].mxu0
      %v3907 = vadd.f32 0.0, %v3906
      %v3908 = vpop.f32.mrb[0].mxu0
      %3909 = vmatprep.mubr.f32.mxu0 0.0
      %3910 = vmatmul.mubr.f32.gmra.mrb[0].mxu0 %v3279
      %v3911 = vpop.f32.mrb[0].mxu0
      %v3912 = vadd.f32 0.0, %v3911
      %v3913 = vpop.f32.mrb[0].mxu0
      %3914 = vmatprep.mubr.f32.mxu0 0.0
      %3915 = vmatmul.mubr.f32.gmra.mrb[0].mxu0 %v3282
      %v3916 = vpop.f32.mrb[0].mxu0
      %v3917 = vadd.f32 0.0, %v3916
      %v3918 = vpop.f32.mrb[0].mxu0
      %3919 = vmatprep.mubr.f32.mxu0 0.0
      %3920 = vmatmul.mubr.f32.gmra.mrb[0].mxu0 %v3285
      %v3921 = vpop.f32.mrb[0].mxu0
      %v3922 = vadd.f32 0.0, %v3921
      %v3923 = vpop.f32.mrb[0].mxu0
      %3924 = vmatprep.mubr.f32.mxu0 0.0
      %3925 = vmatmul.mubr.f32.gmra.mrb[0].mxu0 %v3288
      %v3926 = vpop.f32.mrb[0].mxu0
      %v3927 = vadd.f32 0.0, %v3926
      %v3928 = vpop.f32.mrb[0].mxu0
      %3929 = vmatprep.mubr.f32.mxu0 0.0
      %3930 = vmatmul.mubr.f32.gmra.mrb[0].mxu0 %v3291
      %v3931 = vpop.f32.mrb[0].mxu0
      %v3932 = vadd.f32 0.0, %v3931
      %v3933 = vpop.f32.mrb[0].mxu0
      %3934 = vmatprep.mubr.f32.mxu0 0.0
      %3935 = vmatmul.mubr.f32.gmra.mrb[0].mxu0 %v3294
      %v3936 = vpop.f32.mrb[0].mxu0
      %v3937 = vadd.f32 0.0, %v3936
      %v3938 = vpop.f32.mrb[0].mxu0
      %3939 = vmatprep.mubr.f32.mxu0 0.0
      %3940 = vmatmul.mubr.f32.gmra.mrb[0].mxu0 %v3297
      %v3941 = vpop.f32.mrb[0].mxu0
      %v3942 = vadd.f32 0.0, %v3941
      %v3943 = vpop.f32.mrb[0].mxu0
      %3944 = vmatprep.mubr.f32.mxu0 0.0
      %3945 = vmatmul.mubr.f32.gmra.mrb[0].mxu0 %v3300
      %v3946 = vpop.f32.mrb[0].mxu0
      %v3947 = vadd.f32 0.0, %v3946
      %v3948 = vpop.f32.mrb[0].mxu0
      %3949 = vmatprep.mubr.f32.mxu0 0.0
      %3950 = vmatmul.mubr.f32.gmra.mrb[0].mxu0 %v3303
      %v3951 = vpop.f32.mrb[0].mxu0
      %v3952 = vadd.f32 0.0, %v3951
      %v3953 = vpop.f32.mrb[0].mxu0
      %3954 = vmatprep.mubr.f32.mxu0 0.0
      %3955 = vmatmul.mubr.f32.gmra.mrb[0].mxu0 %v3306
      %v3956 = vpop.f32.mrb[0].mxu0
      %v3957 = vadd.f32 0.0, %v3956
      %v3958 = vpop.f32.mrb[0].mxu0
      %3959 = vmatprep.mubr.f32.mxu0 0.0
      %3960 = vmatmul.mubr.f32.gmra.mrb[0].mxu0 %v3309
      %v3961 = vpop.f32.mrb[0].mxu0
      %v3962 = vadd.f32 0.0, %v3961
      %v3963 = vpop.f32.mrb[0].mxu0
      %3964 = vmatprep.mubr.f32.mxu0 0.0
      %3965 = vmatmul.mubr.f32.gmra.mrb[0].mxu0 %v3312
      %v3966 = vpop.f32.mrb[0].mxu0
      %v3967 = vadd.f32 0.0, %v3966
      %v3968 = vpop.f32.mrb[0].mxu0
      %3969 = vmatprep.mubr.f32.mxu0 0.0
      %3970 = vmatmul.mubr.f32.gmra.mrb[0].mxu0 %v3315
      %v3971 = vpop.f32.mrb[0].mxu0
      %v3972 = vadd.f32 0.0, %v3971
      %v3973 = vpop.f32.mrb[0].mxu0
      %3974 = vmatprep.mubr.f32.mxu0 0.0
      %3975 = vmatmul.mubr.f32.gmra.mrb[0].mxu0 %v3318
      %v3976 = vpop.f32.mrb[0].mxu0
      %v3977 = vadd.f32 0.0, %v3976
      %v3978 = vpop.f32.mrb[0].mxu0
      %3979 = vmatprep.mubr.f32.mxu0 0.0
      %3980 = vmatmul.mubr.f32.gmra.mrb[0].mxu0 %v3321
      %v3981 = vpop.f32.mrb[0].mxu0
      %v3982 = vadd.f32 0.0, %v3981
      %v3983 = vpop.f32.mrb[0].mxu0
      %3984 = vmatprep.mubr.f32.mxu0 0.0
      %3985 = vmatmul.mubr.f32.gmra.mrb[0].mxu0 %v3324
      %v3986 = vpop.f32.mrb[0].mxu0
      %v3987 = vadd.f32 0.0, %v3986
      %v3988 = vpop.f32.mrb[0].mxu0
      %3989 = vmatprep.mubr.f32.mxu0 0.0
      %3990 = vmatmul.mubr.f32.gmra.mrb[0].mxu0 %v3327
      %v3991 = vpop.f32.mrb[0].mxu0
      %v3992 = vadd.f32 0.0, %v3991
      %v3993 = vpop.f32.mrb[0].mxu0
      %3994 = vmatprep.mubr.f32.mxu0 0.0
      %3995 = vmatmul.mubr.f32.gmra.mrb[0].mxu0 %v3330
      %v3996 = vpop.f32.mrb[0].mxu0
      %v3997 = vadd.f32 0.0, %v3996
      %v3998 = vpop.f32.mrb[0].mxu0
      %3999 = vmatprep.mubr.f32.mxu0 0.0
      %4000 = vmatmul.mubr.f32.gmra.mrb[0].mxu0 %v3333
      %v4001 = vpop.f32.mrb[0].mxu0
      %v4002 = vadd.f32 0.0, %v4001
      %v4003 = vpop.f32.mrb[0].mxu0
      %4004 = vmatprep.mubr.f32.mxu0 0.0
      %4005 = vmatmul.mubr.f32.gmra.mrb[0].mxu0 %v3336
      %v4006 = vpop.f32.mrb[0].mxu0
      %v4007 = vadd.f32 0.0, %v4006
      %v4008 = vpop.f32.mrb[0].mxu0
      %4009 = vmatprep.mubr.f32.mxu0 0.0
      %4010 = vmatmul.mubr.f32.gmra.mrb[0].mxu0 %v3339
      %v4011 = vpop.f32.mrb[0].mxu0
      %v4012 = vadd.f32 0.0, %v4011
      %v4013 = vpop.f32.mrb[0].mxu0
      %4014 = vmatprep.mubr.f32.mxu0 0.0
      %4015 = vmatmul.mubr.f32.gmra.mrb[0].mxu0 %v3342
      %v4016 = vpop.f32.mrb[0].mxu0
      %v4017 = vadd.f32 0.0, %v4016
      %v4018 = vpop.f32.mrb[0].mxu0
      %4019 = vmatprep.mubr.f32.mxu0 0.0
      %4020 = vmatmul.mubr.f32.gmra.mrb[0].mxu0 %v3345
      %v4021 = vpop.f32.mrb[0].mxu0
      %v4022 = vadd.f32 0.0, %v4021
      %v4023 = vpop.f32.mrb[0].mxu0
      %4024 = vmatprep.mubr.f32.mxu0 0.0
      %4025 = vmatmul.mubr.f32.gmra.mrb[0].mxu0 %v3348
      %v4026 = vpop.f32.mrb[0].mxu0
      %v4027 = vadd.f32 0.0, %v4026
      %v4028 = vpop.f32.mrb[0].mxu0
      %4029 = vmatprep.mubr.f32.mxu0 0.0
      %4030 = vmatmul.mubr.f32.gmra.mrb[0].mxu0 %v3351
      %v4031 = vpop.f32.mrb[0].mxu0
      %v4032 = vadd.f32 0.0, %v4031
      %v4033 = vpop.f32.mrb[0].mxu0
      %4034 = vmatprep.mubr.f32.mxu0 0.0
      %4035 = vmatmul.mubr.f32.gmra.mrb[0].mxu0 %v3354
      %v4036 = vpop.f32.mrb[0].mxu0
      %v4037 = vadd.f32 0.0, %v4036
      %v4038 = vpop.f32.mrb[0].mxu0
      %4039 = vmatprep.mubr.f32.mxu0 0.0
      %4040 = vmatmul.mubr.f32.gmra.mrb[0].mxu0 %v3357
      %v4041 = vpop.f32.mrb[0].mxu0
      %v4042 = vadd.f32 0.0, %v4041
      %v4043 = vpop.f32.mrb[0].mxu0
      %4044 = vmatprep.mubr.f32.mxu0 0.0
      %4045 = vmatmul.mubr.f32.gmra.mrb[0].mxu0 %v3360
      %v4046 = vpop.f32.mrb[0].mxu0
      %v4047 = vadd.f32 0.0, %v4046
      %v4048 = vpop.f32.mrb[0].mxu0
      %4049 = vmatprep.mubr.f32.mxu0 0.0
      %4050 = vmatmul.mubr.f32.gmra.mrb[0].mxu0 %v3363
      %v4051 = vpop.f32.mrb[0].mxu0
      %v4052 = vadd.f32 0.0, %v4051
      %v4053 = vpop.f32.mrb[0].mxu0
      %4054 = vmatprep.mubr.f32.mxu0 0.0
      %4055 = vmatmul.mubr.f32.gmra.mrb[0].mxu0 %v3366
      %v4056 = vpop.f32.mrb[0].mxu0
      %v4057 = vadd.f32 0.0, %v4056
      %v4058 = vpop.f32.mrb[0].mxu0
      %4059 = vmatprep.mubr.f32.mxu0 0.0
      %4060 = vmatmul.mubr.f32.gmra.mrb[0].mxu0 %v3369
      %v4061 = vpop.f32.mrb[0].mxu0
      %v4062 = vadd.f32 0.0, %v4061
      %v4063 = vpop.f32.mrb[0].mxu0
      %4064 = vmatprep.mubr.f32.mxu0 0.0
      %4065 = vmatmul.mubr.f32.gmra.mrb[0].mxu0 %v3372
      %v4066 = vpop.f32.mrb[0].mxu0
      %v4067 = vadd.f32 0.0, %v4066
      %v4068 = vpop.f32.mrb[0].mxu0
      %4069 = vmatprep.mubr.f32.mxu0 0.0
      %4070 = vmatmul.mubr.f32.gmra.mrb[0].mxu0 %v3375
      %v4071 = vpop.f32.mrb[0].mxu0
      %v4072 = vadd.f32 0.0, %v4071
      %v4073 = vpop.f32.mrb[0].mxu0
      %4074 = vmatprep.mubr.f32.mxu0 0.0
      %4075 = vmatmul.mubr.f32.gmra.mrb[0].mxu0 %v3378
      %v4076 = vpop.f32.mrb[0].mxu0
      %v4077 = vadd.f32 0.0, %v4076
      %v4078 = vpop.f32.mrb[0].mxu0
      %4079 = vmatprep.mubr.f32.mxu0 0.0
      %4080 = vmatmul.mubr.f32.gmra.mrb[0].mxu0 %v3381
      %v4081 = vpop.f32.mrb[0].mxu0
      %v4082 = vadd.f32 0.0, %v4081
      %v4083 = vpop.f32.mrb[0].mxu0
      %4084 = vmatprep.mubr.f32.mxu0 0.0
      %4085 = vmatmul.mubr.f32.gmra.mrb[0].mxu0 %v3384
      %v4086 = vpop.f32.mrb[0].mxu0
      %v4087 = vadd.f32 0.0, %v4086
      %v4088 = vpop.f32.mrb[0].mxu0
      %4089 = vmatprep.mubr.f32.mxu0 0.0
      %4090 = vmatmul.mubr.f32.gmra.mrb[0].mxu0 %v3387
      %v4091 = vpop.f32.mrb[0].mxu0
      %v4092 = vadd.f32 0.0, %v4091
      %v4093 = vpop.f32.mrb[0].mxu0
      %4094 = vmatprep.mubr.f32.mxu0 0.0
      %4095 = vmatmul.mubr.f32.gmra.mrb[0].mxu0 %v3390
      %v4096 = vpop.f32.mrb[0].mxu0
      %v4097 = vadd.f32 0.0, %v4096
      %v4098 = vpop.f32.mrb[0].mxu0
      %4099 = vdwg.mxu0
      %v4100 = vadd.f32 %v2240, %v3462
      %v4101 = vadd.f32 %v2245, %v3467
      %v4102 = vadd.f32 %v2250, %v3472
      %v4103 = vadd.f32 %v2255, %v3477
      %v4104 = vadd.f32 %v2260, %v3482
      %v4105 = vadd.f32 %v2265, %v3487
      %v4106 = vadd.f32 %v2270, %v3492
      %v4107 = vadd.f32 %v2275, %v3497
      %v4108 = vadd.f32 %v2280, %v3502
      %v4109 = vadd.f32 %v2285, %v3507
      %v4110 = vadd.f32 %v2290, %v3512
      %v4111 = vadd.f32 %v2295, %v3517
      %v4112 = vadd.f32 %v2300, %v3522
      %v4113 = vadd.f32 %v2305, %v3527
      %v4114 = vadd.f32 %v2310, %v3532
      %v4115 = vadd.f32 %v2315, %v3537
      %v4116 = vadd.f32 %v2320, %v3542
      %v4117 = vadd.f32 %v2325, %v3547
      %v4118 = vadd.f32 %v2330, %v3552
      %v4119 = vadd.f32 %v2335, %v3557
      %v4120 = vadd.f32 %v2340, %v3562
      %v4121 = vadd.f32 %v2345, %v3567
      %v4122 = vadd.f32 %v2350, %v3572
      %v4123 = vadd.f32 %v2355, %v3577
      %v4124 = vadd.f32 %v2360, %v3582
      %v4125 = vadd.f32 %v2365, %v3587
      %v4126 = vadd.f32 %v2370, %v3592
      %v4127 = vadd.f32 %v2375, %v3597
      %v4128 = vadd.f32 %v2380, %v3602
      %v4129 = vadd.f32 %v2385, %v3607
      %v4130 = vadd.f32 %v2390, %v3612
      %v4131 = vadd.f32 %v2395, %v3617
      %v4132 = vadd.f32 %v2400, %v3622
      %v4133 = vadd.f32 %v2405, %v3627
      %v4134 = vadd.f32 %v2410, %v3632
      %v4135 = vadd.f32 %v2415, %v3637
      %v4136 = vadd.f32 %v2420, %v3642
      %v4137 = vadd.f32 %v2425, %v3647
      %v4138 = vadd.f32 %v2430, %v3652
      %v4139 = vadd.f32 %v2435, %v3657
      %v4140 = vadd.f32 %v2440, %v3662
      %v4141 = vadd.f32 %v2445, %v3667
      %v4142 = vadd.f32 %v2450, %v3672
      %v4143 = vadd.f32 %v2455, %v3677
      %v4144 = vadd.f32 %v2460, %v3682
      %v4145 = vadd.f32 %v2465, %v3687
      %v4146 = vadd.f32 %v2470, %v3692
      %v4147 = vadd.f32 %v2475, %v3697
      %v4148 = vadd.f32 %v2480, %v3702
      %v4149 = vadd.f32 %v2485, %v3707
      %v4150 = vadd.f32 %v2490, %v3712
      %v4151 = vadd.f32 %v2495, %v3717
      %v4152 = vadd.f32 %v2500, %v3722
      %v4153 = vadd.f32 %v2505, %v3727
      %v4154 = vadd.f32 %v2510, %v3732
      %v4155 = vadd.f32 %v2515, %v3737
      %v4156 = vadd.f32 %v2520, %v3742
      %v4157 = vadd.f32 %v2525, %v3747
      %v4158 = vadd.f32 %v2530, %v3752
      %v4159 = vadd.f32 %v2535, %v3757
      %v4160 = vadd.f32 %v2540, %v3762
      %v4161 = vadd.f32 %v2545, %v3767
      %v4162 = vadd.f32 %v2550, %v3772
      %v4163 = vadd.f32 %v2555, %v3777
      %v4164 = vadd.f32 %v2560, %v3782
      %v4165 = vadd.f32 %v2565, %v3787
      %v4166 = vadd.f32 %v2570, %v3792
      %v4167 = vadd.f32 %v2575, %v3797
      %v4168 = vadd.f32 %v2580, %v3802
      %v4169 = vadd.f32 %v2585, %v3807
      %v4170 = vadd.f32 %v2590, %v3812
      %v4171 = vadd.f32 %v2595, %v3817
      %v4172 = vadd.f32 %v2600, %v3822
      %v4173 = vadd.f32 %v2605, %v3827
      %v4174 = vadd.f32 %v2610, %v3832
      %v4175 = vadd.f32 %v2615, %v3837
      %v4176 = vadd.f32 %v2620, %v3842
      %v4177 = vadd.f32 %v2625, %v3847
      %v4178 = vadd.f32 %v2630, %v3852
      %v4179 = vadd.f32 %v2635, %v3857
      %v4180 = vadd.f32 %v2640, %v3862
      %v4181 = vadd.f32 %v2645, %v3867
      %v4182 = vadd.f32 %v2650, %v3872
      %v4183 = vadd.f32 %v2655, %v3877
      %v4184 = vadd.f32 %v2660, %v3882
      %v4185 = vadd.f32 %v2665, %v3887
      %v4186 = vadd.f32 %v2670, %v3892
      %v4187 = vadd.f32 %v2675, %v3897
      %v4188 = vadd.f32 %v2680, %v3902
      %v4189 = vadd.f32 %v2685, %v3907
      %v4190 = vadd.f32 %v2690, %v3912
      %v4191 = vadd.f32 %v2695, %v3917
      %v4192 = vadd.f32 %v2700, %v3922
      %v4193 = vadd.f32 %v2705, %v3927
      %v4194 = vadd.f32 %v2710, %v3932
      %v4195 = vadd.f32 %v2715, %v3937
      %v4196 = vadd.f32 %v2720, %v3942
      %v4197 = vadd.f32 %v2725, %v3947
      %v4198 = vadd.f32 %v2730, %v3952
      %v4199 = vadd.f32 %v2735, %v3957
      %v4200 = vadd.f32 %v2740, %v3962
      %v4201 = vadd.f32 %v2745, %v3967
      %v4202 = vadd.f32 %v2750, %v3972
      %v4203 = vadd.f32 %v2755, %v3977
      %v4204 = vadd.f32 %v2760, %v3982
      %v4205 = vadd.f32 %v2765, %v3987
      %v4206 = vadd.f32 %v2770, %v3992
      %v4207 = vadd.f32 %v2775, %v3997
      %v4208 = vadd.f32 %v2780, %v4002
      %v4209 = vadd.f32 %v2785, %v4007
      %v4210 = vadd.f32 %v2790, %v4012
      %v4211 = vadd.f32 %v2795, %v4017
      %v4212 = vadd.f32 %v2800, %v4022
      %v4213 = vadd.f32 %v2805, %v4027
      %v4214 = vadd.f32 %v2810, %v4032
      %v4215 = vadd.f32 %v2815, %v4037
      %v4216 = vadd.f32 %v2820, %v4042
      %v4217 = vadd.f32 %v2825, %v4047
      %v4218 = vadd.f32 %v2830, %v4052
      %v4219 = vadd.f32 %v2835, %v4057
      %v4220 = vadd.f32 %v2840, %v4062
      %v4221 = vadd.f32 %v2845, %v4067
      %v4222 = vadd.f32 %v2850, %v4072
      %v4223 = vadd.f32 %v2855, %v4077
      %v4224 = vadd.f32 %v2860, %v4082
      %v4225 = vadd.f32 %v2865, %v4087
      %v4226 = vadd.f32 %v2870, %v4092
      %v4227 = vadd.f32 %v2875, %v4097
      %v4228 = vld [vmem:[#allocation2 + $0x11] sm:$0xff]
      %v4229 = vld [vmem:[#allocation2 + $0x19] sm:$0xff]
      %v4230 = vld [vmem:[#allocation2 + $0x21] sm:$0xff]
      %v4231 = vld [vmem:[#allocation2 + $0x29] sm:$0xff]
      %v4232 = vld [vmem:[#allocation2 + $0x31] sm:$0xff]
      %v4233 = vld [vmem:[#allocation2 + $0x39] sm:$0xff]
      %v4234 = vld [vmem:[#allocation2 + $0x41] sm:$0xff]
      %v4235 = vld [vmem:[#allocation2 + $0x49] sm:$0xff]
      %v4236 = vld [vmem:[#allocation2 + $0x51] sm:$0xff]
      %v4237 = vld [vmem:[#allocation2 + $0x59] sm:$0xff]
      %v4238 = vld [vmem:[#allocation2 + $0x61] sm:$0xff]
      %v4239 = vld [vmem:[#allocation2 + $0x69] sm:$0xff]
      %v4240 = vld [vmem:[#allocation2 + $0x71] sm:$0xff]
      %v4241 = vld [vmem:[#allocation2 + $0x79] sm:$0xff]
      %v4242 = vld [vmem:[#allocation2 + $0x81] sm:$0xff]
      %v4243 = vld [vmem:[#allocation2 + $0x89] sm:$0xff]
      %v4244 = vld [vmem:[#allocation2 + $0x91] sm:$0xff]
      %v4245 = vld [vmem:[#allocation2 + $0x99] sm:$0xff]
      %v4246 = vld [vmem:[#allocation2 + $0xa1] sm:$0xff]
      %v4247 = vld [vmem:[#allocation2 + $0xa9] sm:$0xff]
      %v4248 = vld [vmem:[#allocation2 + $0xb1] sm:$0xff]
      %v4249 = vld [vmem:[#allocation2 + $0xb9] sm:$0xff]
      %v4250 = vld [vmem:[#allocation2 + $0xc1] sm:$0xff]
      %v4251 = vld [vmem:[#allocation2 + $0xc9] sm:$0xff]
      %v4252 = vld [vmem:[#allocation2 + $0xd1] sm:$0xff]
      %v4253 = vld [vmem:[#allocation2 + $0xd9] sm:$0xff]
      %v4254 = vld [vmem:[#allocation2 + $0xe1] sm:$0xff]
      %v4255 = vld [vmem:[#allocation2 + $0xe9] sm:$0xff]
      %v4256 = vld [vmem:[#allocation2 + $0xf1] sm:$0xff]
      %v4257 = vld [vmem:[#allocation2 + $0xf9] sm:$0xff]
      %v4258 = vld [vmem:[#allocation2 + $0x101] sm:$0xff]
      %v4259 = vld [vmem:[#allocation2 + $0x109] sm:$0xff]
      %v4260 = vld [vmem:[#allocation2 + $0x111] sm:$0xff]
      %v4261 = vld [vmem:[#allocation2 + $0x119] sm:$0xff]
      %v4262 = vld [vmem:[#allocation2 + $0x121] sm:$0xff]
      %v4263 = vld [vmem:[#allocation2 + $0x129] sm:$0xff]
      %v4264 = vld [vmem:[#allocation2 + $0x131] sm:$0xff]
      %v4265 = vld [vmem:[#allocation2 + $0x139] sm:$0xff]
      %v4266 = vld [vmem:[#allocation2 + $0x141] sm:$0xff]
      %v4267 = vld [vmem:[#allocation2 + $0x149] sm:$0xff]
      %v4268 = vld [vmem:[#allocation2 + $0x151] sm:$0xff]
      %v4269 = vld [vmem:[#allocation2 + $0x159] sm:$0xff]
      %v4270 = vld [vmem:[#allocation2 + $0x161] sm:$0xff]
      %v4271 = vld [vmem:[#allocation2 + $0x169] sm:$0xff]
      %v4272 = vld [vmem:[#allocation2 + $0x171] sm:$0xff]
      %v4273 = vld [vmem:[#allocation2 + $0x179] sm:$0xff]
      %v4274 = vld [vmem:[#allocation2 + $0x181] sm:$0xff]
      %v4275 = vld [vmem:[#allocation2 + $0x189] sm:$0xff]
      %v4276 = vld [vmem:[#allocation2 + $0x191] sm:$0xff]
      %v4277 = vld [vmem:[#allocation2 + $0x199] sm:$0xff]
      %v4278 = vld [vmem:[#allocation2 + $0x1a1] sm:$0xff]
      %v4279 = vld [vmem:[#allocation2 + $0x1a9] sm:$0xff]
      %v4280 = vld [vmem:[#allocation2 + $0x1b1] sm:$0xff]
      %v4281 = vld [vmem:[#allocation2 + $0x1b9] sm:$0xff]
      %v4282 = vld [vmem:[#allocation2 + $0x1c1] sm:$0xff]
      %v4283 = vld [vmem:[#allocation2 + $0x1c9] sm:$0xff]
      %v4284 = vld [vmem:[#allocation2 + $0x1d1] sm:$0xff]
      %v4285 = vld [vmem:[#allocation2 + $0x1d9] sm:$0xff]
      %v4286 = vld [vmem:[#allocation2 + $0x1e1] sm:$0xff]
      %v4287 = vld [vmem:[#allocation2 + $0x1e9] sm:$0xff]
      %v4288 = vld [vmem:[#allocation2 + $0x1f1] sm:$0xff]
      %v4289 = vld [vmem:[#allocation2 + $0x1f9] sm:$0xff]
      %v4290 = vld [vmem:[#allocation2 + $0x201] sm:$0xff]
      %v4291 = vld [vmem:[#allocation2 + $0x209] sm:$0xff]
      %v4292 = vld [vmem:[#allocation2 + $0x211] sm:$0xff]
      %v4293 = vld [vmem:[#allocation2 + $0x219] sm:$0xff]
      %v4294 = vld [vmem:[#allocation2 + $0x221] sm:$0xff]
      %v4295 = vld [vmem:[#allocation2 + $0x229] sm:$0xff]
      %v4296 = vld [vmem:[#allocation2 + $0x231] sm:$0xff]
      %v4297 = vld [vmem:[#allocation2 + $0x239] sm:$0xff]
      %v4298 = vld [vmem:[#allocation2 + $0x241] sm:$0xff]
      %v4299 = vld [vmem:[#allocation2 + $0x249] sm:$0xff]
      %v4300 = vld [vmem:[#allocation2 + $0x251] sm:$0xff]
      %v4301 = vld [vmem:[#allocation2 + $0x259] sm:$0xff]
      %v4302 = vld [vmem:[#allocation2 + $0x261] sm:$0xff]
      %v4303 = vld [vmem:[#allocation2 + $0x269] sm:$0xff]
      %v4304 = vld [vmem:[#allocation2 + $0x271] sm:$0xff]
      %v4305 = vld [vmem:[#allocation2 + $0x279] sm:$0xff]
      %v4306 = vld [vmem:[#allocation2 + $0x281] sm:$0xff]
      %v4307 = vld [vmem:[#allocation2 + $0x289] sm:$0xff]
      %v4308 = vld [vmem:[#allocation2 + $0x291] sm:$0xff]
      %v4309 = vld [vmem:[#allocation2 + $0x299] sm:$0xff]
      %v4310 = vld [vmem:[#allocation2 + $0x2a1] sm:$0xff]
      %v4311 = vld [vmem:[#allocation2 + $0x2a9] sm:$0xff]
      %v4312 = vld [vmem:[#allocation2 + $0x2b1] sm:$0xff]
      %v4313 = vld [vmem:[#allocation2 + $0x2b9] sm:$0xff]
      %v4314 = vld [vmem:[#allocation2 + $0x2c1] sm:$0xff]
      %v4315 = vld [vmem:[#allocation2 + $0x2c9] sm:$0xff]
      %v4316 = vld [vmem:[#allocation2 + $0x2d1] sm:$0xff]
      %v4317 = vld [vmem:[#allocation2 + $0x2d9] sm:$0xff]
      %v4318 = vld [vmem:[#allocation2 + $0x2e1] sm:$0xff]
      %v4319 = vld [vmem:[#allocation2 + $0x2e9] sm:$0xff]
      %v4320 = vld [vmem:[#allocation2 + $0x2f1] sm:$0xff]
      %v4321 = vld [vmem:[#allocation2 + $0x2f9] sm:$0xff]
      %v4322 = vld [vmem:[#allocation2 + $0x301] sm:$0xff]
      %v4323 = vld [vmem:[#allocation2 + $0x309] sm:$0xff]
      %v4324 = vld [vmem:[#allocation2 + $0x311] sm:$0xff]
      %v4325 = vld [vmem:[#allocation2 + $0x319] sm:$0xff]
      %v4326 = vld [vmem:[#allocation2 + $0x321] sm:$0xff]
      %v4327 = vld [vmem:[#allocation2 + $0x329] sm:$0xff]
      %v4328 = vld [vmem:[#allocation2 + $0x331] sm:$0xff]
      %v4329 = vld [vmem:[#allocation2 + $0x339] sm:$0xff]
      %v4330 = vld [vmem:[#allocation2 + $0x341] sm:$0xff]
      %v4331 = vld [vmem:[#allocation2 + $0x349] sm:$0xff]
      %v4332 = vld [vmem:[#allocation2 + $0x351] sm:$0xff]
      %v4333 = vld [vmem:[#allocation2 + $0x359] sm:$0xff]
      %v4334 = vld [vmem:[#allocation2 + $0x361] sm:$0xff]
      %v4335 = vld [vmem:[#allocation2 + $0x369] sm:$0xff]
      %v4336 = vld [vmem:[#allocation2 + $0x371] sm:$0xff]
      %v4337 = vld [vmem:[#allocation2 + $0x379] sm:$0xff]
      %v4338 = vld [vmem:[#allocation2 + $0x381] sm:$0xff]
      %v4339 = vld [vmem:[#allocation2 + $0x389] sm:$0xff]
      %v4340 = vld [vmem:[#allocation2 + $0x391] sm:$0xff]
      %v4341 = vld [vmem:[#allocation2 + $0x399] sm:$0xff]
      %v4342 = vld [vmem:[#allocation2 + $0x3a1] sm:$0xff]
      %v4343 = vld [vmem:[#allocation2 + $0x3a9] sm:$0xff]
      %v4344 = vld [vmem:[#allocation2 + $0x3b1] sm:$0xff]
      %v4345 = vld [vmem:[#allocation2 + $0x3b9] sm:$0xff]
      %v4346 = vld [vmem:[#allocation2 + $0x3c1] sm:$0xff]
      %v4347 = vld [vmem:[#allocation2 + $0x3c9] sm:$0xff]
      %v4348 = vld [vmem:[#allocation2 + $0x3d1] sm:$0xff]
      %v4349 = vld [vmem:[#allocation2 + $0x3d9] sm:$0xff]
      %v4350 = vld [vmem:[#allocation2 + $0x3e1] sm:$0xff]
      %v4351 = vld [vmem:[#allocation2 + $0x3e9] sm:$0xff]
      %v4352 = vld [vmem:[#allocation2 + $0x3f1] sm:$0xff]
      %v4353 = vld [vmem:[#allocation2 + $0x3f9] sm:$0xff]
      %v4354 = vld [vmem:[#allocation2 + $0x401] sm:$0xff]
      %v4355 = vld [vmem:[#allocation2 + $0x409] sm:$0xff]
      %s4356 = scalar_lea.vmem %s1, 12
      %v4357 = vld [vmem:[%s4356] sm:$0xf]
      %v4359 = vsel %vm302, %v4228, 0
      %v4362 = vsel %vm302, %v4229, 0
      %v4365 = vsel %vm302, %v4230, 0
      %v4368 = vsel %vm302, %v4231, 0
      %v4371 = vsel %vm302, %v4232, 0
      %v4374 = vsel %vm302, %v4233, 0
      %v4377 = vsel %vm302, %v4234, 0
      %v4380 = vsel %vm302, %v4235, 0
      %v4383 = vsel %vm302, %v4236, 0
      %v4386 = vsel %vm302, %v4237, 0
      %v4389 = vsel %vm302, %v4238, 0
      %v4392 = vsel %vm302, %v4239, 0
      %v4395 = vsel %vm302, %v4240, 0
      %v4398 = vsel %vm302, %v4241, 0
      %v4401 = vsel %vm302, %v4242, 0
      %v4404 = vsel %vm302, %v4243, 0
      %v4407 = vsel %vm302, %v4244, 0
      %v4410 = vsel %vm302, %v4245, 0
      %v4413 = vsel %vm302, %v4246, 0
      %v4416 = vsel %vm302, %v4247, 0
      %v4419 = vsel %vm302, %v4248, 0
      %v4422 = vsel %vm302, %v4249, 0
      %v4425 = vsel %vm302, %v4250, 0
      %v4428 = vsel %vm302, %v4251, 0
      %v4431 = vsel %vm302, %v4252, 0
      %v4434 = vsel %vm302, %v4253, 0
      %v4437 = vsel %vm302, %v4254, 0
      %v4440 = vsel %vm302, %v4255, 0
      %v4443 = vsel %vm302, %v4256, 0
      %v4446 = vsel %vm302, %v4257, 0
      %v4449 = vsel %vm302, %v4258, 0
      %v4452 = vsel %vm302, %v4259, 0
      %v4455 = vsel %vm302, %v4260, 0
      %v4458 = vsel %vm302, %v4261, 0
      %v4461 = vsel %vm302, %v4262, 0
      %v4464 = vsel %vm302, %v4263, 0
      %v4467 = vsel %vm302, %v4264, 0
      %v4470 = vsel %vm302, %v4265, 0
      %v4473 = vsel %vm302, %v4266, 0
      %v4476 = vsel %vm302, %v4267, 0
      %v4479 = vsel %vm302, %v4268, 0
      %v4482 = vsel %vm302, %v4269, 0
      %v4485 = vsel %vm302, %v4270, 0
      %v4488 = vsel %vm302, %v4271, 0
      %v4491 = vsel %vm302, %v4272, 0
      %v4494 = vsel %vm302, %v4273, 0
      %v4497 = vsel %vm302, %v4274, 0
      %v4500 = vsel %vm302, %v4275, 0
      %v4503 = vsel %vm302, %v4276, 0
      %v4506 = vsel %vm302, %v4277, 0
      %v4509 = vsel %vm302, %v4278, 0
      %v4512 = vsel %vm302, %v4279, 0
      %v4515 = vsel %vm302, %v4280, 0
      %v4518 = vsel %vm302, %v4281, 0
      %v4521 = vsel %vm302, %v4282, 0
      %v4524 = vsel %vm302, %v4283, 0
      %v4527 = vsel %vm302, %v4284, 0
      %v4530 = vsel %vm302, %v4285, 0
      %v4533 = vsel %vm302, %v4286, 0
      %v4536 = vsel %vm302, %v4287, 0
      %v4539 = vsel %vm302, %v4288, 0
      %v4542 = vsel %vm302, %v4289, 0
      %v4545 = vsel %vm302, %v4290, 0
      %v4548 = vsel %vm302, %v4291, 0
      %v4551 = vsel %vm302, %v4292, 0
      %v4554 = vsel %vm302, %v4293, 0
      %v4557 = vsel %vm302, %v4294, 0
      %v4560 = vsel %vm302, %v4295, 0
      %v4563 = vsel %vm302, %v4296, 0
      %v4566 = vsel %vm302, %v4297, 0
      %v4569 = vsel %vm302, %v4298, 0
      %v4572 = vsel %vm302, %v4299, 0
      %v4575 = vsel %vm302, %v4300, 0
      %v4578 = vsel %vm302, %v4301, 0
      %v4581 = vsel %vm302, %v4302, 0
      %v4584 = vsel %vm302, %v4303, 0
      %v4587 = vsel %vm302, %v4304, 0
      %v4590 = vsel %vm302, %v4305, 0
      %v4593 = vsel %vm302, %v4306, 0
      %v4596 = vsel %vm302, %v4307, 0
      %v4599 = vsel %vm302, %v4308, 0
      %v4602 = vsel %vm302, %v4309, 0
      %v4605 = vsel %vm302, %v4310, 0
      %v4608 = vsel %vm302, %v4311, 0
      %v4611 = vsel %vm302, %v4312, 0
      %v4614 = vsel %vm302, %v4313, 0
      %v4617 = vsel %vm302, %v4314, 0
      %v4620 = vsel %vm302, %v4315, 0
      %v4623 = vsel %vm302, %v4316, 0
      %v4626 = vsel %vm302, %v4317, 0
      %v4629 = vsel %vm302, %v4318, 0
      %v4632 = vsel %vm302, %v4319, 0
      %v4635 = vsel %vm302, %v4320, 0
      %v4638 = vsel %vm302, %v4321, 0
      %v4641 = vsel %vm302, %v4322, 0
      %v4644 = vsel %vm302, %v4323, 0
      %v4647 = vsel %vm302, %v4324, 0
      %v4650 = vsel %vm302, %v4325, 0
      %v4653 = vsel %vm302, %v4326, 0
      %v4656 = vsel %vm302, %v4327, 0
      %v4659 = vsel %vm302, %v4328, 0
      %v4662 = vsel %vm302, %v4329, 0
      %v4665 = vsel %vm302, %v4330, 0
      %v4668 = vsel %vm302, %v4331, 0
      %v4671 = vsel %vm302, %v4332, 0
      %v4674 = vsel %vm302, %v4333, 0
      %v4677 = vsel %vm302, %v4334, 0
      %v4680 = vsel %vm302, %v4335, 0
      %v4683 = vsel %vm302, %v4336, 0
      %v4686 = vsel %vm302, %v4337, 0
      %v4689 = vsel %vm302, %v4338, 0
      %v4692 = vsel %vm302, %v4339, 0
      %v4695 = vsel %vm302, %v4340, 0
      %v4698 = vsel %vm302, %v4341, 0
      %v4701 = vsel %vm302, %v4342, 0
      %v4704 = vsel %vm302, %v4343, 0
      %v4707 = vsel %vm302, %v4344, 0
      %v4710 = vsel %vm302, %v4345, 0
      %v4713 = vsel %vm302, %v4346, 0
      %v4716 = vsel %vm302, %v4347, 0
      %v4719 = vsel %vm302, %v4348, 0
      %v4722 = vsel %vm302, %v4349, 0
      %v4725 = vsel %vm302, %v4350, 0
      %v4728 = vsel %vm302, %v4351, 0
      %v4731 = vsel %vm302, %v4352, 0
      %v4734 = vsel %vm302, %v4353, 0
      %v4737 = vsel %vm302, %v4354, 0
      %v4740 = vsel %vm302, %v4355, 0
      %v4743 = vsel %vm1077, %v4357, 0
      %4745 = vmatprep.subr.mxu0 0.0
      %4746 = vmatpush1.msra.mxu0 %v4743
      %4747 = vmatprep.subr.mxu0 0.0
      %4748 = vmatpush1.msra.mxu0 0.0
      %4749 = vmatprep.subr.mxu0 0.0
      %4750 = vmatpush1.msra.mxu0 0.0
      %4751 = vmatprep.subr.mxu0 0.0
      %4752 = vmatpush1.msra.mxu0 0.0
      %4753 = vmatprep.subr.mxu0 0.0
      %4754 = vmatpush1.msra.mxu0 0.0
      %4755 = vmatprep.subr.mxu0 0.0
      %4756 = vmatpush1.msra.mxu0 0.0
      %4757 = vmatprep.subr.mxu0 0.0
      %4758 = vmatpush1.msra.mxu0 0.0
      %4759 = vmatprep.subr.mxu0 0.0
      %4760 = vmatpush1.msra.mxu0 0.0
      %4761 = vmatprep.subr.mxu0 0.0
      %4762 = vmatpush1.msra.mxu0 0.0
      %4763 = vmatprep.subr.mxu0 0.0
      %4764 = vmatpush1.msra.mxu0 0.0
      %4765 = vmatprep.subr.mxu0 0.0
      %4766 = vmatpush1.msra.mxu0 0.0
      %4767 = vmatprep.subr.mxu0 0.0
      %4768 = vmatpush1.msra.mxu0 0.0
      %4769 = vmatprep.subr.mxu0 0.0
      %4770 = vmatpush1.msra.mxu0 0.0
      %4771 = vmatprep.subr.mxu0 0.0
      %4772 = vmatpush1.msra.mxu0 0.0
      %4773 = vmatprep.subr.mxu0 0.0
      %4774 = vmatpush1.msra.mxu0 0.0
      %4775 = vmatprep.subr.mxu0 0.0
      %4776 = vmatpush1.msra.mxu0 0.0
      %4777 = vmatprep.subr.mxu0 0.0
      %4778 = vmatpush1.msra.mxu0 0.0
      %4779 = vmatprep.subr.mxu0 0.0
      %4780 = vmatpush1.msra.mxu0 0.0
      %4781 = vmatprep.subr.mxu0 0.0
      %4782 = vmatpush1.msra.mxu0 0.0
      %4783 = vmatprep.subr.mxu0 0.0
      %4784 = vmatpush1.msra.mxu0 0.0
      %4785 = vmatprep.subr.mxu0 0.0
      %4786 = vmatpush1.msra.mxu0 0.0
      %4787 = vmatprep.subr.mxu0 0.0
      %4788 = vmatpush1.msra.mxu0 0.0
      %4789 = vmatprep.subr.mxu0 0.0
      %4790 = vmatpush1.msra.mxu0 0.0
      %4791 = vmatprep.subr.mxu0 0.0
      %4792 = vmatpush1.msra.mxu0 0.0
      %4793 = vmatprep.subr.mxu0 0.0
      %4794 = vmatpush1.msra.mxu0 0.0
      %4795 = vmatprep.subr.mxu0 0.0
      %4796 = vmatpush1.msra.mxu0 0.0
      %4797 = vmatprep.subr.mxu0 0.0
      %4798 = vmatpush1.msra.mxu0 0.0
      %4799 = vmatprep.subr.mxu0 0.0
      %4800 = vmatpush1.msra.mxu0 0.0
      %4801 = vmatprep.subr.mxu0 0.0
      %4802 = vmatpush1.msra.mxu0 0.0
      %4803 = vmatprep.subr.mxu0 0.0
      %4804 = vmatpush1.msra.mxu0 0.0
      %4805 = vmatprep.subr.mxu0 0.0
      %4806 = vmatpush1.msra.mxu0 0.0
      %4807 = vmatprep.subr.mxu0 0.0
      %4808 = vmatpush1.msra.mxu0 0.0
      %4809 = vmatprep.mubr.f32.mxu0 0.0
      %4810 = vmatmul.mubr.f32.gmra.mrb[0].mxu0 %v4359
      %v4811 = vpop.f32.mrb[0].mxu0
      %v4812 = vadd.f32 0.0, %v4811
      %v4813 = vpop.f32.mrb[0].mxu0
      %4814 = vmatprep.mubr.f32.mxu0 0.0
      %4815 = vmatmul.mubr.f32.gmra.mrb[0].mxu0 %v4362
      %v4816 = vpop.f32.mrb[0].mxu0
      %v4817 = vadd.f32 0.0, %v4816
      %v4818 = vpop.f32.mrb[0].mxu0
      %4819 = vmatprep.mubr.f32.mxu0 0.0
      %4820 = vmatmul.mubr.f32.gmra.mrb[0].mxu0 %v4365
      %v4821 = vpop.f32.mrb[0].mxu0
      %v4822 = vadd.f32 0.0, %v4821
      %v4823 = vpop.f32.mrb[0].mxu0
      %4824 = vmatprep.mubr.f32.mxu0 0.0
      %4825 = vmatmul.mubr.f32.gmra.mrb[0].mxu0 %v4368
      %v4826 = vpop.f32.mrb[0].mxu0
      %v4827 = vadd.f32 0.0, %v4826
      %v4828 = vpop.f32.mrb[0].mxu0
      %4829 = vmatprep.mubr.f32.mxu0 0.0
      %4830 = vmatmul.mubr.f32.gmra.mrb[0].mxu0 %v4371
      %v4831 = vpop.f32.mrb[0].mxu0
      %v4832 = vadd.f32 0.0, %v4831
      %v4833 = vpop.f32.mrb[0].mxu0
      %4834 = vmatprep.mubr.f32.mxu0 0.0
      %4835 = vmatmul.mubr.f32.gmra.mrb[0].mxu0 %v4374
      %v4836 = vpop.f32.mrb[0].mxu0
      %v4837 = vadd.f32 0.0, %v4836
      %v4838 = vpop.f32.mrb[0].mxu0
      %4839 = vmatprep.mubr.f32.mxu0 0.0
      %4840 = vmatmul.mubr.f32.gmra.mrb[0].mxu0 %v4377
      %v4841 = vpop.f32.mrb[0].mxu0
      %v4842 = vadd.f32 0.0, %v4841
      %v4843 = vpop.f32.mrb[0].mxu0
      %4844 = vmatprep.mubr.f32.mxu0 0.0
      %4845 = vmatmul.mubr.f32.gmra.mrb[0].mxu0 %v4380
      %v4846 = vpop.f32.mrb[0].mxu0
      %v4847 = vadd.f32 0.0, %v4846
      %v4848 = vpop.f32.mrb[0].mxu0
      %4849 = vmatprep.mubr.f32.mxu0 0.0
      %4850 = vmatmul.mubr.f32.gmra.mrb[0].mxu0 %v4383
      %v4851 = vpop.f32.mrb[0].mxu0
      %v4852 = vadd.f32 0.0, %v4851
      %v4853 = vpop.f32.mrb[0].mxu0
      %4854 = vmatprep.mubr.f32.mxu0 0.0
      %4855 = vmatmul.mubr.f32.gmra.mrb[0].mxu0 %v4386
      %v4856 = vpop.f32.mrb[0].mxu0
      %v4857 = vadd.f32 0.0, %v4856
      %v4858 = vpop.f32.mrb[0].mxu0
      %4859 = vmatprep.mubr.f32.mxu0 0.0
      %4860 = vmatmul.mubr.f32.gmra.mrb[0].mxu0 %v4389
      %v4861 = vpop.f32.mrb[0].mxu0
      %v4862 = vadd.f32 0.0, %v4861
      %v4863 = vpop.f32.mrb[0].mxu0
      %4864 = vmatprep.mubr.f32.mxu0 0.0
      %4865 = vmatmul.mubr.f32.gmra.mrb[0].mxu0 %v4392
      %v4866 = vpop.f32.mrb[0].mxu0
      %v4867 = vadd.f32 0.0, %v4866
      %v4868 = vpop.f32.mrb[0].mxu0
      %4869 = vmatprep.mubr.f32.mxu0 0.0
      %4870 = vmatmul.mubr.f32.gmra.mrb[0].mxu0 %v4395
      %v4871 = vpop.f32.mrb[0].mxu0
      %v4872 = vadd.f32 0.0, %v4871
      %v4873 = vpop.f32.mrb[0].mxu0
      %4874 = vmatprep.mubr.f32.mxu0 0.0
      %4875 = vmatmul.mubr.f32.gmra.mrb[0].mxu0 %v4398
      %v4876 = vpop.f32.mrb[0].mxu0
      %v4877 = vadd.f32 0.0, %v4876
      %v4878 = vpop.f32.mrb[0].mxu0
      %4879 = vmatprep.mubr.f32.mxu0 0.0
      %4880 = vmatmul.mubr.f32.gmra.mrb[0].mxu0 %v4401
      %v4881 = vpop.f32.mrb[0].mxu0
      %v4882 = vadd.f32 0.0, %v4881
      %v4883 = vpop.f32.mrb[0].mxu0
      %4884 = vmatprep.mubr.f32.mxu0 0.0
      %4885 = vmatmul.mubr.f32.gmra.mrb[0].mxu0 %v4404
      %v4886 = vpop.f32.mrb[0].mxu0
      %v4887 = vadd.f32 0.0, %v4886
      %v4888 = vpop.f32.mrb[0].mxu0
      %4889 = vmatprep.mubr.f32.mxu0 0.0
      %4890 = vmatmul.mubr.f32.gmra.mrb[0].mxu0 %v4407
      %v4891 = vpop.f32.mrb[0].mxu0
      %v4892 = vadd.f32 0.0, %v4891
      %v4893 = vpop.f32.mrb[0].mxu0
      %4894 = vmatprep.mubr.f32.mxu0 0.0
      %4895 = vmatmul.mubr.f32.gmra.mrb[0].mxu0 %v4410
      %v4896 = vpop.f32.mrb[0].mxu0
      %v4897 = vadd.f32 0.0, %v4896
      %v4898 = vpop.f32.mrb[0].mxu0
      %4899 = vmatprep.mubr.f32.mxu0 0.0
      %4900 = vmatmul.mubr.f32.gmra.mrb[0].mxu0 %v4413
      %v4901 = vpop.f32.mrb[0].mxu0
      %v4902 = vadd.f32 0.0, %v4901
      %v4903 = vpop.f32.mrb[0].mxu0
      %4904 = vmatprep.mubr.f32.mxu0 0.0
      %4905 = vmatmul.mubr.f32.gmra.mrb[0].mxu0 %v4416
      %v4906 = vpop.f32.mrb[0].mxu0
      %v4907 = vadd.f32 0.0, %v4906
      %v4908 = vpop.f32.mrb[0].mxu0
      %4909 = vmatprep.mubr.f32.mxu0 0.0
      %4910 = vmatmul.mubr.f32.gmra.mrb[0].mxu0 %v4419
      %v4911 = vpop.f32.mrb[0].mxu0
      %v4912 = vadd.f32 0.0, %v4911
      %v4913 = vpop.f32.mrb[0].mxu0
      %4914 = vmatprep.mubr.f32.mxu0 0.0
      %4915 = vmatmul.mubr.f32.gmra.mrb[0].mxu0 %v4422
      %v4916 = vpop.f32.mrb[0].mxu0
      %v4917 = vadd.f32 0.0, %v4916
      %v4918 = vpop.f32.mrb[0].mxu0
      %4919 = vmatprep.mubr.f32.mxu0 0.0
      %4920 = vmatmul.mubr.f32.gmra.mrb[0].mxu0 %v4425
      %v4921 = vpop.f32.mrb[0].mxu0
      %v4922 = vadd.f32 0.0, %v4921
      %v4923 = vpop.f32.mrb[0].mxu0
      %4924 = vmatprep.mubr.f32.mxu0 0.0
      %4925 = vmatmul.mubr.f32.gmra.mrb[0].mxu0 %v4428
      %v4926 = vpop.f32.mrb[0].mxu0
      %v4927 = vadd.f32 0.0, %v4926
      %v4928 = vpop.f32.mrb[0].mxu0
      %4929 = vmatprep.mubr.f32.mxu0 0.0
      %4930 = vmatmul.mubr.f32.gmra.mrb[0].mxu0 %v4431
      %v4931 = vpop.f32.mrb[0].mxu0
      %v4932 = vadd.f32 0.0, %v4931
      %v4933 = vpop.f32.mrb[0].mxu0
      %4934 = vmatprep.mubr.f32.mxu0 0.0
      %4935 = vmatmul.mubr.f32.gmra.mrb[0].mxu0 %v4434
      %v4936 = vpop.f32.mrb[0].mxu0
      %v4937 = vadd.f32 0.0, %v4936
      %v4938 = vpop.f32.mrb[0].mxu0
      %4939 = vmatprep.mubr.f32.mxu0 0.0
      %4940 = vmatmul.mubr.f32.gmra.mrb[0].mxu0 %v4437
      %v4941 = vpop.f32.mrb[0].mxu0
      %v4942 = vadd.f32 0.0, %v4941
      %v4943 = vpop.f32.mrb[0].mxu0
      %4944 = vmatprep.mubr.f32.mxu0 0.0
      %4945 = vmatmul.mubr.f32.gmra.mrb[0].mxu0 %v4440
      %v4946 = vpop.f32.mrb[0].mxu0
      %v4947 = vadd.f32 0.0, %v4946
      %v4948 = vpop.f32.mrb[0].mxu0
      %4949 = vmatprep.mubr.f32.mxu0 0.0
      %4950 = vmatmul.mubr.f32.gmra.mrb[0].mxu0 %v4443
      %v4951 = vpop.f32.mrb[0].mxu0
      %v4952 = vadd.f32 0.0, %v4951
      %v4953 = vpop.f32.mrb[0].mxu0
      %4954 = vmatprep.mubr.f32.mxu0 0.0
      %4955 = vmatmul.mubr.f32.gmra.mrb[0].mxu0 %v4446
      %v4956 = vpop.f32.mrb[0].mxu0
      %v4957 = vadd.f32 0.0, %v4956
      %v4958 = vpop.f32.mrb[0].mxu0
      %4959 = vmatprep.mubr.f32.mxu0 0.0
      %4960 = vmatmul.mubr.f32.gmra.mrb[0].mxu0 %v4449
      %v4961 = vpop.f32.mrb[0].mxu0
      %v4962 = vadd.f32 0.0, %v4961
      %v4963 = vpop.f32.mrb[0].mxu0
      %4964 = vmatprep.mubr.f32.mxu0 0.0
      %4965 = vmatmul.mubr.f32.gmra.mrb[0].mxu0 %v4452
      %v4966 = vpop.f32.mrb[0].mxu0
      %v4967 = vadd.f32 0.0, %v4966
      %v4968 = vpop.f32.mrb[0].mxu0
      %4969 = vmatprep.mubr.f32.mxu0 0.0
      %4970 = vmatmul.mubr.f32.gmra.mrb[0].mxu0 %v4455
      %v4971 = vpop.f32.mrb[0].mxu0
      %v4972 = vadd.f32 0.0, %v4971
      %v4973 = vpop.f32.mrb[0].mxu0
      %4974 = vmatprep.mubr.f32.mxu0 0.0
      %4975 = vmatmul.mubr.f32.gmra.mrb[0].mxu0 %v4458
      %v4976 = vpop.f32.mrb[0].mxu0
      %v4977 = vadd.f32 0.0, %v4976
      %v4978 = vpop.f32.mrb[0].mxu0
      %4979 = vmatprep.mubr.f32.mxu0 0.0
      %4980 = vmatmul.mubr.f32.gmra.mrb[0].mxu0 %v4461
      %v4981 = vpop.f32.mrb[0].mxu0
      %v4982 = vadd.f32 0.0, %v4981
      %v4983 = vpop.f32.mrb[0].mxu0
      %4984 = vmatprep.mubr.f32.mxu0 0.0
      %4985 = vmatmul.mubr.f32.gmra.mrb[0].mxu0 %v4464
      %v4986 = vpop.f32.mrb[0].mxu0
      %v4987 = vadd.f32 0.0, %v4986
      %v4988 = vpop.f32.mrb[0].mxu0
      %4989 = vmatprep.mubr.f32.mxu0 0.0
      %4990 = vmatmul.mubr.f32.gmra.mrb[0].mxu0 %v4467
      %v4991 = vpop.f32.mrb[0].mxu0
      %v4992 = vadd.f32 0.0, %v4991
      %v4993 = vpop.f32.mrb[0].mxu0
      %4994 = vmatprep.mubr.f32.mxu0 0.0
      %4995 = vmatmul.mubr.f32.gmra.mrb[0].mxu0 %v4470
      %v4996 = vpop.f32.mrb[0].mxu0
      %v4997 = vadd.f32 0.0, %v4996
      %v4998 = vpop.f32.mrb[0].mxu0
      %4999 = vmatprep.mubr.f32.mxu0 0.0
      %5000 = vmatmul.mubr.f32.gmra.mrb[0].mxu0 %v4473
      %v5001 = vpop.f32.mrb[0].mxu0
      %v5002 = vadd.f32 0.0, %v5001
      %v5003 = vpop.f32.mrb[0].mxu0
      %5004 = vmatprep.mubr.f32.mxu0 0.0
      %5005 = vmatmul.mubr.f32.gmra.mrb[0].mxu0 %v4476
      %v5006 = vpop.f32.mrb[0].mxu0
      %v5007 = vadd.f32 0.0, %v5006
      %v5008 = vpop.f32.mrb[0].mxu0
      %5009 = vmatprep.mubr.f32.mxu0 0.0
      %5010 = vmatmul.mubr.f32.gmra.mrb[0].mxu0 %v4479
      %v5011 = vpop.f32.mrb[0].mxu0
      %v5012 = vadd.f32 0.0, %v5011
      %v5013 = vpop.f32.mrb[0].mxu0
      %5014 = vmatprep.mubr.f32.mxu0 0.0
      %5015 = vmatmul.mubr.f32.gmra.mrb[0].mxu0 %v4482
      %v5016 = vpop.f32.mrb[0].mxu0
      %v5017 = vadd.f32 0.0, %v5016
      %v5018 = vpop.f32.mrb[0].mxu0
      %5019 = vmatprep.mubr.f32.mxu0 0.0
      %5020 = vmatmul.mubr.f32.gmra.mrb[0].mxu0 %v4485
      %v5021 = vpop.f32.mrb[0].mxu0
      %v5022 = vadd.f32 0.0, %v5021
      %v5023 = vpop.f32.mrb[0].mxu0
      %5024 = vmatprep.mubr.f32.mxu0 0.0
      %5025 = vmatmul.mubr.f32.gmra.mrb[0].mxu0 %v4488
      %v5026 = vpop.f32.mrb[0].mxu0
      %v5027 = vadd.f32 0.0, %v5026
      %v5028 = vpop.f32.mrb[0].mxu0
      %5029 = vmatprep.mubr.f32.mxu0 0.0
      %5030 = vmatmul.mubr.f32.gmra.mrb[0].mxu0 %v4491
      %v5031 = vpop.f32.mrb[0].mxu0
      %v5032 = vadd.f32 0.0, %v5031
      %v5033 = vpop.f32.mrb[0].mxu0
      %5034 = vmatprep.mubr.f32.mxu0 0.0
      %5035 = vmatmul.mubr.f32.gmra.mrb[0].mxu0 %v4494
      %v5036 = vpop.f32.mrb[0].mxu0
      %v5037 = vadd.f32 0.0, %v5036
      %v5038 = vpop.f32.mrb[0].mxu0
      %5039 = vmatprep.mubr.f32.mxu0 0.0
      %5040 = vmatmul.mubr.f32.gmra.mrb[0].mxu0 %v4497
      %v5041 = vpop.f32.mrb[0].mxu0
      %v5042 = vadd.f32 0.0, %v5041
      %v5043 = vpop.f32.mrb[0].mxu0
      %5044 = vmatprep.mubr.f32.mxu0 0.0
      %5045 = vmatmul.mubr.f32.gmra.mrb[0].mxu0 %v4500
      %v5046 = vpop.f32.mrb[0].mxu0
      %v5047 = vadd.f32 0.0, %v5046
      %v5048 = vpop.f32.mrb[0].mxu0
      %5049 = vmatprep.mubr.f32.mxu0 0.0
      %5050 = vmatmul.mubr.f32.gmra.mrb[0].mxu0 %v4503
      %v5051 = vpop.f32.mrb[0].mxu0
      %v5052 = vadd.f32 0.0, %v5051
      %v5053 = vpop.f32.mrb[0].mxu0
      %5054 = vmatprep.mubr.f32.mxu0 0.0
      %5055 = vmatmul.mubr.f32.gmra.mrb[0].mxu0 %v4506
      %v5056 = vpop.f32.mrb[0].mxu0
      %v5057 = vadd.f32 0.0, %v5056
      %v5058 = vpop.f32.mrb[0].mxu0
      %5059 = vmatprep.mubr.f32.mxu0 0.0
      %5060 = vmatmul.mubr.f32.gmra.mrb[0].mxu0 %v4509
      %v5061 = vpop.f32.mrb[0].mxu0
      %v5062 = vadd.f32 0.0, %v5061
      %v5063 = vpop.f32.mrb[0].mxu0
      %5064 = vmatprep.mubr.f32.mxu0 0.0
      %5065 = vmatmul.mubr.f32.gmra.mrb[0].mxu0 %v4512
      %v5066 = vpop.f32.mrb[0].mxu0
      %v5067 = vadd.f32 0.0, %v5066
      %v5068 = vpop.f32.mrb[0].mxu0
      %5069 = vmatprep.mubr.f32.mxu0 0.0
      %5070 = vmatmul.mubr.f32.gmra.mrb[0].mxu0 %v4515
      %v5071 = vpop.f32.mrb[0].mxu0
      %v5072 = vadd.f32 0.0, %v5071
      %v5073 = vpop.f32.mrb[0].mxu0
      %5074 = vmatprep.mubr.f32.mxu0 0.0
      %5075 = vmatmul.mubr.f32.gmra.mrb[0].mxu0 %v4518
      %v5076 = vpop.f32.mrb[0].mxu0
      %v5077 = vadd.f32 0.0, %v5076
      %v5078 = vpop.f32.mrb[0].mxu0
      %5079 = vmatprep.mubr.f32.mxu0 0.0
      %5080 = vmatmul.mubr.f32.gmra.mrb[0].mxu0 %v4521
      %v5081 = vpop.f32.mrb[0].mxu0
      %v5082 = vadd.f32 0.0, %v5081
      %v5083 = vpop.f32.mrb[0].mxu0
      %5084 = vmatprep.mubr.f32.mxu0 0.0
      %5085 = vmatmul.mubr.f32.gmra.mrb[0].mxu0 %v4524
      %v5086 = vpop.f32.mrb[0].mxu0
      %v5087 = vadd.f32 0.0, %v5086
      %v5088 = vpop.f32.mrb[0].mxu0
      %5089 = vmatprep.mubr.f32.mxu0 0.0
      %5090 = vmatmul.mubr.f32.gmra.mrb[0].mxu0 %v4527
      %v5091 = vpop.f32.mrb[0].mxu0
      %v5092 = vadd.f32 0.0, %v5091
      %v5093 = vpop.f32.mrb[0].mxu0
      %5094 = vmatprep.mubr.f32.mxu0 0.0
      %5095 = vmatmul.mubr.f32.gmra.mrb[0].mxu0 %v4530
      %v5096 = vpop.f32.mrb[0].mxu0
      %v5097 = vadd.f32 0.0, %v5096
      %v5098 = vpop.f32.mrb[0].mxu0
      %5099 = vmatprep.mubr.f32.mxu0 0.0
      %5100 = vmatmul.mubr.f32.gmra.mrb[0].mxu0 %v4533
      %v5101 = vpop.f32.mrb[0].mxu0
      %v5102 = vadd.f32 0.0, %v5101
      %v5103 = vpop.f32.mrb[0].mxu0
      %5104 = vmatprep.mubr.f32.mxu0 0.0
      %5105 = vmatmul.mubr.f32.gmra.mrb[0].mxu0 %v4536
      %v5106 = vpop.f32.mrb[0].mxu0
      %v5107 = vadd.f32 0.0, %v5106
      %v5108 = vpop.f32.mrb[0].mxu0
      %5109 = vmatprep.mubr.f32.mxu0 0.0
      %5110 = vmatmul.mubr.f32.gmra.mrb[0].mxu0 %v4539
      %v5111 = vpop.f32.mrb[0].mxu0
      %v5112 = vadd.f32 0.0, %v5111
      %v5113 = vpop.f32.mrb[0].mxu0
      %5114 = vmatprep.mubr.f32.mxu0 0.0
      %5115 = vmatmul.mubr.f32.gmra.mrb[0].mxu0 %v4542
      %v5116 = vpop.f32.mrb[0].mxu0
      %v5117 = vadd.f32 0.0, %v5116
      %v5118 = vpop.f32.mrb[0].mxu0
      %5119 = vmatprep.mubr.f32.mxu0 0.0
      %5120 = vmatmul.mubr.f32.gmra.mrb[0].mxu0 %v4545
      %v5121 = vpop.f32.mrb[0].mxu0
      %v5122 = vadd.f32 0.0, %v5121
      %v5123 = vpop.f32.mrb[0].mxu0
      %5124 = vmatprep.mubr.f32.mxu0 0.0
      %5125 = vmatmul.mubr.f32.gmra.mrb[0].mxu0 %v4548
      %v5126 = vpop.f32.mrb[0].mxu0
      %v5127 = vadd.f32 0.0, %v5126
      %v5128 = vpop.f32.mrb[0].mxu0
      %5129 = vmatprep.mubr.f32.mxu0 0.0
      %5130 = vmatmul.mubr.f32.gmra.mrb[0].mxu0 %v4551
      %v5131 = vpop.f32.mrb[0].mxu0
      %v5132 = vadd.f32 0.0, %v5131
      %v5133 = vpop.f32.mrb[0].mxu0
      %5134 = vmatprep.mubr.f32.mxu0 0.0
      %5135 = vmatmul.mubr.f32.gmra.mrb[0].mxu0 %v4554
      %v5136 = vpop.f32.mrb[0].mxu0
      %v5137 = vadd.f32 0.0, %v5136
      %v5138 = vpop.f32.mrb[0].mxu0
      %5139 = vmatprep.mubr.f32.mxu0 0.0
      %5140 = vmatmul.mubr.f32.gmra.mrb[0].mxu0 %v4557
      %v5141 = vpop.f32.mrb[0].mxu0
      %v5142 = vadd.f32 0.0, %v5141
      %v5143 = vpop.f32.mrb[0].mxu0
      %5144 = vmatprep.mubr.f32.mxu0 0.0
      %5145 = vmatmul.mubr.f32.gmra.mrb[0].mxu0 %v4560
      %v5146 = vpop.f32.mrb[0].mxu0
      %v5147 = vadd.f32 0.0, %v5146
      %v5148 = vpop.f32.mrb[0].mxu0
      %5149 = vmatprep.mubr.f32.mxu0 0.0
      %5150 = vmatmul.mubr.f32.gmra.mrb[0].mxu0 %v4563
      %v5151 = vpop.f32.mrb[0].mxu0
      %v5152 = vadd.f32 0.0, %v5151
      %v5153 = vpop.f32.mrb[0].mxu0
      %5154 = vmatprep.mubr.f32.mxu0 0.0
      %5155 = vmatmul.mubr.f32.gmra.mrb[0].mxu0 %v4566
      %v5156 = vpop.f32.mrb[0].mxu0
      %v5157 = vadd.f32 0.0, %v5156
      %v5158 = vpop.f32.mrb[0].mxu0
      %5159 = vmatprep.mubr.f32.mxu0 0.0
      %5160 = vmatmul.mubr.f32.gmra.mrb[0].mxu0 %v4569
      %v5161 = vpop.f32.mrb[0].mxu0
      %v5162 = vadd.f32 0.0, %v5161
      %v5163 = vpop.f32.mrb[0].mxu0
      %5164 = vmatprep.mubr.f32.mxu0 0.0
      %5165 = vmatmul.mubr.f32.gmra.mrb[0].mxu0 %v4572
      %v5166 = vpop.f32.mrb[0].mxu0
      %v5167 = vadd.f32 0.0, %v5166
      %v5168 = vpop.f32.mrb[0].mxu0
      %5169 = vmatprep.mubr.f32.mxu0 0.0
      %5170 = vmatmul.mubr.f32.gmra.mrb[0].mxu0 %v4575
      %v5171 = vpop.f32.mrb[0].mxu0
      %v5172 = vadd.f32 0.0, %v5171
      %v5173 = vpop.f32.mrb[0].mxu0
      %5174 = vmatprep.mubr.f32.mxu0 0.0
      %5175 = vmatmul.mubr.f32.gmra.mrb[0].mxu0 %v4578
      %v5176 = vpop.f32.mrb[0].mxu0
      %v5177 = vadd.f32 0.0, %v5176
      %v5178 = vpop.f32.mrb[0].mxu0
      %5179 = vmatprep.mubr.f32.mxu0 0.0
      %5180 = vmatmul.mubr.f32.gmra.mrb[0].mxu0 %v4581
      %v5181 = vpop.f32.mrb[0].mxu0
      %v5182 = vadd.f32 0.0, %v5181
      %v5183 = vpop.f32.mrb[0].mxu0
      %5184 = vmatprep.mubr.f32.mxu0 0.0
      %5185 = vmatmul.mubr.f32.gmra.mrb[0].mxu0 %v4584
      %v5186 = vpop.f32.mrb[0].mxu0
      %v5187 = vadd.f32 0.0, %v5186
      %v5188 = vpop.f32.mrb[0].mxu0
      %5189 = vmatprep.mubr.f32.mxu0 0.0
      %5190 = vmatmul.mubr.f32.gmra.mrb[0].mxu0 %v4587
      %v5191 = vpop.f32.mrb[0].mxu0
      %v5192 = vadd.f32 0.0, %v5191
      %v5193 = vpop.f32.mrb[0].mxu0
      %5194 = vmatprep.mubr.f32.mxu0 0.0
      %5195 = vmatmul.mubr.f32.gmra.mrb[0].mxu0 %v4590
      %v5196 = vpop.f32.mrb[0].mxu0
      %v5197 = vadd.f32 0.0, %v5196
      %v5198 = vpop.f32.mrb[0].mxu0
      %5199 = vmatprep.mubr.f32.mxu0 0.0
      %5200 = vmatmul.mubr.f32.gmra.mrb[0].mxu0 %v4593
      %v5201 = vpop.f32.mrb[0].mxu0
      %v5202 = vadd.f32 0.0, %v5201
      %v5203 = vpop.f32.mrb[0].mxu0
      %5204 = vmatprep.mubr.f32.mxu0 0.0
      %5205 = vmatmul.mubr.f32.gmra.mrb[0].mxu0 %v4596
      %v5206 = vpop.f32.mrb[0].mxu0
      %v5207 = vadd.f32 0.0, %v5206
      %v5208 = vpop.f32.mrb[0].mxu0
      %5209 = vmatprep.mubr.f32.mxu0 0.0
      %5210 = vmatmul.mubr.f32.gmra.mrb[0].mxu0 %v4599
      %v5211 = vpop.f32.mrb[0].mxu0
      %v5212 = vadd.f32 0.0, %v5211
      %v5213 = vpop.f32.mrb[0].mxu0
      %5214 = vmatprep.mubr.f32.mxu0 0.0
      %5215 = vmatmul.mubr.f32.gmra.mrb[0].mxu0 %v4602
      %v5216 = vpop.f32.mrb[0].mxu0
      %v5217 = vadd.f32 0.0, %v5216
      %v5218 = vpop.f32.mrb[0].mxu0
      %5219 = vmatprep.mubr.f32.mxu0 0.0
      %5220 = vmatmul.mubr.f32.gmra.mrb[0].mxu0 %v4605
      %v5221 = vpop.f32.mrb[0].mxu0
      %v5222 = vadd.f32 0.0, %v5221
      %v5223 = vpop.f32.mrb[0].mxu0
      %5224 = vmatprep.mubr.f32.mxu0 0.0
      %5225 = vmatmul.mubr.f32.gmra.mrb[0].mxu0 %v4608
      %v5226 = vpop.f32.mrb[0].mxu0
      %v5227 = vadd.f32 0.0, %v5226
      %v5228 = vpop.f32.mrb[0].mxu0
      %5229 = vmatprep.mubr.f32.mxu0 0.0
      %5230 = vmatmul.mubr.f32.gmra.mrb[0].mxu0 %v4611
      %v5231 = vpop.f32.mrb[0].mxu0
      %v5232 = vadd.f32 0.0, %v5231
      %v5233 = vpop.f32.mrb[0].mxu0
      %5234 = vmatprep.mubr.f32.mxu0 0.0
      %5235 = vmatmul.mubr.f32.gmra.mrb[0].mxu0 %v4614
      %v5236 = vpop.f32.mrb[0].mxu0
      %v5237 = vadd.f32 0.0, %v5236
      %v5238 = vpop.f32.mrb[0].mxu0
      %5239 = vmatprep.mubr.f32.mxu0 0.0
      %5240 = vmatmul.mubr.f32.gmra.mrb[0].mxu0 %v4617
      %v5241 = vpop.f32.mrb[0].mxu0
      %v5242 = vadd.f32 0.0, %v5241
      %v5243 = vpop.f32.mrb[0].mxu0
      %5244 = vmatprep.mubr.f32.mxu0 0.0
      %5245 = vmatmul.mubr.f32.gmra.mrb[0].mxu0 %v4620
      %v5246 = vpop.f32.mrb[0].mxu0
      %v5247 = vadd.f32 0.0, %v5246
      %v5248 = vpop.f32.mrb[0].mxu0
      %5249 = vmatprep.mubr.f32.mxu0 0.0
      %5250 = vmatmul.mubr.f32.gmra.mrb[0].mxu0 %v4623
      %v5251 = vpop.f32.mrb[0].mxu0
      %v5252 = vadd.f32 0.0, %v5251
      %v5253 = vpop.f32.mrb[0].mxu0
      %5254 = vmatprep.mubr.f32.mxu0 0.0
      %5255 = vmatmul.mubr.f32.gmra.mrb[0].mxu0 %v4626
      %v5256 = vpop.f32.mrb[0].mxu0
      %v5257 = vadd.f32 0.0, %v5256
      %v5258 = vpop.f32.mrb[0].mxu0
      %5259 = vmatprep.mubr.f32.mxu0 0.0
      %5260 = vmatmul.mubr.f32.gmra.mrb[0].mxu0 %v4629
      %v5261 = vpop.f32.mrb[0].mxu0
      %v5262 = vadd.f32 0.0, %v5261
      %v5263 = vpop.f32.mrb[0].mxu0
      %5264 = vmatprep.mubr.f32.mxu0 0.0
      %5265 = vmatmul.mubr.f32.gmra.mrb[0].mxu0 %v4632
      %v5266 = vpop.f32.mrb[0].mxu0
      %v5267 = vadd.f32 0.0, %v5266
      %v5268 = vpop.f32.mrb[0].mxu0
      %5269 = vmatprep.mubr.f32.mxu0 0.0
      %5270 = vmatmul.mubr.f32.gmra.mrb[0].mxu0 %v4635
      %v5271 = vpop.f32.mrb[0].mxu0
      %v5272 = vadd.f32 0.0, %v5271
      %v5273 = vpop.f32.mrb[0].mxu0
      %5274 = vmatprep.mubr.f32.mxu0 0.0
      %5275 = vmatmul.mubr.f32.gmra.mrb[0].mxu0 %v4638
      %v5276 = vpop.f32.mrb[0].mxu0
      %v5277 = vadd.f32 0.0, %v5276
      %v5278 = vpop.f32.mrb[0].mxu0
      %5279 = vmatprep.mubr.f32.mxu0 0.0
      %5280 = vmatmul.mubr.f32.gmra.mrb[0].mxu0 %v4641
      %v5281 = vpop.f32.mrb[0].mxu0
      %v5282 = vadd.f32 0.0, %v5281
      %v5283 = vpop.f32.mrb[0].mxu0
      %5284 = vmatprep.mubr.f32.mxu0 0.0
      %5285 = vmatmul.mubr.f32.gmra.mrb[0].mxu0 %v4644
      %v5286 = vpop.f32.mrb[0].mxu0
      %v5287 = vadd.f32 0.0, %v5286
      %v5288 = vpop.f32.mrb[0].mxu0
      %5289 = vmatprep.mubr.f32.mxu0 0.0
      %5290 = vmatmul.mubr.f32.gmra.mrb[0].mxu0 %v4647
      %v5291 = vpop.f32.mrb[0].mxu0
      %v5292 = vadd.f32 0.0, %v5291
      %v5293 = vpop.f32.mrb[0].mxu0
      %5294 = vmatprep.mubr.f32.mxu0 0.0
      %5295 = vmatmul.mubr.f32.gmra.mrb[0].mxu0 %v4650
      %v5296 = vpop.f32.mrb[0].mxu0
      %v5297 = vadd.f32 0.0, %v5296
      %v5298 = vpop.f32.mrb[0].mxu0
      %5299 = vmatprep.mubr.f32.mxu0 0.0
      %5300 = vmatmul.mubr.f32.gmra.mrb[0].mxu0 %v4653
      %v5301 = vpop.f32.mrb[0].mxu0
      %v5302 = vadd.f32 0.0, %v5301
      %v5303 = vpop.f32.mrb[0].mxu0
      %5304 = vmatprep.mubr.f32.mxu0 0.0
      %5305 = vmatmul.mubr.f32.gmra.mrb[0].mxu0 %v4656
      %v5306 = vpop.f32.mrb[0].mxu0
      %v5307 = vadd.f32 0.0, %v5306
      %v5308 = vpop.f32.mrb[0].mxu0
      %5309 = vmatprep.mubr.f32.mxu0 0.0
      %5310 = vmatmul.mubr.f32.gmra.mrb[0].mxu0 %v4659
      %v5311 = vpop.f32.mrb[0].mxu0
      %v5312 = vadd.f32 0.0, %v5311
      %v5313 = vpop.f32.mrb[0].mxu0
      %5314 = vmatprep.mubr.f32.mxu0 0.0
      %5315 = vmatmul.mubr.f32.gmra.mrb[0].mxu0 %v4662
      %v5316 = vpop.f32.mrb[0].mxu0
      %v5317 = vadd.f32 0.0, %v5316
      %v5318 = vpop.f32.mrb[0].mxu0
      %5319 = vmatprep.mubr.f32.mxu0 0.0
      %5320 = vmatmul.mubr.f32.gmra.mrb[0].mxu0 %v4665
      %v5321 = vpop.f32.mrb[0].mxu0
      %v5322 = vadd.f32 0.0, %v5321
      %v5323 = vpop.f32.mrb[0].mxu0
      %5324 = vmatprep.mubr.f32.mxu0 0.0
      %5325 = vmatmul.mubr.f32.gmra.mrb[0].mxu0 %v4668
      %v5326 = vpop.f32.mrb[0].mxu0
      %v5327 = vadd.f32 0.0, %v5326
      %v5328 = vpop.f32.mrb[0].mxu0
      %5329 = vmatprep.mubr.f32.mxu0 0.0
      %5330 = vmatmul.mubr.f32.gmra.mrb[0].mxu0 %v4671
      %v5331 = vpop.f32.mrb[0].mxu0
      %v5332 = vadd.f32 0.0, %v5331
      %v5333 = vpop.f32.mrb[0].mxu0
      %5334 = vmatprep.mubr.f32.mxu0 0.0
      %5335 = vmatmul.mubr.f32.gmra.mrb[0].mxu0 %v4674
      %v5336 = vpop.f32.mrb[0].mxu0
      %v5337 = vadd.f32 0.0, %v5336
      %v5338 = vpop.f32.mrb[0].mxu0
      %5339 = vmatprep.mubr.f32.mxu0 0.0
      %5340 = vmatmul.mubr.f32.gmra.mrb[0].mxu0 %v4677
      %v5341 = vpop.f32.mrb[0].mxu0
      %v5342 = vadd.f32 0.0, %v5341
      %v5343 = vpop.f32.mrb[0].mxu0
      %5344 = vmatprep.mubr.f32.mxu0 0.0
      %5345 = vmatmul.mubr.f32.gmra.mrb[0].mxu0 %v4680
      %v5346 = vpop.f32.mrb[0].mxu0
      %v5347 = vadd.f32 0.0, %v5346
      %v5348 = vpop.f32.mrb[0].mxu0
      %5349 = vmatprep.mubr.f32.mxu0 0.0
      %5350 = vmatmul.mubr.f32.gmra.mrb[0].mxu0 %v4683
      %v5351 = vpop.f32.mrb[0].mxu0
      %v5352 = vadd.f32 0.0, %v5351
      %v5353 = vpop.f32.mrb[0].mxu0
      %5354 = vmatprep.mubr.f32.mxu0 0.0
      %5355 = vmatmul.mubr.f32.gmra.mrb[0].mxu0 %v4686
      %v5356 = vpop.f32.mrb[0].mxu0
      %v5357 = vadd.f32 0.0, %v5356
      %v5358 = vpop.f32.mrb[0].mxu0
      %5359 = vmatprep.mubr.f32.mxu0 0.0
      %5360 = vmatmul.mubr.f32.gmra.mrb[0].mxu0 %v4689
      %v5361 = vpop.f32.mrb[0].mxu0
      %v5362 = vadd.f32 0.0, %v5361
      %v5363 = vpop.f32.mrb[0].mxu0
      %5364 = vmatprep.mubr.f32.mxu0 0.0
      %5365 = vmatmul.mubr.f32.gmra.mrb[0].mxu0 %v4692
      %v5366 = vpop.f32.mrb[0].mxu0
      %v5367 = vadd.f32 0.0, %v5366
      %v5368 = vpop.f32.mrb[0].mxu0
      %5369 = vmatprep.mubr.f32.mxu0 0.0
      %5370 = vmatmul.mubr.f32.gmra.mrb[0].mxu0 %v4695
      %v5371 = vpop.f32.mrb[0].mxu0
      %v5372 = vadd.f32 0.0, %v5371
      %v5373 = vpop.f32.mrb[0].mxu0
      %5374 = vmatprep.mubr.f32.mxu0 0.0
      %5375 = vmatmul.mubr.f32.gmra.mrb[0].mxu0 %v4698
      %v5376 = vpop.f32.mrb[0].mxu0
      %v5377 = vadd.f32 0.0, %v5376
      %v5378 = vpop.f32.mrb[0].mxu0
      %5379 = vmatprep.mubr.f32.mxu0 0.0
      %5380 = vmatmul.mubr.f32.gmra.mrb[0].mxu0 %v4701
      %v5381 = vpop.f32.mrb[0].mxu0
      %v5382 = vadd.f32 0.0, %v5381
      %v5383 = vpop.f32.mrb[0].mxu0
      %5384 = vmatprep.mubr.f32.mxu0 0.0
      %5385 = vmatmul.mubr.f32.gmra.mrb[0].mxu0 %v4704
      %v5386 = vpop.f32.mrb[0].mxu0
      %v5387 = vadd.f32 0.0, %v5386
      %v5388 = vpop.f32.mrb[0].mxu0
      %5389 = vmatprep.mubr.f32.mxu0 0.0
      %5390 = vmatmul.mubr.f32.gmra.mrb[0].mxu0 %v4707
      %v5391 = vpop.f32.mrb[0].mxu0
      %v5392 = vadd.f32 0.0, %v5391
      %v5393 = vpop.f32.mrb[0].mxu0
      %5394 = vmatprep.mubr.f32.mxu0 0.0
      %5395 = vmatmul.mubr.f32.gmra.mrb[0].mxu0 %v4710
      %v5396 = vpop.f32.mrb[0].mxu0
      %v5397 = vadd.f32 0.0, %v5396
      %v5398 = vpop.f32.mrb[0].mxu0
      %5399 = vmatprep.mubr.f32.mxu0 0.0
      %5400 = vmatmul.mubr.f32.gmra.mrb[0].mxu0 %v4713
      %v5401 = vpop.f32.mrb[0].mxu0
      %v5402 = vadd.f32 0.0, %v5401
      %v5403 = vpop.f32.mrb[0].mxu0
      %5404 = vmatprep.mubr.f32.mxu0 0.0
      %5405 = vmatmul.mubr.f32.gmra.mrb[0].mxu0 %v4716
      %v5406 = vpop.f32.mrb[0].mxu0
      %v5407 = vadd.f32 0.0, %v5406
      %v5408 = vpop.f32.mrb[0].mxu0
      %5409 = vmatprep.mubr.f32.mxu0 0.0
      %5410 = vmatmul.mubr.f32.gmra.mrb[0].mxu0 %v4719
      %v5411 = vpop.f32.mrb[0].mxu0
      %v5412 = vadd.f32 0.0, %v5411
      %v5413 = vpop.f32.mrb[0].mxu0
      %5414 = vmatprep.mubr.f32.mxu0 0.0
      %5415 = vmatmul.mubr.f32.gmra.mrb[0].mxu0 %v4722
      %v5416 = vpop.f32.mrb[0].mxu0
      %v5417 = vadd.f32 0.0, %v5416
      %v5418 = vpop.f32.mrb[0].mxu0
      %5419 = vmatprep.mubr.f32.mxu0 0.0
      %5420 = vmatmul.mubr.f32.gmra.mrb[0].mxu0 %v4725
      %v5421 = vpop.f32.mrb[0].mxu0
      %v5422 = vadd.f32 0.0, %v5421
      %v5423 = vpop.f32.mrb[0].mxu0
      %5424 = vmatprep.mubr.f32.mxu0 0.0
      %5425 = vmatmul.mubr.f32.gmra.mrb[0].mxu0 %v4728
      %v5426 = vpop.f32.mrb[0].mxu0
      %v5427 = vadd.f32 0.0, %v5426
      %v5428 = vpop.f32.mrb[0].mxu0
      %5429 = vmatprep.mubr.f32.mxu0 0.0
      %5430 = vmatmul.mubr.f32.gmra.mrb[0].mxu0 %v4731
      %v5431 = vpop.f32.mrb[0].mxu0
      %v5432 = vadd.f32 0.0, %v5431
      %v5433 = vpop.f32.mrb[0].mxu0
      %5434 = vmatprep.mubr.f32.mxu0 0.0
      %5435 = vmatmul.mubr.f32.gmra.mrb[0].mxu0 %v4734
      %v5436 = vpop.f32.mrb[0].mxu0
      %v5437 = vadd.f32 0.0, %v5436
      %v5438 = vpop.f32.mrb[0].mxu0
      %5439 = vmatprep.mubr.f32.mxu0 0.0
      %5440 = vmatmul.mubr.f32.gmra.mrb[0].mxu0 %v4737
      %v5441 = vpop.f32.mrb[0].mxu0
      %v5442 = vadd.f32 0.0, %v5441
      %v5443 = vpop.f32.mrb[0].mxu0
      %5444 = vmatprep.mubr.f32.mxu0 0.0
      %5445 = vmatmul.mubr.f32.gmra.mrb[0].mxu0 %v4740
      %v5446 = vpop.f32.mrb[0].mxu0
      %v5447 = vadd.f32 0.0, %v5446
      %v5448 = vpop.f32.mrb[0].mxu0
      %5449 = vdwg.mxu0
      %v5450 = vadd.f32 %v4100, %v4812
      %v5451 = vadd.f32 %v4101, %v4817
      %v5452 = vadd.f32 %v4102, %v4822
      %v5453 = vadd.f32 %v4103, %v4827
      %v5454 = vadd.f32 %v4104, %v4832
      %v5455 = vadd.f32 %v4105, %v4837
      %v5456 = vadd.f32 %v4106, %v4842
      %v5457 = vadd.f32 %v4107, %v4847
      %v5458 = vadd.f32 %v4108, %v4852
      %v5459 = vadd.f32 %v4109, %v4857
      %v5460 = vadd.f32 %v4110, %v4862
      %v5461 = vadd.f32 %v4111, %v4867
      %v5462 = vadd.f32 %v4112, %v4872
      %v5463 = vadd.f32 %v4113, %v4877
      %v5464 = vadd.f32 %v4114, %v4882
      %v5465 = vadd.f32 %v4115, %v4887
      %v5466 = vadd.f32 %v4116, %v4892
      %v5467 = vadd.f32 %v4117, %v4897
      %v5468 = vadd.f32 %v4118, %v4902
      %v5469 = vadd.f32 %v4119, %v4907
      %v5470 = vadd.f32 %v4120, %v4912
      %v5471 = vadd.f32 %v4121, %v4917
      %v5472 = vadd.f32 %v4122, %v4922
      %v5473 = vadd.f32 %v4123, %v4927
      %v5474 = vadd.f32 %v4124, %v4932
      %v5475 = vadd.f32 %v4125, %v4937
      %v5476 = vadd.f32 %v4126, %v4942
      %v5477 = vadd.f32 %v4127, %v4947
      %v5478 = vadd.f32 %v4128, %v4952
      %v5479 = vadd.f32 %v4129, %v4957
      %v5480 = vadd.f32 %v4130, %v4962
      %v5481 = vadd.f32 %v4131, %v4967
      %v5482 = vadd.f32 %v4132, %v4972
      %v5483 = vadd.f32 %v4133, %v4977
      %v5484 = vadd.f32 %v4134, %v4982
      %v5485 = vadd.f32 %v4135, %v4987
      %v5486 = vadd.f32 %v4136, %v4992
      %v5487 = vadd.f32 %v4137, %v4997
      %v5488 = vadd.f32 %v4138, %v5002
      %v5489 = vadd.f32 %v4139, %v5007
      %v5490 = vadd.f32 %v4140, %v5012
      %v5491 = vadd.f32 %v4141, %v5017
      %v5492 = vadd.f32 %v4142, %v5022
      %v5493 = vadd.f32 %v4143, %v5027
      %v5494 = vadd.f32 %v4144, %v5032
      %v5495 = vadd.f32 %v4145, %v5037
      %v5496 = vadd.f32 %v4146, %v5042
      %v5497 = vadd.f32 %v4147, %v5047
      %v5498 = vadd.f32 %v4148, %v5052
      %v5499 = vadd.f32 %v4149, %v5057
      %v5500 = vadd.f32 %v4150, %v5062
      %v5501 = vadd.f32 %v4151, %v5067
      %v5502 = vadd.f32 %v4152, %v5072
      %v5503 = vadd.f32 %v4153, %v5077
      %v5504 = vadd.f32 %v4154, %v5082
      %v5505 = vadd.f32 %v4155, %v5087
      %v5506 = vadd.f32 %v4156, %v5092
      %v5507 = vadd.f32 %v4157, %v5097
      %v5508 = vadd.f32 %v4158, %v5102
      %v5509 = vadd.f32 %v4159, %v5107
      %v5510 = vadd.f32 %v4160, %v5112
      %v5511 = vadd.f32 %v4161, %v5117
      %v5512 = vadd.f32 %v4162, %v5122
      %v5513 = vadd.f32 %v4163, %v5127
      %v5514 = vadd.f32 %v4164, %v5132
      %v5515 = vadd.f32 %v4165, %v5137
      %v5516 = vadd.f32 %v4166, %v5142
      %v5517 = vadd.f32 %v4167, %v5147
      %v5518 = vadd.f32 %v4168, %v5152
      %v5519 = vadd.f32 %v4169, %v5157
      %v5520 = vadd.f32 %v4170, %v5162
      %v5521 = vadd.f32 %v4171, %v5167
      %v5522 = vadd.f32 %v4172, %v5172
      %v5523 = vadd.f32 %v4173, %v5177
      %v5524 = vadd.f32 %v4174, %v5182
      %v5525 = vadd.f32 %v4175, %v5187
      %v5526 = vadd.f32 %v4176, %v5192
      %v5527 = vadd.f32 %v4177, %v5197
      %v5528 = vadd.f32 %v4178, %v5202
      %v5529 = vadd.f32 %v4179, %v5207
      %v5530 = vadd.f32 %v4180, %v5212
      %v5531 = vadd.f32 %v4181, %v5217
      %v5532 = vadd.f32 %v4182, %v5222
      %v5533 = vadd.f32 %v4183, %v5227
      %v5534 = vadd.f32 %v4184, %v5232
      %v5535 = vadd.f32 %v4185, %v5237
      %v5536 = vadd.f32 %v4186, %v5242
      %v5537 = vadd.f32 %v4187, %v5247
      %v5538 = vadd.f32 %v4188, %v5252
      %v5539 = vadd.f32 %v4189, %v5257
      %v5540 = vadd.f32 %v4190, %v5262
      %v5541 = vadd.f32 %v4191, %v5267
      %v5542 = vadd.f32 %v4192, %v5272
      %v5543 = vadd.f32 %v4193, %v5277
      %v5544 = vadd.f32 %v4194, %v5282
      %v5545 = vadd.f32 %v4195, %v5287
      %v5546 = vadd.f32 %v4196, %v5292
      %v5547 = vadd.f32 %v4197, %v5297
      %v5548 = vadd.f32 %v4198, %v5302
      %v5549 = vadd.f32 %v4199, %v5307
      %v5550 = vadd.f32 %v4200, %v5312
      %v5551 = vadd.f32 %v4201, %v5317
      %v5552 = vadd.f32 %v4202, %v5322
      %v5553 = vadd.f32 %v4203, %v5327
      %v5554 = vadd.f32 %v4204, %v5332
      %v5555 = vadd.f32 %v4205, %v5337
      %v5556 = vadd.f32 %v4206, %v5342
      %v5557 = vadd.f32 %v4207, %v5347
      %v5558 = vadd.f32 %v4208, %v5352
      %v5559 = vadd.f32 %v4209, %v5357
      %v5560 = vadd.f32 %v4210, %v5362
      %v5561 = vadd.f32 %v4211, %v5367
      %v5562 = vadd.f32 %v4212, %v5372
      %v5563 = vadd.f32 %v4213, %v5377
      %v5564 = vadd.f32 %v4214, %v5382
      %v5565 = vadd.f32 %v4215, %v5387
      %v5566 = vadd.f32 %v4216, %v5392
      %v5567 = vadd.f32 %v4217, %v5397
      %v5568 = vadd.f32 %v4218, %v5402
      %v5569 = vadd.f32 %v4219, %v5407
      %v5570 = vadd.f32 %v4220, %v5412
      %v5571 = vadd.f32 %v4221, %v5417
      %v5572 = vadd.f32 %v4222, %v5422
      %v5573 = vadd.f32 %v4223, %v5427
      %v5574 = vadd.f32 %v4224, %v5432
      %v5575 = vadd.f32 %v4225, %v5437
      %v5576 = vadd.f32 %v4226, %v5442
      %v5577 = vadd.f32 %v4227, %v5447
      %5706 = vrot.lane.b32.xlu0 %v5450, 112
      %v5707 = vpop.permute.xlu0 %5706
      %5708 = vrot.lane.b32.xlu0 %v5451, 112
      %v5709 = vpop.permute.xlu0 %5708
      %5710 = vrot.lane.b32.xlu0 %v5452, 112
      %v5711 = vpop.permute.xlu0 %5710
      %5712 = vrot.lane.b32.xlu0 %v5453, 112
      %v5713 = vpop.permute.xlu0 %5712
      %5714 = vrot.lane.b32.xlu0 %v5454, 112
      %v5715 = vpop.permute.xlu0 %5714
      %5716 = vrot.lane.b32.xlu0 %v5455, 112
      %v5717 = vpop.permute.xlu0 %5716
      %5718 = vrot.lane.b32.xlu0 %v5456, 112
      %v5719 = vpop.permute.xlu0 %5718
      %5720 = vrot.lane.b32.xlu0 %v5457, 112
      %v5721 = vpop.permute.xlu0 %5720
      %5722 = vrot.lane.b32.xlu0 %v5458, 112
      %v5723 = vpop.permute.xlu0 %5722
      %5724 = vrot.lane.b32.xlu0 %v5459, 112
      %v5725 = vpop.permute.xlu0 %5724
      %5726 = vrot.lane.b32.xlu0 %v5460, 112
      %v5727 = vpop.permute.xlu0 %5726
      %5728 = vrot.lane.b32.xlu0 %v5461, 112
      %v5729 = vpop.permute.xlu0 %5728
      %5730 = vrot.lane.b32.xlu0 %v5462, 112
      %v5731 = vpop.permute.xlu0 %5730
      %5732 = vrot.lane.b32.xlu0 %v5463, 112
      %v5733 = vpop.permute.xlu0 %5732
      %5734 = vrot.lane.b32.xlu0 %v5464, 112
      %v5735 = vpop.permute.xlu0 %5734
      %5736 = vrot.lane.b32.xlu0 %v5465, 112
      %v5737 = vpop.permute.xlu0 %5736
      %5738 = vrot.lane.b32.xlu0 %v5466, 112
      %v5739 = vpop.permute.xlu0 %5738
      %5740 = vrot.lane.b32.xlu0 %v5467, 112
      %v5741 = vpop.permute.xlu0 %5740
      %5742 = vrot.lane.b32.xlu0 %v5468, 112
      %v5743 = vpop.permute.xlu0 %5742
      %5744 = vrot.lane.b32.xlu0 %v5469, 112
      %v5745 = vpop.permute.xlu0 %5744
      %5746 = vrot.lane.b32.xlu0 %v5470, 112
      %v5747 = vpop.permute.xlu0 %5746
      %5748 = vrot.lane.b32.xlu0 %v5471, 112
      %v5749 = vpop.permute.xlu0 %5748
      %5750 = vrot.lane.b32.xlu0 %v5472, 112
      %v5751 = vpop.permute.xlu0 %5750
      %5752 = vrot.lane.b32.xlu0 %v5473, 112
      %v5753 = vpop.permute.xlu0 %5752
      %5754 = vrot.lane.b32.xlu0 %v5474, 112
      %v5755 = vpop.permute.xlu0 %5754
      %5756 = vrot.lane.b32.xlu0 %v5475, 112
      %v5757 = vpop.permute.xlu0 %5756
      %5758 = vrot.lane.b32.xlu0 %v5476, 112
      %v5759 = vpop.permute.xlu0 %5758
      %5760 = vrot.lane.b32.xlu0 %v5477, 112
      %v5761 = vpop.permute.xlu0 %5760
      %5762 = vrot.lane.b32.xlu0 %v5478, 112
      %v5763 = vpop.permute.xlu0 %5762
      %5764 = vrot.lane.b32.xlu0 %v5479, 112
      %v5765 = vpop.permute.xlu0 %5764
      %5766 = vrot.lane.b32.xlu0 %v5480, 112
      %v5767 = vpop.permute.xlu0 %5766
      %5768 = vrot.lane.b32.xlu0 %v5481, 112
      %v5769 = vpop.permute.xlu0 %5768
      %5770 = vrot.lane.b32.xlu0 %v5482, 112
      %v5771 = vpop.permute.xlu0 %5770
      %5772 = vrot.lane.b32.xlu0 %v5483, 112
      %v5773 = vpop.permute.xlu0 %5772
      %5774 = vrot.lane.b32.xlu0 %v5484, 112
      %v5775 = vpop.permute.xlu0 %5774
      %5776 = vrot.lane.b32.xlu0 %v5485, 112
      %v5777 = vpop.permute.xlu0 %5776
      %5778 = vrot.lane.b32.xlu0 %v5486, 112
      %v5779 = vpop.permute.xlu0 %5778
      %5780 = vrot.lane.b32.xlu0 %v5487, 112
      %v5781 = vpop.permute.xlu0 %5780
      %5782 = vrot.lane.b32.xlu0 %v5488, 112
      %v5783 = vpop.permute.xlu0 %5782
      %5784 = vrot.lane.b32.xlu0 %v5489, 112
      %v5785 = vpop.permute.xlu0 %5784
      %5786 = vrot.lane.b32.xlu0 %v5490, 112
      %v5787 = vpop.permute.xlu0 %5786
      %5788 = vrot.lane.b32.xlu0 %v5491, 112
      %v5789 = vpop.permute.xlu0 %5788
      %5790 = vrot.lane.b32.xlu0 %v5492, 112
      %v5791 = vpop.permute.xlu0 %5790
      %5792 = vrot.lane.b32.xlu0 %v5493, 112
      %v5793 = vpop.permute.xlu0 %5792
      %5794 = vrot.lane.b32.xlu0 %v5494, 112
      %v5795 = vpop.permute.xlu0 %5794
      %5796 = vrot.lane.b32.xlu0 %v5495, 112
      %v5797 = vpop.permute.xlu0 %5796
      %5798 = vrot.lane.b32.xlu0 %v5496, 112
      %v5799 = vpop.permute.xlu0 %5798
      %5800 = vrot.lane.b32.xlu0 %v5497, 112
      %v5801 = vpop.permute.xlu0 %5800
      %5802 = vrot.lane.b32.xlu0 %v5498, 112
      %v5803 = vpop.permute.xlu0 %5802
      %5804 = vrot.lane.b32.xlu0 %v5499, 112
      %v5805 = vpop.permute.xlu0 %5804
      %5806 = vrot.lane.b32.xlu0 %v5500, 112
      %v5807 = vpop.permute.xlu0 %5806
      %5808 = vrot.lane.b32.xlu0 %v5501, 112
      %v5809 = vpop.permute.xlu0 %5808
      %5810 = vrot.lane.b32.xlu0 %v5502, 112
      %v5811 = vpop.permute.xlu0 %5810
      %5812 = vrot.lane.b32.xlu0 %v5503, 112
      %v5813 = vpop.permute.xlu0 %5812
      %5814 = vrot.lane.b32.xlu0 %v5504, 112
      %v5815 = vpop.permute.xlu0 %5814
      %5816 = vrot.lane.b32.xlu0 %v5505, 112
      %v5817 = vpop.permute.xlu0 %5816
      %5818 = vrot.lane.b32.xlu0 %v5506, 112
      %v5819 = vpop.permute.xlu0 %5818
      %5820 = vrot.lane.b32.xlu0 %v5507, 112
      %v5821 = vpop.permute.xlu0 %5820
      %5822 = vrot.lane.b32.xlu0 %v5508, 112
      %v5823 = vpop.permute.xlu0 %5822
      %5824 = vrot.lane.b32.xlu0 %v5509, 112
      %v5825 = vpop.permute.xlu0 %5824
      %5826 = vrot.lane.b32.xlu0 %v5510, 112
      %v5827 = vpop.permute.xlu0 %5826
      %5828 = vrot.lane.b32.xlu0 %v5511, 112
      %v5829 = vpop.permute.xlu0 %5828
      %5830 = vrot.lane.b32.xlu0 %v5512, 112
      %v5831 = vpop.permute.xlu0 %5830
      %5832 = vrot.lane.b32.xlu0 %v5513, 112
      %v5833 = vpop.permute.xlu0 %5832
      %5834 = vrot.lane.b32.xlu0 %v5514, 112
      %v5835 = vpop.permute.xlu0 %5834
      %5836 = vrot.lane.b32.xlu0 %v5515, 112
      %v5837 = vpop.permute.xlu0 %5836
      %5838 = vrot.lane.b32.xlu0 %v5516, 112
      %v5839 = vpop.permute.xlu0 %5838
      %5840 = vrot.lane.b32.xlu0 %v5517, 112
      %v5841 = vpop.permute.xlu0 %5840
      %5842 = vrot.lane.b32.xlu0 %v5518, 112
      %v5843 = vpop.permute.xlu0 %5842
      %5844 = vrot.lane.b32.xlu0 %v5519, 112
      %v5845 = vpop.permute.xlu0 %5844
      %5846 = vrot.lane.b32.xlu0 %v5520, 112
      %v5847 = vpop.permute.xlu0 %5846
      %5848 = vrot.lane.b32.xlu0 %v5521, 112
      %v5849 = vpop.permute.xlu0 %5848
      %5850 = vrot.lane.b32.xlu0 %v5522, 112
      %v5851 = vpop.permute.xlu0 %5850
      %5852 = vrot.lane.b32.xlu0 %v5523, 112
      %v5853 = vpop.permute.xlu0 %5852
      %5854 = vrot.lane.b32.xlu0 %v5524, 112
      %v5855 = vpop.permute.xlu0 %5854
      %5856 = vrot.lane.b32.xlu0 %v5525, 112
      %v5857 = vpop.permute.xlu0 %5856
      %5858 = vrot.lane.b32.xlu0 %v5526, 112
      %v5859 = vpop.permute.xlu0 %5858
      %5860 = vrot.lane.b32.xlu0 %v5527, 112
      %v5861 = vpop.permute.xlu0 %5860
      %5862 = vrot.lane.b32.xlu0 %v5528, 112
      %v5863 = vpop.permute.xlu0 %5862
      %5864 = vrot.lane.b32.xlu0 %v5529, 112
      %v5865 = vpop.permute.xlu0 %5864
      %5866 = vrot.lane.b32.xlu0 %v5530, 112
      %v5867 = vpop.permute.xlu0 %5866
      %5868 = vrot.lane.b32.xlu0 %v5531, 112
      %v5869 = vpop.permute.xlu0 %5868
      %5870 = vrot.lane.b32.xlu0 %v5532, 112
      %v5871 = vpop.permute.xlu0 %5870
      %5872 = vrot.lane.b32.xlu0 %v5533, 112
      %v5873 = vpop.permute.xlu0 %5872
      %5874 = vrot.lane.b32.xlu0 %v5534, 112
      %v5875 = vpop.permute.xlu0 %5874
      %5876 = vrot.lane.b32.xlu0 %v5535, 112
      %v5877 = vpop.permute.xlu0 %5876
      %5878 = vrot.lane.b32.xlu0 %v5536, 112
      %v5879 = vpop.permute.xlu0 %5878
      %5880 = vrot.lane.b32.xlu0 %v5537, 112
      %v5881 = vpop.permute.xlu0 %5880
      %5882 = vrot.lane.b32.xlu0 %v5538, 112
      %v5883 = vpop.permute.xlu0 %5882
      %5884 = vrot.lane.b32.xlu0 %v5539, 112
      %v5885 = vpop.permute.xlu0 %5884
      %5886 = vrot.lane.b32.xlu0 %v5540, 112
      %v5887 = vpop.permute.xlu0 %5886
      %5888 = vrot.lane.b32.xlu0 %v5541, 112
      %v5889 = vpop.permute.xlu0 %5888
      %5890 = vrot.lane.b32.xlu0 %v5542, 112
      %v5891 = vpop.permute.xlu0 %5890
      %5892 = vrot.lane.b32.xlu0 %v5543, 112
      %v5893 = vpop.permute.xlu0 %5892
      %5894 = vrot.lane.b32.xlu0 %v5544, 112
      %v5895 = vpop.permute.xlu0 %5894
      %5896 = vrot.lane.b32.xlu0 %v5545, 112
      %v5897 = vpop.permute.xlu0 %5896
      %5898 = vrot.lane.b32.xlu0 %v5546, 112
      %v5899 = vpop.permute.xlu0 %5898
      %5900 = vrot.lane.b32.xlu0 %v5547, 112
      %v5901 = vpop.permute.xlu0 %5900
      %5902 = vrot.lane.b32.xlu0 %v5548, 112
      %v5903 = vpop.permute.xlu0 %5902
      %5904 = vrot.lane.b32.xlu0 %v5549, 112
      %v5905 = vpop.permute.xlu0 %5904
      %5906 = vrot.lane.b32.xlu0 %v5550, 112
      %v5907 = vpop.permute.xlu0 %5906
      %5908 = vrot.lane.b32.xlu0 %v5551, 112
      %v5909 = vpop.permute.xlu0 %5908
      %5910 = vrot.lane.b32.xlu0 %v5552, 112
      %v5911 = vpop.permute.xlu0 %5910
      %5912 = vrot.lane.b32.xlu0 %v5553, 112
      %v5913 = vpop.permute.xlu0 %5912
      %5914 = vrot.lane.b32.xlu0 %v5554, 112
      %v5915 = vpop.permute.xlu0 %5914
      %5916 = vrot.lane.b32.xlu0 %v5555, 112
      %v5917 = vpop.permute.xlu0 %5916
      %5918 = vrot.lane.b32.xlu0 %v5556, 112
      %v5919 = vpop.permute.xlu0 %5918
      %5920 = vrot.lane.b32.xlu0 %v5557, 112
      %v5921 = vpop.permute.xlu0 %5920
      %5922 = vrot.lane.b32.xlu0 %v5558, 112
      %v5923 = vpop.permute.xlu0 %5922
      %5924 = vrot.lane.b32.xlu0 %v5559, 112
      %v5925 = vpop.permute.xlu0 %5924
      %5926 = vrot.lane.b32.xlu0 %v5560, 112
      %v5927 = vpop.permute.xlu0 %5926
      %5928 = vrot.lane.b32.xlu0 %v5561, 112
      %v5929 = vpop.permute.xlu0 %5928
      %5930 = vrot.lane.b32.xlu0 %v5562, 112
      %v5931 = vpop.permute.xlu0 %5930
      %5932 = vrot.lane.b32.xlu0 %v5563, 112
      %v5933 = vpop.permute.xlu0 %5932
      %5934 = vrot.lane.b32.xlu0 %v5564, 112
      %v5935 = vpop.permute.xlu0 %5934
      %5936 = vrot.lane.b32.xlu0 %v5565, 112
      %v5937 = vpop.permute.xlu0 %5936
      %5938 = vrot.lane.b32.xlu0 %v5566, 112
      %v5939 = vpop.permute.xlu0 %5938
      %5940 = vrot.lane.b32.xlu0 %v5567, 112
      %v5941 = vpop.permute.xlu0 %5940
      %5942 = vrot.lane.b32.xlu0 %v5568, 112
      %v5943 = vpop.permute.xlu0 %5942
      %5944 = vrot.lane.b32.xlu0 %v5569, 112
      %v5945 = vpop.permute.xlu0 %5944
      %5946 = vrot.lane.b32.xlu0 %v5570, 112
      %v5947 = vpop.permute.xlu0 %5946
      %5948 = vrot.lane.b32.xlu0 %v5571, 112
      %v5949 = vpop.permute.xlu0 %5948
      %5950 = vrot.lane.b32.xlu0 %v5572, 112
      %v5951 = vpop.permute.xlu0 %5950
      %5952 = vrot.lane.b32.xlu0 %v5573, 112
      %v5953 = vpop.permute.xlu0 %5952
      %5954 = vrot.lane.b32.xlu0 %v5574, 112
      %v5955 = vpop.permute.xlu0 %5954
      %5956 = vrot.lane.b32.xlu0 %v5575, 112
      %v5957 = vpop.permute.xlu0 %5956
      %5958 = vrot.lane.b32.xlu0 %v5576, 112
      %v5959 = vpop.permute.xlu0 %5958
      %5960 = vrot.lane.b32.xlu0 %v5577, 112
      %v5961 = vpop.permute.xlu0 %5960
      %v6090 = vmax.f32 %v5450, %v5707
      %v6091 = vmax.f32 %v5451, %v5709
      %v6092 = vmax.f32 %v5452, %v5711
      %v6093 = vmax.f32 %v5453, %v5713
      %v6094 = vmax.f32 %v5454, %v5715
      %v6095 = vmax.f32 %v5455, %v5717
      %v6096 = vmax.f32 %v5456, %v5719
      %v6097 = vmax.f32 %v5457, %v5721
      %v6098 = vmax.f32 %v5458, %v5723
      %v6099 = vmax.f32 %v5459, %v5725
      %v6100 = vmax.f32 %v5460, %v5727
      %v6101 = vmax.f32 %v5461, %v5729
      %v6102 = vmax.f32 %v5462, %v5731
      %v6103 = vmax.f32 %v5463, %v5733
      %v6104 = vmax.f32 %v5464, %v5735
      %v6105 = vmax.f32 %v5465, %v5737
      %v6106 = vmax.f32 %v5466, %v5739
      %v6107 = vmax.f32 %v5467, %v5741
      %v6108 = vmax.f32 %v5468, %v5743
      %v6109 = vmax.f32 %v5469, %v5745
      %v6110 = vmax.f32 %v5470, %v5747
      %v6111 = vmax.f32 %v5471, %v5749
      %v6112 = vmax.f32 %v5472, %v5751
      %v6113 = vmax.f32 %v5473, %v5753
      %v6114 = vmax.f32 %v5474, %v5755
      %v6115 = vmax.f32 %v5475, %v5757
      %v6116 = vmax.f32 %v5476, %v5759
      %v6117 = vmax.f32 %v5477, %v5761
      %v6118 = vmax.f32 %v5478, %v5763
      %v6119 = vmax.f32 %v5479, %v5765
      %v6120 = vmax.f32 %v5480, %v5767
      %v6121 = vmax.f32 %v5481, %v5769
      %v6122 = vmax.f32 %v5482, %v5771
      %v6123 = vmax.f32 %v5483, %v5773
      %v6124 = vmax.f32 %v5484, %v5775
      %v6125 = vmax.f32 %v5485, %v5777
      %v6126 = vmax.f32 %v5486, %v5779
      %v6127 = vmax.f32 %v5487, %v5781
      %v6128 = vmax.f32 %v5488, %v5783
      %v6129 = vmax.f32 %v5489, %v5785
      %v6130 = vmax.f32 %v5490, %v5787
      %v6131 = vmax.f32 %v5491, %v5789
      %v6132 = vmax.f32 %v5492, %v5791
      %v6133 = vmax.f32 %v5493, %v5793
      %v6134 = vmax.f32 %v5494, %v5795
      %v6135 = vmax.f32 %v5495, %v5797
      %v6136 = vmax.f32 %v5496, %v5799
      %v6137 = vmax.f32 %v5497, %v5801
      %v6138 = vmax.f32 %v5498, %v5803
      %v6139 = vmax.f32 %v5499, %v5805
      %v6140 = vmax.f32 %v5500, %v5807
      %v6141 = vmax.f32 %v5501, %v5809
      %v6142 = vmax.f32 %v5502, %v5811
      %v6143 = vmax.f32 %v5503, %v5813
      %v6144 = vmax.f32 %v5504, %v5815
      %v6145 = vmax.f32 %v5505, %v5817
      %v6146 = vmax.f32 %v5506, %v5819
      %v6147 = vmax.f32 %v5507, %v5821
      %v6148 = vmax.f32 %v5508, %v5823
      %v6149 = vmax.f32 %v5509, %v5825
      %v6150 = vmax.f32 %v5510, %v5827
      %v6151 = vmax.f32 %v5511, %v5829
      %v6152 = vmax.f32 %v5512, %v5831
      %v6153 = vmax.f32 %v5513, %v5833
      %v6154 = vmax.f32 %v5514, %v5835
      %v6155 = vmax.f32 %v5515, %v5837
      %v6156 = vmax.f32 %v5516, %v5839
      %v6157 = vmax.f32 %v5517, %v5841
      %v6158 = vmax.f32 %v5518, %v5843
      %v6159 = vmax.f32 %v5519, %v5845
      %v6160 = vmax.f32 %v5520, %v5847
      %v6161 = vmax.f32 %v5521, %v5849
      %v6162 = vmax.f32 %v5522, %v5851
      %v6163 = vmax.f32 %v5523, %v5853
      %v6164 = vmax.f32 %v5524, %v5855
      %v6165 = vmax.f32 %v5525, %v5857
      %v6166 = vmax.f32 %v5526, %v5859
      %v6167 = vmax.f32 %v5527, %v5861
      %v6168 = vmax.f32 %v5528, %v5863
      %v6169 = vmax.f32 %v5529, %v5865
      %v6170 = vmax.f32 %v5530, %v5867
      %v6171 = vmax.f32 %v5531, %v5869
      %v6172 = vmax.f32 %v5532, %v5871
      %v6173 = vmax.f32 %v5533, %v5873
      %v6174 = vmax.f32 %v5534, %v5875
      %v6175 = vmax.f32 %v5535, %v5877
      %v6176 = vmax.f32 %v5536, %v5879
      %v6177 = vmax.f32 %v5537, %v5881
      %v6178 = vmax.f32 %v5538, %v5883
      %v6179 = vmax.f32 %v5539, %v5885
      %v6180 = vmax.f32 %v5540, %v5887
      %v6181 = vmax.f32 %v5541, %v5889
      %v6182 = vmax.f32 %v5542, %v5891
      %v6183 = vmax.f32 %v5543, %v5893
      %v6184 = vmax.f32 %v5544, %v5895
      %v6185 = vmax.f32 %v5545, %v5897
      %v6186 = vmax.f32 %v5546, %v5899
      %v6187 = vmax.f32 %v5547, %v5901
      %v6188 = vmax.f32 %v5548, %v5903
      %v6189 = vmax.f32 %v5549, %v5905
      %v6190 = vmax.f32 %v5550, %v5907
      %v6191 = vmax.f32 %v5551, %v5909
      %v6192 = vmax.f32 %v5552, %v5911
      %v6193 = vmax.f32 %v5553, %v5913
      %v6194 = vmax.f32 %v5554, %v5915
      %v6195 = vmax.f32 %v5555, %v5917
      %v6196 = vmax.f32 %v5556, %v5919
      %v6197 = vmax.f32 %v5557, %v5921
      %v6198 = vmax.f32 %v5558, %v5923
      %v6199 = vmax.f32 %v5559, %v5925
      %v6200 = vmax.f32 %v5560, %v5927
      %v6201 = vmax.f32 %v5561, %v5929
      %v6202 = vmax.f32 %v5562, %v5931
      %v6203 = vmax.f32 %v5563, %v5933
      %v6204 = vmax.f32 %v5564, %v5935
      %v6205 = vmax.f32 %v5565, %v5937
      %v6206 = vmax.f32 %v5566, %v5939
      %v6207 = vmax.f32 %v5567, %v5941
      %v6208 = vmax.f32 %v5568, %v5943
      %v6209 = vmax.f32 %v5569, %v5945
      %v6210 = vmax.f32 %v5570, %v5947
      %v6211 = vmax.f32 %v5571, %v5949
      %v6212 = vmax.f32 %v5572, %v5951
      %v6213 = vmax.f32 %v5573, %v5953
      %v6214 = vmax.f32 %v5574, %v5955
      %v6215 = vmax.f32 %v5575, %v5957
      %v6216 = vmax.f32 %v5576, %v5959
      %v6217 = vmax.f32 %v5577, %v5961
      %6346 = vrot.lane.b32.xlu0 %v6090, 96
      %v6347 = vpop.permute.xlu0 %6346
      %6348 = vrot.lane.b32.xlu0 %v6091, 96
      %v6349 = vpop.permute.xlu0 %6348
      %6350 = vrot.lane.b32.xlu0 %v6092, 96
      %v6351 = vpop.permute.xlu0 %6350
      %6352 = vrot.lane.b32.xlu0 %v6093, 96
      %v6353 = vpop.permute.xlu0 %6352
      %6354 = vrot.lane.b32.xlu0 %v6094, 96
      %v6355 = vpop.permute.xlu0 %6354
      %6356 = vrot.lane.b32.xlu0 %v6095, 96
      %v6357 = vpop.permute.xlu0 %6356
      %6358 = vrot.lane.b32.xlu0 %v6096, 96
      %v6359 = vpop.permute.xlu0 %6358
      %6360 = vrot.lane.b32.xlu0 %v6097, 96
      %v6361 = vpop.permute.xlu0 %6360
      %6362 = vrot.lane.b32.xlu0 %v6098, 96
      %v6363 = vpop.permute.xlu0 %6362
      %6364 = vrot.lane.b32.xlu0 %v6099, 96
      %v6365 = vpop.permute.xlu0 %6364
      %6366 = vrot.lane.b32.xlu0 %v6100, 96
      %v6367 = vpop.permute.xlu0 %6366
      %6368 = vrot.lane.b32.xlu0 %v6101, 96
      %v6369 = vpop.permute.xlu0 %6368
      %6370 = vrot.lane.b32.xlu0 %v6102, 96
      %v6371 = vpop.permute.xlu0 %6370
      %6372 = vrot.lane.b32.xlu0 %v6103, 96
      %v6373 = vpop.permute.xlu0 %6372
      %6374 = vrot.lane.b32.xlu0 %v6104, 96
      %v6375 = vpop.permute.xlu0 %6374
      %6376 = vrot.lane.b32.xlu0 %v6105, 96
      %v6377 = vpop.permute.xlu0 %6376
      %6378 = vrot.lane.b32.xlu0 %v6106, 96
      %v6379 = vpop.permute.xlu0 %6378
      %6380 = vrot.lane.b32.xlu0 %v6107, 96
      %v6381 = vpop.permute.xlu0 %6380
      %6382 = vrot.lane.b32.xlu0 %v6108, 96
      %v6383 = vpop.permute.xlu0 %6382
      %6384 = vrot.lane.b32.xlu0 %v6109, 96
      %v6385 = vpop.permute.xlu0 %6384
      %6386 = vrot.lane.b32.xlu0 %v6110, 96
      %v6387 = vpop.permute.xlu0 %6386
      %6388 = vrot.lane.b32.xlu0 %v6111, 96
      %v6389 = vpop.permute.xlu0 %6388
      %6390 = vrot.lane.b32.xlu0 %v6112, 96
      %v6391 = vpop.permute.xlu0 %6390
      %6392 = vrot.lane.b32.xlu0 %v6113, 96
      %v6393 = vpop.permute.xlu0 %6392
      %6394 = vrot.lane.b32.xlu0 %v6114, 96
      %v6395 = vpop.permute.xlu0 %6394
      %6396 = vrot.lane.b32.xlu0 %v6115, 96
      %v6397 = vpop.permute.xlu0 %6396
      %6398 = vrot.lane.b32.xlu0 %v6116, 96
      %v6399 = vpop.permute.xlu0 %6398
      %6400 = vrot.lane.b32.xlu0 %v6117, 96
      %v6401 = vpop.permute.xlu0 %6400
      %6402 = vrot.lane.b32.xlu0 %v6118, 96
      %v6403 = vpop.permute.xlu0 %6402
      %6404 = vrot.lane.b32.xlu0 %v6119, 96
      %v6405 = vpop.permute.xlu0 %6404
      %6406 = vrot.lane.b32.xlu0 %v6120, 96
      %v6407 = vpop.permute.xlu0 %6406
      %6408 = vrot.lane.b32.xlu0 %v6121, 96
      %v6409 = vpop.permute.xlu0 %6408
      %6410 = vrot.lane.b32.xlu0 %v6122, 96
      %v6411 = vpop.permute.xlu0 %6410
      %6412 = vrot.lane.b32.xlu0 %v6123, 96
      %v6413 = vpop.permute.xlu0 %6412
      %6414 = vrot.lane.b32.xlu0 %v6124, 96
      %v6415 = vpop.permute.xlu0 %6414
      %6416 = vrot.lane.b32.xlu0 %v6125, 96
      %v6417 = vpop.permute.xlu0 %6416
      %6418 = vrot.lane.b32.xlu0 %v6126, 96
      %v6419 = vpop.permute.xlu0 %6418
      %6420 = vrot.lane.b32.xlu0 %v6127, 96
      %v6421 = vpop.permute.xlu0 %6420
      %6422 = vrot.lane.b32.xlu0 %v6128, 96
      %v6423 = vpop.permute.xlu0 %6422
      %6424 = vrot.lane.b32.xlu0 %v6129, 96
      %v6425 = vpop.permute.xlu0 %6424
      %6426 = vrot.lane.b32.xlu0 %v6130, 96
      %v6427 = vpop.permute.xlu0 %6426
      %6428 = vrot.lane.b32.xlu0 %v6131, 96
      %v6429 = vpop.permute.xlu0 %6428
      %6430 = vrot.lane.b32.xlu0 %v6132, 96
      %v6431 = vpop.permute.xlu0 %6430
      %6432 = vrot.lane.b32.xlu0 %v6133, 96
      %v6433 = vpop.permute.xlu0 %6432
      %6434 = vrot.lane.b32.xlu0 %v6134, 96
      %v6435 = vpop.permute.xlu0 %6434
      %6436 = vrot.lane.b32.xlu0 %v6135, 96
      %v6437 = vpop.permute.xlu0 %6436
      %6438 = vrot.lane.b32.xlu0 %v6136, 96
      %v6439 = vpop.permute.xlu0 %6438
      %6440 = vrot.lane.b32.xlu0 %v6137, 96
      %v6441 = vpop.permute.xlu0 %6440
      %6442 = vrot.lane.b32.xlu0 %v6138, 96
      %v6443 = vpop.permute.xlu0 %6442
      %6444 = vrot.lane.b32.xlu0 %v6139, 96
      %v6445 = vpop.permute.xlu0 %6444
      %6446 = vrot.lane.b32.xlu0 %v6140, 96
      %v6447 = vpop.permute.xlu0 %6446
      %6448 = vrot.lane.b32.xlu0 %v6141, 96
      %v6449 = vpop.permute.xlu0 %6448
      %6450 = vrot.lane.b32.xlu0 %v6142, 96
      %v6451 = vpop.permute.xlu0 %6450
      %6452 = vrot.lane.b32.xlu0 %v6143, 96
      %v6453 = vpop.permute.xlu0 %6452
      %6454 = vrot.lane.b32.xlu0 %v6144, 96
      %v6455 = vpop.permute.xlu0 %6454
      %6456 = vrot.lane.b32.xlu0 %v6145, 96
      %v6457 = vpop.permute.xlu0 %6456
      %6458 = vrot.lane.b32.xlu0 %v6146, 96
      %v6459 = vpop.permute.xlu0 %6458
      %6460 = vrot.lane.b32.xlu0 %v6147, 96
      %v6461 = vpop.permute.xlu0 %6460
      %6462 = vrot.lane.b32.xlu0 %v6148, 96
      %v6463 = vpop.permute.xlu0 %6462
      %6464 = vrot.lane.b32.xlu0 %v6149, 96
      %v6465 = vpop.permute.xlu0 %6464
      %6466 = vrot.lane.b32.xlu0 %v6150, 96
      %v6467 = vpop.permute.xlu0 %6466
      %6468 = vrot.lane.b32.xlu0 %v6151, 96
      %v6469 = vpop.permute.xlu0 %6468
      %6470 = vrot.lane.b32.xlu0 %v6152, 96
      %v6471 = vpop.permute.xlu0 %6470
      %6472 = vrot.lane.b32.xlu0 %v6153, 96
      %v6473 = vpop.permute.xlu0 %6472
      %6474 = vrot.lane.b32.xlu0 %v6154, 96
      %v6475 = vpop.permute.xlu0 %6474
      %6476 = vrot.lane.b32.xlu0 %v6155, 96
      %v6477 = vpop.permute.xlu0 %6476
      %6478 = vrot.lane.b32.xlu0 %v6156, 96
      %v6479 = vpop.permute.xlu0 %6478
      %6480 = vrot.lane.b32.xlu0 %v6157, 96
      %v6481 = vpop.permute.xlu0 %6480
      %6482 = vrot.lane.b32.xlu0 %v6158, 96
      %v6483 = vpop.permute.xlu0 %6482
      %6484 = vrot.lane.b32.xlu0 %v6159, 96
      %v6485 = vpop.permute.xlu0 %6484
      %6486 = vrot.lane.b32.xlu0 %v6160, 96
      %v6487 = vpop.permute.xlu0 %6486
      %6488 = vrot.lane.b32.xlu0 %v6161, 96
      %v6489 = vpop.permute.xlu0 %6488
      %6490 = vrot.lane.b32.xlu0 %v6162, 96
      %v6491 = vpop.permute.xlu0 %6490
      %6492 = vrot.lane.b32.xlu0 %v6163, 96
      %v6493 = vpop.permute.xlu0 %6492
      %6494 = vrot.lane.b32.xlu0 %v6164, 96
      %v6495 = vpop.permute.xlu0 %6494
      %6496 = vrot.lane.b32.xlu0 %v6165, 96
      %v6497 = vpop.permute.xlu0 %6496
      %6498 = vrot.lane.b32.xlu0 %v6166, 96
      %v6499 = vpop.permute.xlu0 %6498
      %6500 = vrot.lane.b32.xlu0 %v6167, 96
      %v6501 = vpop.permute.xlu0 %6500
      %6502 = vrot.lane.b32.xlu0 %v6168, 96
      %v6503 = vpop.permute.xlu0 %6502
      %6504 = vrot.lane.b32.xlu0 %v6169, 96
      %v6505 = vpop.permute.xlu0 %6504
      %6506 = vrot.lane.b32.xlu0 %v6170, 96
      %v6507 = vpop.permute.xlu0 %6506
      %6508 = vrot.lane.b32.xlu0 %v6171, 96
      %v6509 = vpop.permute.xlu0 %6508
      %6510 = vrot.lane.b32.xlu0 %v6172, 96
      %v6511 = vpop.permute.xlu0 %6510
      %6512 = vrot.lane.b32.xlu0 %v6173, 96
      %v6513 = vpop.permute.xlu0 %6512
      %6514 = vrot.lane.b32.xlu0 %v6174, 96
      %v6515 = vpop.permute.xlu0 %6514
      %6516 = vrot.lane.b32.xlu0 %v6175, 96
      %v6517 = vpop.permute.xlu0 %6516
      %6518 = vrot.lane.b32.xlu0 %v6176, 96
      %v6519 = vpop.permute.xlu0 %6518
      %6520 = vrot.lane.b32.xlu0 %v6177, 96
      %v6521 = vpop.permute.xlu0 %6520
      %6522 = vrot.lane.b32.xlu0 %v6178, 96
      %v6523 = vpop.permute.xlu0 %6522
      %6524 = vrot.lane.b32.xlu0 %v6179, 96
      %v6525 = vpop.permute.xlu0 %6524
      %6526 = vrot.lane.b32.xlu0 %v6180, 96
      %v6527 = vpop.permute.xlu0 %6526
      %6528 = vrot.lane.b32.xlu0 %v6181, 96
      %v6529 = vpop.permute.xlu0 %6528
      %6530 = vrot.lane.b32.xlu0 %v6182, 96
      %v6531 = vpop.permute.xlu0 %6530
      %6532 = vrot.lane.b32.xlu0 %v6183, 96
      %v6533 = vpop.permute.xlu0 %6532
      %6534 = vrot.lane.b32.xlu0 %v6184, 96
      %v6535 = vpop.permute.xlu0 %6534
      %6536 = vrot.lane.b32.xlu0 %v6185, 96
      %v6537 = vpop.permute.xlu0 %6536
      %6538 = vrot.lane.b32.xlu0 %v6186, 96
      %v6539 = vpop.permute.xlu0 %6538
      %6540 = vrot.lane.b32.xlu0 %v6187, 96
      %v6541 = vpop.permute.xlu0 %6540
      %6542 = vrot.lane.b32.xlu0 %v6188, 96
      %v6543 = vpop.permute.xlu0 %6542
      %6544 = vrot.lane.b32.xlu0 %v6189, 96
      %v6545 = vpop.permute.xlu0 %6544
      %6546 = vrot.lane.b32.xlu0 %v6190, 96
      %v6547 = vpop.permute.xlu0 %6546
      %6548 = vrot.lane.b32.xlu0 %v6191, 96
      %v6549 = vpop.permute.xlu0 %6548
      %6550 = vrot.lane.b32.xlu0 %v6192, 96
      %v6551 = vpop.permute.xlu0 %6550
      %6552 = vrot.lane.b32.xlu0 %v6193, 96
      %v6553 = vpop.permute.xlu0 %6552
      %6554 = vrot.lane.b32.xlu0 %v6194, 96
      %v6555 = vpop.permute.xlu0 %6554
      %6556 = vrot.lane.b32.xlu0 %v6195, 96
      %v6557 = vpop.permute.xlu0 %6556
      %6558 = vrot.lane.b32.xlu0 %v6196, 96
      %v6559 = vpop.permute.xlu0 %6558
      %6560 = vrot.lane.b32.xlu0 %v6197, 96
      %v6561 = vpop.permute.xlu0 %6560
      %6562 = vrot.lane.b32.xlu0 %v6198, 96
      %v6563 = vpop.permute.xlu0 %6562
      %6564 = vrot.lane.b32.xlu0 %v6199, 96
      %v6565 = vpop.permute.xlu0 %6564
      %6566 = vrot.lane.b32.xlu0 %v6200, 96
      %v6567 = vpop.permute.xlu0 %6566
      %6568 = vrot.lane.b32.xlu0 %v6201, 96
      %v6569 = vpop.permute.xlu0 %6568
      %6570 = vrot.lane.b32.xlu0 %v6202, 96
      %v6571 = vpop.permute.xlu0 %6570
      %6572 = vrot.lane.b32.xlu0 %v6203, 96
      %v6573 = vpop.permute.xlu0 %6572
      %6574 = vrot.lane.b32.xlu0 %v6204, 96
      %v6575 = vpop.permute.xlu0 %6574
      %6576 = vrot.lane.b32.xlu0 %v6205, 96
      %v6577 = vpop.permute.xlu0 %6576
      %6578 = vrot.lane.b32.xlu0 %v6206, 96
      %v6579 = vpop.permute.xlu0 %6578
      %6580 = vrot.lane.b32.xlu0 %v6207, 96
      %v6581 = vpop.permute.xlu0 %6580
      %6582 = vrot.lane.b32.xlu0 %v6208, 96
      %v6583 = vpop.permute.xlu0 %6582
      %6584 = vrot.lane.b32.xlu0 %v6209, 96
      %v6585 = vpop.permute.xlu0 %6584
      %6586 = vrot.lane.b32.xlu0 %v6210, 96
      %v6587 = vpop.permute.xlu0 %6586
      %6588 = vrot.lane.b32.xlu0 %v6211, 96
      %v6589 = vpop.permute.xlu0 %6588
      %6590 = vrot.lane.b32.xlu0 %v6212, 96
      %v6591 = vpop.permute.xlu0 %6590
      %6592 = vrot.lane.b32.xlu0 %v6213, 96
      %v6593 = vpop.permute.xlu0 %6592
      %6594 = vrot.lane.b32.xlu0 %v6214, 96
      %v6595 = vpop.permute.xlu0 %6594
      %6596 = vrot.lane.b32.xlu0 %v6215, 96
      %v6597 = vpop.permute.xlu0 %6596
      %6598 = vrot.lane.b32.xlu0 %v6216, 96
      %v6599 = vpop.permute.xlu0 %6598
      %6600 = vrot.lane.b32.xlu0 %v6217, 96
      %v6601 = vpop.permute.xlu0 %6600
      %v6730 = vmax.f32 %v6090, %v6347
      %v6731 = vmax.f32 %v6091, %v6349
      %v6732 = vmax.f32 %v6092, %v6351
      %v6733 = vmax.f32 %v6093, %v6353
      %v6734 = vmax.f32 %v6094, %v6355
      %v6735 = vmax.f32 %v6095, %v6357
      %v6736 = vmax.f32 %v6096, %v6359
      %v6737 = vmax.f32 %v6097, %v6361
      %v6738 = vmax.f32 %v6098, %v6363
      %v6739 = vmax.f32 %v6099, %v6365
      %v6740 = vmax.f32 %v6100, %v6367
      %v6741 = vmax.f32 %v6101, %v6369
      %v6742 = vmax.f32 %v6102, %v6371
      %v6743 = vmax.f32 %v6103, %v6373
      %v6744 = vmax.f32 %v6104, %v6375
      %v6745 = vmax.f32 %v6105, %v6377
      %v6746 = vmax.f32 %v6106, %v6379
      %v6747 = vmax.f32 %v6107, %v6381
      %v6748 = vmax.f32 %v6108, %v6383
      %v6749 = vmax.f32 %v6109, %v6385
      %v6750 = vmax.f32 %v6110, %v6387
      %v6751 = vmax.f32 %v6111, %v6389
      %v6752 = vmax.f32 %v6112, %v6391
      %v6753 = vmax.f32 %v6113, %v6393
      %v6754 = vmax.f32 %v6114, %v6395
      %v6755 = vmax.f32 %v6115, %v6397
      %v6756 = vmax.f32 %v6116, %v6399
      %v6757 = vmax.f32 %v6117, %v6401
      %v6758 = vmax.f32 %v6118, %v6403
      %v6759 = vmax.f32 %v6119, %v6405
      %v6760 = vmax.f32 %v6120, %v6407
      %v6761 = vmax.f32 %v6121, %v6409
      %v6762 = vmax.f32 %v6122, %v6411
      %v6763 = vmax.f32 %v6123, %v6413
      %v6764 = vmax.f32 %v6124, %v6415
      %v6765 = vmax.f32 %v6125, %v6417
      %v6766 = vmax.f32 %v6126, %v6419
      %v6767 = vmax.f32 %v6127, %v6421
      %v6768 = vmax.f32 %v6128, %v6423
      %v6769 = vmax.f32 %v6129, %v6425
      %v6770 = vmax.f32 %v6130, %v6427
      %v6771 = vmax.f32 %v6131, %v6429
      %v6772 = vmax.f32 %v6132, %v6431
      %v6773 = vmax.f32 %v6133, %v6433
      %v6774 = vmax.f32 %v6134, %v6435
      %v6775 = vmax.f32 %v6135, %v6437
      %v6776 = vmax.f32 %v6136, %v6439
      %v6777 = vmax.f32 %v6137, %v6441
      %v6778 = vmax.f32 %v6138, %v6443
      %v6779 = vmax.f32 %v6139, %v6445
      %v6780 = vmax.f32 %v6140, %v6447
      %v6781 = vmax.f32 %v6141, %v6449
      %v6782 = vmax.f32 %v6142, %v6451
      %v6783 = vmax.f32 %v6143, %v6453
      %v6784 = vmax.f32 %v6144, %v6455
      %v6785 = vmax.f32 %v6145, %v6457
      %v6786 = vmax.f32 %v6146, %v6459
      %v6787 = vmax.f32 %v6147, %v6461
      %v6788 = vmax.f32 %v6148, %v6463
      %v6789 = vmax.f32 %v6149, %v6465
      %v6790 = vmax.f32 %v6150, %v6467
      %v6791 = vmax.f32 %v6151, %v6469
      %v6792 = vmax.f32 %v6152, %v6471
      %v6793 = vmax.f32 %v6153, %v6473
      %v6794 = vmax.f32 %v6154, %v6475
      %v6795 = vmax.f32 %v6155, %v6477
      %v6796 = vmax.f32 %v6156, %v6479
      %v6797 = vmax.f32 %v6157, %v6481
      %v6798 = vmax.f32 %v6158, %v6483
      %v6799 = vmax.f32 %v6159, %v6485
      %v6800 = vmax.f32 %v6160, %v6487
      %v6801 = vmax.f32 %v6161, %v6489
      %v6802 = vmax.f32 %v6162, %v6491
      %v6803 = vmax.f32 %v6163, %v6493
      %v6804 = vmax.f32 %v6164, %v6495
      %v6805 = vmax.f32 %v6165, %v6497
      %v6806 = vmax.f32 %v6166, %v6499
      %v6807 = vmax.f32 %v6167, %v6501
      %v6808 = vmax.f32 %v6168, %v6503
      %v6809 = vmax.f32 %v6169, %v6505
      %v6810 = vmax.f32 %v6170, %v6507
      %v6811 = vmax.f32 %v6171, %v6509
      %v6812 = vmax.f32 %v6172, %v6511
      %v6813 = vmax.f32 %v6173, %v6513
      %v6814 = vmax.f32 %v6174, %v6515
      %v6815 = vmax.f32 %v6175, %v6517
      %v6816 = vmax.f32 %v6176, %v6519
      %v6817 = vmax.f32 %v6177, %v6521
      %v6818 = vmax.f32 %v6178, %v6523
      %v6819 = vmax.f32 %v6179, %v6525
      %v6820 = vmax.f32 %v6180, %v6527
      %v6821 = vmax.f32 %v6181, %v6529
      %v6822 = vmax.f32 %v6182, %v6531
      %v6823 = vmax.f32 %v6183, %v6533
      %v6824 = vmax.f32 %v6184, %v6535
      %v6825 = vmax.f32 %v6185, %v6537
      %v6826 = vmax.f32 %v6186, %v6539
      %v6827 = vmax.f32 %v6187, %v6541
      %v6828 = vmax.f32 %v6188, %v6543
      %v6829 = vmax.f32 %v6189, %v6545
      %v6830 = vmax.f32 %v6190, %v6547
      %v6831 = vmax.f32 %v6191, %v6549
      %v6832 = vmax.f32 %v6192, %v6551
      %v6833 = vmax.f32 %v6193, %v6553
      %v6834 = vmax.f32 %v6194, %v6555
      %v6835 = vmax.f32 %v6195, %v6557
      %v6836 = vmax.f32 %v6196, %v6559
      %v6837 = vmax.f32 %v6197, %v6561
      %v6838 = vmax.f32 %v6198, %v6563
      %v6839 = vmax.f32 %v6199, %v6565
      %v6840 = vmax.f32 %v6200, %v6567
      %v6841 = vmax.f32 %v6201, %v6569
      %v6842 = vmax.f32 %v6202, %v6571
      %v6843 = vmax.f32 %v6203, %v6573
      %v6844 = vmax.f32 %v6204, %v6575
      %v6845 = vmax.f32 %v6205, %v6577
      %v6846 = vmax.f32 %v6206, %v6579
      %v6847 = vmax.f32 %v6207, %v6581
      %v6848 = vmax.f32 %v6208, %v6583
      %v6849 = vmax.f32 %v6209, %v6585
      %v6850 = vmax.f32 %v6210, %v6587
      %v6851 = vmax.f32 %v6211, %v6589
      %v6852 = vmax.f32 %v6212, %v6591
      %v6853 = vmax.f32 %v6213, %v6593
      %v6854 = vmax.f32 %v6214, %v6595
      %v6855 = vmax.f32 %v6215, %v6597
      %v6856 = vmax.f32 %v6216, %v6599
      %v6857 = vmax.f32 %v6217, %v6601
      %v6858 = vld [vmem:[%s2] sm:$0x1]
      %v6860 = vlaneseq
      %v6861 = vshrl.u32 %v6860, 7
      %v6862 = vsub.s32 0, %v6861
      %v6863 = vrot.slane %v6858, %v6862
      %v6865 = vadd.f32 %v6730, %v6863
      %v6866 = vadd.f32 %v6731, %v6863
      %v6867 = vadd.f32 %v6732, %v6863
      %v6868 = vadd.f32 %v6733, %v6863
      %v6869 = vadd.f32 %v6734, %v6863
      %v6870 = vadd.f32 %v6735, %v6863
      %v6871 = vadd.f32 %v6736, %v6863
      %v6872 = vadd.f32 %v6737, %v6863
      %v6873 = vadd.f32 %v6738, %v6863
      %v6874 = vadd.f32 %v6739, %v6863
      %v6875 = vadd.f32 %v6740, %v6863
      %v6876 = vadd.f32 %v6741, %v6863
      %v6877 = vadd.f32 %v6742, %v6863
      %v6878 = vadd.f32 %v6743, %v6863
      %v6879 = vadd.f32 %v6744, %v6863
      %v6880 = vadd.f32 %v6745, %v6863
      %v6881 = vadd.f32 %v6746, %v6863
      %v6882 = vadd.f32 %v6747, %v6863
      %v6883 = vadd.f32 %v6748, %v6863
      %v6884 = vadd.f32 %v6749, %v6863
      %v6885 = vadd.f32 %v6750, %v6863
      %v6886 = vadd.f32 %v6751, %v6863
      %v6887 = vadd.f32 %v6752, %v6863
      %v6888 = vadd.f32 %v6753, %v6863
      %v6889 = vadd.f32 %v6754, %v6863
      %v6890 = vadd.f32 %v6755, %v6863
      %v6891 = vadd.f32 %v6756, %v6863
      %v6892 = vadd.f32 %v6757, %v6863
      %v6893 = vadd.f32 %v6758, %v6863
      %v6894 = vadd.f32 %v6759, %v6863
      %v6895 = vadd.f32 %v6760, %v6863
      %v6896 = vadd.f32 %v6761, %v6863
      %v6897 = vadd.f32 %v6762, %v6863
      %v6898 = vadd.f32 %v6763, %v6863
      %v6899 = vadd.f32 %v6764, %v6863
      %v6900 = vadd.f32 %v6765, %v6863
      %v6901 = vadd.f32 %v6766, %v6863
      %v6902 = vadd.f32 %v6767, %v6863
      %v6903 = vadd.f32 %v6768, %v6863
      %v6904 = vadd.f32 %v6769, %v6863
      %v6905 = vadd.f32 %v6770, %v6863
      %v6906 = vadd.f32 %v6771, %v6863
      %v6907 = vadd.f32 %v6772, %v6863
      %v6908 = vadd.f32 %v6773, %v6863
      %v6909 = vadd.f32 %v6774, %v6863
      %v6910 = vadd.f32 %v6775, %v6863
      %v6911 = vadd.f32 %v6776, %v6863
      %v6912 = vadd.f32 %v6777, %v6863
      %v6913 = vadd.f32 %v6778, %v6863
      %v6914 = vadd.f32 %v6779, %v6863
      %v6915 = vadd.f32 %v6780, %v6863
      %v6916 = vadd.f32 %v6781, %v6863
      %v6917 = vadd.f32 %v6782, %v6863
      %v6918 = vadd.f32 %v6783, %v6863
      %v6919 = vadd.f32 %v6784, %v6863
      %v6920 = vadd.f32 %v6785, %v6863
      %v6921 = vadd.f32 %v6786, %v6863
      %v6922 = vadd.f32 %v6787, %v6863
      %v6923 = vadd.f32 %v6788, %v6863
      %v6924 = vadd.f32 %v6789, %v6863
      %v6925 = vadd.f32 %v6790, %v6863
      %v6926 = vadd.f32 %v6791, %v6863
      %v6927 = vadd.f32 %v6792, %v6863
      %v6928 = vadd.f32 %v6793, %v6863
      %v6929 = vadd.f32 %v6794, %v6863
      %v6930 = vadd.f32 %v6795, %v6863
      %v6931 = vadd.f32 %v6796, %v6863
      %v6932 = vadd.f32 %v6797, %v6863
      %v6933 = vadd.f32 %v6798, %v6863
      %v6934 = vadd.f32 %v6799, %v6863
      %v6935 = vadd.f32 %v6800, %v6863
      %v6936 = vadd.f32 %v6801, %v6863
      %v6937 = vadd.f32 %v6802, %v6863
      %v6938 = vadd.f32 %v6803, %v6863
      %v6939 = vadd.f32 %v6804, %v6863
      %v6940 = vadd.f32 %v6805, %v6863
      %v6941 = vadd.f32 %v6806, %v6863
      %v6942 = vadd.f32 %v6807, %v6863
      %v6943 = vadd.f32 %v6808, %v6863
      %v6944 = vadd.f32 %v6809, %v6863
      %v6945 = vadd.f32 %v6810, %v6863
      %v6946 = vadd.f32 %v6811, %v6863
      %v6947 = vadd.f32 %v6812, %v6863
      %v6948 = vadd.f32 %v6813, %v6863
      %v6949 = vadd.f32 %v6814, %v6863
      %v6950 = vadd.f32 %v6815, %v6863
      %v6951 = vadd.f32 %v6816, %v6863
      %v6952 = vadd.f32 %v6817, %v6863
      %v6953 = vadd.f32 %v6818, %v6863
      %v6954 = vadd.f32 %v6819, %v6863
      %v6955 = vadd.f32 %v6820, %v6863
      %v6956 = vadd.f32 %v6821, %v6863
      %v6957 = vadd.f32 %v6822, %v6863
      %v6958 = vadd.f32 %v6823, %v6863
      %v6959 = vadd.f32 %v6824, %v6863
      %v6960 = vadd.f32 %v6825, %v6863
      %v6961 = vadd.f32 %v6826, %v6863
      %v6962 = vadd.f32 %v6827, %v6863
      %v6963 = vadd.f32 %v6828, %v6863
      %v6964 = vadd.f32 %v6829, %v6863
      %v6965 = vadd.f32 %v6830, %v6863
      %v6966 = vadd.f32 %v6831, %v6863
      %v6967 = vadd.f32 %v6832, %v6863
      %v6968 = vadd.f32 %v6833, %v6863
      %v6969 = vadd.f32 %v6834, %v6863
      %v6970 = vadd.f32 %v6835, %v6863
      %v6971 = vadd.f32 %v6836, %v6863
      %v6972 = vadd.f32 %v6837, %v6863
      %v6973 = vadd.f32 %v6838, %v6863
      %v6974 = vadd.f32 %v6839, %v6863
      %v6975 = vadd.f32 %v6840, %v6863
      %v6976 = vadd.f32 %v6841, %v6863
      %v6977 = vadd.f32 %v6842, %v6863
      %v6978 = vadd.f32 %v6843, %v6863
      %v6979 = vadd.f32 %v6844, %v6863
      %v6980 = vadd.f32 %v6845, %v6863
      %v6981 = vadd.f32 %v6846, %v6863
      %v6982 = vadd.f32 %v6847, %v6863
      %v6983 = vadd.f32 %v6848, %v6863
      %v6984 = vadd.f32 %v6849, %v6863
      %v6985 = vadd.f32 %v6850, %v6863
      %v6986 = vadd.f32 %v6851, %v6863
      %v6987 = vadd.f32 %v6852, %v6863
      %v6988 = vadd.f32 %v6853, %v6863
      %v6989 = vadd.f32 %v6854, %v6863
      %v6990 = vadd.f32 %v6855, %v6863
      %v6991 = vadd.f32 %v6856, %v6863
      %v6992 = vadd.f32 %v6857, %v6863
      %v6993 = vmax.f32 %v6865, 0.0
      %v6994 = vmax.f32 %v6866, 0.0
      %v6995 = vmax.f32 %v6867, 0.0
      %v6996 = vmax.f32 %v6868, 0.0
      %v6997 = vmax.f32 %v6869, 0.0
      %v6998 = vmax.f32 %v6870, 0.0
      %v6999 = vmax.f32 %v6871, 0.0
      %v7000 = vmax.f32 %v6872, 0.0
      %v7001 = vmax.f32 %v6873, 0.0
      %v7002 = vmax.f32 %v6874, 0.0
      %v7003 = vmax.f32 %v6875, 0.0
      %v7004 = vmax.f32 %v6876, 0.0
      %v7005 = vmax.f32 %v6877, 0.0
      %v7006 = vmax.f32 %v6878, 0.0
      %v7007 = vmax.f32 %v6879, 0.0
      %v7008 = vmax.f32 %v6880, 0.0
      %v7009 = vmax.f32 %v6881, 0.0
      %v7010 = vmax.f32 %v6882, 0.0
      %v7011 = vmax.f32 %v6883, 0.0
      %v7012 = vmax.f32 %v6884, 0.0
      %v7013 = vmax.f32 %v6885, 0.0
      %v7014 = vmax.f32 %v6886, 0.0
      %v7015 = vmax.f32 %v6887, 0.0
      %v7016 = vmax.f32 %v6888, 0.0
      %v7017 = vmax.f32 %v6889, 0.0
      %v7018 = vmax.f32 %v6890, 0.0
      %v7019 = vmax.f32 %v6891, 0.0
      %v7020 = vmax.f32 %v6892, 0.0
      %v7021 = vmax.f32 %v6893, 0.0
      %v7022 = vmax.f32 %v6894, 0.0
      %v7023 = vmax.f32 %v6895, 0.0
      %v7024 = vmax.f32 %v6896, 0.0
      %v7025 = vmax.f32 %v6897, 0.0
      %v7026 = vmax.f32 %v6898, 0.0
      %v7027 = vmax.f32 %v6899, 0.0
      %v7028 = vmax.f32 %v6900, 0.0
      %v7029 = vmax.f32 %v6901, 0.0
      %v7030 = vmax.f32 %v6902, 0.0
      %v7031 = vmax.f32 %v6903, 0.0
      %v7032 = vmax.f32 %v6904, 0.0
      %v7033 = vmax.f32 %v6905, 0.0
      %v7034 = vmax.f32 %v6906, 0.0
      %v7035 = vmax.f32 %v6907, 0.0
      %v7036 = vmax.f32 %v6908, 0.0
      %v7037 = vmax.f32 %v6909, 0.0
      %v7038 = vmax.f32 %v6910, 0.0
      %v7039 = vmax.f32 %v6911, 0.0
      %v7040 = vmax.f32 %v6912, 0.0
      %v7041 = vmax.f32 %v6913, 0.0
      %v7042 = vmax.f32 %v6914, 0.0
      %v7043 = vmax.f32 %v6915, 0.0
      %v7044 = vmax.f32 %v6916, 0.0
      %v7045 = vmax.f32 %v6917, 0.0
      %v7046 = vmax.f32 %v6918, 0.0
      %v7047 = vmax.f32 %v6919, 0.0
      %v7048 = vmax.f32 %v6920, 0.0
      %v7049 = vmax.f32 %v6921, 0.0
      %v7050 = vmax.f32 %v6922, 0.0
      %v7051 = vmax.f32 %v6923, 0.0
      %v7052 = vmax.f32 %v6924, 0.0
      %v7053 = vmax.f32 %v6925, 0.0
      %v7054 = vmax.f32 %v6926, 0.0
      %v7055 = vmax.f32 %v6927, 0.0
      %v7056 = vmax.f32 %v6928, 0.0
      %v7057 = vmax.f32 %v6929, 0.0
      %v7058 = vmax.f32 %v6930, 0.0
      %v7059 = vmax.f32 %v6931, 0.0
      %v7060 = vmax.f32 %v6932, 0.0
      %v7061 = vmax.f32 %v6933, 0.0
      %v7062 = vmax.f32 %v6934, 0.0
      %v7063 = vmax.f32 %v6935, 0.0
      %v7064 = vmax.f32 %v6936, 0.0
      %v7065 = vmax.f32 %v6937, 0.0
      %v7066 = vmax.f32 %v6938, 0.0
      %v7067 = vmax.f32 %v6939, 0.0
      %v7068 = vmax.f32 %v6940, 0.0
      %v7069 = vmax.f32 %v6941, 0.0
      %v7070 = vmax.f32 %v6942, 0.0
      %v7071 = vmax.f32 %v6943, 0.0
      %v7072 = vmax.f32 %v6944, 0.0
      %v7073 = vmax.f32 %v6945, 0.0
      %v7074 = vmax.f32 %v6946, 0.0
      %v7075 = vmax.f32 %v6947, 0.0
      %v7076 = vmax.f32 %v6948, 0.0
      %v7077 = vmax.f32 %v6949, 0.0
      %v7078 = vmax.f32 %v6950, 0.0
      %v7079 = vmax.f32 %v6951, 0.0
      %v7080 = vmax.f32 %v6952, 0.0
      %v7081 = vmax.f32 %v6953, 0.0
      %v7082 = vmax.f32 %v6954, 0.0
      %v7083 = vmax.f32 %v6955, 0.0
      %v7084 = vmax.f32 %v6956, 0.0
      %v7085 = vmax.f32 %v6957, 0.0
      %v7086 = vmax.f32 %v6958, 0.0
      %v7087 = vmax.f32 %v6959, 0.0
      %v7088 = vmax.f32 %v6960, 0.0
      %v7089 = vmax.f32 %v6961, 0.0
      %v7090 = vmax.f32 %v6962, 0.0
      %v7091 = vmax.f32 %v6963, 0.0
      %v7092 = vmax.f32 %v6964, 0.0
      %v7093 = vmax.f32 %v6965, 0.0
      %v7094 = vmax.f32 %v6966, 0.0
      %v7095 = vmax.f32 %v6967, 0.0
      %v7096 = vmax.f32 %v6968, 0.0
      %v7097 = vmax.f32 %v6969, 0.0
      %v7098 = vmax.f32 %v6970, 0.0
      %v7099 = vmax.f32 %v6971, 0.0
      %v7100 = vmax.f32 %v6972, 0.0
      %v7101 = vmax.f32 %v6973, 0.0
      %v7102 = vmax.f32 %v6974, 0.0
      %v7103 = vmax.f32 %v6975, 0.0
      %v7104 = vmax.f32 %v6976, 0.0
      %v7105 = vmax.f32 %v6977, 0.0
      %v7106 = vmax.f32 %v6978, 0.0
      %v7107 = vmax.f32 %v6979, 0.0
      %v7108 = vmax.f32 %v6980, 0.0
      %v7109 = vmax.f32 %v6981, 0.0
      %v7110 = vmax.f32 %v6982, 0.0
      %v7111 = vmax.f32 %v6983, 0.0
      %v7112 = vmax.f32 %v6984, 0.0
      %v7113 = vmax.f32 %v6985, 0.0
      %v7114 = vmax.f32 %v6986, 0.0
      %v7115 = vmax.f32 %v6987, 0.0
      %v7116 = vmax.f32 %v6988, 0.0
      %v7117 = vmax.f32 %v6989, 0.0
      %v7118 = vmax.f32 %v6990, 0.0
      %v7119 = vmax.f32 %v6991, 0.0
      %v7120 = vmax.f32 %v6992, 0.0
      %vm7121 = vcmask 130048
      %7122 = vst.msk [vmem:[%s172] sm:$0xff] %vm7121, %v6993
      %7123 = vst.msk [vmem:[%s172 + $0x8] sm:$0xff] %vm7121, %v6994
      %7124 = vst.msk [vmem:[%s172 + $0x10] sm:$0xff] %vm7121, %v6995
      %7125 = vst.msk [vmem:[%s172 + $0x18] sm:$0xff] %vm7121, %v6996
      %7126 = vst.msk [vmem:[%s172 + $0x20] sm:$0xff] %vm7121, %v6997
      %7127 = vst.msk [vmem:[%s172 + $0x28] sm:$0xff] %vm7121, %v6998
      %7128 = vst.msk [vmem:[%s172 + $0x30] sm:$0xff] %vm7121, %v6999
      %7129 = vst.msk [vmem:[%s172 + $0x38] sm:$0xff] %vm7121, %v7000
      %7130 = vst.msk [vmem:[%s172 + $0x40] sm:$0xff] %vm7121, %v7001
      %7131 = vst.msk [vmem:[%s172 + $0x48] sm:$0xff] %vm7121, %v7002
      %7132 = vst.msk [vmem:[%s172 + $0x50] sm:$0xff] %vm7121, %v7003
      %7133 = vst.msk [vmem:[%s172 + $0x58] sm:$0xff] %vm7121, %v7004
      %7134 = vst.msk [vmem:[%s172 + $0x60] sm:$0xff] %vm7121, %v7005
      %7135 = vst.msk [vmem:[%s172 + $0x68] sm:$0xff] %vm7121, %v7006
      %7136 = vst.msk [vmem:[%s172 + $0x70] sm:$0xff] %vm7121, %v7007
      %7137 = vst.msk [vmem:[%s172 + $0x78] sm:$0xff] %vm7121, %v7008
      %7138 = vst.msk [vmem:[%s172 + $0x80] sm:$0xff] %vm7121, %v7009
      %7139 = vst.msk [vmem:[%s172 + $0x88] sm:$0xff] %vm7121, %v7010
      %7140 = vst.msk [vmem:[%s172 + $0x90] sm:$0xff] %vm7121, %v7011
      %7141 = vst.msk [vmem:[%s172 + $0x98] sm:$0xff] %vm7121, %v7012
      %7142 = vst.msk [vmem:[%s172 + $0xa0] sm:$0xff] %vm7121, %v7013
      %7143 = vst.msk [vmem:[%s172 + $0xa8] sm:$0xff] %vm7121, %v7014
      %7144 = vst.msk [vmem:[%s172 + $0xb0] sm:$0xff] %vm7121, %v7015
      %7145 = vst.msk [vmem:[%s172 + $0xb8] sm:$0xff] %vm7121, %v7016
      %7146 = vst.msk [vmem:[%s172 + $0xc0] sm:$0xff] %vm7121, %v7017
      %7147 = vst.msk [vmem:[%s172 + $0xc8] sm:$0xff] %vm7121, %v7018
      %7148 = vst.msk [vmem:[%s172 + $0xd0] sm:$0xff] %vm7121, %v7019
      %7149 = vst.msk [vmem:[%s172 + $0xd8] sm:$0xff] %vm7121, %v7020
      %7150 = vst.msk [vmem:[%s172 + $0xe0] sm:$0xff] %vm7121, %v7021
      %7151 = vst.msk [vmem:[%s172 + $0xe8] sm:$0xff] %vm7121, %v7022
      %7152 = vst.msk [vmem:[%s172 + $0xf0] sm:$0xff] %vm7121, %v7023
      %7153 = vst.msk [vmem:[%s172 + $0xf8] sm:$0xff] %vm7121, %v7024
      %7154 = vst.msk [vmem:[%s172 + $0x100] sm:$0xff] %vm7121, %v7025
      %7155 = vst.msk [vmem:[%s172 + $0x108] sm:$0xff] %vm7121, %v7026
      %7156 = vst.msk [vmem:[%s172 + $0x110] sm:$0xff] %vm7121, %v7027
      %7157 = vst.msk [vmem:[%s172 + $0x118] sm:$0xff] %vm7121, %v7028
      %7158 = vst.msk [vmem:[%s172 + $0x120] sm:$0xff] %vm7121, %v7029
      %7159 = vst.msk [vmem:[%s172 + $0x128] sm:$0xff] %vm7121, %v7030
      %7160 = vst.msk [vmem:[%s172 + $0x130] sm:$0xff] %vm7121, %v7031
      %7161 = vst.msk [vmem:[%s172 + $0x138] sm:$0xff] %vm7121, %v7032
      %7162 = vst.msk [vmem:[%s172 + $0x140] sm:$0xff] %vm7121, %v7033
      %7163 = vst.msk [vmem:[%s172 + $0x148] sm:$0xff] %vm7121, %v7034
      %7164 = vst.msk [vmem:[%s172 + $0x150] sm:$0xff] %vm7121, %v7035
      %7165 = vst.msk [vmem:[%s172 + $0x158] sm:$0xff] %vm7121, %v7036
      %7166 = vst.msk [vmem:[%s172 + $0x160] sm:$0xff] %vm7121, %v7037
      %7167 = vst.msk [vmem:[%s172 + $0x168] sm:$0xff] %vm7121, %v7038
      %7168 = vst.msk [vmem:[%s172 + $0x170] sm:$0xff] %vm7121, %v7039
      %7169 = vst.msk [vmem:[%s172 + $0x178] sm:$0xff] %vm7121, %v7040
      %7170 = vst.msk [vmem:[%s172 + $0x180] sm:$0xff] %vm7121, %v7041
      %7171 = vst.msk [vmem:[%s172 + $0x188] sm:$0xff] %vm7121, %v7042
      %7172 = vst.msk [vmem:[%s172 + $0x190] sm:$0xff] %vm7121, %v7043
      %7173 = vst.msk [vmem:[%s172 + $0x198] sm:$0xff] %vm7121, %v7044
      %7174 = vst.msk [vmem:[%s172 + $0x1a0] sm:$0xff] %vm7121, %v7045
      %7175 = vst.msk [vmem:[%s172 + $0x1a8] sm:$0xff] %vm7121, %v7046
      %7176 = vst.msk [vmem:[%s172 + $0x1b0] sm:$0xff] %vm7121, %v7047
      %7177 = vst.msk [vmem:[%s172 + $0x1b8] sm:$0xff] %vm7121, %v7048
      %7178 = vst.msk [vmem:[%s172 + $0x1c0] sm:$0xff] %vm7121, %v7049
      %7179 = vst.msk [vmem:[%s172 + $0x1c8] sm:$0xff] %vm7121, %v7050
      %7180 = vst.msk [vmem:[%s172 + $0x1d0] sm:$0xff] %vm7121, %v7051
      %7181 = vst.msk [vmem:[%s172 + $0x1d8] sm:$0xff] %vm7121, %v7052
      %7182 = vst.msk [vmem:[%s172 + $0x1e0] sm:$0xff] %vm7121, %v7053
      %7183 = vst.msk [vmem:[%s172 + $0x1e8] sm:$0xff] %vm7121, %v7054
      %7184 = vst.msk [vmem:[%s172 + $0x1f0] sm:$0xff] %vm7121, %v7055
      %7185 = vst.msk [vmem:[%s172 + $0x1f8] sm:$0xff] %vm7121, %v7056
      %7186 = vst.msk [vmem:[%s172 + $0x200] sm:$0xff] %vm7121, %v7057
      %7187 = vst.msk [vmem:[%s172 + $0x208] sm:$0xff] %vm7121, %v7058
      %7188 = vst.msk [vmem:[%s172 + $0x210] sm:$0xff] %vm7121, %v7059
      %7189 = vst.msk [vmem:[%s172 + $0x218] sm:$0xff] %vm7121, %v7060
      %7190 = vst.msk [vmem:[%s172 + $0x220] sm:$0xff] %vm7121, %v7061
      %7191 = vst.msk [vmem:[%s172 + $0x228] sm:$0xff] %vm7121, %v7062
      %7192 = vst.msk [vmem:[%s172 + $0x230] sm:$0xff] %vm7121, %v7063
      %7193 = vst.msk [vmem:[%s172 + $0x238] sm:$0xff] %vm7121, %v7064
      %7194 = vst.msk [vmem:[%s172 + $0x240] sm:$0xff] %vm7121, %v7065
      %7195 = vst.msk [vmem:[%s172 + $0x248] sm:$0xff] %vm7121, %v7066
      %7196 = vst.msk [vmem:[%s172 + $0x250] sm:$0xff] %vm7121, %v7067
      %7197 = vst.msk [vmem:[%s172 + $0x258] sm:$0xff] %vm7121, %v7068
      %7198 = vst.msk [vmem:[%s172 + $0x260] sm:$0xff] %vm7121, %v7069
      %7199 = vst.msk [vmem:[%s172 + $0x268] sm:$0xff] %vm7121, %v7070
      %7200 = vst.msk [vmem:[%s172 + $0x270] sm:$0xff] %vm7121, %v7071
      %7201 = vst.msk [vmem:[%s172 + $0x278] sm:$0xff] %vm7121, %v7072
      %7202 = vst.msk [vmem:[%s172 + $0x280] sm:$0xff] %vm7121, %v7073
      %7203 = vst.msk [vmem:[%s172 + $0x288] sm:$0xff] %vm7121, %v7074
      %7204 = vst.msk [vmem:[%s172 + $0x290] sm:$0xff] %vm7121, %v7075
      %7205 = vst.msk [vmem:[%s172 + $0x298] sm:$0xff] %vm7121, %v7076
      %7206 = vst.msk [vmem:[%s172 + $0x2a0] sm:$0xff] %vm7121, %v7077
      %7207 = vst.msk [vmem:[%s172 + $0x2a8] sm:$0xff] %vm7121, %v7078
      %7208 = vst.msk [vmem:[%s172 + $0x2b0] sm:$0xff] %vm7121, %v7079
      %7209 = vst.msk [vmem:[%s172 + $0x2b8] sm:$0xff] %vm7121, %v7080
      %7210 = vst.msk [vmem:[%s172 + $0x2c0] sm:$0xff] %vm7121, %v7081
      %7211 = vst.msk [vmem:[%s172 + $0x2c8] sm:$0xff] %vm7121, %v7082
      %7212 = vst.msk [vmem:[%s172 + $0x2d0] sm:$0xff] %vm7121, %v7083
      %7213 = vst.msk [vmem:[%s172 + $0x2d8] sm:$0xff] %vm7121, %v7084
      %7214 = vst.msk [vmem:[%s172 + $0x2e0] sm:$0xff] %vm7121, %v7085
      %7215 = vst.msk [vmem:[%s172 + $0x2e8] sm:$0xff] %vm7121, %v7086
      %7216 = vst.msk [vmem:[%s172 + $0x2f0] sm:$0xff] %vm7121, %v7087
      %7217 = vst.msk [vmem:[%s172 + $0x2f8] sm:$0xff] %vm7121, %v7088
      %7218 = vst.msk [vmem:[%s172 + $0x300] sm:$0xff] %vm7121, %v7089
      %7219 = vst.msk [vmem:[%s172 + $0x308] sm:$0xff] %vm7121, %v7090
      %7220 = vst.msk [vmem:[%s172 + $0x310] sm:$0xff] %vm7121, %v7091
      %7221 = vst.msk [vmem:[%s172 + $0x318] sm:$0xff] %vm7121, %v7092
      %7222 = vst.msk [vmem:[%s172 + $0x320] sm:$0xff] %vm7121, %v7093
      %7223 = vst.msk [vmem:[%s172 + $0x328] sm:$0xff] %vm7121, %v7094
      %7224 = vst.msk [vmem:[%s172 + $0x330] sm:$0xff] %vm7121, %v7095
      %7225 = vst.msk [vmem:[%s172 + $0x338] sm:$0xff] %vm7121, %v7096
      %7226 = vst.msk [vmem:[%s172 + $0x340] sm:$0xff] %vm7121, %v7097
      %7227 = vst.msk [vmem:[%s172 + $0x348] sm:$0xff] %vm7121, %v7098
      %7228 = vst.msk [vmem:[%s172 + $0x350] sm:$0xff] %vm7121, %v7099
      %7229 = vst.msk [vmem:[%s172 + $0x358] sm:$0xff] %vm7121, %v7100
      %7230 = vst.msk [vmem:[%s172 + $0x360] sm:$0xff] %vm7121, %v7101
      %7231 = vst.msk [vmem:[%s172 + $0x368] sm:$0xff] %vm7121, %v7102
      %7232 = vst.msk [vmem:[%s172 + $0x370] sm:$0xff] %vm7121, %v7103
      %7233 = vst.msk [vmem:[%s172 + $0x378] sm:$0xff] %vm7121, %v7104
      %7234 = vst.msk [vmem:[%s172 + $0x380] sm:$0xff] %vm7121, %v7105
      %7235 = vst.msk [vmem:[%s172 + $0x388] sm:$0xff] %vm7121, %v7106
      %7236 = vst.msk [vmem:[%s172 + $0x390] sm:$0xff] %vm7121, %v7107
      %7237 = vst.msk [vmem:[%s172 + $0x398] sm:$0xff] %vm7121, %v7108
      %7238 = vst.msk [vmem:[%s172 + $0x3a0] sm:$0xff] %vm7121, %v7109
      %7239 = vst.msk [vmem:[%s172 + $0x3a8] sm:$0xff] %vm7121, %v7110
      %7240 = vst.msk [vmem:[%s172 + $0x3b0] sm:$0xff] %vm7121, %v7111
      %7241 = vst.msk [vmem:[%s172 + $0x3b8] sm:$0xff] %vm7121, %v7112
      %7242 = vst.msk [vmem:[%s172 + $0x3c0] sm:$0xff] %vm7121, %v7113
      %7243 = vst.msk [vmem:[%s172 + $0x3c8] sm:$0xff] %vm7121, %v7114
      %7244 = vst.msk [vmem:[%s172 + $0x3d0] sm:$0xff] %vm7121, %v7115
      %7245 = vst.msk [vmem:[%s172 + $0x3d8] sm:$0xff] %vm7121, %v7116
      %7246 = vst.msk [vmem:[%s172 + $0x3e0] sm:$0xff] %vm7121, %v7117
      %7247 = vst.msk [vmem:[%s172 + $0x3e8] sm:$0xff] %vm7121, %v7118
      %7248 = vst.msk [vmem:[%s172 + $0x3f0] sm:$0xff] %vm7121, %v7119
      %7249 = vst.msk [vmem:[%s172 + $0x3f8] sm:$0xff] %vm7121, %v7120
      %s7250 = smul.u32 128, %s14
      %p7251 = scmp.lt.s32.totalorder %s7250, 255
      %s7252 = scalar_select %p7251, %s7250, 255
      %s7253 = smul.addr %s7252, 8
      %s7254 = scalar_lea.vmem %s3, %s7253
      // Predicated region
      $region33: #{cnn2_forward.3} parent=31 // pred_check
        %p7255 = pneg %p100
      $region34: #{cnn2_forward.3} parent=31 // pred_check_branch
        %7257 = sbr.rel (%p7255) target = $region36
      $region35: #{cnn2_forward.3} parent=31 // pred_region
        %s7258 = smul.u32 128, %s14
      $region36: #{cnn2_forward.3} parent=31 // pred_fallthru
        _
    $region32: #{cnn2_forward.3} parent=5 // pred_fallthru
      _
    %p7259 = scmp.le.s32.totalorder 2, %s9
    // Predicated region
    $region37: #{cnn2_forward.3} parent=5 // pred_check
      %p7260 = pneg %p7259
    $region38: #{cnn2_forward.3} parent=5 // pred_check_branch
      %7262 = sbr.rel (%p7260) target = $region40
    $region39: #{cnn2_forward.3} parent=5 // pred_region
      %s7263 = ssub.s32 %s9, 2
      // Predicated region
      $region41: #{cnn2_forward.3} parent=39 // pred_check
        %p7264 = pneg %p106
      $region42: #{cnn2_forward.3} parent=39 // pred_check_branch
        %7266 = sbr.rel (%p7264) target = $region44
      $region43: #{cnn2_forward.3} parent=39 // pred_region
        %s7267 = smul.u32 128, %s15
        %p7268 = scmp.lt.s32.totalorder %s7267, 255
        %s7269 = scalar_select %p7268, %s7267, 255
        %s7270 = smul.addr %s7269, 8
        %s7271 = scalar_lea.vmem %s3, %s7270
      $region44: #{cnn2_forward.3} parent=39 // pred_fallthru
        _
    $region40: #{cnn2_forward.3} parent=5 // pred_fallthru
      _
  $region6: #{cnn2_forward.3} parent=0 // loop_footer
    %s13 = sadd.s32 1, %s9
  $region7: #{cnn2_forward.3} parent=0 // loop_footer_branch
    %8 = sbr.rel target = $region3
  $region8: #{cnn2_forward.3} parent=0 // loop_exit
    _

// kernel: cnn2_forward.4
$region0: #{cnn2_forward.4}
  #allocation0 [shape = 'u32[]', space=smem, size = 0x4, offset = 0x4, fixed_abs, tag = 'smem constant byte address 0x4 - core index']
  #allocation1 [shape = 'u32[144,128]{1,0:T(1,128)}', space=vmem, size = 0x12000, scoped, tag = 'internal scratch']
  #allocation2 [shape = 'f32[272,64]{1,0:T(8,128)}', space=vmem, size = 0x22000, scoped, tag = 'scratch operand']
  %s0 = inlined_call_operand.vmem [shape: f32[512,64], index: 0, kind: input, shape index: {}]
  %s1 = inlined_call_operand.vmem [shape: f32[4,64,128], index: 1, kind: input, shape index: {}]
  %s2 = inlined_call_operand.vmem [shape: f32[1,32], index: 2, kind: input, shape index: {}]
  %s3 = inlined_call_operand.vmem [shape: f32[512,32], index: 3, kind: output, shape index: {}]
  %s4 = sld [smem:[#allocation0]]
  $region45: #{cnn2_forward.4} parent=0
    _
  %s6 = ssub.s32 1, %s4
  %s7 = scalar_select 0, %s6, %s4
  loop: start=0, step=1, limit=4
  $region2: #{cnn2_forward.4} parent=0 // loop_pre_header
    _
  $region3: #{cnn2_forward.4} parent=0 // loop_header
    %s9 = sphi 0, %s13
    %p10 = scmp.ge.s32.totalorder %s9, 4
    %s19 = sphi 0, %s21
    %s22 = sphi 0, %s19
    %s23 = sphi 0, %s22
    %s39 = sphi 0, %s23
    %s43 = sphi 0, %s43
    %s45 = sphi 0, %s43
    %s46 = sphi 0, %s45
    %s60 = sphi 0, %s46
    %s64 = sphi 0, %s64
    %s66 = sphi 0, %s64
    %s67 = sphi 0, %s66
    %s81 = sphi 0, %s67
    %s87 = sphi 0, %s89
    %s90 = sphi 0, %s87
    %s91 = sphi 0, %s90
    %s107 = sphi 0, %s91
  $region4: #{cnn2_forward.4} parent=0 // loop_header_branch
    %12 = sbr.rel (%p10) target = $region8
  $region5: #{cnn2_forward.4} parent=0 // loop_body
    %s14 = ssub.s32 %s9, 1
    %s15 = ssub.s32 %s9, 2
    %s16 = sadd.s32 %s9, 1
    %s17 = ssub.s32 %s9, %s16
    %p18 = scmp.eq.s32.totalorder %s17, 0
    %s20 = sadd.s32 %s19, 1
    %s21 = scalar_select %p18, %s19, %s20
    %p24 = pneg %p18
    %p25 = scmp.eq.s32.totalorder %s9, 1
    %p26 = por %p24, %p25
    %p27 = scmp.ne.s32.totalorder %s19, %s22
    %p28 = scmp.eq.s32.totalorder %s9, 0
    %p29 = por %p27, %p28
    %p30 = scmp.ne.s32.totalorder %s19, %s22
    %p31 = scmp.eq.s32.totalorder %s14, 1
    %p32 = por %p30, %p31
    %p33 = scmp.ne.s32.totalorder %s22, %s23
    %p34 = scmp.eq.s32.totalorder %s14, 0
    %p35 = por %p33, %p34
    %p36 = scmp.ne.s32.totalorder %s22, %s23
    %p37 = scmp.eq.s32.totalorder %s15, 1
    %p38 = por %p36, %p37
    %p40 = scmp.ne.s32.totalorder %s23, %s39
    %p41 = scmp.eq.s32.totalorder %s15, 0
    %p42 = por %p40, %p41
    %s44 = sadd.s32 %s43, 1
    %p47 = scmp.eq.s32.totalorder %s9, 1
    %p48 = scmp.ne.s32.totalorder %s43, %s45
    %p49 = scmp.eq.s32.totalorder %s9, 0
    %p50 = por %p48, %p49
    %p51 = scmp.ne.s32.totalorder %s43, %s45
    %p52 = scmp.eq.s32.totalorder %s14, 1
    %p53 = por %p51, %p52
    %p54 = scmp.ne.s32.totalorder %s45, %s46
    %p55 = scmp.eq.s32.totalorder %s14, 0
    %p56 = por %p54, %p55
    %p57 = scmp.ne.s32.totalorder %s45, %s46
    %p58 = scmp.eq.s32.totalorder %s15, 1
    %p59 = por %p57, %p58
    %p61 = scmp.ne.s32.totalorder %s46, %s60
    %p62 = scmp.eq.s32.totalorder %s15, 0
    %p63 = por %p61, %p62
    %s65 = sadd.s32 %s64, 1
    %p68 = scmp.eq.s32.totalorder %s9, 1
    %p69 = scmp.ne.s32.totalorder %s64, %s66
    %p70 = scmp.eq.s32.totalorder %s9, 0
    %p71 = por %p69, %p70
    %p72 = scmp.ne.s32.totalorder %s64, %s66
    %p73 = scmp.eq.s32.totalorder %s14, 1
    %p74 = por %p72, %p73
    %p75 = scmp.ne.s32.totalorder %s66, %s67
    %p76 = scmp.eq.s32.totalorder %s14, 0
    %p77 = por %p75, %p76
    %p78 = scmp.ne.s32.totalorder %s66, %s67
    %p79 = scmp.eq.s32.totalorder %s15, 1
    %p80 = por %p78, %p79
    %p82 = scmp.ne.s32.totalorder %s67, %s81
    %p83 = scmp.eq.s32.totalorder %s15, 0
    %p84 = por %p82, %p83
    %s85 = ssub.s32 %s9, %s16
    %p86 = scmp.eq.s32.totalorder %s85, 0
    %s88 = sadd.s32 %s87, 1
    %s89 = scalar_select %p86, %s87, %s88
    %p92 = pneg %p86
    %p93 = scmp.eq.s32.totalorder %s9, 1
    %p94 = por %p92, %p93
    %p95 = scmp.ne.s32.totalorder %s87, %s90
    %p96 = scmp.eq.s32.totalorder %s9, 0
    %p97 = por %p95, %p96
    %p98 = scmp.ne.s32.totalorder %s87, %s90
    %p99 = scmp.eq.s32.totalorder %s14, 1
    %p100 = por %p98, %p99
    %p101 = scmp.ne.s32.totalorder %s90, %s91
    %p102 = scmp.eq.s32.totalorder %s14, 0
    %p103 = por %p101, %p102
    %p104 = scmp.ne.s32.totalorder %s90, %s91
    %p105 = scmp.eq.s32.totalorder %s15, 1
    %p106 = por %p104, %p105
    %p108 = scmp.ne.s32.totalorder %s91, %s107
    %p109 = scmp.eq.s32.totalorder %s15, 0
    %p110 = por %p108, %p109
    %p111 = scmp.le.s32.totalorder 1, %s9
    %p112 = scmp.lt.s32.totalorder %s9, 3
    %p113 = pnand %p111, %p112
    %p114 = pneg %p113
    // Predicated region
    $region9: #{cnn2_forward.4} parent=5 // pred_check
      _
    $region10: #{cnn2_forward.4} parent=5 // pred_check_branch
      %116 = sbr.rel (%p113) target = $region12
    $region11: #{cnn2_forward.4} parent=5 // pred_region
      %s117 = ssub.s32 %s9, 1
      // Predicated region
      $region13: #{cnn2_forward.4} parent=11 // pred_check
        %p118 = pneg %p56
      $region14: #{cnn2_forward.4} parent=11 // pred_check_branch
        %120 = sbr.rel (%p118) target = $region16
      $region15: #{cnn2_forward.4} parent=11 // pred_region
        _
      $region16: #{cnn2_forward.4} parent=11 // pred_fallthru
        _
      // Predicated region
      $region17: #{cnn2_forward.4} parent=11 // pred_check
        %p121 = pneg %p77
      $region18: #{cnn2_forward.4} parent=11 // pred_check_branch
        %123 = sbr.rel (%p121) target = $region20
      $region19: #{cnn2_forward.4} parent=11 // pred_region
        _
      $region20: #{cnn2_forward.4} parent=11 // pred_fallthru
        _
    $region12: #{cnn2_forward.4} parent=5 // pred_fallthru
      _
    %p124 = scmp.lt.s32.totalorder %s9, 2
    // Predicated region
    $region21: #{cnn2_forward.4} parent=5 // pred_check
      %p125 = pneg %p124
    $region22: #{cnn2_forward.4} parent=5 // pred_check_branch
      %127 = sbr.rel (%p125) target = $region24
    $region23: #{cnn2_forward.4} parent=5 // pred_region
      // Predicated region
      $region25: #{cnn2_forward.4} parent=23 // pred_check
        %p128 = pneg %p29
      $region26: #{cnn2_forward.4} parent=23 // pred_check_branch
        %130 = sbr.rel (%p128) target = $region28
      $region27: #{cnn2_forward.4} parent=23 // pred_region
        %s131 = smul.u32 32, %s9
        %p132 = scmp.lt.s32.totalorder %s131, 63
        %s133 = scalar_select %p132, %s131, 63
        %s134 = smul.addr %s133, 8
        %s135 = scalar_lea.vmem %s0, %s134
        %s136 = smul.u32 32, %s9
      $region28: #{cnn2_forward.4} parent=23 // pred_fallthru
        _
    $region24: #{cnn2_forward.4} parent=5 // pred_fallthru
      _
    %p137 = scmp.le.s32.totalorder 1, %s9
    %p138 = scmp.lt.s32.totalorder %s9, 3
    %p139 = pnand %p137, %p138
    %p140 = pneg %p139
    // Predicated region
    $region29: #{cnn2_forward.4} parent=5 // pred_check
      _
    $region30: #{cnn2_forward.4} parent=5 // pred_check_branch
      %142 = sbr.rel (%p139) target = $region32
    $region31: #{cnn2_forward.4} parent=5 // pred_region
      %s143 = ssub.s32 %s9, 1
      %s144 = smul.u32 32, %s14
      %p145 = scmp.lt.s32.totalorder %s144, 63
      %s146 = scalar_select %p145, %s144, 63
      %s147 = smul.addr %s146, 8
      %s148 = scalar_lea.vmem %s0, %s147
      %p149 = pneg %p35
      %p150 = pneg %p32
      %p151 = pneg %p56
      %p152 = pneg %p53
      %p153 = pneg %p77
      %p154 = pneg %p74
      %p155 = pneg %p103
      %p156 = pneg %p100
      %s157 = smul.u32 32, %s14
      %p158 = scmp.lt.s32.totalorder %s157, 63
      %s159 = scalar_select %p158, %s157, 63
      %s160 = smul.addr %s159, 8
      %s161 = scalar_lea.vmem %s3, %s160
      %s162 = smul.u32 32, %s14
      %p163 = scmp.lt.s32.totalorder %s162, 63
      %s164 = scalar_select %p163, %s162, 63
      %s165 = smul.addr %s164, 8
      %s166 = scalar_lea.vmem %s0, %s165
      %s167 = smul.u32 32, %s14
      %s168 = smul.u32 32, %s14
      %p169 = scmp.lt.s32.totalorder %s168, 63
      %s170 = scalar_select %p169, %s168, 63
      %s171 = smul.addr %s170, 8
      %s172 = scalar_lea.vmem %s3, %s171
      %s173 = smul.u32 32, %s14
      %v174 = vld [vmem:[%s166] sm:$0xff]
      %v175 = vld [vmem:[%s166 + $0x8] sm:$0xff]
      %v176 = vld [vmem:[%s166 + $0x10] sm:$0xff]
      %v177 = vld [vmem:[%s166 + $0x18] sm:$0xff]
      %v178 = vld [vmem:[%s166 + $0x20] sm:$0xff]
      %v179 = vld [vmem:[%s166 + $0x28] sm:$0xff]
      %v180 = vld [vmem:[%s166 + $0x30] sm:$0xff]
      %v181 = vld [vmem:[%s166 + $0x38] sm:$0xff]
      %v182 = vld [vmem:[%s166 + $0x40] sm:$0xff]
      %v183 = vld [vmem:[%s166 + $0x48] sm:$0xff]
      %v184 = vld [vmem:[%s166 + $0x50] sm:$0xff]
      %v185 = vld [vmem:[%s166 + $0x58] sm:$0xff]
      %v186 = vld [vmem:[%s166 + $0x60] sm:$0xff]
      %v187 = vld [vmem:[%s166 + $0x68] sm:$0xff]
      %v188 = vld [vmem:[%s166 + $0x70] sm:$0xff]
      %v189 = vld [vmem:[%s166 + $0x78] sm:$0xff]
      %v190 = vld [vmem:[%s166 + $0x80] sm:$0xff]
      %v191 = vld [vmem:[%s166 + $0x88] sm:$0xff]
      %v192 = vld [vmem:[%s166 + $0x90] sm:$0xff]
      %v193 = vld [vmem:[%s166 + $0x98] sm:$0xff]
      %v194 = vld [vmem:[%s166 + $0xa0] sm:$0xff]
      %v195 = vld [vmem:[%s166 + $0xa8] sm:$0xff]
      %v196 = vld [vmem:[%s166 + $0xb0] sm:$0xff]
      %v197 = vld [vmem:[%s166 + $0xb8] sm:$0xff]
      %v198 = vld [vmem:[%s166 + $0xc0] sm:$0xff]
      %v199 = vld [vmem:[%s166 + $0xc8] sm:$0xff]
      %v200 = vld [vmem:[%s166 + $0xd0] sm:$0xff]
      %v201 = vld [vmem:[%s166 + $0xd8] sm:$0xff]
      %v202 = vld [vmem:[%s166 + $0xe0] sm:$0xff]
      %v203 = vld [vmem:[%s166 + $0xe8] sm:$0xff]
      %v204 = vld [vmem:[%s166 + $0xf0] sm:$0xff]
      %v205 = vld [vmem:[%s166 + $0xf8] sm:$0xff]
      %vm206 = vcmask 523264
      %207 = vst.msk [vmem:[#allocation2] sm:$0xff] %vm206, %v174
      %208 = vst.msk [vmem:[#allocation2 + $0x8] sm:$0xff] %vm206, %v175
      %209 = vst.msk [vmem:[#allocation2 + $0x10] sm:$0xff] %vm206, %v176
      %210 = vst.msk [vmem:[#allocation2 + $0x18] sm:$0xff] %vm206, %v177
      %211 = vst.msk [vmem:[#allocation2 + $0x20] sm:$0xff] %vm206, %v178
      %212 = vst.msk [vmem:[#allocation2 + $0x28] sm:$0xff] %vm206, %v179
      %213 = vst.msk [vmem:[#allocation2 + $0x30] sm:$0xff] %vm206, %v180
      %214 = vst.msk [vmem:[#allocation2 + $0x38] sm:$0xff] %vm206, %v181
      %215 = vst.msk [vmem:[#allocation2 + $0x40] sm:$0xff] %vm206, %v182
      %216 = vst.msk [vmem:[#allocation2 + $0x48] sm:$0xff] %vm206, %v183
      %217 = vst.msk [vmem:[#allocation2 + $0x50] sm:$0xff] %vm206, %v184
      %218 = vst.msk [vmem:[#allocation2 + $0x58] sm:$0xff] %vm206, %v185
      %219 = vst.msk [vmem:[#allocation2 + $0x60] sm:$0xff] %vm206, %v186
      %220 = vst.msk [vmem:[#allocation2 + $0x68] sm:$0xff] %vm206, %v187
      %221 = vst.msk [vmem:[#allocation2 + $0x70] sm:$0xff] %vm206, %v188
      %222 = vst.msk [vmem:[#allocation2 + $0x78] sm:$0xff] %vm206, %v189
      %223 = vst.msk [vmem:[#allocation2 + $0x80] sm:$0xff] %vm206, %v190
      %224 = vst.msk [vmem:[#allocation2 + $0x88] sm:$0xff] %vm206, %v191
      %225 = vst.msk [vmem:[#allocation2 + $0x90] sm:$0xff] %vm206, %v192
      %226 = vst.msk [vmem:[#allocation2 + $0x98] sm:$0xff] %vm206, %v193
      %227 = vst.msk [vmem:[#allocation2 + $0xa0] sm:$0xff] %vm206, %v194
      %228 = vst.msk [vmem:[#allocation2 + $0xa8] sm:$0xff] %vm206, %v195
      %229 = vst.msk [vmem:[#allocation2 + $0xb0] sm:$0xff] %vm206, %v196
      %230 = vst.msk [vmem:[#allocation2 + $0xb8] sm:$0xff] %vm206, %v197
      %231 = vst.msk [vmem:[#allocation2 + $0xc0] sm:$0xff] %vm206, %v198
      %232 = vst.msk [vmem:[#allocation2 + $0xc8] sm:$0xff] %vm206, %v199
      %233 = vst.msk [vmem:[#allocation2 + $0xd0] sm:$0xff] %vm206, %v200
      %234 = vst.msk [vmem:[#allocation2 + $0xd8] sm:$0xff] %vm206, %v201
      %235 = vst.msk [vmem:[#allocation2 + $0xe0] sm:$0xff] %vm206, %v202
      %236 = vst.msk [vmem:[#allocation2 + $0xe8] sm:$0xff] %vm206, %v203
      %237 = vst.msk [vmem:[#allocation2 + $0xf0] sm:$0xff] %vm206, %v204
      %238 = vst.msk [vmem:[#allocation2 + $0xf8] sm:$0xff] %vm206, %v205
      %239 = vst.msk [vmem:[#allocation2 + $0x100] sm:$0xff] %vm206, 0.0
      %240 = vst.msk [vmem:[#allocation2 + $0x108] sm:$0xff] %vm206, 0.0
      %v241 = vld [vmem:[#allocation2] sm:$0xff]
      %v242 = vld [vmem:[#allocation2 + $0x8] sm:$0xff]
      %v243 = vld [vmem:[#allocation2 + $0x10] sm:$0xff]
      %v244 = vld [vmem:[#allocation2 + $0x18] sm:$0xff]
      %v245 = vld [vmem:[#allocation2 + $0x20] sm:$0xff]
      %v246 = vld [vmem:[#allocation2 + $0x28] sm:$0xff]
      %v247 = vld [vmem:[#allocation2 + $0x30] sm:$0xff]
      %v248 = vld [vmem:[#allocation2 + $0x38] sm:$0xff]
      %v249 = vld [vmem:[#allocation2 + $0x40] sm:$0xff]
      %v250 = vld [vmem:[#allocation2 + $0x48] sm:$0xff]
      %v251 = vld [vmem:[#allocation2 + $0x50] sm:$0xff]
      %v252 = vld [vmem:[#allocation2 + $0x58] sm:$0xff]
      %v253 = vld [vmem:[#allocation2 + $0x60] sm:$0xff]
      %v254 = vld [vmem:[#allocation2 + $0x68] sm:$0xff]
      %v255 = vld [vmem:[#allocation2 + $0x70] sm:$0xff]
      %v256 = vld [vmem:[#allocation2 + $0x78] sm:$0xff]
      %v257 = vld [vmem:[#allocation2 + $0x80] sm:$0xff]
      %v258 = vld [vmem:[#allocation2 + $0x88] sm:$0xff]
      %v259 = vld [vmem:[#allocation2 + $0x90] sm:$0xff]
      %v260 = vld [vmem:[#allocation2 + $0x98] sm:$0xff]
      %v261 = vld [vmem:[#allocation2 + $0xa0] sm:$0xff]
      %v262 = vld [vmem:[#allocation2 + $0xa8] sm:$0xff]
      %v263 = vld [vmem:[#allocation2 + $0xb0] sm:$0xff]
      %v264 = vld [vmem:[#allocation2 + $0xb8] sm:$0xff]
      %v265 = vld [vmem:[#allocation2 + $0xc0] sm:$0xff]
      %v266 = vld [vmem:[#allocation2 + $0xc8] sm:$0xff]
      %v267 = vld [vmem:[#allocation2 + $0xd0] sm:$0xff]
      %v268 = vld [vmem:[#allocation2 + $0xd8] sm:$0xff]
      %v269 = vld [vmem:[#allocation2 + $0xe0] sm:$0xff]
      %v270 = vld [vmem:[#allocation2 + $0xe8] sm:$0xff]
      %v271 = vld [vmem:[#allocation2 + $0xf0] sm:$0xff]
      %v272 = vld [vmem:[#allocation2 + $0xf8] sm:$0xff]
      %v273 = vld [vmem:[%s1] sm:$0xff]
      %v274 = vld [vmem:[%s1 + $0x8] sm:$0xff]
      %v275 = vld [vmem:[%s1 + $0x10] sm:$0xff]
      %v276 = vld [vmem:[%s1 + $0x18] sm:$0xff]
      %v277 = vld [vmem:[%s1 + $0x20] sm:$0xff]
      %v278 = vld [vmem:[%s1 + $0x28] sm:$0xff]
      %v279 = vld [vmem:[%s1 + $0x30] sm:$0xff]
      %v280 = vld [vmem:[%s1 + $0x38] sm:$0xff]
      %v281 = vld [vmem:[#allocation2 + $0x1] sm:$0xff]
      %v282 = vld [vmem:[#allocation2 + $0x9] sm:$0xff]
      %v283 = vld [vmem:[#allocation2 + $0x11] sm:$0xff]
      %v284 = vld [vmem:[#allocation2 + $0x19] sm:$0xff]
      %v285 = vld [vmem:[#allocation2 + $0x21] sm:$0xff]
      %v286 = vld [vmem:[#allocation2 + $0x29] sm:$0xff]
      %v287 = vld [vmem:[#allocation2 + $0x31] sm:$0xff]
      %v288 = vld [vmem:[#allocation2 + $0x39] sm:$0xff]
      %v289 = vld [vmem:[#allocation2 + $0x41] sm:$0xff]
      %v290 = vld [vmem:[#allocation2 + $0x49] sm:$0xff]
      %v291 = vld [vmem:[#allocation2 + $0x51] sm:$0xff]
      %v292 = vld [vmem:[#allocation2 + $0x59] sm:$0xff]
      %v293 = vld [vmem:[#allocation2 + $0x61] sm:$0xff]
      %v294 = vld [vmem:[#allocation2 + $0x69] sm:$0xff]
      %v295 = vld [vmem:[#allocation2 + $0x71] sm:$0xff]
      %v296 = vld [vmem:[#allocation2 + $0x79] sm:$0xff]
      %v297 = vld [vmem:[#allocation2 + $0x81] sm:$0xff]
      %v298 = vld [vmem:[#allocation2 + $0x89] sm:$0xff]
      %v299 = vld [vmem:[#allocation2 + $0x91] sm:$0xff]
      %v300 = vld [vmem:[#allocation2 + $0x99] sm:$0xff]
      %v301 = vld [vmem:[#allocation2 + $0xa1] sm:$0xff]
      %v302 = vld [vmem:[#allocation2 + $0xa9] sm:$0xff]
      %v303 = vld [vmem:[#allocation2 + $0xb1] sm:$0xff]
      %v304 = vld [vmem:[#allocation2 + $0xb9] sm:$0xff]
      %v305 = vld [vmem:[#allocation2 + $0xc1] sm:$0xff]
      %v306 = vld [vmem:[#allocation2 + $0xc9] sm:$0xff]
      %v307 = vld [vmem:[#allocation2 + $0xd1] sm:$0xff]
      %v308 = vld [vmem:[#allocation2 + $0xd9] sm:$0xff]
      %v309 = vld [vmem:[#allocation2 + $0xe1] sm:$0xff]
      %v310 = vld [vmem:[#allocation2 + $0xe9] sm:$0xff]
      %v311 = vld [vmem:[#allocation2 + $0xf1] sm:$0xff]
      %v312 = vld [vmem:[#allocation2 + $0xf9] sm:$0xff]
      %s313 = scalar_lea.vmem %s1, 64
      %v314 = vld [vmem:[%s313] sm:$0xff]
      %v315 = vld [vmem:[%s313 + $0x8] sm:$0xff]
      %v316 = vld [vmem:[%s313 + $0x10] sm:$0xff]
      %v317 = vld [vmem:[%s313 + $0x18] sm:$0xff]
      %v318 = vld [vmem:[%s313 + $0x20] sm:$0xff]
      %v319 = vld [vmem:[%s313 + $0x28] sm:$0xff]
      %v320 = vld [vmem:[%s313 + $0x30] sm:$0xff]
      %v321 = vld [vmem:[%s313 + $0x38] sm:$0xff]
      %v323 = vsel %vm206, %v281, 0
      %v326 = vsel %vm206, %v282, 0
      %v329 = vsel %vm206, %v283, 0
      %v332 = vsel %vm206, %v284, 0
      %v335 = vsel %vm206, %v285, 0
      %v338 = vsel %vm206, %v286, 0
      %v341 = vsel %vm206, %v287, 0
      %v344 = vsel %vm206, %v288, 0
      %v347 = vsel %vm206, %v289, 0
      %v350 = vsel %vm206, %v290, 0
      %v353 = vsel %vm206, %v291, 0
      %v356 = vsel %vm206, %v292, 0
      %v359 = vsel %vm206, %v293, 0
      %v362 = vsel %vm206, %v294, 0
      %v365 = vsel %vm206, %v295, 0
      %v368 = vsel %vm206, %v296, 0
      %v371 = vsel %vm206, %v297, 0
      %v374 = vsel %vm206, %v298, 0
      %v377 = vsel %vm206, %v299, 0
      %v380 = vsel %vm206, %v300, 0
      %v383 = vsel %vm206, %v301, 0
      %v386 = vsel %vm206, %v302, 0
      %v389 = vsel %vm206, %v303, 0
      %v392 = vsel %vm206, %v304, 0
      %v395 = vsel %vm206, %v305, 0
      %v398 = vsel %vm206, %v306, 0
      %v401 = vsel %vm206, %v307, 0
      %v404 = vsel %vm206, %v308, 0
      %v407 = vsel %vm206, %v309, 0
      %v410 = vsel %vm206, %v310, 0
      %v413 = vsel %vm206, %v311, 0
      %v416 = vsel %vm206, %v312, 0
      %418 = vmatprep.subr.mxu0 0.0
      %419 = vmatpush1.msra.mxu0 %v314
      %420 = vmatprep.subr.mxu0 0.0
      %421 = vmatpush1.msra.mxu0 %v315
      %422 = vmatprep.subr.mxu0 0.0
      %423 = vmatpush1.msra.mxu0 %v316
      %424 = vmatprep.subr.mxu0 0.0
      %425 = vmatpush1.msra.mxu0 %v317
      %426 = vmatprep.subr.mxu0 0.0
      %427 = vmatpush1.msra.mxu0 %v318
      %428 = vmatprep.subr.mxu0 0.0
      %429 = vmatpush1.msra.mxu0 %v319
      %430 = vmatprep.subr.mxu0 0.0
      %431 = vmatpush1.msra.mxu0 %v320
      %432 = vmatprep.subr.mxu0 0.0
      %433 = vmatpush1.msra.mxu0 %v321
      %434 = vmatprep.subr.mxu0 0.0
      %435 = vmatpush1.msra.mxu0 0.0
      %436 = vmatprep.subr.mxu0 0.0
      %437 = vmatpush1.msra.mxu0 0.0
      %438 = vmatprep.subr.mxu0 0.0
      %439 = vmatpush1.msra.mxu0 0.0
      %440 = vmatprep.subr.mxu0 0.0
      %441 = vmatpush1.msra.mxu0 0.0
      %442 = vmatprep.subr.mxu0 0.0
      %443 = vmatpush1.msra.mxu0 0.0
      %444 = vmatprep.subr.mxu0 0.0
      %445 = vmatpush1.msra.mxu0 0.0
      %446 = vmatprep.subr.mxu0 0.0
      %447 = vmatpush1.msra.mxu0 0.0
      %448 = vmatprep.subr.mxu0 0.0
      %449 = vmatpush1.msra.mxu0 0.0
      %450 = vmatprep.subr.mxu0 0.0
      %451 = vmatpush1.msra.mxu0 0.0
      %452 = vmatprep.subr.mxu0 0.0
      %453 = vmatpush1.msra.mxu0 0.0
      %454 = vmatprep.subr.mxu0 0.0
      %455 = vmatpush1.msra.mxu0 0.0
      %456 = vmatprep.subr.mxu0 0.0
      %457 = vmatpush1.msra.mxu0 0.0
      %458 = vmatprep.subr.mxu0 0.0
      %459 = vmatpush1.msra.mxu0 0.0
      %460 = vmatprep.subr.mxu0 0.0
      %461 = vmatpush1.msra.mxu0 0.0
      %462 = vmatprep.subr.mxu0 0.0
      %463 = vmatpush1.msra.mxu0 0.0
      %464 = vmatprep.subr.mxu0 0.0
      %465 = vmatpush1.msra.mxu0 0.0
      %466 = vmatprep.subr.mxu0 0.0
      %467 = vmatpush1.msra.mxu0 0.0
      %468 = vmatprep.subr.mxu0 0.0
      %469 = vmatpush1.msra.mxu0 0.0
      %470 = vmatprep.subr.mxu0 0.0
      %471 = vmatpush1.msra.mxu0 0.0
      %472 = vmatprep.subr.mxu0 0.0
      %473 = vmatpush1.msra.mxu0 0.0
      %474 = vmatprep.subr.mxu0 0.0
      %475 = vmatpush1.msra.mxu0 0.0
      %476 = vmatprep.subr.mxu0 0.0
      %477 = vmatpush1.msra.mxu0 0.0
      %478 = vmatprep.subr.mxu0 0.0
      %479 = vmatpush1.msra.mxu0 0.0
      %480 = vmatprep.subr.mxu0 0.0
      %481 = vmatpush1.msra.mxu0 0.0
      %482 = vmatprep.mubr.f32.mxu0 0.0
      %483 = vmatmul.mubr.f32.gmra.mrb[0].mxu0 %v323
      %v484 = vpop.f32.mrb[0].mxu0
      %v485 = vadd.f32 0.0, %v484
      %v486 = vpop.f32.mrb[0].mxu0
      %487 = vmatprep.mubr.f32.mxu0 0.0
      %488 = vmatmul.mubr.f32.gmra.mrb[0].mxu0 %v326
      %v489 = vpop.f32.mrb[0].mxu0
      %v490 = vadd.f32 0.0, %v489
      %v491 = vpop.f32.mrb[0].mxu0
      %492 = vmatprep.mubr.f32.mxu0 0.0
      %493 = vmatmul.mubr.f32.gmra.mrb[0].mxu0 %v329
      %v494 = vpop.f32.mrb[0].mxu0
      %v495 = vadd.f32 0.0, %v494
      %v496 = vpop.f32.mrb[0].mxu0
      %497 = vmatprep.mubr.f32.mxu0 0.0
      %498 = vmatmul.mubr.f32.gmra.mrb[0].mxu0 %v332
      %v499 = vpop.f32.mrb[0].mxu0
      %v500 = vadd.f32 0.0, %v499
      %v501 = vpop.f32.mrb[0].mxu0
      %502 = vmatprep.mubr.f32.mxu0 0.0
      %503 = vmatmul.mubr.f32.gmra.mrb[0].mxu0 %v335
      %v504 = vpop.f32.mrb[0].mxu0
      %v505 = vadd.f32 0.0, %v504
      %v506 = vpop.f32.mrb[0].mxu0
      %507 = vmatprep.mubr.f32.mxu0 0.0
      %508 = vmatmul.mubr.f32.gmra.mrb[0].mxu0 %v338
      %v509 = vpop.f32.mrb[0].mxu0
      %v510 = vadd.f32 0.0, %v509
      %v511 = vpop.f32.mrb[0].mxu0
      %512 = vmatprep.mubr.f32.mxu0 0.0
      %513 = vmatmul.mubr.f32.gmra.mrb[0].mxu0 %v341
      %v514 = vpop.f32.mrb[0].mxu0
      %v515 = vadd.f32 0.0, %v514
      %v516 = vpop.f32.mrb[0].mxu0
      %517 = vmatprep.mubr.f32.mxu0 0.0
      %518 = vmatmul.mubr.f32.gmra.mrb[0].mxu0 %v344
      %v519 = vpop.f32.mrb[0].mxu0
      %v520 = vadd.f32 0.0, %v519
      %v521 = vpop.f32.mrb[0].mxu0
      %522 = vmatprep.mubr.f32.mxu0 0.0
      %523 = vmatmul.mubr.f32.gmra.mrb[0].mxu0 %v347
      %v524 = vpop.f32.mrb[0].mxu0
      %v525 = vadd.f32 0.0, %v524
      %v526 = vpop.f32.mrb[0].mxu0
      %527 = vmatprep.mubr.f32.mxu0 0.0
      %528 = vmatmul.mubr.f32.gmra.mrb[0].mxu0 %v350
      %v529 = vpop.f32.mrb[0].mxu0
      %v530 = vadd.f32 0.0, %v529
      %v531 = vpop.f32.mrb[0].mxu0
      %532 = vmatprep.mubr.f32.mxu0 0.0
      %533 = vmatmul.mubr.f32.gmra.mrb[0].mxu0 %v353
      %v534 = vpop.f32.mrb[0].mxu0
      %v535 = vadd.f32 0.0, %v534
      %v536 = vpop.f32.mrb[0].mxu0
      %537 = vmatprep.mubr.f32.mxu0 0.0
      %538 = vmatmul.mubr.f32.gmra.mrb[0].mxu0 %v356
      %v539 = vpop.f32.mrb[0].mxu0
      %v540 = vadd.f32 0.0, %v539
      %v541 = vpop.f32.mrb[0].mxu0
      %542 = vmatprep.mubr.f32.mxu0 0.0
      %543 = vmatmul.mubr.f32.gmra.mrb[0].mxu0 %v359
      %v544 = vpop.f32.mrb[0].mxu0
      %v545 = vadd.f32 0.0, %v544
      %v546 = vpop.f32.mrb[0].mxu0
      %547 = vmatprep.mubr.f32.mxu0 0.0
      %548 = vmatmul.mubr.f32.gmra.mrb[0].mxu0 %v362
      %v549 = vpop.f32.mrb[0].mxu0
      %v550 = vadd.f32 0.0, %v549
      %v551 = vpop.f32.mrb[0].mxu0
      %552 = vmatprep.mubr.f32.mxu0 0.0
      %553 = vmatmul.mubr.f32.gmra.mrb[0].mxu0 %v365
      %v554 = vpop.f32.mrb[0].mxu0
      %v555 = vadd.f32 0.0, %v554
      %v556 = vpop.f32.mrb[0].mxu0
      %557 = vmatprep.mubr.f32.mxu0 0.0
      %558 = vmatmul.mubr.f32.gmra.mrb[0].mxu0 %v368
      %v559 = vpop.f32.mrb[0].mxu0
      %v560 = vadd.f32 0.0, %v559
      %v561 = vpop.f32.mrb[0].mxu0
      %562 = vmatprep.mubr.f32.mxu0 0.0
      %563 = vmatmul.mubr.f32.gmra.mrb[0].mxu0 %v371
      %v564 = vpop.f32.mrb[0].mxu0
      %v565 = vadd.f32 0.0, %v564
      %v566 = vpop.f32.mrb[0].mxu0
      %567 = vmatprep.mubr.f32.mxu0 0.0
      %568 = vmatmul.mubr.f32.gmra.mrb[0].mxu0 %v374
      %v569 = vpop.f32.mrb[0].mxu0
      %v570 = vadd.f32 0.0, %v569
      %v571 = vpop.f32.mrb[0].mxu0
      %572 = vmatprep.mubr.f32.mxu0 0.0
      %573 = vmatmul.mubr.f32.gmra.mrb[0].mxu0 %v377
      %v574 = vpop.f32.mrb[0].mxu0
      %v575 = vadd.f32 0.0, %v574
      %v576 = vpop.f32.mrb[0].mxu0
      %577 = vmatprep.mubr.f32.mxu0 0.0
      %578 = vmatmul.mubr.f32.gmra.mrb[0].mxu0 %v380
      %v579 = vpop.f32.mrb[0].mxu0
      %v580 = vadd.f32 0.0, %v579
      %v581 = vpop.f32.mrb[0].mxu0
      %582 = vmatprep.mubr.f32.mxu0 0.0
      %583 = vmatmul.mubr.f32.gmra.mrb[0].mxu0 %v383
      %v584 = vpop.f32.mrb[0].mxu0
      %v585 = vadd.f32 0.0, %v584
      %v586 = vpop.f32.mrb[0].mxu0
      %587 = vmatprep.mubr.f32.mxu0 0.0
      %588 = vmatmul.mubr.f32.gmra.mrb[0].mxu0 %v386
      %v589 = vpop.f32.mrb[0].mxu0
      %v590 = vadd.f32 0.0, %v589
      %v591 = vpop.f32.mrb[0].mxu0
      %592 = vmatprep.mubr.f32.mxu0 0.0
      %593 = vmatmul.mubr.f32.gmra.mrb[0].mxu0 %v389
      %v594 = vpop.f32.mrb[0].mxu0
      %v595 = vadd.f32 0.0, %v594
      %v596 = vpop.f32.mrb[0].mxu0
      %597 = vmatprep.mubr.f32.mxu0 0.0
      %598 = vmatmul.mubr.f32.gmra.mrb[0].mxu0 %v392
      %v599 = vpop.f32.mrb[0].mxu0
      %v600 = vadd.f32 0.0, %v599
      %v601 = vpop.f32.mrb[0].mxu0
      %602 = vmatprep.mubr.f32.mxu0 0.0
      %603 = vmatmul.mubr.f32.gmra.mrb[0].mxu0 %v395
      %v604 = vpop.f32.mrb[0].mxu0
      %v605 = vadd.f32 0.0, %v604
      %v606 = vpop.f32.mrb[0].mxu0
      %607 = vmatprep.mubr.f32.mxu0 0.0
      %608 = vmatmul.mubr.f32.gmra.mrb[0].mxu0 %v398
      %v609 = vpop.f32.mrb[0].mxu0
      %v610 = vadd.f32 0.0, %v609
      %v611 = vpop.f32.mrb[0].mxu0
      %612 = vmatprep.mubr.f32.mxu0 0.0
      %613 = vmatmul.mubr.f32.gmra.mrb[0].mxu0 %v401
      %v614 = vpop.f32.mrb[0].mxu0
      %v615 = vadd.f32 0.0, %v614
      %v616 = vpop.f32.mrb[0].mxu0
      %617 = vmatprep.mubr.f32.mxu0 0.0
      %618 = vmatmul.mubr.f32.gmra.mrb[0].mxu0 %v404
      %v619 = vpop.f32.mrb[0].mxu0
      %v620 = vadd.f32 0.0, %v619
      %v621 = vpop.f32.mrb[0].mxu0
      %622 = vmatprep.mubr.f32.mxu0 0.0
      %623 = vmatmul.mubr.f32.gmra.mrb[0].mxu0 %v407
      %v624 = vpop.f32.mrb[0].mxu0
      %v625 = vadd.f32 0.0, %v624
      %v626 = vpop.f32.mrb[0].mxu0
      %627 = vmatprep.mubr.f32.mxu0 0.0
      %628 = vmatmul.mubr.f32.gmra.mrb[0].mxu0 %v410
      %v629 = vpop.f32.mrb[0].mxu0
      %v630 = vadd.f32 0.0, %v629
      %v631 = vpop.f32.mrb[0].mxu0
      %632 = vmatprep.mubr.f32.mxu0 0.0
      %633 = vmatmul.mubr.f32.gmra.mrb[0].mxu0 %v413
      %v634 = vpop.f32.mrb[0].mxu0
      %v635 = vadd.f32 0.0, %v634
      %v636 = vpop.f32.mrb[0].mxu0
      %637 = vmatprep.mubr.f32.mxu0 0.0
      %638 = vmatmul.mubr.f32.gmra.mrb[0].mxu0 %v416
      %v639 = vpop.f32.mrb[0].mxu0
      %v640 = vadd.f32 0.0, %v639
      %v641 = vpop.f32.mrb[0].mxu0
      %642 = vdwg.mxu0
      %v644 = vsel %vm206, %v241, 0
      %v647 = vsel %vm206, %v242, 0
      %v650 = vsel %vm206, %v243, 0
      %v653 = vsel %vm206, %v244, 0
      %v656 = vsel %vm206, %v245, 0
      %v659 = vsel %vm206, %v246, 0
      %v662 = vsel %vm206, %v247, 0
      %v665 = vsel %vm206, %v248, 0
      %v668 = vsel %vm206, %v249, 0
      %v671 = vsel %vm206, %v250, 0
      %v674 = vsel %vm206, %v251, 0
      %v677 = vsel %vm206, %v252, 0
      %v680 = vsel %vm206, %v253, 0
      %v683 = vsel %vm206, %v254, 0
      %v686 = vsel %vm206, %v255, 0
      %v689 = vsel %vm206, %v256, 0
      %v692 = vsel %vm206, %v257, 0
      %v695 = vsel %vm206, %v258, 0
      %v698 = vsel %vm206, %v259, 0
      %v701 = vsel %vm206, %v260, 0
      %v704 = vsel %vm206, %v261, 0
      %v707 = vsel %vm206, %v262, 0
      %v710 = vsel %vm206, %v263, 0
      %v713 = vsel %vm206, %v264, 0
      %v716 = vsel %vm206, %v265, 0
      %v719 = vsel %vm206, %v266, 0
      %v722 = vsel %vm206, %v267, 0
      %v725 = vsel %vm206, %v268, 0
      %v728 = vsel %vm206, %v269, 0
      %v731 = vsel %vm206, %v270, 0
      %v734 = vsel %vm206, %v271, 0
      %v737 = vsel %vm206, %v272, 0
      %739 = vmatprep.subr.mxu0 0.0
      %740 = vmatpush1.msra.mxu0 %v273
      %741 = vmatprep.subr.mxu0 0.0
      %742 = vmatpush1.msra.mxu0 %v274
      %743 = vmatprep.subr.mxu0 0.0
      %744 = vmatpush1.msra.mxu0 %v275
      %745 = vmatprep.subr.mxu0 0.0
      %746 = vmatpush1.msra.mxu0 %v276
      %747 = vmatprep.subr.mxu0 0.0
      %748 = vmatpush1.msra.mxu0 %v277
      %749 = vmatprep.subr.mxu0 0.0
      %750 = vmatpush1.msra.mxu0 %v278
      %751 = vmatprep.subr.mxu0 0.0
      %752 = vmatpush1.msra.mxu0 %v279
      %753 = vmatprep.subr.mxu0 0.0
      %754 = vmatpush1.msra.mxu0 %v280
      %755 = vmatprep.subr.mxu0 0.0
      %756 = vmatpush1.msra.mxu0 0.0
      %757 = vmatprep.subr.mxu0 0.0
      %758 = vmatpush1.msra.mxu0 0.0
      %759 = vmatprep.subr.mxu0 0.0
      %760 = vmatpush1.msra.mxu0 0.0
      %761 = vmatprep.subr.mxu0 0.0
      %762 = vmatpush1.msra.mxu0 0.0
      %763 = vmatprep.subr.mxu0 0.0
      %764 = vmatpush1.msra.mxu0 0.0
      %765 = vmatprep.subr.mxu0 0.0
      %766 = vmatpush1.msra.mxu0 0.0
      %767 = vmatprep.subr.mxu0 0.0
      %768 = vmatpush1.msra.mxu0 0.0
      %769 = vmatprep.subr.mxu0 0.0
      %770 = vmatpush1.msra.mxu0 0.0
      %771 = vmatprep.subr.mxu0 0.0
      %772 = vmatpush1.msra.mxu0 0.0
      %773 = vmatprep.subr.mxu0 0.0
      %774 = vmatpush1.msra.mxu0 0.0
      %775 = vmatprep.subr.mxu0 0.0
      %776 = vmatpush1.msra.mxu0 0.0
      %777 = vmatprep.subr.mxu0 0.0
      %778 = vmatpush1.msra.mxu0 0.0
      %779 = vmatprep.subr.mxu0 0.0
      %780 = vmatpush1.msra.mxu0 0.0
      %781 = vmatprep.subr.mxu0 0.0
      %782 = vmatpush1.msra.mxu0 0.0
      %783 = vmatprep.subr.mxu0 0.0
      %784 = vmatpush1.msra.mxu0 0.0
      %785 = vmatprep.subr.mxu0 0.0
      %786 = vmatpush1.msra.mxu0 0.0
      %787 = vmatprep.subr.mxu0 0.0
      %788 = vmatpush1.msra.mxu0 0.0
      %789 = vmatprep.subr.mxu0 0.0
      %790 = vmatpush1.msra.mxu0 0.0
      %791 = vmatprep.subr.mxu0 0.0
      %792 = vmatpush1.msra.mxu0 0.0
      %793 = vmatprep.subr.mxu0 0.0
      %794 = vmatpush1.msra.mxu0 0.0
      %795 = vmatprep.subr.mxu0 0.0
      %796 = vmatpush1.msra.mxu0 0.0
      %797 = vmatprep.subr.mxu0 0.0
      %798 = vmatpush1.msra.mxu0 0.0
      %799 = vmatprep.subr.mxu0 0.0
      %800 = vmatpush1.msra.mxu0 0.0
      %801 = vmatprep.subr.mxu0 0.0
      %802 = vmatpush1.msra.mxu0 0.0
      %803 = vmatprep.mubr.f32.mxu0 0.0
      %804 = vmatmul.mubr.f32.gmra.mrb[0].mxu0 %v644
      %v805 = vpop.f32.mrb[0].mxu0
      %v806 = vadd.f32 %v485, %v805
      %v807 = vpop.f32.mrb[0].mxu0
      %808 = vmatprep.mubr.f32.mxu0 0.0
      %809 = vmatmul.mubr.f32.gmra.mrb[0].mxu0 %v647
      %v810 = vpop.f32.mrb[0].mxu0
      %v811 = vadd.f32 %v490, %v810
      %v812 = vpop.f32.mrb[0].mxu0
      %813 = vmatprep.mubr.f32.mxu0 0.0
      %814 = vmatmul.mubr.f32.gmra.mrb[0].mxu0 %v650
      %v815 = vpop.f32.mrb[0].mxu0
      %v816 = vadd.f32 %v495, %v815
      %v817 = vpop.f32.mrb[0].mxu0
      %818 = vmatprep.mubr.f32.mxu0 0.0
      %819 = vmatmul.mubr.f32.gmra.mrb[0].mxu0 %v653
      %v820 = vpop.f32.mrb[0].mxu0
      %v821 = vadd.f32 %v500, %v820
      %v822 = vpop.f32.mrb[0].mxu0
      %823 = vmatprep.mubr.f32.mxu0 0.0
      %824 = vmatmul.mubr.f32.gmra.mrb[0].mxu0 %v656
      %v825 = vpop.f32.mrb[0].mxu0
      %v826 = vadd.f32 %v505, %v825
      %v827 = vpop.f32.mrb[0].mxu0
      %828 = vmatprep.mubr.f32.mxu0 0.0
      %829 = vmatmul.mubr.f32.gmra.mrb[0].mxu0 %v659
      %v830 = vpop.f32.mrb[0].mxu0
      %v831 = vadd.f32 %v510, %v830
      %v832 = vpop.f32.mrb[0].mxu0
      %833 = vmatprep.mubr.f32.mxu0 0.0
      %834 = vmatmul.mubr.f32.gmra.mrb[0].mxu0 %v662
      %v835 = vpop.f32.mrb[0].mxu0
      %v836 = vadd.f32 %v515, %v835
      %v837 = vpop.f32.mrb[0].mxu0
      %838 = vmatprep.mubr.f32.mxu0 0.0
      %839 = vmatmul.mubr.f32.gmra.mrb[0].mxu0 %v665
      %v840 = vpop.f32.mrb[0].mxu0
      %v841 = vadd.f32 %v520, %v840
      %v842 = vpop.f32.mrb[0].mxu0
      %843 = vmatprep.mubr.f32.mxu0 0.0
      %844 = vmatmul.mubr.f32.gmra.mrb[0].mxu0 %v668
      %v845 = vpop.f32.mrb[0].mxu0
      %v846 = vadd.f32 %v525, %v845
      %v847 = vpop.f32.mrb[0].mxu0
      %848 = vmatprep.mubr.f32.mxu0 0.0
      %849 = vmatmul.mubr.f32.gmra.mrb[0].mxu0 %v671
      %v850 = vpop.f32.mrb[0].mxu0
      %v851 = vadd.f32 %v530, %v850
      %v852 = vpop.f32.mrb[0].mxu0
      %853 = vmatprep.mubr.f32.mxu0 0.0
      %854 = vmatmul.mubr.f32.gmra.mrb[0].mxu0 %v674
      %v855 = vpop.f32.mrb[0].mxu0
      %v856 = vadd.f32 %v535, %v855
      %v857 = vpop.f32.mrb[0].mxu0
      %858 = vmatprep.mubr.f32.mxu0 0.0
      %859 = vmatmul.mubr.f32.gmra.mrb[0].mxu0 %v677
      %v860 = vpop.f32.mrb[0].mxu0
      %v861 = vadd.f32 %v540, %v860
      %v862 = vpop.f32.mrb[0].mxu0
      %863 = vmatprep.mubr.f32.mxu0 0.0
      %864 = vmatmul.mubr.f32.gmra.mrb[0].mxu0 %v680
      %v865 = vpop.f32.mrb[0].mxu0
      %v866 = vadd.f32 %v545, %v865
      %v867 = vpop.f32.mrb[0].mxu0
      %868 = vmatprep.mubr.f32.mxu0 0.0
      %869 = vmatmul.mubr.f32.gmra.mrb[0].mxu0 %v683
      %v870 = vpop.f32.mrb[0].mxu0
      %v871 = vadd.f32 %v550, %v870
      %v872 = vpop.f32.mrb[0].mxu0
      %873 = vmatprep.mubr.f32.mxu0 0.0
      %874 = vmatmul.mubr.f32.gmra.mrb[0].mxu0 %v686
      %v875 = vpop.f32.mrb[0].mxu0
      %v876 = vadd.f32 %v555, %v875
      %v877 = vpop.f32.mrb[0].mxu0
      %878 = vmatprep.mubr.f32.mxu0 0.0
      %879 = vmatmul.mubr.f32.gmra.mrb[0].mxu0 %v689
      %v880 = vpop.f32.mrb[0].mxu0
      %v881 = vadd.f32 %v560, %v880
      %v882 = vpop.f32.mrb[0].mxu0
      %883 = vmatprep.mubr.f32.mxu0 0.0
      %884 = vmatmul.mubr.f32.gmra.mrb[0].mxu0 %v692
      %v885 = vpop.f32.mrb[0].mxu0
      %v886 = vadd.f32 %v565, %v885
      %v887 = vpop.f32.mrb[0].mxu0
      %888 = vmatprep.mubr.f32.mxu0 0.0
      %889 = vmatmul.mubr.f32.gmra.mrb[0].mxu0 %v695
      %v890 = vpop.f32.mrb[0].mxu0
      %v891 = vadd.f32 %v570, %v890
      %v892 = vpop.f32.mrb[0].mxu0
      %893 = vmatprep.mubr.f32.mxu0 0.0
      %894 = vmatmul.mubr.f32.gmra.mrb[0].mxu0 %v698
      %v895 = vpop.f32.mrb[0].mxu0
      %v896 = vadd.f32 %v575, %v895
      %v897 = vpop.f32.mrb[0].mxu0
      %898 = vmatprep.mubr.f32.mxu0 0.0
      %899 = vmatmul.mubr.f32.gmra.mrb[0].mxu0 %v701
      %v900 = vpop.f32.mrb[0].mxu0
      %v901 = vadd.f32 %v580, %v900
      %v902 = vpop.f32.mrb[0].mxu0
      %903 = vmatprep.mubr.f32.mxu0 0.0
      %904 = vmatmul.mubr.f32.gmra.mrb[0].mxu0 %v704
      %v905 = vpop.f32.mrb[0].mxu0
      %v906 = vadd.f32 %v585, %v905
      %v907 = vpop.f32.mrb[0].mxu0
      %908 = vmatprep.mubr.f32.mxu0 0.0
      %909 = vmatmul.mubr.f32.gmra.mrb[0].mxu0 %v707
      %v910 = vpop.f32.mrb[0].mxu0
      %v911 = vadd.f32 %v590, %v910
      %v912 = vpop.f32.mrb[0].mxu0
      %913 = vmatprep.mubr.f32.mxu0 0.0
      %914 = vmatmul.mubr.f32.gmra.mrb[0].mxu0 %v710
      %v915 = vpop.f32.mrb[0].mxu0
      %v916 = vadd.f32 %v595, %v915
      %v917 = vpop.f32.mrb[0].mxu0
      %918 = vmatprep.mubr.f32.mxu0 0.0
      %919 = vmatmul.mubr.f32.gmra.mrb[0].mxu0 %v713
      %v920 = vpop.f32.mrb[0].mxu0
      %v921 = vadd.f32 %v600, %v920
      %v922 = vpop.f32.mrb[0].mxu0
      %923 = vmatprep.mubr.f32.mxu0 0.0
      %924 = vmatmul.mubr.f32.gmra.mrb[0].mxu0 %v716
      %v925 = vpop.f32.mrb[0].mxu0
      %v926 = vadd.f32 %v605, %v925
      %v927 = vpop.f32.mrb[0].mxu0
      %928 = vmatprep.mubr.f32.mxu0 0.0
      %929 = vmatmul.mubr.f32.gmra.mrb[0].mxu0 %v719
      %v930 = vpop.f32.mrb[0].mxu0
      %v931 = vadd.f32 %v610, %v930
      %v932 = vpop.f32.mrb[0].mxu0
      %933 = vmatprep.mubr.f32.mxu0 0.0
      %934 = vmatmul.mubr.f32.gmra.mrb[0].mxu0 %v722
      %v935 = vpop.f32.mrb[0].mxu0
      %v936 = vadd.f32 %v615, %v935
      %v937 = vpop.f32.mrb[0].mxu0
      %938 = vmatprep.mubr.f32.mxu0 0.0
      %939 = vmatmul.mubr.f32.gmra.mrb[0].mxu0 %v725
      %v940 = vpop.f32.mrb[0].mxu0
      %v941 = vadd.f32 %v620, %v940
      %v942 = vpop.f32.mrb[0].mxu0
      %943 = vmatprep.mubr.f32.mxu0 0.0
      %944 = vmatmul.mubr.f32.gmra.mrb[0].mxu0 %v728
      %v945 = vpop.f32.mrb[0].mxu0
      %v946 = vadd.f32 %v625, %v945
      %v947 = vpop.f32.mrb[0].mxu0
      %948 = vmatprep.mubr.f32.mxu0 0.0
      %949 = vmatmul.mubr.f32.gmra.mrb[0].mxu0 %v731
      %v950 = vpop.f32.mrb[0].mxu0
      %v951 = vadd.f32 %v630, %v950
      %v952 = vpop.f32.mrb[0].mxu0
      %953 = vmatprep.mubr.f32.mxu0 0.0
      %954 = vmatmul.mubr.f32.gmra.mrb[0].mxu0 %v734
      %v955 = vpop.f32.mrb[0].mxu0
      %v956 = vadd.f32 %v635, %v955
      %v957 = vpop.f32.mrb[0].mxu0
      %958 = vmatprep.mubr.f32.mxu0 0.0
      %959 = vmatmul.mubr.f32.gmra.mrb[0].mxu0 %v737
      %v960 = vpop.f32.mrb[0].mxu0
      %v961 = vadd.f32 %v640, %v960
      %v962 = vpop.f32.mrb[0].mxu0
      %963 = vdwg.mxu0
      %v964 = vld [vmem:[#allocation2 + $0x8] sm:$0xff]
      %v965 = vld [vmem:[#allocation2 + $0x10] sm:$0xff]
      %v966 = vld [vmem:[#allocation2 + $0x18] sm:$0xff]
      %v967 = vld [vmem:[#allocation2 + $0x20] sm:$0xff]
      %v968 = vld [vmem:[#allocation2 + $0x28] sm:$0xff]
      %v969 = vld [vmem:[#allocation2 + $0x30] sm:$0xff]
      %v970 = vld [vmem:[#allocation2 + $0x38] sm:$0xff]
      %v971 = vld [vmem:[#allocation2 + $0x40] sm:$0xff]
      %v972 = vld [vmem:[#allocation2 + $0x48] sm:$0xff]
      %v973 = vld [vmem:[#allocation2 + $0x50] sm:$0xff]
      %v974 = vld [vmem:[#allocation2 + $0x58] sm:$0xff]
      %v975 = vld [vmem:[#allocation2 + $0x60] sm:$0xff]
      %v976 = vld [vmem:[#allocation2 + $0x68] sm:$0xff]
      %v977 = vld [vmem:[#allocation2 + $0x70] sm:$0xff]
      %v978 = vld [vmem:[#allocation2 + $0x78] sm:$0xff]
      %v979 = vld [vmem:[#allocation2 + $0x80] sm:$0xff]
      %v980 = vld [vmem:[#allocation2 + $0x88] sm:$0xff]
      %v981 = vld [vmem:[#allocation2 + $0x90] sm:$0xff]
      %v982 = vld [vmem:[#allocation2 + $0x98] sm:$0xff]
      %v983 = vld [vmem:[#allocation2 + $0xa0] sm:$0xff]
      %v984 = vld [vmem:[#allocation2 + $0xa8] sm:$0xff]
      %v985 = vld [vmem:[#allocation2 + $0xb0] sm:$0xff]
      %v986 = vld [vmem:[#allocation2 + $0xb8] sm:$0xff]
      %v987 = vld [vmem:[#allocation2 + $0xc0] sm:$0xff]
      %v988 = vld [vmem:[#allocation2 + $0xc8] sm:$0xff]
      %v989 = vld [vmem:[#allocation2 + $0xd0] sm:$0xff]
      %v990 = vld [vmem:[#allocation2 + $0xd8] sm:$0xff]
      %v991 = vld [vmem:[#allocation2 + $0xe0] sm:$0xff]
      %v992 = vld [vmem:[#allocation2 + $0xe8] sm:$0xff]
      %v993 = vld [vmem:[#allocation2 + $0xf0] sm:$0xff]
      %v994 = vld [vmem:[#allocation2 + $0xf8] sm:$0xff]
      %v995 = vld [vmem:[#allocation2 + $0x100] sm:$0xff]
      %s996 = scalar_lea.vmem %s1, 128
      %v997 = vld [vmem:[%s996] sm:$0xff]
      %v998 = vld [vmem:[%s996 + $0x8] sm:$0xff]
      %v999 = vld [vmem:[%s996 + $0x10] sm:$0xff]
      %v1000 = vld [vmem:[%s996 + $0x18] sm:$0xff]
      %v1001 = vld [vmem:[%s996 + $0x20] sm:$0xff]
      %v1002 = vld [vmem:[%s996 + $0x28] sm:$0xff]
      %v1003 = vld [vmem:[%s996 + $0x30] sm:$0xff]
      %v1004 = vld [vmem:[%s996 + $0x38] sm:$0xff]
      %v1006 = vsel %vm206, %v964, 0
      %v1009 = vsel %vm206, %v965, 0
      %v1012 = vsel %vm206, %v966, 0
      %v1015 = vsel %vm206, %v967, 0
      %v1018 = vsel %vm206, %v968, 0
      %v1021 = vsel %vm206, %v969, 0
      %v1024 = vsel %vm206, %v970, 0
      %v1027 = vsel %vm206, %v971, 0
      %v1030 = vsel %vm206, %v972, 0
      %v1033 = vsel %vm206, %v973, 0
      %v1036 = vsel %vm206, %v974, 0
      %v1039 = vsel %vm206, %v975, 0
      %v1042 = vsel %vm206, %v976, 0
      %v1045 = vsel %vm206, %v977, 0
      %v1048 = vsel %vm206, %v978, 0
      %v1051 = vsel %vm206, %v979, 0
      %v1054 = vsel %vm206, %v980, 0
      %v1057 = vsel %vm206, %v981, 0
      %v1060 = vsel %vm206, %v982, 0
      %v1063 = vsel %vm206, %v983, 0
      %v1066 = vsel %vm206, %v984, 0
      %v1069 = vsel %vm206, %v985, 0
      %v1072 = vsel %vm206, %v986, 0
      %v1075 = vsel %vm206, %v987, 0
      %v1078 = vsel %vm206, %v988, 0
      %v1081 = vsel %vm206, %v989, 0
      %v1084 = vsel %vm206, %v990, 0
      %v1087 = vsel %vm206, %v991, 0
      %v1090 = vsel %vm206, %v992, 0
      %v1093 = vsel %vm206, %v993, 0
      %v1096 = vsel %vm206, %v994, 0
      %v1099 = vsel %vm206, %v995, 0
      %1101 = vmatprep.subr.mxu0 0.0
      %1102 = vmatpush1.msra.mxu0 %v997
      %1103 = vmatprep.subr.mxu0 0.0
      %1104 = vmatpush1.msra.mxu0 %v998
      %1105 = vmatprep.subr.mxu0 0.0
      %1106 = vmatpush1.msra.mxu0 %v999
      %1107 = vmatprep.subr.mxu0 0.0
      %1108 = vmatpush1.msra.mxu0 %v1000
      %1109 = vmatprep.subr.mxu0 0.0
      %1110 = vmatpush1.msra.mxu0 %v1001
      %1111 = vmatprep.subr.mxu0 0.0
      %1112 = vmatpush1.msra.mxu0 %v1002
      %1113 = vmatprep.subr.mxu0 0.0
      %1114 = vmatpush1.msra.mxu0 %v1003
      %1115 = vmatprep.subr.mxu0 0.0
      %1116 = vmatpush1.msra.mxu0 %v1004
      %1117 = vmatprep.subr.mxu0 0.0
      %1118 = vmatpush1.msra.mxu0 0.0
      %1119 = vmatprep.subr.mxu0 0.0
      %1120 = vmatpush1.msra.mxu0 0.0
      %1121 = vmatprep.subr.mxu0 0.0
      %1122 = vmatpush1.msra.mxu0 0.0
      %1123 = vmatprep.subr.mxu0 0.0
      %1124 = vmatpush1.msra.mxu0 0.0
      %1125 = vmatprep.subr.mxu0 0.0
      %1126 = vmatpush1.msra.mxu0 0.0
      %1127 = vmatprep.subr.mxu0 0.0
      %1128 = vmatpush1.msra.mxu0 0.0
      %1129 = vmatprep.subr.mxu0 0.0
      %1130 = vmatpush1.msra.mxu0 0.0
      %1131 = vmatprep.subr.mxu0 0.0
      %1132 = vmatpush1.msra.mxu0 0.0
      %1133 = vmatprep.subr.mxu0 0.0
      %1134 = vmatpush1.msra.mxu0 0.0
      %1135 = vmatprep.subr.mxu0 0.0
      %1136 = vmatpush1.msra.mxu0 0.0
      %1137 = vmatprep.subr.mxu0 0.0
      %1138 = vmatpush1.msra.mxu0 0.0
      %1139 = vmatprep.subr.mxu0 0.0
      %1140 = vmatpush1.msra.mxu0 0.0
      %1141 = vmatprep.subr.mxu0 0.0
      %1142 = vmatpush1.msra.mxu0 0.0
      %1143 = vmatprep.subr.mxu0 0.0
      %1144 = vmatpush1.msra.mxu0 0.0
      %1145 = vmatprep.subr.mxu0 0.0
      %1146 = vmatpush1.msra.mxu0 0.0
      %1147 = vmatprep.subr.mxu0 0.0
      %1148 = vmatpush1.msra.mxu0 0.0
      %1149 = vmatprep.subr.mxu0 0.0
      %1150 = vmatpush1.msra.mxu0 0.0
      %1151 = vmatprep.subr.mxu0 0.0
      %1152 = vmatpush1.msra.mxu0 0.0
      %1153 = vmatprep.subr.mxu0 0.0
      %1154 = vmatpush1.msra.mxu0 0.0
      %1155 = vmatprep.subr.mxu0 0.0
      %1156 = vmatpush1.msra.mxu0 0.0
      %1157 = vmatprep.subr.mxu0 0.0
      %1158 = vmatpush1.msra.mxu0 0.0
      %1159 = vmatprep.subr.mxu0 0.0
      %1160 = vmatpush1.msra.mxu0 0.0
      %1161 = vmatprep.subr.mxu0 0.0
      %1162 = vmatpush1.msra.mxu0 0.0
      %1163 = vmatprep.subr.mxu0 0.0
      %1164 = vmatpush1.msra.mxu0 0.0
      %1165 = vmatprep.mubr.f32.mxu0 0.0
      %1166 = vmatmul.mubr.f32.gmra.mrb[0].mxu0 %v1006
      %v1167 = vpop.f32.mrb[0].mxu0
      %v1168 = vadd.f32 0.0, %v1167
      %v1169 = vpop.f32.mrb[0].mxu0
      %1170 = vmatprep.mubr.f32.mxu0 0.0
      %1171 = vmatmul.mubr.f32.gmra.mrb[0].mxu0 %v1009
      %v1172 = vpop.f32.mrb[0].mxu0
      %v1173 = vadd.f32 0.0, %v1172
      %v1174 = vpop.f32.mrb[0].mxu0
      %1175 = vmatprep.mubr.f32.mxu0 0.0
      %1176 = vmatmul.mubr.f32.gmra.mrb[0].mxu0 %v1012
      %v1177 = vpop.f32.mrb[0].mxu0
      %v1178 = vadd.f32 0.0, %v1177
      %v1179 = vpop.f32.mrb[0].mxu0
      %1180 = vmatprep.mubr.f32.mxu0 0.0
      %1181 = vmatmul.mubr.f32.gmra.mrb[0].mxu0 %v1015
      %v1182 = vpop.f32.mrb[0].mxu0
      %v1183 = vadd.f32 0.0, %v1182
      %v1184 = vpop.f32.mrb[0].mxu0
      %1185 = vmatprep.mubr.f32.mxu0 0.0
      %1186 = vmatmul.mubr.f32.gmra.mrb[0].mxu0 %v1018
      %v1187 = vpop.f32.mrb[0].mxu0
      %v1188 = vadd.f32 0.0, %v1187
      %v1189 = vpop.f32.mrb[0].mxu0
      %1190 = vmatprep.mubr.f32.mxu0 0.0
      %1191 = vmatmul.mubr.f32.gmra.mrb[0].mxu0 %v1021
      %v1192 = vpop.f32.mrb[0].mxu0
      %v1193 = vadd.f32 0.0, %v1192
      %v1194 = vpop.f32.mrb[0].mxu0
      %1195 = vmatprep.mubr.f32.mxu0 0.0
      %1196 = vmatmul.mubr.f32.gmra.mrb[0].mxu0 %v1024
      %v1197 = vpop.f32.mrb[0].mxu0
      %v1198 = vadd.f32 0.0, %v1197
      %v1199 = vpop.f32.mrb[0].mxu0
      %1200 = vmatprep.mubr.f32.mxu0 0.0
      %1201 = vmatmul.mubr.f32.gmra.mrb[0].mxu0 %v1027
      %v1202 = vpop.f32.mrb[0].mxu0
      %v1203 = vadd.f32 0.0, %v1202
      %v1204 = vpop.f32.mrb[0].mxu0
      %1205 = vmatprep.mubr.f32.mxu0 0.0
      %1206 = vmatmul.mubr.f32.gmra.mrb[0].mxu0 %v1030
      %v1207 = vpop.f32.mrb[0].mxu0
      %v1208 = vadd.f32 0.0, %v1207
      %v1209 = vpop.f32.mrb[0].mxu0
      %1210 = vmatprep.mubr.f32.mxu0 0.0
      %1211 = vmatmul.mubr.f32.gmra.mrb[0].mxu0 %v1033
      %v1212 = vpop.f32.mrb[0].mxu0
      %v1213 = vadd.f32 0.0, %v1212
      %v1214 = vpop.f32.mrb[0].mxu0
      %1215 = vmatprep.mubr.f32.mxu0 0.0
      %1216 = vmatmul.mubr.f32.gmra.mrb[0].mxu0 %v1036
      %v1217 = vpop.f32.mrb[0].mxu0
      %v1218 = vadd.f32 0.0, %v1217
      %v1219 = vpop.f32.mrb[0].mxu0
      %1220 = vmatprep.mubr.f32.mxu0 0.0
      %1221 = vmatmul.mubr.f32.gmra.mrb[0].mxu0 %v1039
      %v1222 = vpop.f32.mrb[0].mxu0
      %v1223 = vadd.f32 0.0, %v1222
      %v1224 = vpop.f32.mrb[0].mxu0
      %1225 = vmatprep.mubr.f32.mxu0 0.0
      %1226 = vmatmul.mubr.f32.gmra.mrb[0].mxu0 %v1042
      %v1227 = vpop.f32.mrb[0].mxu0
      %v1228 = vadd.f32 0.0, %v1227
      %v1229 = vpop.f32.mrb[0].mxu0
      %1230 = vmatprep.mubr.f32.mxu0 0.0
      %1231 = vmatmul.mubr.f32.gmra.mrb[0].mxu0 %v1045
      %v1232 = vpop.f32.mrb[0].mxu0
      %v1233 = vadd.f32 0.0, %v1232
      %v1234 = vpop.f32.mrb[0].mxu0
      %1235 = vmatprep.mubr.f32.mxu0 0.0
      %1236 = vmatmul.mubr.f32.gmra.mrb[0].mxu0 %v1048
      %v1237 = vpop.f32.mrb[0].mxu0
      %v1238 = vadd.f32 0.0, %v1237
      %v1239 = vpop.f32.mrb[0].mxu0
      %1240 = vmatprep.mubr.f32.mxu0 0.0
      %1241 = vmatmul.mubr.f32.gmra.mrb[0].mxu0 %v1051
      %v1242 = vpop.f32.mrb[0].mxu0
      %v1243 = vadd.f32 0.0, %v1242
      %v1244 = vpop.f32.mrb[0].mxu0
      %1245 = vmatprep.mubr.f32.mxu0 0.0
      %1246 = vmatmul.mubr.f32.gmra.mrb[0].mxu0 %v1054
      %v1247 = vpop.f32.mrb[0].mxu0
      %v1248 = vadd.f32 0.0, %v1247
      %v1249 = vpop.f32.mrb[0].mxu0
      %1250 = vmatprep.mubr.f32.mxu0 0.0
      %1251 = vmatmul.mubr.f32.gmra.mrb[0].mxu0 %v1057
      %v1252 = vpop.f32.mrb[0].mxu0
      %v1253 = vadd.f32 0.0, %v1252
      %v1254 = vpop.f32.mrb[0].mxu0
      %1255 = vmatprep.mubr.f32.mxu0 0.0
      %1256 = vmatmul.mubr.f32.gmra.mrb[0].mxu0 %v1060
      %v1257 = vpop.f32.mrb[0].mxu0
      %v1258 = vadd.f32 0.0, %v1257
      %v1259 = vpop.f32.mrb[0].mxu0
      %1260 = vmatprep.mubr.f32.mxu0 0.0
      %1261 = vmatmul.mubr.f32.gmra.mrb[0].mxu0 %v1063
      %v1262 = vpop.f32.mrb[0].mxu0
      %v1263 = vadd.f32 0.0, %v1262
      %v1264 = vpop.f32.mrb[0].mxu0
      %1265 = vmatprep.mubr.f32.mxu0 0.0
      %1266 = vmatmul.mubr.f32.gmra.mrb[0].mxu0 %v1066
      %v1267 = vpop.f32.mrb[0].mxu0
      %v1268 = vadd.f32 0.0, %v1267
      %v1269 = vpop.f32.mrb[0].mxu0
      %1270 = vmatprep.mubr.f32.mxu0 0.0
      %1271 = vmatmul.mubr.f32.gmra.mrb[0].mxu0 %v1069
      %v1272 = vpop.f32.mrb[0].mxu0
      %v1273 = vadd.f32 0.0, %v1272
      %v1274 = vpop.f32.mrb[0].mxu0
      %1275 = vmatprep.mubr.f32.mxu0 0.0
      %1276 = vmatmul.mubr.f32.gmra.mrb[0].mxu0 %v1072
      %v1277 = vpop.f32.mrb[0].mxu0
      %v1278 = vadd.f32 0.0, %v1277
      %v1279 = vpop.f32.mrb[0].mxu0
      %1280 = vmatprep.mubr.f32.mxu0 0.0
      %1281 = vmatmul.mubr.f32.gmra.mrb[0].mxu0 %v1075
      %v1282 = vpop.f32.mrb[0].mxu0
      %v1283 = vadd.f32 0.0, %v1282
      %v1284 = vpop.f32.mrb[0].mxu0
      %1285 = vmatprep.mubr.f32.mxu0 0.0
      %1286 = vmatmul.mubr.f32.gmra.mrb[0].mxu0 %v1078
      %v1287 = vpop.f32.mrb[0].mxu0
      %v1288 = vadd.f32 0.0, %v1287
      %v1289 = vpop.f32.mrb[0].mxu0
      %1290 = vmatprep.mubr.f32.mxu0 0.0
      %1291 = vmatmul.mubr.f32.gmra.mrb[0].mxu0 %v1081
      %v1292 = vpop.f32.mrb[0].mxu0
      %v1293 = vadd.f32 0.0, %v1292
      %v1294 = vpop.f32.mrb[0].mxu0
      %1295 = vmatprep.mubr.f32.mxu0 0.0
      %1296 = vmatmul.mubr.f32.gmra.mrb[0].mxu0 %v1084
      %v1297 = vpop.f32.mrb[0].mxu0
      %v1298 = vadd.f32 0.0, %v1297
      %v1299 = vpop.f32.mrb[0].mxu0
      %1300 = vmatprep.mubr.f32.mxu0 0.0
      %1301 = vmatmul.mubr.f32.gmra.mrb[0].mxu0 %v1087
      %v1302 = vpop.f32.mrb[0].mxu0
      %v1303 = vadd.f32 0.0, %v1302
      %v1304 = vpop.f32.mrb[0].mxu0
      %1305 = vmatprep.mubr.f32.mxu0 0.0
      %1306 = vmatmul.mubr.f32.gmra.mrb[0].mxu0 %v1090
      %v1307 = vpop.f32.mrb[0].mxu0
      %v1308 = vadd.f32 0.0, %v1307
      %v1309 = vpop.f32.mrb[0].mxu0
      %1310 = vmatprep.mubr.f32.mxu0 0.0
      %1311 = vmatmul.mubr.f32.gmra.mrb[0].mxu0 %v1093
      %v1312 = vpop.f32.mrb[0].mxu0
      %v1313 = vadd.f32 0.0, %v1312
      %v1314 = vpop.f32.mrb[0].mxu0
      %1315 = vmatprep.mubr.f32.mxu0 0.0
      %1316 = vmatmul.mubr.f32.gmra.mrb[0].mxu0 %v1096
      %v1317 = vpop.f32.mrb[0].mxu0
      %v1318 = vadd.f32 0.0, %v1317
      %v1319 = vpop.f32.mrb[0].mxu0
      %1320 = vmatprep.mubr.f32.mxu0 0.0
      %1321 = vmatmul.mubr.f32.gmra.mrb[0].mxu0 %v1099
      %v1322 = vpop.f32.mrb[0].mxu0
      %v1323 = vadd.f32 0.0, %v1322
      %v1324 = vpop.f32.mrb[0].mxu0
      %1325 = vdwg.mxu0
      %v1326 = vadd.f32 %v806, %v1168
      %v1327 = vadd.f32 %v811, %v1173
      %v1328 = vadd.f32 %v816, %v1178
      %v1329 = vadd.f32 %v821, %v1183
      %v1330 = vadd.f32 %v826, %v1188
      %v1331 = vadd.f32 %v831, %v1193
      %v1332 = vadd.f32 %v836, %v1198
      %v1333 = vadd.f32 %v841, %v1203
      %v1334 = vadd.f32 %v846, %v1208
      %v1335 = vadd.f32 %v851, %v1213
      %v1336 = vadd.f32 %v856, %v1218
      %v1337 = vadd.f32 %v861, %v1223
      %v1338 = vadd.f32 %v866, %v1228
      %v1339 = vadd.f32 %v871, %v1233
      %v1340 = vadd.f32 %v876, %v1238
      %v1341 = vadd.f32 %v881, %v1243
      %v1342 = vadd.f32 %v886, %v1248
      %v1343 = vadd.f32 %v891, %v1253
      %v1344 = vadd.f32 %v896, %v1258
      %v1345 = vadd.f32 %v901, %v1263
      %v1346 = vadd.f32 %v906, %v1268
      %v1347 = vadd.f32 %v911, %v1273
      %v1348 = vadd.f32 %v916, %v1278
      %v1349 = vadd.f32 %v921, %v1283
      %v1350 = vadd.f32 %v926, %v1288
      %v1351 = vadd.f32 %v931, %v1293
      %v1352 = vadd.f32 %v936, %v1298
      %v1353 = vadd.f32 %v941, %v1303
      %v1354 = vadd.f32 %v946, %v1308
      %v1355 = vadd.f32 %v951, %v1313
      %v1356 = vadd.f32 %v956, %v1318
      %v1357 = vadd.f32 %v961, %v1323
      %v1358 = vld [vmem:[#allocation2 + $0x9] sm:$0xff]
      %v1359 = vld [vmem:[#allocation2 + $0x11] sm:$0xff]
      %v1360 = vld [vmem:[#allocation2 + $0x19] sm:$0xff]
      %v1361 = vld [vmem:[#allocation2 + $0x21] sm:$0xff]
      %v1362 = vld [vmem:[#allocation2 + $0x29] sm:$0xff]
      %v1363 = vld [vmem:[#allocation2 + $0x31] sm:$0xff]
      %v1364 = vld [vmem:[#allocation2 + $0x39] sm:$0xff]
      %v1365 = vld [vmem:[#allocation2 + $0x41] sm:$0xff]
      %v1366 = vld [vmem:[#allocation2 + $0x49] sm:$0xff]
      %v1367 = vld [vmem:[#allocation2 + $0x51] sm:$0xff]
      %v1368 = vld [vmem:[#allocation2 + $0x59] sm:$0xff]
      %v1369 = vld [vmem:[#allocation2 + $0x61] sm:$0xff]
      %v1370 = vld [vmem:[#allocation2 + $0x69] sm:$0xff]
      %v1371 = vld [vmem:[#allocation2 + $0x71] sm:$0xff]
      %v1372 = vld [vmem:[#allocation2 + $0x79] sm:$0xff]
      %v1373 = vld [vmem:[#allocation2 + $0x81] sm:$0xff]
      %v1374 = vld [vmem:[#allocation2 + $0x89] sm:$0xff]
      %v1375 = vld [vmem:[#allocation2 + $0x91] sm:$0xff]
      %v1376 = vld [vmem:[#allocation2 + $0x99] sm:$0xff]
      %v1377 = vld [vmem:[#allocation2 + $0xa1] sm:$0xff]
      %v1378 = vld [vmem:[#allocation2 + $0xa9] sm:$0xff]
      %v1379 = vld [vmem:[#allocation2 + $0xb1] sm:$0xff]
      %v1380 = vld [vmem:[#allocation2 + $0xb9] sm:$0xff]
      %v1381 = vld [vmem:[#allocation2 + $0xc1] sm:$0xff]
      %v1382 = vld [vmem:[#allocation2 + $0xc9] sm:$0xff]
      %v1383 = vld [vmem:[#allocation2 + $0xd1] sm:$0xff]
      %v1384 = vld [vmem:[#allocation2 + $0xd9] sm:$0xff]
      %v1385 = vld [vmem:[#allocation2 + $0xe1] sm:$0xff]
      %v1386 = vld [vmem:[#allocation2 + $0xe9] sm:$0xff]
      %v1387 = vld [vmem:[#allocation2 + $0xf1] sm:$0xff]
      %v1388 = vld [vmem:[#allocation2 + $0xf9] sm:$0xff]
      %v1389 = vld [vmem:[#allocation2 + $0x101] sm:$0xff]
      %s1390 = scalar_lea.vmem %s1, 192
      %v1391 = vld [vmem:[%s1390] sm:$0xff]
      %v1392 = vld [vmem:[%s1390 + $0x8] sm:$0xff]
      %v1393 = vld [vmem:[%s1390 + $0x10] sm:$0xff]
      %v1394 = vld [vmem:[%s1390 + $0x18] sm:$0xff]
      %v1395 = vld [vmem:[%s1390 + $0x20] sm:$0xff]
      %v1396 = vld [vmem:[%s1390 + $0x28] sm:$0xff]
      %v1397 = vld [vmem:[%s1390 + $0x30] sm:$0xff]
      %v1398 = vld [vmem:[%s1390 + $0x38] sm:$0xff]
      %v1400 = vsel %vm206, %v1358, 0
      %v1403 = vsel %vm206, %v1359, 0
      %v1406 = vsel %vm206, %v1360, 0
      %v1409 = vsel %vm206, %v1361, 0
      %v1412 = vsel %vm206, %v1362, 0
      %v1415 = vsel %vm206, %v1363, 0
      %v1418 = vsel %vm206, %v1364, 0
      %v1421 = vsel %vm206, %v1365, 0
      %v1424 = vsel %vm206, %v1366, 0
      %v1427 = vsel %vm206, %v1367, 0
      %v1430 = vsel %vm206, %v1368, 0
      %v1433 = vsel %vm206, %v1369, 0
      %v1436 = vsel %vm206, %v1370, 0
      %v1439 = vsel %vm206, %v1371, 0
      %v1442 = vsel %vm206, %v1372, 0
      %v1445 = vsel %vm206, %v1373, 0
      %v1448 = vsel %vm206, %v1374, 0
      %v1451 = vsel %vm206, %v1375, 0
      %v1454 = vsel %vm206, %v1376, 0
      %v1457 = vsel %vm206, %v1377, 0
      %v1460 = vsel %vm206, %v1378, 0
      %v1463 = vsel %vm206, %v1379, 0
      %v1466 = vsel %vm206, %v1380, 0
      %v1469 = vsel %vm206, %v1381, 0
      %v1472 = vsel %vm206, %v1382, 0
      %v1475 = vsel %vm206, %v1383, 0
      %v1478 = vsel %vm206, %v1384, 0
      %v1481 = vsel %vm206, %v1385, 0
      %v1484 = vsel %vm206, %v1386, 0
      %v1487 = vsel %vm206, %v1387, 0
      %v1490 = vsel %vm206, %v1388, 0
      %v1493 = vsel %vm206, %v1389, 0
      %1495 = vmatprep.subr.mxu0 0.0
      %1496 = vmatpush1.msra.mxu0 %v1391
      %1497 = vmatprep.subr.mxu0 0.0
      %1498 = vmatpush1.msra.mxu0 %v1392
      %1499 = vmatprep.subr.mxu0 0.0
      %1500 = vmatpush1.msra.mxu0 %v1393
      %1501 = vmatprep.subr.mxu0 0.0
      %1502 = vmatpush1.msra.mxu0 %v1394
      %1503 = vmatprep.subr.mxu0 0.0
      %1504 = vmatpush1.msra.mxu0 %v1395
      %1505 = vmatprep.subr.mxu0 0.0
      %1506 = vmatpush1.msra.mxu0 %v1396
      %1507 = vmatprep.subr.mxu0 0.0
      %1508 = vmatpush1.msra.mxu0 %v1397
      %1509 = vmatprep.subr.mxu0 0.0
      %1510 = vmatpush1.msra.mxu0 %v1398
      %1511 = vmatprep.subr.mxu0 0.0
      %1512 = vmatpush1.msra.mxu0 0.0
      %1513 = vmatprep.subr.mxu0 0.0
      %1514 = vmatpush1.msra.mxu0 0.0
      %1515 = vmatprep.subr.mxu0 0.0
      %1516 = vmatpush1.msra.mxu0 0.0
      %1517 = vmatprep.subr.mxu0 0.0
      %1518 = vmatpush1.msra.mxu0 0.0
      %1519 = vmatprep.subr.mxu0 0.0
      %1520 = vmatpush1.msra.mxu0 0.0
      %1521 = vmatprep.subr.mxu0 0.0
      %1522 = vmatpush1.msra.mxu0 0.0
      %1523 = vmatprep.subr.mxu0 0.0
      %1524 = vmatpush1.msra.mxu0 0.0
      %1525 = vmatprep.subr.mxu0 0.0
      %1526 = vmatpush1.msra.mxu0 0.0
      %1527 = vmatprep.subr.mxu0 0.0
      %1528 = vmatpush1.msra.mxu0 0.0
      %1529 = vmatprep.subr.mxu0 0.0
      %1530 = vmatpush1.msra.mxu0 0.0
      %1531 = vmatprep.subr.mxu0 0.0
      %1532 = vmatpush1.msra.mxu0 0.0
      %1533 = vmatprep.subr.mxu0 0.0
      %1534 = vmatpush1.msra.mxu0 0.0
      %1535 = vmatprep.subr.mxu0 0.0
      %1536 = vmatpush1.msra.mxu0 0.0
      %1537 = vmatprep.subr.mxu0 0.0
      %1538 = vmatpush1.msra.mxu0 0.0
      %1539 = vmatprep.subr.mxu0 0.0
      %1540 = vmatpush1.msra.mxu0 0.0
      %1541 = vmatprep.subr.mxu0 0.0
      %1542 = vmatpush1.msra.mxu0 0.0
      %1543 = vmatprep.subr.mxu0 0.0
      %1544 = vmatpush1.msra.mxu0 0.0
      %1545 = vmatprep.subr.mxu0 0.0
      %1546 = vmatpush1.msra.mxu0 0.0
      %1547 = vmatprep.subr.mxu0 0.0
      %1548 = vmatpush1.msra.mxu0 0.0
      %1549 = vmatprep.subr.mxu0 0.0
      %1550 = vmatpush1.msra.mxu0 0.0
      %1551 = vmatprep.subr.mxu0 0.0
      %1552 = vmatpush1.msra.mxu0 0.0
      %1553 = vmatprep.subr.mxu0 0.0
      %1554 = vmatpush1.msra.mxu0 0.0
      %1555 = vmatprep.subr.mxu0 0.0
      %1556 = vmatpush1.msra.mxu0 0.0
      %1557 = vmatprep.subr.mxu0 0.0
      %1558 = vmatpush1.msra.mxu0 0.0
      %1559 = vmatprep.mubr.f32.mxu0 0.0
      %1560 = vmatmul.mubr.f32.gmra.mrb[0].mxu0 %v1400
      %v1561 = vpop.f32.mrb[0].mxu0
      %v1562 = vadd.f32 0.0, %v1561
      %v1563 = vpop.f32.mrb[0].mxu0
      %1564 = vmatprep.mubr.f32.mxu0 0.0
      %1565 = vmatmul.mubr.f32.gmra.mrb[0].mxu0 %v1403
      %v1566 = vpop.f32.mrb[0].mxu0
      %v1567 = vadd.f32 0.0, %v1566
      %v1568 = vpop.f32.mrb[0].mxu0
      %1569 = vmatprep.mubr.f32.mxu0 0.0
      %1570 = vmatmul.mubr.f32.gmra.mrb[0].mxu0 %v1406
      %v1571 = vpop.f32.mrb[0].mxu0
      %v1572 = vadd.f32 0.0, %v1571
      %v1573 = vpop.f32.mrb[0].mxu0
      %1574 = vmatprep.mubr.f32.mxu0 0.0
      %1575 = vmatmul.mubr.f32.gmra.mrb[0].mxu0 %v1409
      %v1576 = vpop.f32.mrb[0].mxu0
      %v1577 = vadd.f32 0.0, %v1576
      %v1578 = vpop.f32.mrb[0].mxu0
      %1579 = vmatprep.mubr.f32.mxu0 0.0
      %1580 = vmatmul.mubr.f32.gmra.mrb[0].mxu0 %v1412
      %v1581 = vpop.f32.mrb[0].mxu0
      %v1582 = vadd.f32 0.0, %v1581
      %v1583 = vpop.f32.mrb[0].mxu0
      %1584 = vmatprep.mubr.f32.mxu0 0.0
      %1585 = vmatmul.mubr.f32.gmra.mrb[0].mxu0 %v1415
      %v1586 = vpop.f32.mrb[0].mxu0
      %v1587 = vadd.f32 0.0, %v1586
      %v1588 = vpop.f32.mrb[0].mxu0
      %1589 = vmatprep.mubr.f32.mxu0 0.0
      %1590 = vmatmul.mubr.f32.gmra.mrb[0].mxu0 %v1418
      %v1591 = vpop.f32.mrb[0].mxu0
      %v1592 = vadd.f32 0.0, %v1591
      %v1593 = vpop.f32.mrb[0].mxu0
      %1594 = vmatprep.mubr.f32.mxu0 0.0
      %1595 = vmatmul.mubr.f32.gmra.mrb[0].mxu0 %v1421
      %v1596 = vpop.f32.mrb[0].mxu0
      %v1597 = vadd.f32 0.0, %v1596
      %v1598 = vpop.f32.mrb[0].mxu0
      %1599 = vmatprep.mubr.f32.mxu0 0.0
      %1600 = vmatmul.mubr.f32.gmra.mrb[0].mxu0 %v1424
      %v1601 = vpop.f32.mrb[0].mxu0
      %v1602 = vadd.f32 0.0, %v1601
      %v1603 = vpop.f32.mrb[0].mxu0
      %1604 = vmatprep.mubr.f32.mxu0 0.0
      %1605 = vmatmul.mubr.f32.gmra.mrb[0].mxu0 %v1427
      %v1606 = vpop.f32.mrb[0].mxu0
      %v1607 = vadd.f32 0.0, %v1606
      %v1608 = vpop.f32.mrb[0].mxu0
      %1609 = vmatprep.mubr.f32.mxu0 0.0
      %1610 = vmatmul.mubr.f32.gmra.mrb[0].mxu0 %v1430
      %v1611 = vpop.f32.mrb[0].mxu0
      %v1612 = vadd.f32 0.0, %v1611
      %v1613 = vpop.f32.mrb[0].mxu0
      %1614 = vmatprep.mubr.f32.mxu0 0.0
      %1615 = vmatmul.mubr.f32.gmra.mrb[0].mxu0 %v1433
      %v1616 = vpop.f32.mrb[0].mxu0
      %v1617 = vadd.f32 0.0, %v1616
      %v1618 = vpop.f32.mrb[0].mxu0
      %1619 = vmatprep.mubr.f32.mxu0 0.0
      %1620 = vmatmul.mubr.f32.gmra.mrb[0].mxu0 %v1436
      %v1621 = vpop.f32.mrb[0].mxu0
      %v1622 = vadd.f32 0.0, %v1621
      %v1623 = vpop.f32.mrb[0].mxu0
      %1624 = vmatprep.mubr.f32.mxu0 0.0
      %1625 = vmatmul.mubr.f32.gmra.mrb[0].mxu0 %v1439
      %v1626 = vpop.f32.mrb[0].mxu0
      %v1627 = vadd.f32 0.0, %v1626
      %v1628 = vpop.f32.mrb[0].mxu0
      %1629 = vmatprep.mubr.f32.mxu0 0.0
      %1630 = vmatmul.mubr.f32.gmra.mrb[0].mxu0 %v1442
      %v1631 = vpop.f32.mrb[0].mxu0
      %v1632 = vadd.f32 0.0, %v1631
      %v1633 = vpop.f32.mrb[0].mxu0
      %1634 = vmatprep.mubr.f32.mxu0 0.0
      %1635 = vmatmul.mubr.f32.gmra.mrb[0].mxu0 %v1445
      %v1636 = vpop.f32.mrb[0].mxu0
      %v1637 = vadd.f32 0.0, %v1636
      %v1638 = vpop.f32.mrb[0].mxu0
      %1639 = vmatprep.mubr.f32.mxu0 0.0
      %1640 = vmatmul.mubr.f32.gmra.mrb[0].mxu0 %v1448
      %v1641 = vpop.f32.mrb[0].mxu0
      %v1642 = vadd.f32 0.0, %v1641
      %v1643 = vpop.f32.mrb[0].mxu0
      %1644 = vmatprep.mubr.f32.mxu0 0.0
      %1645 = vmatmul.mubr.f32.gmra.mrb[0].mxu0 %v1451
      %v1646 = vpop.f32.mrb[0].mxu0
      %v1647 = vadd.f32 0.0, %v1646
      %v1648 = vpop.f32.mrb[0].mxu0
      %1649 = vmatprep.mubr.f32.mxu0 0.0
      %1650 = vmatmul.mubr.f32.gmra.mrb[0].mxu0 %v1454
      %v1651 = vpop.f32.mrb[0].mxu0
      %v1652 = vadd.f32 0.0, %v1651
      %v1653 = vpop.f32.mrb[0].mxu0
      %1654 = vmatprep.mubr.f32.mxu0 0.0
      %1655 = vmatmul.mubr.f32.gmra.mrb[0].mxu0 %v1457
      %v1656 = vpop.f32.mrb[0].mxu0
      %v1657 = vadd.f32 0.0, %v1656
      %v1658 = vpop.f32.mrb[0].mxu0
      %1659 = vmatprep.mubr.f32.mxu0 0.0
      %1660 = vmatmul.mubr.f32.gmra.mrb[0].mxu0 %v1460
      %v1661 = vpop.f32.mrb[0].mxu0
      %v1662 = vadd.f32 0.0, %v1661
      %v1663 = vpop.f32.mrb[0].mxu0
      %1664 = vmatprep.mubr.f32.mxu0 0.0
      %1665 = vmatmul.mubr.f32.gmra.mrb[0].mxu0 %v1463
      %v1666 = vpop.f32.mrb[0].mxu0
      %v1667 = vadd.f32 0.0, %v1666
      %v1668 = vpop.f32.mrb[0].mxu0
      %1669 = vmatprep.mubr.f32.mxu0 0.0
      %1670 = vmatmul.mubr.f32.gmra.mrb[0].mxu0 %v1466
      %v1671 = vpop.f32.mrb[0].mxu0
      %v1672 = vadd.f32 0.0, %v1671
      %v1673 = vpop.f32.mrb[0].mxu0
      %1674 = vmatprep.mubr.f32.mxu0 0.0
      %1675 = vmatmul.mubr.f32.gmra.mrb[0].mxu0 %v1469
      %v1676 = vpop.f32.mrb[0].mxu0
      %v1677 = vadd.f32 0.0, %v1676
      %v1678 = vpop.f32.mrb[0].mxu0
      %1679 = vmatprep.mubr.f32.mxu0 0.0
      %1680 = vmatmul.mubr.f32.gmra.mrb[0].mxu0 %v1472
      %v1681 = vpop.f32.mrb[0].mxu0
      %v1682 = vadd.f32 0.0, %v1681
      %v1683 = vpop.f32.mrb[0].mxu0
      %1684 = vmatprep.mubr.f32.mxu0 0.0
      %1685 = vmatmul.mubr.f32.gmra.mrb[0].mxu0 %v1475
      %v1686 = vpop.f32.mrb[0].mxu0
      %v1687 = vadd.f32 0.0, %v1686
      %v1688 = vpop.f32.mrb[0].mxu0
      %1689 = vmatprep.mubr.f32.mxu0 0.0
      %1690 = vmatmul.mubr.f32.gmra.mrb[0].mxu0 %v1478
      %v1691 = vpop.f32.mrb[0].mxu0
      %v1692 = vadd.f32 0.0, %v1691
      %v1693 = vpop.f32.mrb[0].mxu0
      %1694 = vmatprep.mubr.f32.mxu0 0.0
      %1695 = vmatmul.mubr.f32.gmra.mrb[0].mxu0 %v1481
      %v1696 = vpop.f32.mrb[0].mxu0
      %v1697 = vadd.f32 0.0, %v1696
      %v1698 = vpop.f32.mrb[0].mxu0
      %1699 = vmatprep.mubr.f32.mxu0 0.0
      %1700 = vmatmul.mubr.f32.gmra.mrb[0].mxu0 %v1484
      %v1701 = vpop.f32.mrb[0].mxu0
      %v1702 = vadd.f32 0.0, %v1701
      %v1703 = vpop.f32.mrb[0].mxu0
      %1704 = vmatprep.mubr.f32.mxu0 0.0
      %1705 = vmatmul.mubr.f32.gmra.mrb[0].mxu0 %v1487
      %v1706 = vpop.f32.mrb[0].mxu0
      %v1707 = vadd.f32 0.0, %v1706
      %v1708 = vpop.f32.mrb[0].mxu0
      %1709 = vmatprep.mubr.f32.mxu0 0.0
      %1710 = vmatmul.mubr.f32.gmra.mrb[0].mxu0 %v1490
      %v1711 = vpop.f32.mrb[0].mxu0
      %v1712 = vadd.f32 0.0, %v1711
      %v1713 = vpop.f32.mrb[0].mxu0
      %1714 = vmatprep.mubr.f32.mxu0 0.0
      %1715 = vmatmul.mubr.f32.gmra.mrb[0].mxu0 %v1493
      %v1716 = vpop.f32.mrb[0].mxu0
      %v1717 = vadd.f32 0.0, %v1716
      %v1718 = vpop.f32.mrb[0].mxu0
      %1719 = vdwg.mxu0
      %v1720 = vadd.f32 %v1326, %v1562
      %v1721 = vadd.f32 %v1327, %v1567
      %v1722 = vadd.f32 %v1328, %v1572
      %v1723 = vadd.f32 %v1329, %v1577
      %v1724 = vadd.f32 %v1330, %v1582
      %v1725 = vadd.f32 %v1331, %v1587
      %v1726 = vadd.f32 %v1332, %v1592
      %v1727 = vadd.f32 %v1333, %v1597
      %v1728 = vadd.f32 %v1334, %v1602
      %v1729 = vadd.f32 %v1335, %v1607
      %v1730 = vadd.f32 %v1336, %v1612
      %v1731 = vadd.f32 %v1337, %v1617
      %v1732 = vadd.f32 %v1338, %v1622
      %v1733 = vadd.f32 %v1339, %v1627
      %v1734 = vadd.f32 %v1340, %v1632
      %v1735 = vadd.f32 %v1341, %v1637
      %v1736 = vadd.f32 %v1342, %v1642
      %v1737 = vadd.f32 %v1343, %v1647
      %v1738 = vadd.f32 %v1344, %v1652
      %v1739 = vadd.f32 %v1345, %v1657
      %v1740 = vadd.f32 %v1346, %v1662
      %v1741 = vadd.f32 %v1347, %v1667
      %v1742 = vadd.f32 %v1348, %v1672
      %v1743 = vadd.f32 %v1349, %v1677
      %v1744 = vadd.f32 %v1350, %v1682
      %v1745 = vadd.f32 %v1351, %v1687
      %v1746 = vadd.f32 %v1352, %v1692
      %v1747 = vadd.f32 %v1353, %v1697
      %v1748 = vadd.f32 %v1354, %v1702
      %v1749 = vadd.f32 %v1355, %v1707
      %v1750 = vadd.f32 %v1356, %v1712
      %v1751 = vadd.f32 %v1357, %v1717
      %1784 = vrot.lane.b32.xlu0 %v1720, 96
      %v1785 = vpop.permute.xlu0 %1784
      %1786 = vrot.lane.b32.xlu0 %v1721, 96
      %v1787 = vpop.permute.xlu0 %1786
      %1788 = vrot.lane.b32.xlu0 %v1722, 96
      %v1789 = vpop.permute.xlu0 %1788
      %1790 = vrot.lane.b32.xlu0 %v1723, 96
      %v1791 = vpop.permute.xlu0 %1790
      %1792 = vrot.lane.b32.xlu0 %v1724, 96
      %v1793 = vpop.permute.xlu0 %1792
      %1794 = vrot.lane.b32.xlu0 %v1725, 96
      %v1795 = vpop.permute.xlu0 %1794
      %1796 = vrot.lane.b32.xlu0 %v1726, 96
      %v1797 = vpop.permute.xlu0 %1796
      %1798 = vrot.lane.b32.xlu0 %v1727, 96
      %v1799 = vpop.permute.xlu0 %1798
      %1800 = vrot.lane.b32.xlu0 %v1728, 96
      %v1801 = vpop.permute.xlu0 %1800
      %1802 = vrot.lane.b32.xlu0 %v1729, 96
      %v1803 = vpop.permute.xlu0 %1802
      %1804 = vrot.lane.b32.xlu0 %v1730, 96
      %v1805 = vpop.permute.xlu0 %1804
      %1806 = vrot.lane.b32.xlu0 %v1731, 96
      %v1807 = vpop.permute.xlu0 %1806
      %1808 = vrot.lane.b32.xlu0 %v1732, 96
      %v1809 = vpop.permute.xlu0 %1808
      %1810 = vrot.lane.b32.xlu0 %v1733, 96
      %v1811 = vpop.permute.xlu0 %1810
      %1812 = vrot.lane.b32.xlu0 %v1734, 96
      %v1813 = vpop.permute.xlu0 %1812
      %1814 = vrot.lane.b32.xlu0 %v1735, 96
      %v1815 = vpop.permute.xlu0 %1814
      %1816 = vrot.lane.b32.xlu0 %v1736, 96
      %v1817 = vpop.permute.xlu0 %1816
      %1818 = vrot.lane.b32.xlu0 %v1737, 96
      %v1819 = vpop.permute.xlu0 %1818
      %1820 = vrot.lane.b32.xlu0 %v1738, 96
      %v1821 = vpop.permute.xlu0 %1820
      %1822 = vrot.lane.b32.xlu0 %v1739, 96
      %v1823 = vpop.permute.xlu0 %1822
      %1824 = vrot.lane.b32.xlu0 %v1740, 96
      %v1825 = vpop.permute.xlu0 %1824
      %1826 = vrot.lane.b32.xlu0 %v1741, 96
      %v1827 = vpop.permute.xlu0 %1826
      %1828 = vrot.lane.b32.xlu0 %v1742, 96
      %v1829 = vpop.permute.xlu0 %1828
      %1830 = vrot.lane.b32.xlu0 %v1743, 96
      %v1831 = vpop.permute.xlu0 %1830
      %1832 = vrot.lane.b32.xlu0 %v1744, 96
      %v1833 = vpop.permute.xlu0 %1832
      %1834 = vrot.lane.b32.xlu0 %v1745, 96
      %v1835 = vpop.permute.xlu0 %1834
      %1836 = vrot.lane.b32.xlu0 %v1746, 96
      %v1837 = vpop.permute.xlu0 %1836
      %1838 = vrot.lane.b32.xlu0 %v1747, 96
      %v1839 = vpop.permute.xlu0 %1838
      %1840 = vrot.lane.b32.xlu0 %v1748, 96
      %v1841 = vpop.permute.xlu0 %1840
      %1842 = vrot.lane.b32.xlu0 %v1749, 96
      %v1843 = vpop.permute.xlu0 %1842
      %1844 = vrot.lane.b32.xlu0 %v1750, 96
      %v1845 = vpop.permute.xlu0 %1844
      %1846 = vrot.lane.b32.xlu0 %v1751, 96
      %v1847 = vpop.permute.xlu0 %1846
      %v1880 = vmax.f32 %v1720, %v1785
      %v1881 = vmax.f32 %v1721, %v1787
      %v1882 = vmax.f32 %v1722, %v1789
      %v1883 = vmax.f32 %v1723, %v1791
      %v1884 = vmax.f32 %v1724, %v1793
      %v1885 = vmax.f32 %v1725, %v1795
      %v1886 = vmax.f32 %v1726, %v1797
      %v1887 = vmax.f32 %v1727, %v1799
      %v1888 = vmax.f32 %v1728, %v1801
      %v1889 = vmax.f32 %v1729, %v1803
      %v1890 = vmax.f32 %v1730, %v1805
      %v1891 = vmax.f32 %v1731, %v1807
      %v1892 = vmax.f32 %v1732, %v1809
      %v1893 = vmax.f32 %v1733, %v1811
      %v1894 = vmax.f32 %v1734, %v1813
      %v1895 = vmax.f32 %v1735, %v1815
      %v1896 = vmax.f32 %v1736, %v1817
      %v1897 = vmax.f32 %v1737, %v1819
      %v1898 = vmax.f32 %v1738, %v1821
      %v1899 = vmax.f32 %v1739, %v1823
      %v1900 = vmax.f32 %v1740, %v1825
      %v1901 = vmax.f32 %v1741, %v1827
      %v1902 = vmax.f32 %v1742, %v1829
      %v1903 = vmax.f32 %v1743, %v1831
      %v1904 = vmax.f32 %v1744, %v1833
      %v1905 = vmax.f32 %v1745, %v1835
      %v1906 = vmax.f32 %v1746, %v1837
      %v1907 = vmax.f32 %v1747, %v1839
      %v1908 = vmax.f32 %v1748, %v1841
      %v1909 = vmax.f32 %v1749, %v1843
      %v1910 = vmax.f32 %v1750, %v1845
      %v1911 = vmax.f32 %v1751, %v1847
      %1944 = vrot.lane.b32.xlu0 %v1880, 64
      %v1945 = vpop.permute.xlu0 %1944
      %1946 = vrot.lane.b32.xlu0 %v1881, 64
      %v1947 = vpop.permute.xlu0 %1946
      %1948 = vrot.lane.b32.xlu0 %v1882, 64
      %v1949 = vpop.permute.xlu0 %1948
      %1950 = vrot.lane.b32.xlu0 %v1883, 64
      %v1951 = vpop.permute.xlu0 %1950
      %1952 = vrot.lane.b32.xlu0 %v1884, 64
      %v1953 = vpop.permute.xlu0 %1952
      %1954 = vrot.lane.b32.xlu0 %v1885, 64
      %v1955 = vpop.permute.xlu0 %1954
      %1956 = vrot.lane.b32.xlu0 %v1886, 64
      %v1957 = vpop.permute.xlu0 %1956
      %1958 = vrot.lane.b32.xlu0 %v1887, 64
      %v1959 = vpop.permute.xlu0 %1958
      %1960 = vrot.lane.b32.xlu0 %v1888, 64
      %v1961 = vpop.permute.xlu0 %1960
      %1962 = vrot.lane.b32.xlu0 %v1889, 64
      %v1963 = vpop.permute.xlu0 %1962
      %1964 = vrot.lane.b32.xlu0 %v1890, 64
      %v1965 = vpop.permute.xlu0 %1964
      %1966 = vrot.lane.b32.xlu0 %v1891, 64
      %v1967 = vpop.permute.xlu0 %1966
      %1968 = vrot.lane.b32.xlu0 %v1892, 64
      %v1969 = vpop.permute.xlu0 %1968
      %1970 = vrot.lane.b32.xlu0 %v1893, 64
      %v1971 = vpop.permute.xlu0 %1970
      %1972 = vrot.lane.b32.xlu0 %v1894, 64
      %v1973 = vpop.permute.xlu0 %1972
      %1974 = vrot.lane.b32.xlu0 %v1895, 64
      %v1975 = vpop.permute.xlu0 %1974
      %1976 = vrot.lane.b32.xlu0 %v1896, 64
      %v1977 = vpop.permute.xlu0 %1976
      %1978 = vrot.lane.b32.xlu0 %v1897, 64
      %v1979 = vpop.permute.xlu0 %1978
      %1980 = vrot.lane.b32.xlu0 %v1898, 64
      %v1981 = vpop.permute.xlu0 %1980
      %1982 = vrot.lane.b32.xlu0 %v1899, 64
      %v1983 = vpop.permute.xlu0 %1982
      %1984 = vrot.lane.b32.xlu0 %v1900, 64
      %v1985 = vpop.permute.xlu0 %1984
      %1986 = vrot.lane.b32.xlu0 %v1901, 64
      %v1987 = vpop.permute.xlu0 %1986
      %1988 = vrot.lane.b32.xlu0 %v1902, 64
      %v1989 = vpop.permute.xlu0 %1988
      %1990 = vrot.lane.b32.xlu0 %v1903, 64
      %v1991 = vpop.permute.xlu0 %1990
      %1992 = vrot.lane.b32.xlu0 %v1904, 64
      %v1993 = vpop.permute.xlu0 %1992
      %1994 = vrot.lane.b32.xlu0 %v1905, 64
      %v1995 = vpop.permute.xlu0 %1994
      %1996 = vrot.lane.b32.xlu0 %v1906, 64
      %v1997 = vpop.permute.xlu0 %1996
      %1998 = vrot.lane.b32.xlu0 %v1907, 64
      %v1999 = vpop.permute.xlu0 %1998
      %2000 = vrot.lane.b32.xlu0 %v1908, 64
      %v2001 = vpop.permute.xlu0 %2000
      %2002 = vrot.lane.b32.xlu0 %v1909, 64
      %v2003 = vpop.permute.xlu0 %2002
      %2004 = vrot.lane.b32.xlu0 %v1910, 64
      %v2005 = vpop.permute.xlu0 %2004
      %2006 = vrot.lane.b32.xlu0 %v1911, 64
      %v2007 = vpop.permute.xlu0 %2006
      %v2040 = vmax.f32 %v1880, %v1945
      %v2041 = vmax.f32 %v1881, %v1947
      %v2042 = vmax.f32 %v1882, %v1949
      %v2043 = vmax.f32 %v1883, %v1951
      %v2044 = vmax.f32 %v1884, %v1953
      %v2045 = vmax.f32 %v1885, %v1955
      %v2046 = vmax.f32 %v1886, %v1957
      %v2047 = vmax.f32 %v1887, %v1959
      %v2048 = vmax.f32 %v1888, %v1961
      %v2049 = vmax.f32 %v1889, %v1963
      %v2050 = vmax.f32 %v1890, %v1965
      %v2051 = vmax.f32 %v1891, %v1967
      %v2052 = vmax.f32 %v1892, %v1969
      %v2053 = vmax.f32 %v1893, %v1971
      %v2054 = vmax.f32 %v1894, %v1973
      %v2055 = vmax.f32 %v1895, %v1975
      %v2056 = vmax.f32 %v1896, %v1977
      %v2057 = vmax.f32 %v1897, %v1979
      %v2058 = vmax.f32 %v1898, %v1981
      %v2059 = vmax.f32 %v1899, %v1983
      %v2060 = vmax.f32 %v1900, %v1985
      %v2061 = vmax.f32 %v1901, %v1987
      %v2062 = vmax.f32 %v1902, %v1989
      %v2063 = vmax.f32 %v1903, %v1991
      %v2064 = vmax.f32 %v1904, %v1993
      %v2065 = vmax.f32 %v1905, %v1995
      %v2066 = vmax.f32 %v1906, %v1997
      %v2067 = vmax.f32 %v1907, %v1999
      %v2068 = vmax.f32 %v1908, %v2001
      %v2069 = vmax.f32 %v1909, %v2003
      %v2070 = vmax.f32 %v1910, %v2005
      %v2071 = vmax.f32 %v1911, %v2007
      %v2072 = vld [vmem:[%s2] sm:$0x1]
      %v2074 = vlaneseq
      %v2075 = vshrl.u32 %v2074, 7
      %v2076 = vsub.s32 0, %v2075
      %v2077 = vrot.slane %v2072, %v2076
      %v2079 = vadd.f32 %v2040, %v2077
      %v2080 = vadd.f32 %v2041, %v2077
      %v2081 = vadd.f32 %v2042, %v2077
      %v2082 = vadd.f32 %v2043, %v2077
      %v2083 = vadd.f32 %v2044, %v2077
      %v2084 = vadd.f32 %v2045, %v2077
      %v2085 = vadd.f32 %v2046, %v2077
      %v2086 = vadd.f32 %v2047, %v2077
      %v2087 = vadd.f32 %v2048, %v2077
      %v2088 = vadd.f32 %v2049, %v2077
      %v2089 = vadd.f32 %v2050, %v2077
      %v2090 = vadd.f32 %v2051, %v2077
      %v2091 = vadd.f32 %v2052, %v2077
      %v2092 = vadd.f32 %v2053, %v2077
      %v2093 = vadd.f32 %v2054, %v2077
      %v2094 = vadd.f32 %v2055, %v2077
      %v2095 = vadd.f32 %v2056, %v2077
      %v2096 = vadd.f32 %v2057, %v2077
      %v2097 = vadd.f32 %v2058, %v2077
      %v2098 = vadd.f32 %v2059, %v2077
      %v2099 = vadd.f32 %v2060, %v2077
      %v2100 = vadd.f32 %v2061, %v2077
      %v2101 = vadd.f32 %v2062, %v2077
      %v2102 = vadd.f32 %v2063, %v2077
      %v2103 = vadd.f32 %v2064, %v2077
      %v2104 = vadd.f32 %v2065, %v2077
      %v2105 = vadd.f32 %v2066, %v2077
      %v2106 = vadd.f32 %v2067, %v2077
      %v2107 = vadd.f32 %v2068, %v2077
      %v2108 = vadd.f32 %v2069, %v2077
      %v2109 = vadd.f32 %v2070, %v2077
      %v2110 = vadd.f32 %v2071, %v2077
      %v2111 = vmax.f32 %v2079, 0.0
      %v2112 = vmax.f32 %v2080, 0.0
      %v2113 = vmax.f32 %v2081, 0.0
      %v2114 = vmax.f32 %v2082, 0.0
      %v2115 = vmax.f32 %v2083, 0.0
      %v2116 = vmax.f32 %v2084, 0.0
      %v2117 = vmax.f32 %v2085, 0.0
      %v2118 = vmax.f32 %v2086, 0.0
      %v2119 = vmax.f32 %v2087, 0.0
      %v2120 = vmax.f32 %v2088, 0.0
      %v2121 = vmax.f32 %v2089, 0.0
      %v2122 = vmax.f32 %v2090, 0.0
      %v2123 = vmax.f32 %v2091, 0.0
      %v2124 = vmax.f32 %v2092, 0.0
      %v2125 = vmax.f32 %v2093, 0.0
      %v2126 = vmax.f32 %v2094, 0.0
      %v2127 = vmax.f32 %v2095, 0.0
      %v2128 = vmax.f32 %v2096, 0.0
      %v2129 = vmax.f32 %v2097, 0.0
      %v2130 = vmax.f32 %v2098, 0.0
      %v2131 = vmax.f32 %v2099, 0.0
      %v2132 = vmax.f32 %v2100, 0.0
      %v2133 = vmax.f32 %v2101, 0.0
      %v2134 = vmax.f32 %v2102, 0.0
      %v2135 = vmax.f32 %v2103, 0.0
      %v2136 = vmax.f32 %v2104, 0.0
      %v2137 = vmax.f32 %v2105, 0.0
      %v2138 = vmax.f32 %v2106, 0.0
      %v2139 = vmax.f32 %v2107, 0.0
      %v2140 = vmax.f32 %v2108, 0.0
      %v2141 = vmax.f32 %v2109, 0.0
      %v2142 = vmax.f32 %v2110, 0.0
      %vm2143 = vcmask 261120
      %2144 = vst.msk [vmem:[%s172] sm:$0xff] %vm2143, %v2111
      %2145 = vst.msk [vmem:[%s172 + $0x8] sm:$0xff] %vm2143, %v2112
      %2146 = vst.msk [vmem:[%s172 + $0x10] sm:$0xff] %vm2143, %v2113
      %2147 = vst.msk [vmem:[%s172 + $0x18] sm:$0xff] %vm2143, %v2114
      %2148 = vst.msk [vmem:[%s172 + $0x20] sm:$0xff] %vm2143, %v2115
      %2149 = vst.msk [vmem:[%s172 + $0x28] sm:$0xff] %vm2143, %v2116
      %2150 = vst.msk [vmem:[%s172 + $0x30] sm:$0xff] %vm2143, %v2117
      %2151 = vst.msk [vmem:[%s172 + $0x38] sm:$0xff] %vm2143, %v2118
      %2152 = vst.msk [vmem:[%s172 + $0x40] sm:$0xff] %vm2143, %v2119
      %2153 = vst.msk [vmem:[%s172 + $0x48] sm:$0xff] %vm2143, %v2120
      %2154 = vst.msk [vmem:[%s172 + $0x50] sm:$0xff] %vm2143, %v2121
      %2155 = vst.msk [vmem:[%s172 + $0x58] sm:$0xff] %vm2143, %v2122
      %2156 = vst.msk [vmem:[%s172 + $0x60] sm:$0xff] %vm2143, %v2123
      %2157 = vst.msk [vmem:[%s172 + $0x68] sm:$0xff] %vm2143, %v2124
      %2158 = vst.msk [vmem:[%s172 + $0x70] sm:$0xff] %vm2143, %v2125
      %2159 = vst.msk [vmem:[%s172 + $0x78] sm:$0xff] %vm2143, %v2126
      %2160 = vst.msk [vmem:[%s172 + $0x80] sm:$0xff] %vm2143, %v2127
      %2161 = vst.msk [vmem:[%s172 + $0x88] sm:$0xff] %vm2143, %v2128
      %2162 = vst.msk [vmem:[%s172 + $0x90] sm:$0xff] %vm2143, %v2129
      %2163 = vst.msk [vmem:[%s172 + $0x98] sm:$0xff] %vm2143, %v2130
      %2164 = vst.msk [vmem:[%s172 + $0xa0] sm:$0xff] %vm2143, %v2131
      %2165 = vst.msk [vmem:[%s172 + $0xa8] sm:$0xff] %vm2143, %v2132
      %2166 = vst.msk [vmem:[%s172 + $0xb0] sm:$0xff] %vm2143, %v2133
      %2167 = vst.msk [vmem:[%s172 + $0xb8] sm:$0xff] %vm2143, %v2134
      %2168 = vst.msk [vmem:[%s172 + $0xc0] sm:$0xff] %vm2143, %v2135
      %2169 = vst.msk [vmem:[%s172 + $0xc8] sm:$0xff] %vm2143, %v2136
      %2170 = vst.msk [vmem:[%s172 + $0xd0] sm:$0xff] %vm2143, %v2137
      %2171 = vst.msk [vmem:[%s172 + $0xd8] sm:$0xff] %vm2143, %v2138
      %2172 = vst.msk [vmem:[%s172 + $0xe0] sm:$0xff] %vm2143, %v2139
      %2173 = vst.msk [vmem:[%s172 + $0xe8] sm:$0xff] %vm2143, %v2140
      %2174 = vst.msk [vmem:[%s172 + $0xf0] sm:$0xff] %vm2143, %v2141
      %2175 = vst.msk [vmem:[%s172 + $0xf8] sm:$0xff] %vm2143, %v2142
      %s2176 = smul.u32 32, %s14
      %p2177 = scmp.lt.s32.totalorder %s2176, 63
      %s2178 = scalar_select %p2177, %s2176, 63
      %s2179 = smul.addr %s2178, 8
      %s2180 = scalar_lea.vmem %s3, %s2179
      // Predicated region
      $region33: #{cnn2_forward.4} parent=31 // pred_check
        %p2181 = pneg %p100
      $region34: #{cnn2_forward.4} parent=31 // pred_check_branch
        %2183 = sbr.rel (%p2181) target = $region36
      $region35: #{cnn2_forward.4} parent=31 // pred_region
        %s2184 = smul.u32 32, %s14
      $region36: #{cnn2_forward.4} parent=31 // pred_fallthru
        _
    $region32: #{cnn2_forward.4} parent=5 // pred_fallthru
      _
    %p2185 = scmp.le.s32.totalorder 2, %s9
    // Predicated region
    $region37: #{cnn2_forward.4} parent=5 // pred_check
      %p2186 = pneg %p2185
    $region38: #{cnn2_forward.4} parent=5 // pred_check_branch
      %2188 = sbr.rel (%p2186) target = $region40
    $region39: #{cnn2_forward.4} parent=5 // pred_region
      %s2189 = ssub.s32 %s9, 2
      // Predicated region
      $region41: #{cnn2_forward.4} parent=39 // pred_check
        %p2190 = pneg %p106
      $region42: #{cnn2_forward.4} parent=39 // pred_check_branch
        %2192 = sbr.rel (%p2190) target = $region44
      $region43: #{cnn2_forward.4} parent=39 // pred_region
        %s2193 = smul.u32 32, %s15
        %p2194 = scmp.lt.s32.totalorder %s2193, 63
        %s2195 = scalar_select %p2194, %s2193, 63
        %s2196 = smul.addr %s2195, 8
        %s2197 = scalar_lea.vmem %s3, %s2196
      $region44: #{cnn2_forward.4} parent=39 // pred_fallthru
        _
    $region40: #{cnn2_forward.4} parent=5 // pred_fallthru
      _
  $region6: #{cnn2_forward.4} parent=0 // loop_footer
    %s13 = sadd.s32 1, %s9
  $region7: #{cnn2_forward.4} parent=0 // loop_footer_branch
    %8 = sbr.rel target = $region3
  $region8: #{cnn2_forward.4} parent=0 // loop_exit
    _

// kernel: cnn2_forward.5
$region0: #{cnn2_forward.5}
  #allocation0 [shape = 'u32[]', space=smem, size = 0x4, offset = 0x4, fixed_abs, tag = 'smem constant byte address 0x4 - core index']
  #allocation1 [shape = 'u32[144,128]{1,0:T(1,128)}', space=vmem, size = 0x12000, scoped, tag = 'internal scratch']
  %s0 = inlined_call_operand.vmem [shape: f32[8,2048], index: 0, kind: input, shape index: {}]
  %s1 = inlined_call_operand.vmem [shape: f32[2048,10], index: 1, kind: input, shape index: {}]
  %s2 = inlined_call_operand.vmem [shape: f32[1,10], index: 2, kind: input, shape index: {}]
  %s3 = inlined_call_operand.hbm [shape: f32[8,10], index: 3, kind: output, shape index: {}]
  %s4 = sld [smem:[#allocation0]]
  $region22: #{cnn2_forward.5} parent=0
    _
  %s6 = ssub.s32 1, %s4
  %s7 = scalar_select 0, %s6, %s4
  $region1: #{cnn2_forward.5} parent=0
    #allocation2 [shape = 'u8[4096]{0}', space=vmem, size = 0x1000, scoped, tag = 'output window, operand 0, single buffered']
    #allocation3 [shape = 's32[1]{0}', space=sflag, size = 0x4, scoped, tag = 'scoped memory for cnn2_forward.5']
    %8 = vsyncpa [#allocation3], 0
    // Predicated region
    $region2: #{cnn2_forward.5} parent=1 // pred_check
      _
    $region3: #{cnn2_forward.5} parent=1 // pred_check_branch
      %10 = sbr.rel (0) target = $region5
    $region4: #{cnn2_forward.5} parent=1 // pred_region
      _
    $region5: #{cnn2_forward.5} parent=1 // pred_fallthru
      _
    // Predicated region
    $region6: #{cnn2_forward.5} parent=1 // pred_check
      _
    $region7: #{cnn2_forward.5} parent=1 // pred_check_branch
      %12 = sbr.rel (0) target = $region9
    $region8: #{cnn2_forward.5} parent=1 // pred_region
      _
    $region9: #{cnn2_forward.5} parent=1 // pred_fallthru
      _
    // Predicated region
    $region10: #{cnn2_forward.5} parent=1 // pred_check
      _
    $region11: #{cnn2_forward.5} parent=1 // pred_check_branch
      %14 = sbr.rel (0) target = $region13
    $region12: #{cnn2_forward.5} parent=1 // pred_region
      _
    $region13: #{cnn2_forward.5} parent=1 // pred_fallthru
      _
    %v15 = vld [vmem:[%s0] sm:$0xff]
    %v16 = vld [vmem:[%s0 + $0x8] sm:$0xff]
    %v17 = vld [vmem:[%s0 + $0x10] sm:$0xff]
    %v18 = vld [vmem:[%s0 + $0x18] sm:$0xff]
    %v19 = vld [vmem:[%s0 + $0x20] sm:$0xff]
    %v20 = vld [vmem:[%s0 + $0x28] sm:$0xff]
    %v21 = vld [vmem:[%s0 + $0x30] sm:$0xff]
    %v22 = vld [vmem:[%s0 + $0x38] sm:$0xff]
    %v23 = vld [vmem:[%s0 + $0x40] sm:$0xff]
    %v24 = vld [vmem:[%s0 + $0x48] sm:$0xff]
    %v25 = vld [vmem:[%s0 + $0x50] sm:$0xff]
    %v26 = vld [vmem:[%s0 + $0x58] sm:$0xff]
    %v27 = vld [vmem:[%s0 + $0x60] sm:$0xff]
    %v28 = vld [vmem:[%s0 + $0x68] sm:$0xff]
    %v29 = vld [vmem:[%s0 + $0x70] sm:$0xff]
    %v30 = vld [vmem:[%s0 + $0x78] sm:$0xff]
    %v31 = vld [vmem:[%s1] sm:$0xff]
    %v32 = vld [vmem:[%s1 + $0x8] sm:$0xff]
    %v33 = vld [vmem:[%s1 + $0x10] sm:$0xff]
    %v34 = vld [vmem:[%s1 + $0x18] sm:$0xff]
    %v35 = vld [vmem:[%s1 + $0x20] sm:$0xff]
    %v36 = vld [vmem:[%s1 + $0x28] sm:$0xff]
    %v37 = vld [vmem:[%s1 + $0x30] sm:$0xff]
    %v38 = vld [vmem:[%s1 + $0x38] sm:$0xff]
    %v39 = vld [vmem:[%s1 + $0x40] sm:$0xff]
    %v40 = vld [vmem:[%s1 + $0x48] sm:$0xff]
    %v41 = vld [vmem:[%s1 + $0x50] sm:$0xff]
    %v42 = vld [vmem:[%s1 + $0x58] sm:$0xff]
    %v43 = vld [vmem:[%s1 + $0x60] sm:$0xff]
    %v44 = vld [vmem:[%s1 + $0x68] sm:$0xff]
    %v45 = vld [vmem:[%s1 + $0x70] sm:$0xff]
    %v46 = vld [vmem:[%s1 + $0x78] sm:$0xff]
    %v47 = vld [vmem:[%s1 + $0x80] sm:$0xff]
    %v48 = vld [vmem:[%s1 + $0x88] sm:$0xff]
    %v49 = vld [vmem:[%s1 + $0x90] sm:$0xff]
    %v50 = vld [vmem:[%s1 + $0x98] sm:$0xff]
    %v51 = vld [vmem:[%s1 + $0xa0] sm:$0xff]
    %v52 = vld [vmem:[%s1 + $0xa8] sm:$0xff]
    %v53 = vld [vmem:[%s1 + $0xb0] sm:$0xff]
    %v54 = vld [vmem:[%s1 + $0xb8] sm:$0xff]
    %v55 = vld [vmem:[%s1 + $0xc0] sm:$0xff]
    %v56 = vld [vmem:[%s1 + $0xc8] sm:$0xff]
    %v57 = vld [vmem:[%s1 + $0xd0] sm:$0xff]
    %v58 = vld [vmem:[%s1 + $0xd8] sm:$0xff]
    %v59 = vld [vmem:[%s1 + $0xe0] sm:$0xff]
    %v60 = vld [vmem:[%s1 + $0xe8] sm:$0xff]
    %v61 = vld [vmem:[%s1 + $0xf0] sm:$0xff]
    %v62 = vld [vmem:[%s1 + $0xf8] sm:$0xff]
    %v63 = vld [vmem:[%s1 + $0x100] sm:$0xff]
    %v64 = vld [vmem:[%s1 + $0x108] sm:$0xff]
    %v65 = vld [vmem:[%s1 + $0x110] sm:$0xff]
    %v66 = vld [vmem:[%s1 + $0x118] sm:$0xff]
    %v67 = vld [vmem:[%s1 + $0x120] sm:$0xff]
    %v68 = vld [vmem:[%s1 + $0x128] sm:$0xff]
    %v69 = vld [vmem:[%s1 + $0x130] sm:$0xff]
    %v70 = vld [vmem:[%s1 + $0x138] sm:$0xff]
    %v71 = vld [vmem:[%s1 + $0x140] sm:$0xff]
    %v72 = vld [vmem:[%s1 + $0x148] sm:$0xff]
    %v73 = vld [vmem:[%s1 + $0x150] sm:$0xff]
    %v74 = vld [vmem:[%s1 + $0x158] sm:$0xff]
    %v75 = vld [vmem:[%s1 + $0x160] sm:$0xff]
    %v76 = vld [vmem:[%s1 + $0x168] sm:$0xff]
    %v77 = vld [vmem:[%s1 + $0x170] sm:$0xff]
    %v78 = vld [vmem:[%s1 + $0x178] sm:$0xff]
    %v79 = vld [vmem:[%s1 + $0x180] sm:$0xff]
    %v80 = vld [vmem:[%s1 + $0x188] sm:$0xff]
    %v81 = vld [vmem:[%s1 + $0x190] sm:$0xff]
    %v82 = vld [vmem:[%s1 + $0x198] sm:$0xff]
    %v83 = vld [vmem:[%s1 + $0x1a0] sm:$0xff]
    %v84 = vld [vmem:[%s1 + $0x1a8] sm:$0xff]
    %v85 = vld [vmem:[%s1 + $0x1b0] sm:$0xff]
    %v86 = vld [vmem:[%s1 + $0x1b8] sm:$0xff]
    %v87 = vld [vmem:[%s1 + $0x1c0] sm:$0xff]
    %v88 = vld [vmem:[%s1 + $0x1c8] sm:$0xff]
    %v89 = vld [vmem:[%s1 + $0x1d0] sm:$0xff]
    %v90 = vld [vmem:[%s1 + $0x1d8] sm:$0xff]
    %v91 = vld [vmem:[%s1 + $0x1e0] sm:$0xff]
    %v92 = vld [vmem:[%s1 + $0x1e8] sm:$0xff]
    %v93 = vld [vmem:[%s1 + $0x1f0] sm:$0xff]
    %v94 = vld [vmem:[%s1 + $0x1f8] sm:$0xff]
    %v95 = vld [vmem:[%s1 + $0x200] sm:$0xff]
    %v96 = vld [vmem:[%s1 + $0x208] sm:$0xff]
    %v97 = vld [vmem:[%s1 + $0x210] sm:$0xff]
    %v98 = vld [vmem:[%s1 + $0x218] sm:$0xff]
    %v99 = vld [vmem:[%s1 + $0x220] sm:$0xff]
    %v100 = vld [vmem:[%s1 + $0x228] sm:$0xff]
    %v101 = vld [vmem:[%s1 + $0x230] sm:$0xff]
    %v102 = vld [vmem:[%s1 + $0x238] sm:$0xff]
    %v103 = vld [vmem:[%s1 + $0x240] sm:$0xff]
    %v104 = vld [vmem:[%s1 + $0x248] sm:$0xff]
    %v105 = vld [vmem:[%s1 + $0x250] sm:$0xff]
    %v106 = vld [vmem:[%s1 + $0x258] sm:$0xff]
    %v107 = vld [vmem:[%s1 + $0x260] sm:$0xff]
    %v108 = vld [vmem:[%s1 + $0x268] sm:$0xff]
    %v109 = vld [vmem:[%s1 + $0x270] sm:$0xff]
    %v110 = vld [vmem:[%s1 + $0x278] sm:$0xff]
    %v111 = vld [vmem:[%s1 + $0x280] sm:$0xff]
    %v112 = vld [vmem:[%s1 + $0x288] sm:$0xff]
    %v113 = vld [vmem:[%s1 + $0x290] sm:$0xff]
    %v114 = vld [vmem:[%s1 + $0x298] sm:$0xff]
    %v115 = vld [vmem:[%s1 + $0x2a0] sm:$0xff]
    %v116 = vld [vmem:[%s1 + $0x2a8] sm:$0xff]
    %v117 = vld [vmem:[%s1 + $0x2b0] sm:$0xff]
    %v118 = vld [vmem:[%s1 + $0x2b8] sm:$0xff]
    %v119 = vld [vmem:[%s1 + $0x2c0] sm:$0xff]
    %v120 = vld [vmem:[%s1 + $0x2c8] sm:$0xff]
    %v121 = vld [vmem:[%s1 + $0x2d0] sm:$0xff]
    %v122 = vld [vmem:[%s1 + $0x2d8] sm:$0xff]
    %v123 = vld [vmem:[%s1 + $0x2e0] sm:$0xff]
    %v124 = vld [vmem:[%s1 + $0x2e8] sm:$0xff]
    %v125 = vld [vmem:[%s1 + $0x2f0] sm:$0xff]
    %v126 = vld [vmem:[%s1 + $0x2f8] sm:$0xff]
    %v127 = vld [vmem:[%s1 + $0x300] sm:$0xff]
    %v128 = vld [vmem:[%s1 + $0x308] sm:$0xff]
    %v129 = vld [vmem:[%s1 + $0x310] sm:$0xff]
    %v130 = vld [vmem:[%s1 + $0x318] sm:$0xff]
    %v131 = vld [vmem:[%s1 + $0x320] sm:$0xff]
    %v132 = vld [vmem:[%s1 + $0x328] sm:$0xff]
    %v133 = vld [vmem:[%s1 + $0x330] sm:$0xff]
    %v134 = vld [vmem:[%s1 + $0x338] sm:$0xff]
    %v135 = vld [vmem:[%s1 + $0x340] sm:$0xff]
    %v136 = vld [vmem:[%s1 + $0x348] sm:$0xff]
    %v137 = vld [vmem:[%s1 + $0x350] sm:$0xff]
    %v138 = vld [vmem:[%s1 + $0x358] sm:$0xff]
    %v139 = vld [vmem:[%s1 + $0x360] sm:$0xff]
    %v140 = vld [vmem:[%s1 + $0x368] sm:$0xff]
    %v141 = vld [vmem:[%s1 + $0x370] sm:$0xff]
    %v142 = vld [vmem:[%s1 + $0x378] sm:$0xff]
    %v143 = vld [vmem:[%s1 + $0x380] sm:$0xff]
    %v144 = vld [vmem:[%s1 + $0x388] sm:$0xff]
    %v145 = vld [vmem:[%s1 + $0x390] sm:$0xff]
    %v146 = vld [vmem:[%s1 + $0x398] sm:$0xff]
    %v147 = vld [vmem:[%s1 + $0x3a0] sm:$0xff]
    %v148 = vld [vmem:[%s1 + $0x3a8] sm:$0xff]
    %v149 = vld [vmem:[%s1 + $0x3b0] sm:$0xff]
    %v150 = vld [vmem:[%s1 + $0x3b8] sm:$0xff]
    %v151 = vld [vmem:[%s1 + $0x3c0] sm:$0xff]
    %v152 = vld [vmem:[%s1 + $0x3c8] sm:$0xff]
    %v153 = vld [vmem:[%s1 + $0x3d0] sm:$0xff]
    %v154 = vld [vmem:[%s1 + $0x3d8] sm:$0xff]
    %v155 = vld [vmem:[%s1 + $0x3e0] sm:$0xff]
    %v156 = vld [vmem:[%s1 + $0x3e8] sm:$0xff]
    %v157 = vld [vmem:[%s1 + $0x3f0] sm:$0xff]
    %v158 = vld [vmem:[%s1 + $0x3f8] sm:$0xff]
    %v159 = vld [vmem:[%s1 + $0x400] sm:$0xff]
    %v160 = vld [vmem:[%s1 + $0x408] sm:$0xff]
    %v161 = vld [vmem:[%s1 + $0x410] sm:$0xff]
    %v162 = vld [vmem:[%s1 + $0x418] sm:$0xff]
    %v163 = vld [vmem:[%s1 + $0x420] sm:$0xff]
    %v164 = vld [vmem:[%s1 + $0x428] sm:$0xff]
    %v165 = vld [vmem:[%s1 + $0x430] sm:$0xff]
    %v166 = vld [vmem:[%s1 + $0x438] sm:$0xff]
    %v167 = vld [vmem:[%s1 + $0x440] sm:$0xff]
    %v168 = vld [vmem:[%s1 + $0x448] sm:$0xff]
    %v169 = vld [vmem:[%s1 + $0x450] sm:$0xff]
    %v170 = vld [vmem:[%s1 + $0x458] sm:$0xff]
    %v171 = vld [vmem:[%s1 + $0x460] sm:$0xff]
    %v172 = vld [vmem:[%s1 + $0x468] sm:$0xff]
    %v173 = vld [vmem:[%s1 + $0x470] sm:$0xff]
    %v174 = vld [vmem:[%s1 + $0x478] sm:$0xff]
    %v175 = vld [vmem:[%s1 + $0x480] sm:$0xff]
    %v176 = vld [vmem:[%s1 + $0x488] sm:$0xff]
    %v177 = vld [vmem:[%s1 + $0x490] sm:$0xff]
    %v178 = vld [vmem:[%s1 + $0x498] sm:$0xff]
    %v179 = vld [vmem:[%s1 + $0x4a0] sm:$0xff]
    %v180 = vld [vmem:[%s1 + $0x4a8] sm:$0xff]
    %v181 = vld [vmem:[%s1 + $0x4b0] sm:$0xff]
    %v182 = vld [vmem:[%s1 + $0x4b8] sm:$0xff]
    %v183 = vld [vmem:[%s1 + $0x4c0] sm:$0xff]
    %v184 = vld [vmem:[%s1 + $0x4c8] sm:$0xff]
    %v185 = vld [vmem:[%s1 + $0x4d0] sm:$0xff]
    %v186 = vld [vmem:[%s1 + $0x4d8] sm:$0xff]
    %v187 = vld [vmem:[%s1 + $0x4e0] sm:$0xff]
    %v188 = vld [vmem:[%s1 + $0x4e8] sm:$0xff]
    %v189 = vld [vmem:[%s1 + $0x4f0] sm:$0xff]
    %v190 = vld [vmem:[%s1 + $0x4f8] sm:$0xff]
    %v191 = vld [vmem:[%s1 + $0x500] sm:$0xff]
    %v192 = vld [vmem:[%s1 + $0x508] sm:$0xff]
    %v193 = vld [vmem:[%s1 + $0x510] sm:$0xff]
    %v194 = vld [vmem:[%s1 + $0x518] sm:$0xff]
    %v195 = vld [vmem:[%s1 + $0x520] sm:$0xff]
    %v196 = vld [vmem:[%s1 + $0x528] sm:$0xff]
    %v197 = vld [vmem:[%s1 + $0x530] sm:$0xff]
    %v198 = vld [vmem:[%s1 + $0x538] sm:$0xff]
    %v199 = vld [vmem:[%s1 + $0x540] sm:$0xff]
    %v200 = vld [vmem:[%s1 + $0x548] sm:$0xff]
    %v201 = vld [vmem:[%s1 + $0x550] sm:$0xff]
    %v202 = vld [vmem:[%s1 + $0x558] sm:$0xff]
    %v203 = vld [vmem:[%s1 + $0x560] sm:$0xff]
    %v204 = vld [vmem:[%s1 + $0x568] sm:$0xff]
    %v205 = vld [vmem:[%s1 + $0x570] sm:$0xff]
    %v206 = vld [vmem:[%s1 + $0x578] sm:$0xff]
    %v207 = vld [vmem:[%s1 + $0x580] sm:$0xff]
    %v208 = vld [vmem:[%s1 + $0x588] sm:$0xff]
    %v209 = vld [vmem:[%s1 + $0x590] sm:$0xff]
    %v210 = vld [vmem:[%s1 + $0x598] sm:$0xff]
    %v211 = vld [vmem:[%s1 + $0x5a0] sm:$0xff]
    %v212 = vld [vmem:[%s1 + $0x5a8] sm:$0xff]
    %v213 = vld [vmem:[%s1 + $0x5b0] sm:$0xff]
    %v214 = vld [vmem:[%s1 + $0x5b8] sm:$0xff]
    %v215 = vld [vmem:[%s1 + $0x5c0] sm:$0xff]
    %v216 = vld [vmem:[%s1 + $0x5c8] sm:$0xff]
    %v217 = vld [vmem:[%s1 + $0x5d0] sm:$0xff]
    %v218 = vld [vmem:[%s1 + $0x5d8] sm:$0xff]
    %v219 = vld [vmem:[%s1 + $0x5e0] sm:$0xff]
    %v220 = vld [vmem:[%s1 + $0x5e8] sm:$0xff]
    %v221 = vld [vmem:[%s1 + $0x5f0] sm:$0xff]
    %v222 = vld [vmem:[%s1 + $0x5f8] sm:$0xff]
    %v223 = vld [vmem:[%s1 + $0x600] sm:$0xff]
    %v224 = vld [vmem:[%s1 + $0x608] sm:$0xff]
    %v225 = vld [vmem:[%s1 + $0x610] sm:$0xff]
    %v226 = vld [vmem:[%s1 + $0x618] sm:$0xff]
    %v227 = vld [vmem:[%s1 + $0x620] sm:$0xff]
    %v228 = vld [vmem:[%s1 + $0x628] sm:$0xff]
    %v229 = vld [vmem:[%s1 + $0x630] sm:$0xff]
    %v230 = vld [vmem:[%s1 + $0x638] sm:$0xff]
    %v231 = vld [vmem:[%s1 + $0x640] sm:$0xff]
    %v232 = vld [vmem:[%s1 + $0x648] sm:$0xff]
    %v233 = vld [vmem:[%s1 + $0x650] sm:$0xff]
    %v234 = vld [vmem:[%s1 + $0x658] sm:$0xff]
    %v235 = vld [vmem:[%s1 + $0x660] sm:$0xff]
    %v236 = vld [vmem:[%s1 + $0x668] sm:$0xff]
    %v237 = vld [vmem:[%s1 + $0x670] sm:$0xff]
    %v238 = vld [vmem:[%s1 + $0x678] sm:$0xff]
    %v239 = vld [vmem:[%s1 + $0x680] sm:$0xff]
    %v240 = vld [vmem:[%s1 + $0x688] sm:$0xff]
    %v241 = vld [vmem:[%s1 + $0x690] sm:$0xff]
    %v242 = vld [vmem:[%s1 + $0x698] sm:$0xff]
    %v243 = vld [vmem:[%s1 + $0x6a0] sm:$0xff]
    %v244 = vld [vmem:[%s1 + $0x6a8] sm:$0xff]
    %v245 = vld [vmem:[%s1 + $0x6b0] sm:$0xff]
    %v246 = vld [vmem:[%s1 + $0x6b8] sm:$0xff]
    %v247 = vld [vmem:[%s1 + $0x6c0] sm:$0xff]
    %v248 = vld [vmem:[%s1 + $0x6c8] sm:$0xff]
    %v249 = vld [vmem:[%s1 + $0x6d0] sm:$0xff]
    %v250 = vld [vmem:[%s1 + $0x6d8] sm:$0xff]
    %v251 = vld [vmem:[%s1 + $0x6e0] sm:$0xff]
    %v252 = vld [vmem:[%s1 + $0x6e8] sm:$0xff]
    %v253 = vld [vmem:[%s1 + $0x6f0] sm:$0xff]
    %v254 = vld [vmem:[%s1 + $0x6f8] sm:$0xff]
    %v255 = vld [vmem:[%s1 + $0x700] sm:$0xff]
    %v256 = vld [vmem:[%s1 + $0x708] sm:$0xff]
    %v257 = vld [vmem:[%s1 + $0x710] sm:$0xff]
    %v258 = vld [vmem:[%s1 + $0x718] sm:$0xff]
    %v259 = vld [vmem:[%s1 + $0x720] sm:$0xff]
    %v260 = vld [vmem:[%s1 + $0x728] sm:$0xff]
    %v261 = vld [vmem:[%s1 + $0x730] sm:$0xff]
    %v262 = vld [vmem:[%s1 + $0x738] sm:$0xff]
    %v263 = vld [vmem:[%s1 + $0x740] sm:$0xff]
    %v264 = vld [vmem:[%s1 + $0x748] sm:$0xff]
    %v265 = vld [vmem:[%s1 + $0x750] sm:$0xff]
    %v266 = vld [vmem:[%s1 + $0x758] sm:$0xff]
    %v267 = vld [vmem:[%s1 + $0x760] sm:$0xff]
    %v268 = vld [vmem:[%s1 + $0x768] sm:$0xff]
    %v269 = vld [vmem:[%s1 + $0x770] sm:$0xff]
    %v270 = vld [vmem:[%s1 + $0x778] sm:$0xff]
    %v271 = vld [vmem:[%s1 + $0x780] sm:$0xff]
    %v272 = vld [vmem:[%s1 + $0x788] sm:$0xff]
    %v273 = vld [vmem:[%s1 + $0x790] sm:$0xff]
    %v274 = vld [vmem:[%s1 + $0x798] sm:$0xff]
    %v275 = vld [vmem:[%s1 + $0x7a0] sm:$0xff]
    %v276 = vld [vmem:[%s1 + $0x7a8] sm:$0xff]
    %v277 = vld [vmem:[%s1 + $0x7b0] sm:$0xff]
    %v278 = vld [vmem:[%s1 + $0x7b8] sm:$0xff]
    %v279 = vld [vmem:[%s1 + $0x7c0] sm:$0xff]
    %v280 = vld [vmem:[%s1 + $0x7c8] sm:$0xff]
    %v281 = vld [vmem:[%s1 + $0x7d0] sm:$0xff]
    %v282 = vld [vmem:[%s1 + $0x7d8] sm:$0xff]
    %v283 = vld [vmem:[%s1 + $0x7e0] sm:$0xff]
    %v284 = vld [vmem:[%s1 + $0x7e8] sm:$0xff]
    %v285 = vld [vmem:[%s1 + $0x7f0] sm:$0xff]
    %v286 = vld [vmem:[%s1 + $0x7f8] sm:$0xff]
    %v287 = vld [vmem:[%s2] sm:$0x1]
    %v289 = vlaneseq
    %v290 = vshrl.u32 %v289, 7
    %v291 = vsub.s32 0, %v290
    %v292 = vrot.slane %v287, %v291
    %294 = vmatprep.subr.mxu0 0.0
    %295 = vmatpush1.msra.mxu0 %v31
    %296 = vmatprep.subr.mxu0 0.0
    %297 = vmatpush1.msra.mxu0 %v32
    %298 = vmatprep.subr.mxu0 0.0
    %299 = vmatpush1.msra.mxu0 %v33
    %300 = vmatprep.subr.mxu0 0.0
    %301 = vmatpush1.msra.mxu0 %v34
    %302 = vmatprep.subr.mxu0 0.0
    %303 = vmatpush1.msra.mxu0 %v35
    %304 = vmatprep.subr.mxu0 0.0
    %305 = vmatpush1.msra.mxu0 %v36
    %306 = vmatprep.subr.mxu0 0.0
    %307 = vmatpush1.msra.mxu0 %v37
    %308 = vmatprep.subr.mxu0 0.0
    %309 = vmatpush1.msra.mxu0 %v38
    %310 = vmatprep.subr.mxu0 0.0
    %311 = vmatpush1.msra.mxu0 %v39
    %312 = vmatprep.subr.mxu0 0.0
    %313 = vmatpush1.msra.mxu0 %v40
    %314 = vmatprep.subr.mxu0 0.0
    %315 = vmatpush1.msra.mxu0 %v41
    %316 = vmatprep.subr.mxu0 0.0
    %317 = vmatpush1.msra.mxu0 %v42
    %318 = vmatprep.subr.mxu0 0.0
    %319 = vmatpush1.msra.mxu0 %v43
    %320 = vmatprep.subr.mxu0 0.0
    %321 = vmatpush1.msra.mxu0 %v44
    %322 = vmatprep.subr.mxu0 0.0
    %323 = vmatpush1.msra.mxu0 %v45
    %324 = vmatprep.subr.mxu0 0.0
    %325 = vmatpush1.msra.mxu0 %v46
    %326 = vmatprep.subr.mxu0 0.0
    %327 = vmatpush1.msra.mxu0 %v47
    %328 = vmatprep.subr.mxu0 0.0
    %329 = vmatpush1.msra.mxu0 %v48
    %330 = vmatprep.subr.mxu0 0.0
    %331 = vmatpush1.msra.mxu0 %v49
    %332 = vmatprep.subr.mxu0 0.0
    %333 = vmatpush1.msra.mxu0 %v50
    %334 = vmatprep.subr.mxu0 0.0
    %335 = vmatpush1.msra.mxu0 %v51
    %336 = vmatprep.subr.mxu0 0.0
    %337 = vmatpush1.msra.mxu0 %v52
    %338 = vmatprep.subr.mxu0 0.0
    %339 = vmatpush1.msra.mxu0 %v53
    %340 = vmatprep.subr.mxu0 0.0
    %341 = vmatpush1.msra.mxu0 %v54
    %342 = vmatprep.subr.mxu0 0.0
    %343 = vmatpush1.msra.mxu0 %v55
    %344 = vmatprep.subr.mxu0 0.0
    %345 = vmatpush1.msra.mxu0 %v56
    %346 = vmatprep.subr.mxu0 0.0
    %347 = vmatpush1.msra.mxu0 %v57
    %348 = vmatprep.subr.mxu0 0.0
    %349 = vmatpush1.msra.mxu0 %v58
    %350 = vmatprep.subr.mxu0 0.0
    %351 = vmatpush1.msra.mxu0 %v59
    %352 = vmatprep.subr.mxu0 0.0
    %353 = vmatpush1.msra.mxu0 %v60
    %354 = vmatprep.subr.mxu0 0.0
    %355 = vmatpush1.msra.mxu0 %v61
    %356 = vmatprep.subr.mxu0 0.0
    %357 = vmatpush1.msra.mxu0 %v62
    %358 = vmatprep.mubr.f32.mxu0 %v16
    %359 = vmatmul.mubr.f32.gmra.mrb[0].mxu0 %v15
    %v360 = vpop.f32.mrb[0].mxu0
    %v361 = vadd.f32 %v292, %v360
    %v362 = vpop.f32.mrb[0].mxu0
    %363 = vdwg.mxu0
    %364 = vmatprep.subr.mxu0 0.0
    %365 = vmatpush1.msra.mxu0 %v63
    %366 = vmatprep.subr.mxu0 0.0
    %367 = vmatpush1.msra.mxu0 %v64
    %368 = vmatprep.subr.mxu0 0.0
    %369 = vmatpush1.msra.mxu0 %v65
    %370 = vmatprep.subr.mxu0 0.0
    %371 = vmatpush1.msra.mxu0 %v66
    %372 = vmatprep.subr.mxu0 0.0
    %373 = vmatpush1.msra.mxu0 %v67
    %374 = vmatprep.subr.mxu0 0.0
    %375 = vmatpush1.msra.mxu0 %v68
    %376 = vmatprep.subr.mxu0 0.0
    %377 = vmatpush1.msra.mxu0 %v69
    %378 = vmatprep.subr.mxu0 0.0
    %379 = vmatpush1.msra.mxu0 %v70
    %380 = vmatprep.subr.mxu0 0.0
    %381 = vmatpush1.msra.mxu0 %v71
    %382 = vmatprep.subr.mxu0 0.0
    %383 = vmatpush1.msra.mxu0 %v72
    %384 = vmatprep.subr.mxu0 0.0
    %385 = vmatpush1.msra.mxu0 %v73
    %386 = vmatprep.subr.mxu0 0.0
    %387 = vmatpush1.msra.mxu0 %v74
    %388 = vmatprep.subr.mxu0 0.0
    %389 = vmatpush1.msra.mxu0 %v75
    %390 = vmatprep.subr.mxu0 0.0
    %391 = vmatpush1.msra.mxu0 %v76
    %392 = vmatprep.subr.mxu0 0.0
    %393 = vmatpush1.msra.mxu0 %v77
    %394 = vmatprep.subr.mxu0 0.0
    %395 = vmatpush1.msra.mxu0 %v78
    %396 = vmatprep.subr.mxu0 0.0
    %397 = vmatpush1.msra.mxu0 %v79
    %398 = vmatprep.subr.mxu0 0.0
    %399 = vmatpush1.msra.mxu0 %v80
    %400 = vmatprep.subr.mxu0 0.0
    %401 = vmatpush1.msra.mxu0 %v81
    %402 = vmatprep.subr.mxu0 0.0
    %403 = vmatpush1.msra.mxu0 %v82
    %404 = vmatprep.subr.mxu0 0.0
    %405 = vmatpush1.msra.mxu0 %v83
    %406 = vmatprep.subr.mxu0 0.0
    %407 = vmatpush1.msra.mxu0 %v84
    %408 = vmatprep.subr.mxu0 0.0
    %409 = vmatpush1.msra.mxu0 %v85
    %410 = vmatprep.subr.mxu0 0.0
    %411 = vmatpush1.msra.mxu0 %v86
    %412 = vmatprep.subr.mxu0 0.0
    %413 = vmatpush1.msra.mxu0 %v87
    %414 = vmatprep.subr.mxu0 0.0
    %415 = vmatpush1.msra.mxu0 %v88
    %416 = vmatprep.subr.mxu0 0.0
    %417 = vmatpush1.msra.mxu0 %v89
    %418 = vmatprep.subr.mxu0 0.0
    %419 = vmatpush1.msra.mxu0 %v90
    %420 = vmatprep.subr.mxu0 0.0
    %421 = vmatpush1.msra.mxu0 %v91
    %422 = vmatprep.subr.mxu0 0.0
    %423 = vmatpush1.msra.mxu0 %v92
    %424 = vmatprep.subr.mxu0 0.0
    %425 = vmatpush1.msra.mxu0 %v93
    %426 = vmatprep.subr.mxu0 0.0
    %427 = vmatpush1.msra.mxu0 %v94
    %428 = vmatprep.mubr.f32.mxu0 %v18
    %429 = vmatmul.mubr.f32.gmra.mrb[0].mxu0 %v17
    %v430 = vpop.f32.mrb[0].mxu0
    %v431 = vadd.f32 %v361, %v430
    %v432 = vpop.f32.mrb[0].mxu0
    %433 = vdwg.mxu0
    %434 = vmatprep.subr.mxu0 0.0
    %435 = vmatpush1.msra.mxu0 %v95
    %436 = vmatprep.subr.mxu0 0.0
    %437 = vmatpush1.msra.mxu0 %v96
    %438 = vmatprep.subr.mxu0 0.0
    %439 = vmatpush1.msra.mxu0 %v97
    %440 = vmatprep.subr.mxu0 0.0
    %441 = vmatpush1.msra.mxu0 %v98
    %442 = vmatprep.subr.mxu0 0.0
    %443 = vmatpush1.msra.mxu0 %v99
    %444 = vmatprep.subr.mxu0 0.0
    %445 = vmatpush1.msra.mxu0 %v100
    %446 = vmatprep.subr.mxu0 0.0
    %447 = vmatpush1.msra.mxu0 %v101
    %448 = vmatprep.subr.mxu0 0.0
    %449 = vmatpush1.msra.mxu0 %v102
    %450 = vmatprep.subr.mxu0 0.0
    %451 = vmatpush1.msra.mxu0 %v103
    %452 = vmatprep.subr.mxu0 0.0
    %453 = vmatpush1.msra.mxu0 %v104
    %454 = vmatprep.subr.mxu0 0.0
    %455 = vmatpush1.msra.mxu0 %v105
    %456 = vmatprep.subr.mxu0 0.0
    %457 = vmatpush1.msra.mxu0 %v106
    %458 = vmatprep.subr.mxu0 0.0
    %459 = vmatpush1.msra.mxu0 %v107
    %460 = vmatprep.subr.mxu0 0.0
    %461 = vmatpush1.msra.mxu0 %v108
    %462 = vmatprep.subr.mxu0 0.0
    %463 = vmatpush1.msra.mxu0 %v109
    %464 = vmatprep.subr.mxu0 0.0
    %465 = vmatpush1.msra.mxu0 %v110
    %466 = vmatprep.subr.mxu0 0.0
    %467 = vmatpush1.msra.mxu0 %v111
    %468 = vmatprep.subr.mxu0 0.0
    %469 = vmatpush1.msra.mxu0 %v112
    %470 = vmatprep.subr.mxu0 0.0
    %471 = vmatpush1.msra.mxu0 %v113
    %472 = vmatprep.subr.mxu0 0.0
    %473 = vmatpush1.msra.mxu0 %v114
    %474 = vmatprep.subr.mxu0 0.0
    %475 = vmatpush1.msra.mxu0 %v115
    %476 = vmatprep.subr.mxu0 0.0
    %477 = vmatpush1.msra.mxu0 %v116
    %478 = vmatprep.subr.mxu0 0.0
    %479 = vmatpush1.msra.mxu0 %v117
    %480 = vmatprep.subr.mxu0 0.0
    %481 = vmatpush1.msra.mxu0 %v118
    %482 = vmatprep.subr.mxu0 0.0
    %483 = vmatpush1.msra.mxu0 %v119
    %484 = vmatprep.subr.mxu0 0.0
    %485 = vmatpush1.msra.mxu0 %v120
    %486 = vmatprep.subr.mxu0 0.0
    %487 = vmatpush1.msra.mxu0 %v121
    %488 = vmatprep.subr.mxu0 0.0
    %489 = vmatpush1.msra.mxu0 %v122
    %490 = vmatprep.subr.mxu0 0.0
    %491 = vmatpush1.msra.mxu0 %v123
    %492 = vmatprep.subr.mxu0 0.0
    %493 = vmatpush1.msra.mxu0 %v124
    %494 = vmatprep.subr.mxu0 0.0
    %495 = vmatpush1.msra.mxu0 %v125
    %496 = vmatprep.subr.mxu0 0.0
    %497 = vmatpush1.msra.mxu0 %v126
    %498 = vmatprep.mubr.f32.mxu0 %v20
    %499 = vmatmul.mubr.f32.gmra.mrb[0].mxu0 %v19
    %v500 = vpop.f32.mrb[0].mxu0
    %v501 = vadd.f32 %v431, %v500
    %v502 = vpop.f32.mrb[0].mxu0
    %503 = vdwg.mxu0
    %504 = vmatprep.subr.mxu0 0.0
    %505 = vmatpush1.msra.mxu0 %v127
    %506 = vmatprep.subr.mxu0 0.0
    %507 = vmatpush1.msra.mxu0 %v128
    %508 = vmatprep.subr.mxu0 0.0
    %509 = vmatpush1.msra.mxu0 %v129
    %510 = vmatprep.subr.mxu0 0.0
    %511 = vmatpush1.msra.mxu0 %v130
    %512 = vmatprep.subr.mxu0 0.0
    %513 = vmatpush1.msra.mxu0 %v131
    %514 = vmatprep.subr.mxu0 0.0
    %515 = vmatpush1.msra.mxu0 %v132
    %516 = vmatprep.subr.mxu0 0.0
    %517 = vmatpush1.msra.mxu0 %v133
    %518 = vmatprep.subr.mxu0 0.0
    %519 = vmatpush1.msra.mxu0 %v134
    %520 = vmatprep.subr.mxu0 0.0
    %521 = vmatpush1.msra.mxu0 %v135
    %522 = vmatprep.subr.mxu0 0.0
    %523 = vmatpush1.msra.mxu0 %v136
    %524 = vmatprep.subr.mxu0 0.0
    %525 = vmatpush1.msra.mxu0 %v137
    %526 = vmatprep.subr.mxu0 0.0
    %527 = vmatpush1.msra.mxu0 %v138
    %528 = vmatprep.subr.mxu0 0.0
    %529 = vmatpush1.msra.mxu0 %v139
    %530 = vmatprep.subr.mxu0 0.0
    %531 = vmatpush1.msra.mxu0 %v140
    %532 = vmatprep.subr.mxu0 0.0
    %533 = vmatpush1.msra.mxu0 %v141
    %534 = vmatprep.subr.mxu0 0.0
    %535 = vmatpush1.msra.mxu0 %v142
    %536 = vmatprep.subr.mxu0 0.0
    %537 = vmatpush1.msra.mxu0 %v143
    %538 = vmatprep.subr.mxu0 0.0
    %539 = vmatpush1.msra.mxu0 %v144
    %540 = vmatprep.subr.mxu0 0.0
    %541 = vmatpush1.msra.mxu0 %v145
    %542 = vmatprep.subr.mxu0 0.0
    %543 = vmatpush1.msra.mxu0 %v146
    %544 = vmatprep.subr.mxu0 0.0
    %545 = vmatpush1.msra.mxu0 %v147
    %546 = vmatprep.subr.mxu0 0.0
    %547 = vmatpush1.msra.mxu0 %v148
    %548 = vmatprep.subr.mxu0 0.0
    %549 = vmatpush1.msra.mxu0 %v149
    %550 = vmatprep.subr.mxu0 0.0
    %551 = vmatpush1.msra.mxu0 %v150
    %552 = vmatprep.subr.mxu0 0.0
    %553 = vmatpush1.msra.mxu0 %v151
    %554 = vmatprep.subr.mxu0 0.0
    %555 = vmatpush1.msra.mxu0 %v152
    %556 = vmatprep.subr.mxu0 0.0
    %557 = vmatpush1.msra.mxu0 %v153
    %558 = vmatprep.subr.mxu0 0.0
    %559 = vmatpush1.msra.mxu0 %v154
    %560 = vmatprep.subr.mxu0 0.0
    %561 = vmatpush1.msra.mxu0 %v155
    %562 = vmatprep.subr.mxu0 0.0
    %563 = vmatpush1.msra.mxu0 %v156
    %564 = vmatprep.subr.mxu0 0.0
    %565 = vmatpush1.msra.mxu0 %v157
    %566 = vmatprep.subr.mxu0 0.0
    %567 = vmatpush1.msra.mxu0 %v158
    %568 = vmatprep.mubr.f32.mxu0 %v22
    %569 = vmatmul.mubr.f32.gmra.mrb[0].mxu0 %v21
    %v570 = vpop.f32.mrb[0].mxu0
    %v571 = vadd.f32 %v501, %v570
    %v572 = vpop.f32.mrb[0].mxu0
    %573 = vdwg.mxu0
    %574 = vmatprep.subr.mxu0 0.0
    %575 = vmatpush1.msra.mxu0 %v159
    %576 = vmatprep.subr.mxu0 0.0
    %577 = vmatpush1.msra.mxu0 %v160
    %578 = vmatprep.subr.mxu0 0.0
    %579 = vmatpush1.msra.mxu0 %v161
    %580 = vmatprep.subr.mxu0 0.0
    %581 = vmatpush1.msra.mxu0 %v162
    %582 = vmatprep.subr.mxu0 0.0
    %583 = vmatpush1.msra.mxu0 %v163
    %584 = vmatprep.subr.mxu0 0.0
    %585 = vmatpush1.msra.mxu0 %v164
    %586 = vmatprep.subr.mxu0 0.0
    %587 = vmatpush1.msra.mxu0 %v165
    %588 = vmatprep.subr.mxu0 0.0
    %589 = vmatpush1.msra.mxu0 %v166
    %590 = vmatprep.subr.mxu0 0.0
    %591 = vmatpush1.msra.mxu0 %v167
    %592 = vmatprep.subr.mxu0 0.0
    %593 = vmatpush1.msra.mxu0 %v168
    %594 = vmatprep.subr.mxu0 0.0
    %595 = vmatpush1.msra.mxu0 %v169
    %596 = vmatprep.subr.mxu0 0.0
    %597 = vmatpush1.msra.mxu0 %v170
    %598 = vmatprep.subr.mxu0 0.0
    %599 = vmatpush1.msra.mxu0 %v171
    %600 = vmatprep.subr.mxu0 0.0
    %601 = vmatpush1.msra.mxu0 %v172
    %602 = vmatprep.subr.mxu0 0.0
    %603 = vmatpush1.msra.mxu0 %v173
    %604 = vmatprep.subr.mxu0 0.0
    %605 = vmatpush1.msra.mxu0 %v174
    %606 = vmatprep.subr.mxu0 0.0
    %607 = vmatpush1.msra.mxu0 %v175
    %608 = vmatprep.subr.mxu0 0.0
    %609 = vmatpush1.msra.mxu0 %v176
    %610 = vmatprep.subr.mxu0 0.0
    %611 = vmatpush1.msra.mxu0 %v177
    %612 = vmatprep.subr.mxu0 0.0
    %613 = vmatpush1.msra.mxu0 %v178
    %614 = vmatprep.subr.mxu0 0.0
    %615 = vmatpush1.msra.mxu0 %v179
    %616 = vmatprep.subr.mxu0 0.0
    %617 = vmatpush1.msra.mxu0 %v180
    %618 = vmatprep.subr.mxu0 0.0
    %619 = vmatpush1.msra.mxu0 %v181
    %620 = vmatprep.subr.mxu0 0.0
    %621 = vmatpush1.msra.mxu0 %v182
    %622 = vmatprep.subr.mxu0 0.0
    %623 = vmatpush1.msra.mxu0 %v183
    %624 = vmatprep.subr.mxu0 0.0
    %625 = vmatpush1.msra.mxu0 %v184
    %626 = vmatprep.subr.mxu0 0.0
    %627 = vmatpush1.msra.mxu0 %v185
    %628 = vmatprep.subr.mxu0 0.0
    %629 = vmatpush1.msra.mxu0 %v186
    %630 = vmatprep.subr.mxu0 0.0
    %631 = vmatpush1.msra.mxu0 %v187
    %632 = vmatprep.subr.mxu0 0.0
    %633 = vmatpush1.msra.mxu0 %v188
    %634 = vmatprep.subr.mxu0 0.0
    %635 = vmatpush1.msra.mxu0 %v189
    %636 = vmatprep.subr.mxu0 0.0
    %637 = vmatpush1.msra.mxu0 %v190
    %638 = vmatprep.mubr.f32.mxu0 %v24
    %639 = vmatmul.mubr.f32.gmra.mrb[0].mxu0 %v23
    %v640 = vpop.f32.mrb[0].mxu0
    %v641 = vadd.f32 %v571, %v640
    %v642 = vpop.f32.mrb[0].mxu0
    %643 = vdwg.mxu0
    %644 = vmatprep.subr.mxu0 0.0
    %645 = vmatpush1.msra.mxu0 %v191
    %646 = vmatprep.subr.mxu0 0.0
    %647 = vmatpush1.msra.mxu0 %v192
    %648 = vmatprep.subr.mxu0 0.0
    %649 = vmatpush1.msra.mxu0 %v193
    %650 = vmatprep.subr.mxu0 0.0
    %651 = vmatpush1.msra.mxu0 %v194
    %652 = vmatprep.subr.mxu0 0.0
    %653 = vmatpush1.msra.mxu0 %v195
    %654 = vmatprep.subr.mxu0 0.0
    %655 = vmatpush1.msra.mxu0 %v196
    %656 = vmatprep.subr.mxu0 0.0
    %657 = vmatpush1.msra.mxu0 %v197
    %658 = vmatprep.subr.mxu0 0.0
    %659 = vmatpush1.msra.mxu0 %v198
    %660 = vmatprep.subr.mxu0 0.0
    %661 = vmatpush1.msra.mxu0 %v199
    %662 = vmatprep.subr.mxu0 0.0
    %663 = vmatpush1.msra.mxu0 %v200
    %664 = vmatprep.subr.mxu0 0.0
    %665 = vmatpush1.msra.mxu0 %v201
    %666 = vmatprep.subr.mxu0 0.0
    %667 = vmatpush1.msra.mxu0 %v202
    %668 = vmatprep.subr.mxu0 0.0
    %669 = vmatpush1.msra.mxu0 %v203
    %670 = vmatprep.subr.mxu0 0.0
    %671 = vmatpush1.msra.mxu0 %v204
    %672 = vmatprep.subr.mxu0 0.0
    %673 = vmatpush1.msra.mxu0 %v205
    %674 = vmatprep.subr.mxu0 0.0
    %675 = vmatpush1.msra.mxu0 %v206
    %676 = vmatprep.subr.mxu0 0.0
    %677 = vmatpush1.msra.mxu0 %v207
    %678 = vmatprep.subr.mxu0 0.0
    %679 = vmatpush1.msra.mxu0 %v208
    %680 = vmatprep.subr.mxu0 0.0
    %681 = vmatpush1.msra.mxu0 %v209
    %682 = vmatprep.subr.mxu0 0.0
    %683 = vmatpush1.msra.mxu0 %v210
    %684 = vmatprep.subr.mxu0 0.0
    %685 = vmatpush1.msra.mxu0 %v211
    %686 = vmatprep.subr.mxu0 0.0
    %687 = vmatpush1.msra.mxu0 %v212
    %688 = vmatprep.subr.mxu0 0.0
    %689 = vmatpush1.msra.mxu0 %v213
    %690 = vmatprep.subr.mxu0 0.0
    %691 = vmatpush1.msra.mxu0 %v214
    %692 = vmatprep.subr.mxu0 0.0
    %693 = vmatpush1.msra.mxu0 %v215
    %694 = vmatprep.subr.mxu0 0.0
    %695 = vmatpush1.msra.mxu0 %v216
    %696 = vmatprep.subr.mxu0 0.0
    %697 = vmatpush1.msra.mxu0 %v217
    %698 = vmatprep.subr.mxu0 0.0
    %699 = vmatpush1.msra.mxu0 %v218
    %700 = vmatprep.subr.mxu0 0.0
    %701 = vmatpush1.msra.mxu0 %v219
    %702 = vmatprep.subr.mxu0 0.0
    %703 = vmatpush1.msra.mxu0 %v220
    %704 = vmatprep.subr.mxu0 0.0
    %705 = vmatpush1.msra.mxu0 %v221
    %706 = vmatprep.subr.mxu0 0.0
    %707 = vmatpush1.msra.mxu0 %v222
    %708 = vmatprep.mubr.f32.mxu0 %v26
    %709 = vmatmul.mubr.f32.gmra.mrb[0].mxu0 %v25
    %v710 = vpop.f32.mrb[0].mxu0
    %v711 = vadd.f32 %v641, %v710
    %v712 = vpop.f32.mrb[0].mxu0
    %713 = vdwg.mxu0
    %714 = vmatprep.subr.mxu0 0.0
    %715 = vmatpush1.msra.mxu0 %v223
    %716 = vmatprep.subr.mxu0 0.0
    %717 = vmatpush1.msra.mxu0 %v224
    %718 = vmatprep.subr.mxu0 0.0
    %719 = vmatpush1.msra.mxu0 %v225
    %720 = vmatprep.subr.mxu0 0.0
    %721 = vmatpush1.msra.mxu0 %v226
    %722 = vmatprep.subr.mxu0 0.0
    %723 = vmatpush1.msra.mxu0 %v227
    %724 = vmatprep.subr.mxu0 0.0
    %725 = vmatpush1.msra.mxu0 %v228
    %726 = vmatprep.subr.mxu0 0.0
    %727 = vmatpush1.msra.mxu0 %v229
    %728 = vmatprep.subr.mxu0 0.0
    %729 = vmatpush1.msra.mxu0 %v230
    %730 = vmatprep.subr.mxu0 0.0
    %731 = vmatpush1.msra.mxu0 %v231
    %732 = vmatprep.subr.mxu0 0.0
    %733 = vmatpush1.msra.mxu0 %v232
    %734 = vmatprep.subr.mxu0 0.0
    %735 = vmatpush1.msra.mxu0 %v233
    %736 = vmatprep.subr.mxu0 0.0
    %737 = vmatpush1.msra.mxu0 %v234
    %738 = vmatprep.subr.mxu0 0.0
    %739 = vmatpush1.msra.mxu0 %v235
    %740 = vmatprep.subr.mxu0 0.0
    %741 = vmatpush1.msra.mxu0 %v236
    %742 = vmatprep.subr.mxu0 0.0
    %743 = vmatpush1.msra.mxu0 %v237
    %744 = vmatprep.subr.mxu0 0.0
    %745 = vmatpush1.msra.mxu0 %v238
    %746 = vmatprep.subr.mxu0 0.0
    %747 = vmatpush1.msra.mxu0 %v239
    %748 = vmatprep.subr.mxu0 0.0
    %749 = vmatpush1.msra.mxu0 %v240
    %750 = vmatprep.subr.mxu0 0.0
    %751 = vmatpush1.msra.mxu0 %v241
    %752 = vmatprep.subr.mxu0 0.0
    %753 = vmatpush1.msra.mxu0 %v242
    %754 = vmatprep.subr.mxu0 0.0
    %755 = vmatpush1.msra.mxu0 %v243
    %756 = vmatprep.subr.mxu0 0.0
    %757 = vmatpush1.msra.mxu0 %v244
    %758 = vmatprep.subr.mxu0 0.0
    %759 = vmatpush1.msra.mxu0 %v245
    %760 = vmatprep.subr.mxu0 0.0
    %761 = vmatpush1.msra.mxu0 %v246
    %762 = vmatprep.subr.mxu0 0.0
    %763 = vmatpush1.msra.mxu0 %v247
    %764 = vmatprep.subr.mxu0 0.0
    %765 = vmatpush1.msra.mxu0 %v248
    %766 = vmatprep.subr.mxu0 0.0
    %767 = vmatpush1.msra.mxu0 %v249
    %768 = vmatprep.subr.mxu0 0.0
    %769 = vmatpush1.msra.mxu0 %v250
    %770 = vmatprep.subr.mxu0 0.0
    %771 = vmatpush1.msra.mxu0 %v251
    %772 = vmatprep.subr.mxu0 0.0
    %773 = vmatpush1.msra.mxu0 %v252
    %774 = vmatprep.subr.mxu0 0.0
    %775 = vmatpush1.msra.mxu0 %v253
    %776 = vmatprep.subr.mxu0 0.0
    %777 = vmatpush1.msra.mxu0 %v254
    %778 = vmatprep.mubr.f32.mxu0 %v28
    %779 = vmatmul.mubr.f32.gmra.mrb[0].mxu0 %v27
    %v780 = vpop.f32.mrb[0].mxu0
    %v781 = vadd.f32 %v711, %v780
    %v782 = vpop.f32.mrb[0].mxu0
    %783 = vdwg.mxu0
    %784 = vmatprep.subr.mxu0 0.0
    %785 = vmatpush1.msra.mxu0 %v255
    %786 = vmatprep.subr.mxu0 0.0
    %787 = vmatpush1.msra.mxu0 %v256
    %788 = vmatprep.subr.mxu0 0.0
    %789 = vmatpush1.msra.mxu0 %v257
    %790 = vmatprep.subr.mxu0 0.0
    %791 = vmatpush1.msra.mxu0 %v258
    %792 = vmatprep.subr.mxu0 0.0
    %793 = vmatpush1.msra.mxu0 %v259
    %794 = vmatprep.subr.mxu0 0.0
    %795 = vmatpush1.msra.mxu0 %v260
    %796 = vmatprep.subr.mxu0 0.0
    %797 = vmatpush1.msra.mxu0 %v261
    %798 = vmatprep.subr.mxu0 0.0
    %799 = vmatpush1.msra.mxu0 %v262
    %800 = vmatprep.subr.mxu0 0.0
    %801 = vmatpush1.msra.mxu0 %v263
    %802 = vmatprep.subr.mxu0 0.0
    %803 = vmatpush1.msra.mxu0 %v264
    %804 = vmatprep.subr.mxu0 0.0
    %805 = vmatpush1.msra.mxu0 %v265
    %806 = vmatprep.subr.mxu0 0.0
    %807 = vmatpush1.msra.mxu0 %v266
    %808 = vmatprep.subr.mxu0 0.0
    %809 = vmatpush1.msra.mxu0 %v267
    %810 = vmatprep.subr.mxu0 0.0
    %811 = vmatpush1.msra.mxu0 %v268
    %812 = vmatprep.subr.mxu0 0.0
    %813 = vmatpush1.msra.mxu0 %v269
    %814 = vmatprep.subr.mxu0 0.0
    %815 = vmatpush1.msra.mxu0 %v270
    %816 = vmatprep.subr.mxu0 0.0
    %817 = vmatpush1.msra.mxu0 %v271
    %818 = vmatprep.subr.mxu0 0.0
    %819 = vmatpush1.msra.mxu0 %v272
    %820 = vmatprep.subr.mxu0 0.0
    %821 = vmatpush1.msra.mxu0 %v273
    %822 = vmatprep.subr.mxu0 0.0
    %823 = vmatpush1.msra.mxu0 %v274
    %824 = vmatprep.subr.mxu0 0.0
    %825 = vmatpush1.msra.mxu0 %v275
    %826 = vmatprep.subr.mxu0 0.0
    %827 = vmatpush1.msra.mxu0 %v276
    %828 = vmatprep.subr.mxu0 0.0
    %829 = vmatpush1.msra.mxu0 %v277
    %830 = vmatprep.subr.mxu0 0.0
    %831 = vmatpush1.msra.mxu0 %v278
    %832 = vmatprep.subr.mxu0 0.0
    %833 = vmatpush1.msra.mxu0 %v279
    %834 = vmatprep.subr.mxu0 0.0
    %835 = vmatpush1.msra.mxu0 %v280
    %836 = vmatprep.subr.mxu0 0.0
    %837 = vmatpush1.msra.mxu0 %v281
    %838 = vmatprep.subr.mxu0 0.0
    %839 = vmatpush1.msra.mxu0 %v282
    %840 = vmatprep.subr.mxu0 0.0
    %841 = vmatpush1.msra.mxu0 %v283
    %842 = vmatprep.subr.mxu0 0.0
    %843 = vmatpush1.msra.mxu0 %v284
    %844 = vmatprep.subr.mxu0 0.0
    %845 = vmatpush1.msra.mxu0 %v285
    %846 = vmatprep.subr.mxu0 0.0
    %847 = vmatpush1.msra.mxu0 %v286
    %848 = vmatprep.mubr.f32.mxu0 %v30
    %849 = vmatmul.mubr.f32.gmra.mrb[0].mxu0 %v29
    %v850 = vpop.f32.mrb[0].mxu0
    %v851 = vadd.f32 %v781, %v850
    %v852 = vpop.f32.mrb[0].mxu0
    %853 = vdwg.mxu0
    %vm854 = vcmask 80896
    %855 = vst.msk [vmem:[#allocation2] sm:$0xff] %vm854, %v851
    // Predicated region
    $region14: #{cnn2_forward.5} parent=1 // pred_check
      _
    $region15: #{cnn2_forward.5} parent=1 // pred_check_branch
      %857 = sbr.rel (0) target = $region17
    $region16: #{cnn2_forward.5} parent=1 // pred_region
      %s859 = ssub.s32 128, 128
      %860 = vsyncadd [#allocation3], %s859
      %s862 = sshll.u32 [#allocation2], 4
      %s863 = int_to_ptr.vmem [resolvable:$true] %s862
      %865 = dma.vmem_to_hbm [thread:$0]  %s863, 128, %s3, [#allocation3]
    $region17: #{cnn2_forward.5} parent=1 // pred_fallthru
      _
    // Predicated region
    $region18: #{cnn2_forward.5} parent=1 // pred_check
      _
    $region19: #{cnn2_forward.5} parent=1 // pred_check_branch
      %867 = sbr.rel (0) target = $region21
    $region20: #{cnn2_forward.5} parent=1 // pred_region
      %868 = dma.done [#allocation3], 128
    $region21: #{cnn2_forward.5} parent=1 // pred_fallthru
      _
    %869 = vsyncpa [#allocation3], 1

</llo_original>
